<compile_context>
chip_gen: v6e
topology: v6e:2x2x1
jax: 0.10.0
libtpu: 0.0.40
codegen_flags: <defaults>
</compile_context>

<pallas_src>
import functools

import numpy as np
import jax
import jax.numpy as jnp
from jax.experimental import pallas as pl
from jax.experimental.pallas import tpu as pltpu

CIN = 3            # input channels
C1 = 16            # conv1 out channels
C2 = 32            # conv2 out channels
K1 = 9 * CIN       # conv1 im2col depth  (27)
K2 = 9 * C1        # conv2 im2col depth  (144)
TB = 8             # images per grid step (batch tile)
SLOT_CHUNK = 16    # conv1 patch rows per dot (bounds live vregs)


# --------------------------------------------------------------------------- #
#                    static layout plan for the host im2col                    #
# --------------------------------------------------------------------------- #
def _plan(H, W):
    H1 = (H - 3) // 2 + 1
    W1 = (W - 3) // 2 + 1
    Hp, Wp = H1 // 2, W1 // 2
    H2 = (Hp - 3) // 2 + 1
    W2 = (Wp - 3) // 2 + 1
    assert H2 >= 1 and W2 >= 1, "input too small for the conv stack"
    PU, PV = H2 + 1, W2 + 1                      # parity-plane extent conv2 reads
    nslot = 4 * PU * PV
    NSLOT = ((nslot + SLOT_CHUNK - 1) // SLOT_CHUNK) * SLOT_CHUNK
    NP2 = ((H2 * W2 + 15) // 16) * 16            # conv2 im2col rows (padded)

    R = np.zeros((4, NSLOT, K1), np.int32)
    C = np.zeros((4, NSLOT, K1), np.int32)
    CH = np.tile(np.arange(CIN, dtype=np.int32), 9)
    V = np.zeros((4, NSLOT, 1), np.float32)
    for a in range(2):                           # pool-window row offset
        for b in range(2):                       # pool-window col offset
            cls = a * 2 + b
            for rho in range(2):                 # pooled-row parity
                for sig in range(2):             # pooled-col parity
                    pln = rho * 2 + sig
                    for u in range(PU):
                        for v in range(PV):
                            s = pln * PU * PV + u * PV + v
                            pi, pj = 2 * u + rho, 2 * v + sig
                            if pi >= Hp or pj >= Wp:
                                continue         # padded slot, never read
                            V[cls, s, 0] = 1.0
                            i, j = 2 * pi + a, 2 * pj + b    # conv1 output pos
                            for ih in range(3):
                                for iw in range(3):
                                    k = ih * 3 + iw
                                    R[cls, s, k * CIN:(k + 1) * CIN] = 2 * i + ih
                                    C[cls, s, k * CIN:(k + 1) * CIN] = 2 * j + iw
    return dict(H1=H1, W1=W1, Hp=Hp, Wp=Wp, H2=H2, W2=W2, PU=PU, PV=PV,
                NSLOT=NSLOT, NP2=NP2, R=R, C=C, CH=CH, V=V)


# --------------------------------------------------------------------------- #
#                               fused kernel                                   #
# --------------------------------------------------------------------------- #
def _fused_forward_kernel(p1_ref, task_ref, w1_ref, b1_ref, w2_ref, b2_ref,
                          wf1_ref, bf1_ref, wf2_ref, bf2_ref,
                          out_ref, pooled_scr, p2_scr, y2_scr, fc_scr,
                          *, NSLOT, NP2, H2, W2, PU, PV, NT, FLAT):
    f32 = jnp.float32
    bf16 = jnp.bfloat16

    b1 = b1_ref[...]                     # (1, C1)  f32
    b2 = b2_ref[...]                     # (1, C2)  f32

    # ------------- conv1 (3x3, s=2) + ReLU + 2x2 maxpool ------------------- #
    # taps fused into K=27; the maxpool is an elementwise max over the 4
    # pool-window classes (host ordered the im2col rows accordingly).
    for cs in range(0, NSLOT, SLOT_CHUNK):
        pooled = None
        for cls in range(4):
            lhs = p1_ref[:, cls, cs:cs + SLOT_CHUNK, :]       # (TB, 16, K1) bf16
            lhs = lhs.reshape(TB * SLOT_CHUNK, K1)
            y = jnp.dot(lhs, w1_ref[...], preferred_element_type=f32)
            y = jnp.maximum(y + b1, 0.0)                      # (TB*16, C1)
            pooled = y if pooled is None else jnp.maximum(pooled, y)
        pooled_scr[:, cs:cs + SLOT_CHUNK, :] = (
            pooled.reshape(TB, SLOT_CHUNK, C1).astype(bf16))

    # --------- conv2 (3x3, s=2): im2col from contiguous plane slices ------- #
    p2_scr[...] = jnp.zeros(p2_scr.shape, p2_scr.dtype)
    for ih in range(3):
        for iw in range(3):
            t9 = ih * 3 + iw
            pln = (ih % 2) * 2 + (iw % 2)
            u0, v0 = ih // 2, iw // 2
            for oi in range(H2):
                base = pln * (PU * PV) + (u0 + oi) * PV + v0
                slab = pooled_scr[:, base:base + W2, :]        # (TB, W2, C1)
                p2_scr[:, oi * W2:(oi + 1) * W2,
                       t9 * C1:(t9 + 1) * C1] = slab

    y2 = jnp.dot(p2_scr[...].reshape(TB * NP2, K2), w2_ref[...],
                 preferred_element_type=f32)                   # (TB*NP2, C2)
    y2 = jnp.maximum(y2 + b2, 0.0)
    y2_scr[...] = y2.reshape(TB, NP2, C2).astype(bf16)

    # ------ flatten (NCHW order folded into fc1 weight) + task concat ------ #
    for k in range(H2 * W2):
        fc_scr[:, k * C2:(k + 1) * C2] = y2_scr[:, k, :]
    fc_scr[:, FLAT:FLAT + NT] = task_ref[...].astype(bf16)

    # -------------------- fc1 + ReLU + fc2 (lane-dense out) ---------------- #
    h = jnp.dot(fc_scr[...], wf1_ref[...], preferred_element_type=f32)
    h = jnp.maximum(h + bf1_ref[...], 0.0)                     # (TB, 128)
    out = jnp.dot(h.astype(bf16), wf2_ref[...], preferred_element_type=f32)
    out_ref[...] = out + bf2_ref[...]                          # (TB, 128)


# --------------------------------------------------------------------------- #
#                            host-side wrappers                                #
# --------------------------------------------------------------------------- #
@jax.jit
def task_conditioned_forward(kp, x_nchw, task_onehot):
    """x_nchw: [B,3,H,W] f32, task_onehot: [B,num_tasks] f32 -> [B,2] f32."""
    B, Cin, H, W = x_nchw.shape
    assert Cin == CIN
    NT = task_onehot.shape[1]
    plan = _plan(H, W)
    H2, W2 = plan["H2"], plan["W2"]
    NSLOT, NP2 = plan["NSLOT"], plan["NP2"]
    PU, PV = plan["PU"], plan["PV"]
    FLAT = H2 * W2 * C2
    assert FLAT + NT == kp["wf1"].shape[0]

    Bp = ((B + TB - 1) // TB) * TB

    # Layout-only host prep: im2col gather with patch rows ordered
    # (pool-class, parity-plane, u, v) so pooling / conv2 are trivial in-kernel.
    x = jnp.transpose(x_nchw, (0, 2, 3, 1)).astype(jnp.float32)   # NHWC
    patches = x[:, plan["R"], plan["C"], plan["CH"]]              # (B,4,NSLOT,27)
    patches = (patches * plan["V"]).astype(jnp.bfloat16)
    patches = jnp.pad(patches, ((0, Bp - B), (0, 0), (0, 0), (0, 0)))
    task = jnp.pad(task_onehot.astype(jnp.float32), ((0, Bp - B), (0, 0)))

    kernel = functools.partial(
        _fused_forward_kernel, NSLOT=NSLOT, NP2=NP2, H2=H2, W2=W2,
        PU=PU, PV=PV, NT=NT, FLAT=FLAT)

    out = pl.pallas_call(
        kernel,
        out_shape=jax.ShapeDtypeStruct((Bp, 128), jnp.float32),
        grid=(Bp // TB,),
        in_specs=[
            pl.BlockSpec((TB, 4, NSLOT, K1), lambda b: (b, 0, 0, 0)),
            pl.BlockSpec((TB, NT), lambda b: (b, 0)),
            pl.BlockSpec(kp["w1"].shape, lambda b: (0, 0)),
            pl.BlockSpec(kp["b1"].shape, lambda b: (0, 0)),
            pl.BlockSpec(kp["w2"].shape, lambda b: (0, 0)),
            pl.BlockSpec(kp["b2"].shape, lambda b: (0, 0)),
            pl.BlockSpec(kp["wf1"].shape, lambda b: (0, 0)),
            pl.BlockSpec(kp["bf1"].shape, lambda b: (0, 0)),
            pl.BlockSpec(kp["wf2"].shape, lambda b: (0, 0)),
            pl.BlockSpec(kp["bf2"].shape, lambda b: (0, 0)),
        ],
        out_specs=pl.BlockSpec((TB, 128), lambda b: (b, 0)),
        scratch_shapes=[
            pltpu.VMEM((TB, NSLOT, C1), jnp.bfloat16),      # pooled feature map
            pltpu.VMEM((TB, NP2, K2), jnp.bfloat16),        # conv2 im2col tile
            pltpu.VMEM((TB, NP2, C2), jnp.bfloat16),        # conv2 output
            pltpu.VMEM((TB, FLAT + NT), jnp.bfloat16),      # fc1 input
        ],
        compiler_params=pltpu.CompilerParams(
            dimension_semantics=("parallel",),
            vmem_limit_bytes=32 * 1024 * 1024),
    )(patches, task, kp["w1"], kp["b1"], kp["w2"], kp["b2"],
      kp["wf1"], kp["bf1"], kp["wf2"], kp["bf2"])
    return out[:B, :2]


def prepare_params(params):
    """One-time weight-layout transforms + bf16 casts (off the fwd path)."""
    c1w, c2w = params["conv1_w"], params["conv2_w"]
    w1 = jnp.transpose(c1w, (2, 3, 1, 0)).reshape(K1, C1).astype(jnp.bfloat16)
    w2 = jnp.transpose(c2w, (2, 3, 1, 0)).reshape(K2, C2).astype(jnp.bfloat16)
    b1 = params["conv1_b"].reshape(1, C1).astype(jnp.float32)
    b2 = params["conv2_b"].reshape(1, C2).astype(jnp.float32)

    fc1_w = params["fc1_w"]                       # (flat+NT, 128), NCHW order
    flat = params["flat_size"]
    hdim = fc1_w.shape[1]
    n_pos = flat // C2                            # H2*W2
    # Absorb the PyTorch NCHW flatten order:  wf1[k*C2 + c] = fc1_w[c*n_pos + k]
    w1p = (fc1_w[:flat].reshape(C2, n_pos, hdim)
           .transpose(1, 0, 2).reshape(flat, hdim))
    wf1 = jnp.concatenate([w1p, fc1_w[flat:]], axis=0).astype(jnp.bfloat16)
    bf1 = params["fc1_b"].reshape(1, hdim).astype(jnp.float32)

    wf2 = jnp.zeros((hdim, 128), jnp.float32).at[:, :2].set(params["fc2_w"])
    wf2 = wf2.astype(jnp.bfloat16)                # output padded to 128 lanes
    bf2 = jnp.zeros((1, 128), jnp.float32).at[:, :2].set(
        params["fc2_b"].reshape(1, 2))
    return dict(w1=w1, b1=b1, w2=w2, b2=b2, wf1=wf1, bf1=bf1, wf2=wf2, bf2=bf2)


def init_params(key, num_tasks, input_height, input_width):
    """Deterministic init mimicking PyTorch defaults (U(-1/sqrt(fan_in), +))."""
    ks = jax.random.split(key, 8)

    def u(k, shape, fan_in):
        bound = 1.0 / jnp.sqrt(float(fan_in))
        return jax.random.uniform(k, shape, jnp.float32, -bound, bound)

    conv1_w = u(ks[0], (16, 3, 3, 3), 3 * 3 * 3)
    conv1_b = u(ks[1], (16,), 3 * 3 * 3)
    conv2_w = u(ks[2], (32, 16, 3, 3), 16 * 3 * 3)
    conv2_b = u(ks[3], (32,), 16 * 3 * 3)

    h1 = (input_height - 3) // 2 + 1
    w1 = (input_width - 3) // 2 + 1
    h2, w2 = h1 // 2, w1 // 2
    h3 = (h2 - 3) // 2 + 1
    w3 = (w2 - 3) // 2 + 1
    flat_size = 32 * h3 * w3

    fin = flat_size + num_tasks
    fc1_w = u(ks[4], (fin, 128), fin)
    fc1_b = u(ks[5], (128,), fin)
    fc2_w = u(ks[6], (128, 2), 128)
    fc2_b = u(ks[7], (2,), 128)

    return dict(conv1_w=conv1_w, conv1_b=conv1_b,
                conv2_w=conv2_w, conv2_b=conv2_b,
                fc1_w=fc1_w, fc1_b=fc1_b, fc2_w=fc2_w, fc2_b=fc2_b,
                flat_size=flat_size)


# Pure-JAX (f32) reference of the PyTorch module, for an in-script sanity check.
def _ref_forward(params, x_nchw, task_onehot):
    B = x_nchw.shape[0]
    x = jnp.transpose(x_nchw, (0, 2, 3, 1))

    def im2col(x, k, s):
        _, H, W, _ = x.shape
        Ho = (H - k) // s + 1
        Wo = (W - k) // s + 1
        cols = []
        for ih in range(k):
            for iw in range(k):
                cols.append(x[:, ih:ih + s * Ho:s, iw:iw + s * Wo:s, :])
        return jnp.concatenate(cols, axis=-1), Ho, Wo

    def convmat(w):
        Cout, Cin, kh, kw = w.shape
        return jnp.transpose(w, (2, 3, 1, 0)).reshape(kh * kw * Cin, Cout)

    p1, h1, w1 = im2col(x, 3, 2)
    y1 = jnp.maximum(p1.reshape(B * h1 * w1, -1) @ convmat(params["conv1_w"])
                     + params["conv1_b"], 0.0).reshape(B, h1, w1, 16)
    Ho, Wo = h1 // 2, w1 // 2
    y1p = jnp.maximum(
        jnp.maximum(y1[:, 0:2 * Ho:2, 0:2 * Wo:2], y1[:, 0:2 * Ho:2, 1:2 * Wo:2]),
        jnp.maximum(y1[:, 1:2 * Ho:2, 0:2 * Wo:2], y1[:, 1:2 * Ho:2, 1:2 * Wo:2]))
    p2, h2, w2 = im2col(y1p, 3, 2)
    y2 = jnp.maximum(p2.reshape(B * h2 * w2, -1) @ convmat(params["conv2_w"])
                     + params["conv2_b"], 0.0).reshape(B, h2, w2, 32)
    flat = jnp.transpose(y2, (0, 3, 1, 2)).reshape(B, -1)
    feat = jnp.concatenate([flat, task_onehot], axis=1)
    h = jnp.maximum(feat @ params["fc1_w"] + params["fc1_b"], 0.0)
    return h @ params["fc2_w"] + params["fc2_b"]


if __name__ == "__main__":
    NUM_TASKS = 5
    H = W = 32
    B = 2

    key = jax.random.PRNGKey(0)
    k_params, k_x, k_t = jax.random.split(key, 3)

    params = init_params(k_params, NUM_TASKS, H, W)
    kparams = prepare_params(params)

    x = jax.random.normal(k_x, (B, 3, H, W), jnp.float32)            # NCHW
    task_ids = jax.random.randint(k_t, (B,), 0, NUM_TASKS)
    task_onehot = jax.nn.one_hot(task_ids, NUM_TASKS, dtype=jnp.float32)

    out = task_conditioned_forward(kparams, x, task_onehot)
    out = jax.block_until_ready(out)
    assert out.shape == (B, 2) and out.dtype == jnp.float32

    ref = _ref_forward(params, x, task_onehot)
    assert jnp.allclose(out, ref, atol=5e-2, rtol=5e-2)

    print("KERNEL_OK")
</pallas_src>

<mosaic_0001>
module attributes {stable_mosaic.version = 11 : i64} {
  func.func @_fused_forward_kernel(%arg0: i32, %arg1: memref<8x4x64x27xbf16, #tpu.memory_space<vmem>>, %arg2: memref<8x5xf32, #tpu.memory_space<vmem>>, %arg3: memref<27x16xbf16, #tpu.memory_space<vmem>>, %arg4: memref<1x16xf32, #tpu.memory_space<vmem>>, %arg5: memref<144x32xbf16, #tpu.memory_space<vmem>>, %arg6: memref<1x32xf32, #tpu.memory_space<vmem>>, %arg7: memref<293x128xbf16, #tpu.memory_space<vmem>>, %arg8: memref<1x128xf32, #tpu.memory_space<vmem>>, %arg9: memref<128x128xbf16, #tpu.memory_space<vmem>>, %arg10: memref<1x128xf32, #tpu.memory_space<vmem>>, %arg11: memref<8x128xf32, #tpu.memory_space<vmem>>, %arg12: memref<8x64x16xbf16, #tpu.memory_space<vmem>>, %arg13: memref<8x16x144xbf16, #tpu.memory_space<vmem>>, %arg14: memref<8x16x32xbf16, #tpu.memory_space<vmem>>, %arg15: memref<8x293xbf16, #tpu.memory_space<vmem>>) attributes {dimension_semantics = [#tpu.dimension_semantics<parallel>], iteration_bounds = array<i64: 1>, scalar_prefetch = 0 : i64, scratch_operands = 4 : i64, tpu.core_type = #tpu.core_type<tc>, window_params = [{transform_indices = @transform_0, window_bounds = array<i64: 8, 4, 64, 27>}, {transform_indices = @transform_1, window_bounds = array<i64: 8, 5>}, {pipeline_mode = #tpu.pipeline_mode<synchronous>, transform_indices = @transform_2, window_bounds = array<i64: 27, 16>}, {pipeline_mode = #tpu.pipeline_mode<synchronous>, transform_indices = @transform_3, window_bounds = array<i64: 1, 16>}, {pipeline_mode = #tpu.pipeline_mode<synchronous>, transform_indices = @transform_4, window_bounds = array<i64: 144, 32>}, {pipeline_mode = #tpu.pipeline_mode<synchronous>, transform_indices = @transform_5, window_bounds = array<i64: 1, 32>}, {pipeline_mode = #tpu.pipeline_mode<synchronous>, transform_indices = @transform_6, window_bounds = array<i64: 293, 128>}, {pipeline_mode = #tpu.pipeline_mode<synchronous>, transform_indices = @transform_7, window_bounds = array<i64: 1, 128>}, {pipeline_mode = #tpu.pipeline_mode<synchronous>, transform_indices = @transform_8, window_bounds = array<i64: 128, 128>}, {pipeline_mode = #tpu.pipeline_mode<synchronous>, transform_indices = @transform_9, window_bounds = array<i64: 1, 128>}, {transform_indices = @transform_10, window_bounds = array<i64: 8, 128>}]} {
    %c0 = arith.constant 0 : index
    %c0_0 = arith.constant 0 : index
    %0 = vector.load %arg4[%c0, %c0_0] : memref<1x16xf32, #tpu.memory_space<vmem>>, vector<1x16xf32>
    %c0_1 = arith.constant 0 : index
    %c0_2 = arith.constant 0 : index
    %1 = vector.load %arg6[%c0_1, %c0_2] : memref<1x32xf32, #tpu.memory_space<vmem>>, vector<1x32xf32>
    %c0_3 = arith.constant 0 : index
    %c0_4 = arith.constant 0 : index
    %c0_5 = arith.constant 0 : index
    %c0_6 = arith.constant 0 : index
    %2 = vector.load %arg1[%c0_3, %c0_4, %c0_5, %c0_6] : memref<8x4x64x27xbf16, #tpu.memory_space<vmem>>, vector<8x1x16x27xbf16>
    %3 = vector.shape_cast %2 : vector<8x1x16x27xbf16> to vector<8x16x27xbf16>
    %4 = vector.shape_cast %3 : vector<8x16x27xbf16> to vector<128x27xbf16>
    %c0_7 = arith.constant 0 : index
    %c0_8 = arith.constant 0 : index
    %5 = vector.load %arg3[%c0_7, %c0_8] : memref<27x16xbf16, #tpu.memory_space<vmem>>, vector<27x16xbf16>
    %cst = arith.constant dense<0.000000e+00> : vector<128x16xf32>
    %6 = tpu.matmul %4, %5, %cst {dimension_numbers = #tpu.dot_dimension_numbers<[1], [0], [0], [1], [0, 0, 1, 1], [], []>} : vector<128x27xbf16>, vector<27x16xbf16>, vector<128x16xf32> -> vector<128x16xf32>
    %7 = vector.broadcast %0 : vector<1x16xf32> to vector<128x16xf32>
    %8 = arith.addf %6, %7 : vector<128x16xf32>
    %cst_9 = arith.constant 0.000000e+00 : f32
    %9 = vector.broadcast %cst_9 : f32 to vector<128x16xf32>
    %10 = arith.maximumf %8, %9 : vector<128x16xf32>
    %c0_10 = arith.constant 0 : index
    %c1 = arith.constant 1 : index
    %c0_11 = arith.constant 0 : index
    %c0_12 = arith.constant 0 : index
    %11 = vector.load %arg1[%c0_10, %c1, %c0_11, %c0_12] : memref<8x4x64x27xbf16, #tpu.memory_space<vmem>>, vector<8x1x16x27xbf16>
    %12 = vector.shape_cast %11 : vector<8x1x16x27xbf16> to vector<8x16x27xbf16>
    %13 = vector.shape_cast %12 : vector<8x16x27xbf16> to vector<128x27xbf16>
    %c0_13 = arith.constant 0 : index
    %c0_14 = arith.constant 0 : index
    %14 = vector.load %arg3[%c0_13, %c0_14] : memref<27x16xbf16, #tpu.memory_space<vmem>>, vector<27x16xbf16>
    %cst_15 = arith.constant dense<0.000000e+00> : vector<128x16xf32>
    %15 = tpu.matmul %13, %14, %cst_15 {dimension_numbers = #tpu.dot_dimension_numbers<[1], [0], [0], [1], [0, 0, 1, 1], [], []>} : vector<128x27xbf16>, vector<27x16xbf16>, vector<128x16xf32> -> vector<128x16xf32>
    %16 = vector.broadcast %0 : vector<1x16xf32> to vector<128x16xf32>
    %17 = arith.addf %15, %16 : vector<128x16xf32>
    %cst_16 = arith.constant 0.000000e+00 : f32
    %18 = vector.broadcast %cst_16 : f32 to vector<128x16xf32>
    %19 = arith.maximumf %17, %18 : vector<128x16xf32>
    %20 = arith.maximumf %10, %19 : vector<128x16xf32>
    %c0_17 = arith.constant 0 : index
    %c2 = arith.constant 2 : index
    %c0_18 = arith.constant 0 : index
    %c0_19 = arith.constant 0 : index
    %21 = vector.load %arg1[%c0_17, %c2, %c0_18, %c0_19] : memref<8x4x64x27xbf16, #tpu.memory_space<vmem>>, vector<8x1x16x27xbf16>
    %22 = vector.shape_cast %21 : vector<8x1x16x27xbf16> to vector<8x16x27xbf16>
    %23 = vector.shape_cast %22 : vector<8x16x27xbf16> to vector<128x27xbf16>
    %c0_20 = arith.constant 0 : index
    %c0_21 = arith.constant 0 : index
    %24 = vector.load %arg3[%c0_20, %c0_21] : memref<27x16xbf16, #tpu.memory_space<vmem>>, vector<27x16xbf16>
    %cst_22 = arith.constant dense<0.000000e+00> : vector<128x16xf32>
    %25 = tpu.matmul %23, %24, %cst_22 {dimension_numbers = #tpu.dot_dimension_numbers<[1], [0], [0], [1], [0, 0, 1, 1], [], []>} : vector<128x27xbf16>, vector<27x16xbf16>, vector<128x16xf32> -> vector<128x16xf32>
    %26 = vector.broadcast %0 : vector<1x16xf32> to vector<128x16xf32>
    %27 = arith.addf %25, %26 : vector<128x16xf32>
    %cst_23 = arith.constant 0.000000e+00 : f32
    %28 = vector.broadcast %cst_23 : f32 to vector<128x16xf32>
    %29 = arith.maximumf %27, %28 : vector<128x16xf32>
    %30 = arith.maximumf %20, %29 : vector<128x16xf32>
    %c0_24 = arith.constant 0 : index
    %c3 = arith.constant 3 : index
    %c0_25 = arith.constant 0 : index
    %c0_26 = arith.constant 0 : index
    %31 = vector.load %arg1[%c0_24, %c3, %c0_25, %c0_26] : memref<8x4x64x27xbf16, #tpu.memory_space<vmem>>, vector<8x1x16x27xbf16>
    %32 = vector.shape_cast %31 : vector<8x1x16x27xbf16> to vector<8x16x27xbf16>
    %33 = vector.shape_cast %32 : vector<8x16x27xbf16> to vector<128x27xbf16>
    %c0_27 = arith.constant 0 : index
    %c0_28 = arith.constant 0 : index
    %34 = vector.load %arg3[%c0_27, %c0_28] : memref<27x16xbf16, #tpu.memory_space<vmem>>, vector<27x16xbf16>
    %cst_29 = arith.constant dense<0.000000e+00> : vector<128x16xf32>
    %35 = tpu.matmul %33, %34, %cst_29 {dimension_numbers = #tpu.dot_dimension_numbers<[1], [0], [0], [1], [0, 0, 1, 1], [], []>} : vector<128x27xbf16>, vector<27x16xbf16>, vector<128x16xf32> -> vector<128x16xf32>
    %36 = vector.broadcast %0 : vector<1x16xf32> to vector<128x16xf32>
    %37 = arith.addf %35, %36 : vector<128x16xf32>
    %cst_30 = arith.constant 0.000000e+00 : f32
    %38 = vector.broadcast %cst_30 : f32 to vector<128x16xf32>
    %39 = arith.maximumf %37, %38 : vector<128x16xf32>
    %40 = arith.maximumf %30, %39 : vector<128x16xf32>
    %41 = vector.shape_cast %40 : vector<128x16xf32> to vector<8x16x16xf32>
    %42 = arith.truncf %41 : vector<8x16x16xf32> to vector<8x16x16xbf16>
    %c0_31 = arith.constant 0 : index
    %c0_32 = arith.constant 0 : index
    %c0_33 = arith.constant 0 : index
    %43 = vector.load %arg12[%c0_31, %c0_32, %c0_33] : memref<8x64x16xbf16, #tpu.memory_space<vmem>>, vector<8x16x16xbf16>
    tpu.vector_store %arg12[%c0_31, %c0_32, %c0_33], %42 {strides = array<i32>} : memref<8x64x16xbf16, #tpu.memory_space<vmem>>, vector<8x16x16xbf16>,
    %c0_34 = arith.constant 0 : index
    %c0_35 = arith.constant 0 : index
    %c16 = arith.constant 16 : index
    %c0_36 = arith.constant 0 : index
    %44 = vector.load %arg1[%c0_34, %c0_35, %c16, %c0_36] : memref<8x4x64x27xbf16, #tpu.memory_space<vmem>>, vector<8x1x16x27xbf16>
    %45 = vector.shape_cast %44 : vector<8x1x16x27xbf16> to vector<8x16x27xbf16>
    %46 = vector.shape_cast %45 : vector<8x16x27xbf16> to vector<128x27xbf16>
    %c0_37 = arith.constant 0 : index
    %c0_38 = arith.constant 0 : index
    %47 = vector.load %arg3[%c0_37, %c0_38] : memref<27x16xbf16, #tpu.memory_space<vmem>>, vector<27x16xbf16>
    %cst_39 = arith.constant dense<0.000000e+00> : vector<128x16xf32>
    %48 = tpu.matmul %46, %47, %cst_39 {dimension_numbers = #tpu.dot_dimension_numbers<[1], [0], [0], [1], [0, 0, 1, 1], [], []>} : vector<128x27xbf16>, vector<27x16xbf16>, vector<128x16xf32> -> vector<128x16xf32>
    %49 = vector.broadcast %0 : vector<1x16xf32> to vector<128x16xf32>
    %50 = arith.addf %48, %49 : vector<128x16xf32>
    %cst_40 = arith.constant 0.000000e+00 : f32
    %51 = vector.broadcast %cst_40 : f32 to vector<128x16xf32>
    %52 = arith.maximumf %50, %51 : vector<128x16xf32>
    %c0_41 = arith.constant 0 : index
    %c1_42 = arith.constant 1 : index
    %c16_43 = arith.constant 16 : index
    %c0_44 = arith.constant 0 : index
    %53 = vector.load %arg1[%c0_41, %c1_42, %c16_43, %c0_44] : memref<8x4x64x27xbf16, #tpu.memory_space<vmem>>, vector<8x1x16x27xbf16>
    %54 = vector.shape_cast %53 : vector<8x1x16x27xbf16> to vector<8x16x27xbf16>
    %55 = vector.shape_cast %54 : vector<8x16x27xbf16> to vector<128x27xbf16>
    %c0_45 = arith.constant 0 : index
    %c0_46 = arith.constant 0 : index
    %56 = vector.load %arg3[%c0_45, %c0_46] : memref<27x16xbf16, #tpu.memory_space<vmem>>, vector<27x16xbf16>
    %cst_47 = arith.constant dense<0.000000e+00> : vector<128x16xf32>
    %57 = tpu.matmul %55, %56, %cst_47 {dimension_numbers = #tpu.dot_dimension_numbers<[1], [0], [0], [1], [0, 0, 1, 1], [], []>} : vector<128x27xbf16>, vector<27x16xbf16>, vector<128x16xf32> -> vector<128x16xf32>
    %58 = vector.broadcast %0 : vector<1x16xf32> to vector<128x16xf32>
    %59 = arith.addf %57, %58 : vector<128x16xf32>
    %cst_48 = arith.constant 0.000000e+00 : f32
    %60 = vector.broadcast %cst_48 : f32 to vector<128x16xf32>
    %61 = arith.maximumf %59, %60 : vector<128x16xf32>
    %62 = arith.maximumf %52, %61 : vector<128x16xf32>
    %c0_49 = arith.constant 0 : index
    %c2_50 = arith.constant 2 : index
    %c16_51 = arith.constant 16 : index
    %c0_52 = arith.constant 0 : index
    %63 = vector.load %arg1[%c0_49, %c2_50, %c16_51, %c0_52] : memref<8x4x64x27xbf16, #tpu.memory_space<vmem>>, vector<8x1x16x27xbf16>
    %64 = vector.shape_cast %63 : vector<8x1x16x27xbf16> to vector<8x16x27xbf16>
    %65 = vector.shape_cast %64 : vector<8x16x27xbf16> to vector<128x27xbf16>
    %c0_53 = arith.constant 0 : index
    %c0_54 = arith.constant 0 : index
    %66 = vector.load %arg3[%c0_53, %c0_54] : memref<27x16xbf16, #tpu.memory_space<vmem>>, vector<27x16xbf16>
    %cst_55 = arith.constant dense<0.000000e+00> : vector<128x16xf32>
    %67 = tpu.matmul %65, %66, %cst_55 {dimension_numbers = #tpu.dot_dimension_numbers<[1], [0], [0], [1], [0, 0, 1, 1], [], []>} : vector<128x27xbf16>, vector<27x16xbf16>, vector<128x16xf32> -> vector<128x16xf32>
    %68 = vector.broadcast %0 : vector<1x16xf32> to vector<128x16xf32>
    %69 = arith.addf %67, %68 : vector<128x16xf32>
    %cst_56 = arith.constant 0.000000e+00 : f32
    %70 = vector.broadcast %cst_56 : f32 to vector<128x16xf32>
    %71 = arith.maximumf %69, %70 : vector<128x16xf32>
    %72 = arith.maximumf %62, %71 : vector<128x16xf32>
    %c0_57 = arith.constant 0 : index
    %c3_58 = arith.constant 3 : index
    %c16_59 = arith.constant 16 : index
    %c0_60 = arith.constant 0 : index
    %73 = vector.load %arg1[%c0_57, %c3_58, %c16_59, %c0_60] : memref<8x4x64x27xbf16, #tpu.memory_space<vmem>>, vector<8x1x16x27xbf16>
    %74 = vector.shape_cast %73 : vector<8x1x16x27xbf16> to vector<8x16x27xbf16>
    %75 = vector.shape_cast %74 : vector<8x16x27xbf16> to vector<128x27xbf16>
    %c0_61 = arith.constant 0 : index
    %c0_62 = arith.constant 0 : index
    %76 = vector.load %arg3[%c0_61, %c0_62] : memref<27x16xbf16, #tpu.memory_space<vmem>>, vector<27x16xbf16>
    %cst_63 = arith.constant dense<0.000000e+00> : vector<128x16xf32>
    %77 = tpu.matmul %75, %76, %cst_63 {dimension_numbers = #tpu.dot_dimension_numbers<[1], [0], [0], [1], [0, 0, 1, 1], [], []>} : vector<128x27xbf16>, vector<27x16xbf16>, vector<128x16xf32> -> vector<128x16xf32>
    %78 = vector.broadcast %0 : vector<1x16xf32> to vector<128x16xf32>
    %79 = arith.addf %77, %78 : vector<128x16xf32>
    %cst_64 = arith.constant 0.000000e+00 : f32
    %80 = vector.broadcast %cst_64 : f32 to vector<128x16xf32>
    %81 = arith.maximumf %79, %80 : vector<128x16xf32>
    %82 = arith.maximumf %72, %81 : vector<128x16xf32>
    %83 = vector.shape_cast %82 : vector<128x16xf32> to vector<8x16x16xf32>
    %84 = arith.truncf %83 : vector<8x16x16xf32> to vector<8x16x16xbf16>
    %c0_65 = arith.constant 0 : index
    %c16_66 = arith.constant 16 : index
    %c0_67 = arith.constant 0 : index
    %85 = vector.load %arg12[%c0_65, %c16_66, %c0_67] : memref<8x64x16xbf16, #tpu.memory_space<vmem>>, vector<8x16x16xbf16>
    tpu.vector_store %arg12[%c0_65, %c16_66, %c0_67], %84 {strides = array<i32>} : memref<8x64x16xbf16, #tpu.memory_space<vmem>>, vector<8x16x16xbf16>,
    %c0_68 = arith.constant 0 : index
    %c0_69 = arith.constant 0 : index
    %c32 = arith.constant 32 : index
    %c0_70 = arith.constant 0 : index
    %86 = vector.load %arg1[%c0_68, %c0_69, %c32, %c0_70] : memref<8x4x64x27xbf16, #tpu.memory_space<vmem>>, vector<8x1x16x27xbf16>
    %87 = vector.shape_cast %86 : vector<8x1x16x27xbf16> to vector<8x16x27xbf16>
    %88 = vector.shape_cast %87 : vector<8x16x27xbf16> to vector<128x27xbf16>
    %c0_71 = arith.constant 0 : index
    %c0_72 = arith.constant 0 : index
    %89 = vector.load %arg3[%c0_71, %c0_72] : memref<27x16xbf16, #tpu.memory_space<vmem>>, vector<27x16xbf16>
    %cst_73 = arith.constant dense<0.000000e+00> : vector<128x16xf32>
    %90 = tpu.matmul %88, %89, %cst_73 {dimension_numbers = #tpu.dot_dimension_numbers<[1], [0], [0], [1], [0, 0, 1, 1], [], []>} : vector<128x27xbf16>, vector<27x16xbf16>, vector<128x16xf32> -> vector<128x16xf32>
    %91 = vector.broadcast %0 : vector<1x16xf32> to vector<128x16xf32>
    %92 = arith.addf %90, %91 : vector<128x16xf32>
    %cst_74 = arith.constant 0.000000e+00 : f32
    %93 = vector.broadcast %cst_74 : f32 to vector<128x16xf32>
    %94 = arith.maximumf %92, %93 : vector<128x16xf32>
    %c0_75 = arith.constant 0 : index
    %c1_76 = arith.constant 1 : index
    %c32_77 = arith.constant 32 : index
    %c0_78 = arith.constant 0 : index
    %95 = vector.load %arg1[%c0_75, %c1_76, %c32_77, %c0_78] : memref<8x4x64x27xbf16, #tpu.memory_space<vmem>>, vector<8x1x16x27xbf16>
    %96 = vector.shape_cast %95 : vector<8x1x16x27xbf16> to vector<8x16x27xbf16>
    %97 = vector.shape_cast %96 : vector<8x16x27xbf16> to vector<128x27xbf16>
    %c0_79 = arith.constant 0 : index
    %c0_80 = arith.constant 0 : index
    %98 = vector.load %arg3[%c0_79, %c0_80] : memref<27x16xbf16, #tpu.memory_space<vmem>>, vector<27x16xbf16>
    %cst_81 = arith.constant dense<0.000000e+00> : vector<128x16xf32>
    %99 = tpu.matmul %97, %98, %cst_81 {dimension_numbers = #tpu.dot_dimension_numbers<[1], [0], [0], [1], [0, 0, 1, 1], [], []>} : vector<128x27xbf16>, vector<27x16xbf16>, vector<128x16xf32> -> vector<128x16xf32>
    %100 = vector.broadcast %0 : vector<1x16xf32> to vector<128x16xf32>
    %101 = arith.addf %99, %100 : vector<128x16xf32>
    %cst_82 = arith.constant 0.000000e+00 : f32
    %102 = vector.broadcast %cst_82 : f32 to vector<128x16xf32>
    %103 = arith.maximumf %101, %102 : vector<128x16xf32>
    %104 = arith.maximumf %94, %103 : vector<128x16xf32>
    %c0_83 = arith.constant 0 : index
    %c2_84 = arith.constant 2 : index
    %c32_85 = arith.constant 32 : index
    %c0_86 = arith.constant 0 : index
    %105 = vector.load %arg1[%c0_83, %c2_84, %c32_85, %c0_86] : memref<8x4x64x27xbf16, #tpu.memory_space<vmem>>, vector<8x1x16x27xbf16>
    %106 = vector.shape_cast %105 : vector<8x1x16x27xbf16> to vector<8x16x27xbf16>
    %107 = vector.shape_cast %106 : vector<8x16x27xbf16> to vector<128x27xbf16>
    %c0_87 = arith.constant 0 : index
    %c0_88 = arith.constant 0 : index
    %108 = vector.load %arg3[%c0_87, %c0_88] : memref<27x16xbf16, #tpu.memory_space<vmem>>, vector<27x16xbf16>
    %cst_89 = arith.constant dense<0.000000e+00> : vector<128x16xf32>
    %109 = tpu.matmul %107, %108, %cst_89 {dimension_numbers = #tpu.dot_dimension_numbers<[1], [0], [0], [1], [0, 0, 1, 1], [], []>} : vector<128x27xbf16>, vector<27x16xbf16>, vector<128x16xf32> -> vector<128x16xf32>
    %110 = vector.broadcast %0 : vector<1x16xf32> to vector<128x16xf32>
    %111 = arith.addf %109, %110 : vector<128x16xf32>
    %cst_90 = arith.constant 0.000000e+00 : f32
    %112 = vector.broadcast %cst_90 : f32 to vector<128x16xf32>
    %113 = arith.maximumf %111, %112 : vector<128x16xf32>
    %114 = arith.maximumf %104, %113 : vector<128x16xf32>
    %c0_91 = arith.constant 0 : index
    %c3_92 = arith.constant 3 : index
    %c32_93 = arith.constant 32 : index
    %c0_94 = arith.constant 0 : index
    %115 = vector.load %arg1[%c0_91, %c3_92, %c32_93, %c0_94] : memref<8x4x64x27xbf16, #tpu.memory_space<vmem>>, vector<8x1x16x27xbf16>
    %116 = vector.shape_cast %115 : vector<8x1x16x27xbf16> to vector<8x16x27xbf16>
    %117 = vector.shape_cast %116 : vector<8x16x27xbf16> to vector<128x27xbf16>
    %c0_95 = arith.constant 0 : index
    %c0_96 = arith.constant 0 : index
    %118 = vector.load %arg3[%c0_95, %c0_96] : memref<27x16xbf16, #tpu.memory_space<vmem>>, vector<27x16xbf16>
    %cst_97 = arith.constant dense<0.000000e+00> : vector<128x16xf32>
    %119 = tpu.matmul %117, %118, %cst_97 {dimension_numbers = #tpu.dot_dimension_numbers<[1], [0], [0], [1], [0, 0, 1, 1], [], []>} : vector<128x27xbf16>, vector<27x16xbf16>, vector<128x16xf32> -> vector<128x16xf32>
    %120 = vector.broadcast %0 : vector<1x16xf32> to vector<128x16xf32>
    %121 = arith.addf %119, %120 : vector<128x16xf32>
    %cst_98 = arith.constant 0.000000e+00 : f32
    %122 = vector.broadcast %cst_98 : f32 to vector<128x16xf32>
    %123 = arith.maximumf %121, %122 : vector<128x16xf32>
    %124 = arith.maximumf %114, %123 : vector<128x16xf32>
    %125 = vector.shape_cast %124 : vector<128x16xf32> to vector<8x16x16xf32>
    %126 = arith.truncf %125 : vector<8x16x16xf32> to vector<8x16x16xbf16>
    %c0_99 = arith.constant 0 : index
    %c32_100 = arith.constant 32 : index
    %c0_101 = arith.constant 0 : index
    %127 = vector.load %arg12[%c0_99, %c32_100, %c0_101] : memref<8x64x16xbf16, #tpu.memory_space<vmem>>, vector<8x16x16xbf16>
    tpu.vector_store %arg12[%c0_99, %c32_100, %c0_101], %126 {strides = array<i32>} : memref<8x64x16xbf16, #tpu.memory_space<vmem>>, vector<8x16x16xbf16>,
    %c0_102 = arith.constant 0 : index
    %c0_103 = arith.constant 0 : index
    %c48 = arith.constant 48 : index
    %c0_104 = arith.constant 0 : index
    %128 = vector.load %arg1[%c0_102, %c0_103, %c48, %c0_104] : memref<8x4x64x27xbf16, #tpu.memory_space<vmem>>, vector<8x1x16x27xbf16>
    %129 = vector.shape_cast %128 : vector<8x1x16x27xbf16> to vector<8x16x27xbf16>
    %130 = vector.shape_cast %129 : vector<8x16x27xbf16> to vector<128x27xbf16>
    %c0_105 = arith.constant 0 : index
    %c0_106 = arith.constant 0 : index
    %131 = vector.load %arg3[%c0_105, %c0_106] : memref<27x16xbf16, #tpu.memory_space<vmem>>, vector<27x16xbf16>
    %cst_107 = arith.constant dense<0.000000e+00> : vector<128x16xf32>
    %132 = tpu.matmul %130, %131, %cst_107 {dimension_numbers = #tpu.dot_dimension_numbers<[1], [0], [0], [1], [0, 0, 1, 1], [], []>} : vector<128x27xbf16>, vector<27x16xbf16>, vector<128x16xf32> -> vector<128x16xf32>
    %133 = vector.broadcast %0 : vector<1x16xf32> to vector<128x16xf32>
    %134 = arith.addf %132, %133 : vector<128x16xf32>
    %cst_108 = arith.constant 0.000000e+00 : f32
    %135 = vector.broadcast %cst_108 : f32 to vector<128x16xf32>
    %136 = arith.maximumf %134, %135 : vector<128x16xf32>
    %c0_109 = arith.constant 0 : index
    %c1_110 = arith.constant 1 : index
    %c48_111 = arith.constant 48 : index
    %c0_112 = arith.constant 0 : index
    %137 = vector.load %arg1[%c0_109, %c1_110, %c48_111, %c0_112] : memref<8x4x64x27xbf16, #tpu.memory_space<vmem>>, vector<8x1x16x27xbf16>
    %138 = vector.shape_cast %137 : vector<8x1x16x27xbf16> to vector<8x16x27xbf16>
    %139 = vector.shape_cast %138 : vector<8x16x27xbf16> to vector<128x27xbf16>
    %c0_113 = arith.constant 0 : index
    %c0_114 = arith.constant 0 : index
    %140 = vector.load %arg3[%c0_113, %c0_114] : memref<27x16xbf16, #tpu.memory_space<vmem>>, vector<27x16xbf16>
    %cst_115 = arith.constant dense<0.000000e+00> : vector<128x16xf32>
    %141 = tpu.matmul %139, %140, %cst_115 {dimension_numbers = #tpu.dot_dimension_numbers<[1], [0], [0], [1], [0, 0, 1, 1], [], []>} : vector<128x27xbf16>, vector<27x16xbf16>, vector<128x16xf32> -> vector<128x16xf32>
    %142 = vector.broadcast %0 : vector<1x16xf32> to vector<128x16xf32>
    %143 = arith.addf %141, %142 : vector<128x16xf32>
    %cst_116 = arith.constant 0.000000e+00 : f32
    %144 = vector.broadcast %cst_116 : f32 to vector<128x16xf32>
    %145 = arith.maximumf %143, %144 : vector<128x16xf32>
    %146 = arith.maximumf %136, %145 : vector<128x16xf32>
    %c0_117 = arith.constant 0 : index
    %c2_118 = arith.constant 2 : index
    %c48_119 = arith.constant 48 : index
    %c0_120 = arith.constant 0 : index
    %147 = vector.load %arg1[%c0_117, %c2_118, %c48_119, %c0_120] : memref<8x4x64x27xbf16, #tpu.memory_space<vmem>>, vector<8x1x16x27xbf16>
    %148 = vector.shape_cast %147 : vector<8x1x16x27xbf16> to vector<8x16x27xbf16>
    %149 = vector.shape_cast %148 : vector<8x16x27xbf16> to vector<128x27xbf16>
    %c0_121 = arith.constant 0 : index
    %c0_122 = arith.constant 0 : index
    %150 = vector.load %arg3[%c0_121, %c0_122] : memref<27x16xbf16, #tpu.memory_space<vmem>>, vector<27x16xbf16>
    %cst_123 = arith.constant dense<0.000000e+00> : vector<128x16xf32>
    %151 = tpu.matmul %149, %150, %cst_123 {dimension_numbers = #tpu.dot_dimension_numbers<[1], [0], [0], [1], [0, 0, 1, 1], [], []>} : vector<128x27xbf16>, vector<27x16xbf16>, vector<128x16xf32> -> vector<128x16xf32>
    %152 = vector.broadcast %0 : vector<1x16xf32> to vector<128x16xf32>
    %153 = arith.addf %151, %152 : vector<128x16xf32>
    %cst_124 = arith.constant 0.000000e+00 : f32
    %154 = vector.broadcast %cst_124 : f32 to vector<128x16xf32>
    %155 = arith.maximumf %153, %154 : vector<128x16xf32>
    %156 = arith.maximumf %146, %155 : vector<128x16xf32>
    %c0_125 = arith.constant 0 : index
    %c3_126 = arith.constant 3 : index
    %c48_127 = arith.constant 48 : index
    %c0_128 = arith.constant 0 : index
    %157 = vector.load %arg1[%c0_125, %c3_126, %c48_127, %c0_128] : memref<8x4x64x27xbf16, #tpu.memory_space<vmem>>, vector<8x1x16x27xbf16>
    %158 = vector.shape_cast %157 : vector<8x1x16x27xbf16> to vector<8x16x27xbf16>
    %159 = vector.shape_cast %158 : vector<8x16x27xbf16> to vector<128x27xbf16>
    %c0_129 = arith.constant 0 : index
    %c0_130 = arith.constant 0 : index
    %160 = vector.load %arg3[%c0_129, %c0_130] : memref<27x16xbf16, #tpu.memory_space<vmem>>, vector<27x16xbf16>
    %cst_131 = arith.constant dense<0.000000e+00> : vector<128x16xf32>
    %161 = tpu.matmul %159, %160, %cst_131 {dimension_numbers = #tpu.dot_dimension_numbers<[1], [0], [0], [1], [0, 0, 1, 1], [], []>} : vector<128x27xbf16>, vector<27x16xbf16>, vector<128x16xf32> -> vector<128x16xf32>
    %162 = vector.broadcast %0 : vector<1x16xf32> to vector<128x16xf32>
    %163 = arith.addf %161, %162 : vector<128x16xf32>
    %cst_132 = arith.constant 0.000000e+00 : f32
    %164 = vector.broadcast %cst_132 : f32 to vector<128x16xf32>
    %165 = arith.maximumf %163, %164 : vector<128x16xf32>
    %166 = arith.maximumf %156, %165 : vector<128x16xf32>
    %167 = vector.shape_cast %166 : vector<128x16xf32> to vector<8x16x16xf32>
    %168 = arith.truncf %167 : vector<8x16x16xf32> to vector<8x16x16xbf16>
    %c0_133 = arith.constant 0 : index
    %c48_134 = arith.constant 48 : index
    %c0_135 = arith.constant 0 : index
    %169 = vector.load %arg12[%c0_133, %c48_134, %c0_135] : memref<8x64x16xbf16, #tpu.memory_space<vmem>>, vector<8x16x16xbf16>
    tpu.vector_store %arg12[%c0_133, %c48_134, %c0_135], %168 {strides = array<i32>} : memref<8x64x16xbf16, #tpu.memory_space<vmem>>, vector<8x16x16xbf16>,
    %cst_136 = arith.constant 0.000000e+00 : bf16
    %170 = vector.broadcast %cst_136 : bf16 to vector<8x16x144xbf16>
    %c0_137 = arith.constant 0 : index
    %c0_138 = arith.constant 0 : index
    %c0_139 = arith.constant 0 : index
    %171 = vector.load %arg13[%c0_137, %c0_138, %c0_139] : memref<8x16x144xbf16, #tpu.memory_space<vmem>>, vector<8x16x144xbf16>
    tpu.vector_store %arg13[%c0_137, %c0_138, %c0_139], %170 {strides = array<i32>} : memref<8x16x144xbf16, #tpu.memory_space<vmem>>, vector<8x16x144xbf16>,
    %c0_140 = arith.constant 0 : index
    %c0_141 = arith.constant 0 : index
    %c0_142 = arith.constant 0 : index
    %172 = vector.load %arg12[%c0_140, %c0_141, %c0_142] : memref<8x64x16xbf16, #tpu.memory_space<vmem>>, vector<8x3x16xbf16>
    %c0_143 = arith.constant 0 : index
    %c0_144 = arith.constant 0 : index
    %c0_145 = arith.constant 0 : index
    %173 = vector.load %arg13[%c0_143, %c0_144, %c0_145] : memref<8x16x144xbf16, #tpu.memory_space<vmem>>, vector<8x3x16xbf16>
    tpu.vector_store %arg13[%c0_143, %c0_144, %c0_145], %172 {strides = array<i32>} : memref<8x16x144xbf16, #tpu.memory_space<vmem>>, vector<8x3x16xbf16>,
    %c0_146 = arith.constant 0 : index
    %c4 = arith.constant 4 : index
    %c0_147 = arith.constant 0 : index
    %174 = vector.load %arg12[%c0_146, %c4, %c0_147] : memref<8x64x16xbf16, #tpu.memory_space<vmem>>, vector<8x3x16xbf16>
    %c0_148 = arith.constant 0 : index
    %c3_149 = arith.constant 3 : index
    %c0_150 = arith.constant 0 : index
    %175 = vector.load %arg13[%c0_148, %c3_149, %c0_150] : memref<8x16x144xbf16, #tpu.memory_space<vmem>>, vector<8x3x16xbf16>
    tpu.vector_store %arg13[%c0_148, %c3_149, %c0_150], %174 {strides = array<i32>} : memref<8x16x144xbf16, #tpu.memory_space<vmem>>, vector<8x3x16xbf16>,
    %c0_151 = arith.constant 0 : index
    %c8 = arith.constant 8 : index
    %c0_152 = arith.constant 0 : index
    %176 = vector.load %arg12[%c0_151, %c8, %c0_152] : memref<8x64x16xbf16, #tpu.memory_space<vmem>>, vector<8x3x16xbf16>
    %c0_153 = arith.constant 0 : index
    %c6 = arith.constant 6 : index
    %c0_154 = arith.constant 0 : index
    %177 = vector.load %arg13[%c0_153, %c6, %c0_154] : memref<8x16x144xbf16, #tpu.memory_space<vmem>>, vector<8x3x16xbf16>
    tpu.vector_store %arg13[%c0_153, %c6, %c0_154], %176 {strides = array<i32>} : memref<8x16x144xbf16, #tpu.memory_space<vmem>>, vector<8x3x16xbf16>,
    %c0_155 = arith.constant 0 : index
    %c16_156 = arith.constant 16 : index
    %c0_157 = arith.constant 0 : index
    %178 = vector.load %arg12[%c0_155, %c16_156, %c0_157] : memref<8x64x16xbf16, #tpu.memory_space<vmem>>, vector<8x3x16xbf16>
    %c0_158 = arith.constant 0 : index
    %c0_159 = arith.constant 0 : index
    %c16_160 = arith.constant 16 : index
    %179 = vector.load %arg13[%c0_158, %c0_159, %c16_160] : memref<8x16x144xbf16, #tpu.memory_space<vmem>>, vector<8x3x16xbf16>
    tpu.vector_store %arg13[%c0_158, %c0_159, %c16_160], %178 {strides = array<i32>} : memref<8x16x144xbf16, #tpu.memory_space<vmem>>, vector<8x3x16xbf16>,
    %c0_161 = arith.constant 0 : index
    %c20 = arith.constant 20 : index
    %c0_162 = arith.constant 0 : index
    %180 = vector.load %arg12[%c0_161, %c20, %c0_162] : memref<8x64x16xbf16, #tpu.memory_space<vmem>>, vector<8x3x16xbf16>
    %c0_163 = arith.constant 0 : index
    %c3_164 = arith.constant 3 : index
    %c16_165 = arith.constant 16 : index
    %181 = vector.load %arg13[%c0_163, %c3_164, %c16_165] : memref<8x16x144xbf16, #tpu.memory_space<vmem>>, vector<8x3x16xbf16>
    tpu.vector_store %arg13[%c0_163, %c3_164, %c16_165], %180 {strides = array<i32>} : memref<8x16x144xbf16, #tpu.memory_space<vmem>>, vector<8x3x16xbf16>,
    %c0_166 = arith.constant 0 : index
    %c24 = arith.constant 24 : index
    %c0_167 = arith.constant 0 : index
    %182 = vector.load %arg12[%c0_166, %c24, %c0_167] : memref<8x64x16xbf16, #tpu.memory_space<vmem>>, vector<8x3x16xbf16>
    %c0_168 = arith.constant 0 : index
    %c6_169 = arith.constant 6 : index
    %c16_170 = arith.constant 16 : index
    %183 = vector.load %arg13[%c0_168, %c6_169, %c16_170] : memref<8x16x144xbf16, #tpu.memory_space<vmem>>, vector<8x3x16xbf16>
    tpu.vector_store %arg13[%c0_168, %c6_169, %c16_170], %182 {strides = array<i32>} : memref<8x16x144xbf16, #tpu.memory_space<vmem>>, vector<8x3x16xbf16>,
    %c0_171 = arith.constant 0 : index
    %c1_172 = arith.constant 1 : index
    %c0_173 = arith.constant 0 : index
    %184 = vector.load %arg12[%c0_171, %c1_172, %c0_173] : memref<8x64x16xbf16, #tpu.memory_space<vmem>>, vector<8x3x16xbf16>
    %c0_174 = arith.constant 0 : index
    %c0_175 = arith.constant 0 : index
    %c32_176 = arith.constant 32 : index
    %185 = vector.load %arg13[%c0_174, %c0_175, %c32_176] : memref<8x16x144xbf16, #tpu.memory_space<vmem>>, vector<8x3x16xbf16>
    tpu.vector_store %arg13[%c0_174, %c0_175, %c32_176], %184 {strides = array<i32>} : memref<8x16x144xbf16, #tpu.memory_space<vmem>>, vector<8x3x16xbf16>,
    %c0_177 = arith.constant 0 : index
    %c5 = arith.constant 5 : index
    %c0_178 = arith.constant 0 : index
    %186 = vector.load %arg12[%c0_177, %c5, %c0_178] : memref<8x64x16xbf16, #tpu.memory_space<vmem>>, vector<8x3x16xbf16>
    %c0_179 = arith.constant 0 : index
    %c3_180 = arith.constant 3 : index
    %c32_181 = arith.constant 32 : index
    %187 = vector.load %arg13[%c0_179, %c3_180, %c32_181] : memref<8x16x144xbf16, #tpu.memory_space<vmem>>, vector<8x3x16xbf16>
    tpu.vector_store %arg13[%c0_179, %c3_180, %c32_181], %186 {strides = array<i32>} : memref<8x16x144xbf16, #tpu.memory_space<vmem>>, vector<8x3x16xbf16>,
    %c0_182 = arith.constant 0 : index
    %c9 = arith.constant 9 : index
    %c0_183 = arith.constant 0 : index
    %188 = vector.load %arg12[%c0_182, %c9, %c0_183] : memref<8x64x16xbf16, #tpu.memory_space<vmem>>, vector<8x3x16xbf16>
    %c0_184 = arith.constant 0 : index
    %c6_185 = arith.constant 6 : index
    %c32_186 = arith.constant 32 : index
    %189 = vector.load %arg13[%c0_184, %c6_185, %c32_186] : memref<8x16x144xbf16, #tpu.memory_space<vmem>>, vector<8x3x16xbf16>
    tpu.vector_store %arg13[%c0_184, %c6_185, %c32_186], %188 {strides = array<i32>} : memref<8x16x144xbf16, #tpu.memory_space<vmem>>, vector<8x3x16xbf16>,
    %c0_187 = arith.constant 0 : index
    %c32_188 = arith.constant 32 : index
    %c0_189 = arith.constant 0 : index
    %190 = vector.load %arg12[%c0_187, %c32_188, %c0_189] : memref<8x64x16xbf16, #tpu.memory_space<vmem>>, vector<8x3x16xbf16>
    %c0_190 = arith.constant 0 : index
    %c0_191 = arith.constant 0 : index
    %c48_192 = arith.constant 48 : index
    %191 = vector.load %arg13[%c0_190, %c0_191, %c48_192] : memref<8x16x144xbf16, #tpu.memory_space<vmem>>, vector<8x3x16xbf16>
    tpu.vector_store %arg13[%c0_190, %c0_191, %c48_192], %190 {strides = array<i32>} : memref<8x16x144xbf16, #tpu.memory_space<vmem>>, vector<8x3x16xbf16>,
    %c0_193 = arith.constant 0 : index
    %c36 = arith.constant 36 : index
    %c0_194 = arith.constant 0 : index
    %192 = vector.load %arg12[%c0_193, %c36, %c0_194] : memref<8x64x16xbf16, #tpu.memory_space<vmem>>, vector<8x3x16xbf16>
    %c0_195 = arith.constant 0 : index
    %c3_196 = arith.constant 3 : index
    %c48_197 = arith.constant 48 : index
    %193 = vector.load %arg13[%c0_195, %c3_196, %c48_197] : memref<8x16x144xbf16, #tpu.memory_space<vmem>>, vector<8x3x16xbf16>
    tpu.vector_store %arg13[%c0_195, %c3_196, %c48_197], %192 {strides = array<i32>} : memref<8x16x144xbf16, #tpu.memory_space<vmem>>, vector<8x3x16xbf16>,
    %c0_198 = arith.constant 0 : index
    %c40 = arith.constant 40 : index
    %c0_199 = arith.constant 0 : index
    %194 = vector.load %arg12[%c0_198, %c40, %c0_199] : memref<8x64x16xbf16, #tpu.memory_space<vmem>>, vector<8x3x16xbf16>
    %c0_200 = arith.constant 0 : index
    %c6_201 = arith.constant 6 : index
    %c48_202 = arith.constant 48 : index
    %195 = vector.load %arg13[%c0_200, %c6_201, %c48_202] : memref<8x16x144xbf16, #tpu.memory_space<vmem>>, vector<8x3x16xbf16>
    tpu.vector_store %arg13[%c0_200, %c6_201, %c48_202], %194 {strides = array<i32>} : memref<8x16x144xbf16, #tpu.memory_space<vmem>>, vector<8x3x16xbf16>,
    %c0_203 = arith.constant 0 : index
    %c48_204 = arith.constant 48 : index
    %c0_205 = arith.constant 0 : index
    %196 = vector.load %arg12[%c0_203, %c48_204, %c0_205] : memref<8x64x16xbf16, #tpu.memory_space<vmem>>, vector<8x3x16xbf16>
    %c0_206 = arith.constant 0 : index
    %c0_207 = arith.constant 0 : index
    %c64 = arith.constant 64 : index
    %197 = vector.load %arg13[%c0_206, %c0_207, %c64] : memref<8x16x144xbf16, #tpu.memory_space<vmem>>, vector<8x3x16xbf16>
    tpu.vector_store %arg13[%c0_206, %c0_207, %c64], %196 {strides = array<i32>} : memref<8x16x144xbf16, #tpu.memory_space<vmem>>, vector<8x3x16xbf16>,
    %c0_208 = arith.constant 0 : index
    %c52 = arith.constant 52 : index
    %c0_209 = arith.constant 0 : index
    %198 = vector.load %arg12[%c0_208, %c52, %c0_209] : memref<8x64x16xbf16, #tpu.memory_space<vmem>>, vector<8x3x16xbf16>
    %c0_210 = arith.constant 0 : index
    %c3_211 = arith.constant 3 : index
    %c64_212 = arith.constant 64 : index
    %199 = vector.load %arg13[%c0_210, %c3_211, %c64_212] : memref<8x16x144xbf16, #tpu.memory_space<vmem>>, vector<8x3x16xbf16>
    tpu.vector_store %arg13[%c0_210, %c3_211, %c64_212], %198 {strides = array<i32>} : memref<8x16x144xbf16, #tpu.memory_space<vmem>>, vector<8x3x16xbf16>,
    %c0_213 = arith.constant 0 : index
    %c56 = arith.constant 56 : index
    %c0_214 = arith.constant 0 : index
    %200 = vector.load %arg12[%c0_213, %c56, %c0_214] : memref<8x64x16xbf16, #tpu.memory_space<vmem>>, vector<8x3x16xbf16>
    %c0_215 = arith.constant 0 : index
    %c6_216 = arith.constant 6 : index
    %c64_217 = arith.constant 64 : index
    %201 = vector.load %arg13[%c0_215, %c6_216, %c64_217] : memref<8x16x144xbf16, #tpu.memory_space<vmem>>, vector<8x3x16xbf16>
    tpu.vector_store %arg13[%c0_215, %c6_216, %c64_217], %200 {strides = array<i32>} : memref<8x16x144xbf16, #tpu.memory_space<vmem>>, vector<8x3x16xbf16>,
    %c0_218 = arith.constant 0 : index
    %c33 = arith.constant 33 : index
    %c0_219 = arith.constant 0 : index
    %202 = vector.load %arg12[%c0_218, %c33, %c0_219] : memref<8x64x16xbf16, #tpu.memory_space<vmem>>, vector<8x3x16xbf16>
    %c0_220 = arith.constant 0 : index
    %c0_221 = arith.constant 0 : index
    %c80 = arith.constant 80 : index
    %203 = vector.load %arg13[%c0_220, %c0_221, %c80] : memref<8x16x144xbf16, #tpu.memory_space<vmem>>, vector<8x3x16xbf16>
    tpu.vector_store %arg13[%c0_220, %c0_221, %c80], %202 {strides = array<i32>} : memref<8x16x144xbf16, #tpu.memory_space<vmem>>, vector<8x3x16xbf16>,
    %c0_222 = arith.constant 0 : index
    %c37 = arith.constant 37 : index
    %c0_223 = arith.constant 0 : index
    %204 = vector.load %arg12[%c0_222, %c37, %c0_223] : memref<8x64x16xbf16, #tpu.memory_space<vmem>>, vector<8x3x16xbf16>
    %c0_224 = arith.constant 0 : index
    %c3_225 = arith.constant 3 : index
    %c80_226 = arith.constant 80 : index
    %205 = vector.load %arg13[%c0_224, %c3_225, %c80_226] : memref<8x16x144xbf16, #tpu.memory_space<vmem>>, vector<8x3x16xbf16>
    tpu.vector_store %arg13[%c0_224, %c3_225, %c80_226], %204 {strides = array<i32>} : memref<8x16x144xbf16, #tpu.memory_space<vmem>>, vector<8x3x16xbf16>,
    %c0_227 = arith.constant 0 : index
    %c41 = arith.constant 41 : index
    %c0_228 = arith.constant 0 : index
    %206 = vector.load %arg12[%c0_227, %c41, %c0_228] : memref<8x64x16xbf16, #tpu.memory_space<vmem>>, vector<8x3x16xbf16>
    %c0_229 = arith.constant 0 : index
    %c6_230 = arith.constant 6 : index
    %c80_231 = arith.constant 80 : index
    %207 = vector.load %arg13[%c0_229, %c6_230, %c80_231] : memref<8x16x144xbf16, #tpu.memory_space<vmem>>, vector<8x3x16xbf16>
    tpu.vector_store %arg13[%c0_229, %c6_230, %c80_231], %206 {strides = array<i32>} : memref<8x16x144xbf16, #tpu.memory_space<vmem>>, vector<8x3x16xbf16>,
    %c0_232 = arith.constant 0 : index
    %c4_233 = arith.constant 4 : index
    %c0_234 = arith.constant 0 : index
    %208 = vector.load %arg12[%c0_232, %c4_233, %c0_234] : memref<8x64x16xbf16, #tpu.memory_space<vmem>>, vector<8x3x16xbf16>
    %c0_235 = arith.constant 0 : index
    %c0_236 = arith.constant 0 : index
    %c96 = arith.constant 96 : index
    %209 = vector.load %arg13[%c0_235, %c0_236, %c96] : memref<8x16x144xbf16, #tpu.memory_space<vmem>>, vector<8x3x16xbf16>
    tpu.vector_store %arg13[%c0_235, %c0_236, %c96], %208 {strides = array<i32>} : memref<8x16x144xbf16, #tpu.memory_space<vmem>>, vector<8x3x16xbf16>,
    %c0_237 = arith.constant 0 : index
    %c8_238 = arith.constant 8 : index
    %c0_239 = arith.constant 0 : index
    %210 = vector.load %arg12[%c0_237, %c8_238, %c0_239] : memref<8x64x16xbf16, #tpu.memory_space<vmem>>, vector<8x3x16xbf16>
    %c0_240 = arith.constant 0 : index
    %c3_241 = arith.constant 3 : index
    %c96_242 = arith.constant 96 : index
    %211 = vector.load %arg13[%c0_240, %c3_241, %c96_242] : memref<8x16x144xbf16, #tpu.memory_space<vmem>>, vector<8x3x16xbf16>
    tpu.vector_store %arg13[%c0_240, %c3_241, %c96_242], %210 {strides = array<i32>} : memref<8x16x144xbf16, #tpu.memory_space<vmem>>, vector<8x3x16xbf16>,
    %c0_243 = arith.constant 0 : index
    %c12 = arith.constant 12 : index
    %c0_244 = arith.constant 0 : index
    %212 = vector.load %arg12[%c0_243, %c12, %c0_244] : memref<8x64x16xbf16, #tpu.memory_space<vmem>>, vector<8x3x16xbf16>
    %c0_245 = arith.constant 0 : index
    %c6_246 = arith.constant 6 : index
    %c96_247 = arith.constant 96 : index
    %213 = vector.load %arg13[%c0_245, %c6_246, %c96_247] : memref<8x16x144xbf16, #tpu.memory_space<vmem>>, vector<8x3x16xbf16>
    tpu.vector_store %arg13[%c0_245, %c6_246, %c96_247], %212 {strides = array<i32>} : memref<8x16x144xbf16, #tpu.memory_space<vmem>>, vector<8x3x16xbf16>,
    %c0_248 = arith.constant 0 : index
    %c20_249 = arith.constant 20 : index
    %c0_250 = arith.constant 0 : index
    %214 = vector.load %arg12[%c0_248, %c20_249, %c0_250] : memref<8x64x16xbf16, #tpu.memory_space<vmem>>, vector<8x3x16xbf16>
    %c0_251 = arith.constant 0 : index
    %c0_252 = arith.constant 0 : index
    %c112 = arith.constant 112 : index
    %215 = vector.load %arg13[%c0_251, %c0_252, %c112] : memref<8x16x144xbf16, #tpu.memory_space<vmem>>, vector<8x3x16xbf16>
    tpu.vector_store %arg13[%c0_251, %c0_252, %c112], %214 {strides = array<i32>} : memref<8x16x144xbf16, #tpu.memory_space<vmem>>, vector<8x3x16xbf16>,
    %c0_253 = arith.constant 0 : index
    %c24_254 = arith.constant 24 : index
    %c0_255 = arith.constant 0 : index
    %216 = vector.load %arg12[%c0_253, %c24_254, %c0_255] : memref<8x64x16xbf16, #tpu.memory_space<vmem>>, vector<8x3x16xbf16>
    %c0_256 = arith.constant 0 : index
    %c3_257 = arith.constant 3 : index
    %c112_258 = arith.constant 112 : index
    %217 = vector.load %arg13[%c0_256, %c3_257, %c112_258] : memref<8x16x144xbf16, #tpu.memory_space<vmem>>, vector<8x3x16xbf16>
    tpu.vector_store %arg13[%c0_256, %c3_257, %c112_258], %216 {strides = array<i32>} : memref<8x16x144xbf16, #tpu.memory_space<vmem>>, vector<8x3x16xbf16>,
    %c0_259 = arith.constant 0 : index
    %c28 = arith.constant 28 : index
    %c0_260 = arith.constant 0 : index
    %218 = vector.load %arg12[%c0_259, %c28, %c0_260] : memref<8x64x16xbf16, #tpu.memory_space<vmem>>, vector<8x3x16xbf16>
    %c0_261 = arith.constant 0 : index
    %c6_262 = arith.constant 6 : index
    %c112_263 = arith.constant 112 : index
    %219 = vector.load %arg13[%c0_261, %c6_262, %c112_263] : memref<8x16x144xbf16, #tpu.memory_space<vmem>>, vector<8x3x16xbf16>
    tpu.vector_store %arg13[%c0_261, %c6_262, %c112_263], %218 {strides = array<i32>} : memref<8x16x144xbf16, #tpu.memory_space<vmem>>, vector<8x3x16xbf16>,
    %c0_264 = arith.constant 0 : index
    %c5_265 = arith.constant 5 : index
    %c0_266 = arith.constant 0 : index
    %220 = vector.load %arg12[%c0_264, %c5_265, %c0_266] : memref<8x64x16xbf16, #tpu.memory_space<vmem>>, vector<8x3x16xbf16>
    %c0_267 = arith.constant 0 : index
    %c0_268 = arith.constant 0 : index
    %c128 = arith.constant 128 : index
    %221 = vector.load %arg13[%c0_267, %c0_268, %c128] : memref<8x16x144xbf16, #tpu.memory_space<vmem>>, vector<8x3x16xbf16>
    tpu.vector_store %arg13[%c0_267, %c0_268, %c128], %220 {strides = array<i32>} : memref<8x16x144xbf16, #tpu.memory_space<vmem>>, vector<8x3x16xbf16>,
    %c0_269 = arith.constant 0 : index
    %c9_270 = arith.constant 9 : index
    %c0_271 = arith.constant 0 : index
    %222 = vector.load %arg12[%c0_269, %c9_270, %c0_271] : memref<8x64x16xbf16, #tpu.memory_space<vmem>>, vector<8x3x16xbf16>
    %c0_272 = arith.constant 0 : index
    %c3_273 = arith.constant 3 : index
    %c128_274 = arith.constant 128 : index
    %223 = vector.load %arg13[%c0_272, %c3_273, %c128_274] : memref<8x16x144xbf16, #tpu.memory_space<vmem>>, vector<8x3x16xbf16>
    tpu.vector_store %arg13[%c0_272, %c3_273, %c128_274], %222 {strides = array<i32>} : memref<8x16x144xbf16, #tpu.memory_space<vmem>>, vector<8x3x16xbf16>,
    %c0_275 = arith.constant 0 : index
    %c13 = arith.constant 13 : index
    %c0_276 = arith.constant 0 : index
    %224 = vector.load %arg12[%c0_275, %c13, %c0_276] : memref<8x64x16xbf16, #tpu.memory_space<vmem>>, vector<8x3x16xbf16>
    %c0_277 = arith.constant 0 : index
    %c6_278 = arith.constant 6 : index
    %c128_279 = arith.constant 128 : index
    %225 = vector.load %arg13[%c0_277, %c6_278, %c128_279] : memref<8x16x144xbf16, #tpu.memory_space<vmem>>, vector<8x3x16xbf16>
    tpu.vector_store %arg13[%c0_277, %c6_278, %c128_279], %224 {strides = array<i32>} : memref<8x16x144xbf16, #tpu.memory_space<vmem>>, vector<8x3x16xbf16>,
    %c0_280 = arith.constant 0 : index
    %c0_281 = arith.constant 0 : index
    %c0_282 = arith.constant 0 : index
    %226 = vector.load %arg13[%c0_280, %c0_281, %c0_282] : memref<8x16x144xbf16, #tpu.memory_space<vmem>>, vector<8x16x144xbf16>
    %227 = vector.shape_cast %226 : vector<8x16x144xbf16> to vector<128x144xbf16>
    %c0_283 = arith.constant 0 : index
    %c0_284 = arith.constant 0 : index
    %228 = vector.load %arg5[%c0_283, %c0_284] : memref<144x32xbf16, #tpu.memory_space<vmem>>, vector<144x32xbf16>
    %cst_285 = arith.constant dense<0.000000e+00> : vector<128x32xf32>
    %229 = tpu.matmul %227, %228, %cst_285 {dimension_numbers = #tpu.dot_dimension_numbers<[1], [0], [0], [1], [0, 0, 1, 1], [], []>} : vector<128x144xbf16>, vector<144x32xbf16>, vector<128x32xf32> -> vector<128x32xf32>
    %230 = vector.broadcast %1 : vector<1x32xf32> to vector<128x32xf32>
    %231 = arith.addf %229, %230 : vector<128x32xf32>
    %cst_286 = arith.constant 0.000000e+00 : f32
    %232 = vector.broadcast %cst_286 : f32 to vector<128x32xf32>
    %233 = arith.maximumf %231, %232 : vector<128x32xf32>
    %234 = vector.shape_cast %233 : vector<128x32xf32> to vector<8x16x32xf32>
    %235 = arith.truncf %234 : vector<8x16x32xf32> to vector<8x16x32xbf16>
    %c0_287 = arith.constant 0 : index
    %c0_288 = arith.constant 0 : index
    %c0_289 = arith.constant 0 : index
    %236 = vector.load %arg14[%c0_287, %c0_288, %c0_289] : memref<8x16x32xbf16, #tpu.memory_space<vmem>>, vector<8x16x32xbf16>
    tpu.vector_store %arg14[%c0_287, %c0_288, %c0_289], %235 {strides = array<i32>} : memref<8x16x32xbf16, #tpu.memory_space<vmem>>, vector<8x16x32xbf16>,
    %c0_290 = arith.constant 0 : index
    %c0_291 = arith.constant 0 : index
    %c0_292 = arith.constant 0 : index
    %237 = vector.load %arg14[%c0_290, %c0_291, %c0_292] : memref<8x16x32xbf16, #tpu.memory_space<vmem>>, vector<8x1x32xbf16>
    %238 = vector.shape_cast %237 : vector<8x1x32xbf16> to vector<8x32xbf16>
    %c0_293 = arith.constant 0 : index
    %c0_294 = arith.constant 0 : index
    %239 = vector.load %arg15[%c0_293, %c0_294] : memref<8x293xbf16, #tpu.memory_space<vmem>>, vector<8x32xbf16>
    tpu.vector_store %arg15[%c0_293, %c0_294], %238 {strides = array<i32>} : memref<8x293xbf16, #tpu.memory_space<vmem>>, vector<8x32xbf16>,
    %c0_295 = arith.constant 0 : index
    %c1_296 = arith.constant 1 : index
    %c0_297 = arith.constant 0 : index
    %240 = vector.load %arg14[%c0_295, %c1_296, %c0_297] : memref<8x16x32xbf16, #tpu.memory_space<vmem>>, vector<8x1x32xbf16>
    %241 = vector.shape_cast %240 : vector<8x1x32xbf16> to vector<8x32xbf16>
    %c0_298 = arith.constant 0 : index
    %c32_299 = arith.constant 32 : index
    %242 = vector.load %arg15[%c0_298, %c32_299] : memref<8x293xbf16, #tpu.memory_space<vmem>>, vector<8x32xbf16>
    tpu.vector_store %arg15[%c0_298, %c32_299], %241 {strides = array<i32>} : memref<8x293xbf16, #tpu.memory_space<vmem>>, vector<8x32xbf16>,
    %c0_300 = arith.constant 0 : index
    %c2_301 = arith.constant 2 : index
    %c0_302 = arith.constant 0 : index
    %243 = vector.load %arg14[%c0_300, %c2_301, %c0_302] : memref<8x16x32xbf16, #tpu.memory_space<vmem>>, vector<8x1x32xbf16>
    %244 = vector.shape_cast %243 : vector<8x1x32xbf16> to vector<8x32xbf16>
    %c0_303 = arith.constant 0 : index
    %c64_304 = arith.constant 64 : index
    %245 = vector.load %arg15[%c0_303, %c64_304] : memref<8x293xbf16, #tpu.memory_space<vmem>>, vector<8x32xbf16>
    tpu.vector_store %arg15[%c0_303, %c64_304], %244 {strides = array<i32>} : memref<8x293xbf16, #tpu.memory_space<vmem>>, vector<8x32xbf16>,
    %c0_305 = arith.constant 0 : index
    %c3_306 = arith.constant 3 : index
    %c0_307 = arith.constant 0 : index
    %246 = vector.load %arg14[%c0_305, %c3_306, %c0_307] : memref<8x16x32xbf16, #tpu.memory_space<vmem>>, vector<8x1x32xbf16>
    %247 = vector.shape_cast %246 : vector<8x1x32xbf16> to vector<8x32xbf16>
    %c0_308 = arith.constant 0 : index
    %c96_309 = arith.constant 96 : index
    %248 = vector.load %arg15[%c0_308, %c96_309] : memref<8x293xbf16, #tpu.memory_space<vmem>>, vector<8x32xbf16>
    tpu.vector_store %arg15[%c0_308, %c96_309], %247 {strides = array<i32>} : memref<8x293xbf16, #tpu.memory_space<vmem>>, vector<8x32xbf16>,
    %c0_310 = arith.constant 0 : index
    %c4_311 = arith.constant 4 : index
    %c0_312 = arith.constant 0 : index
    %249 = vector.load %arg14[%c0_310, %c4_311, %c0_312] : memref<8x16x32xbf16, #tpu.memory_space<vmem>>, vector<8x1x32xbf16>
    %250 = vector.shape_cast %249 : vector<8x1x32xbf16> to vector<8x32xbf16>
    %c0_313 = arith.constant 0 : index
    %c128_314 = arith.constant 128 : index
    %251 = vector.load %arg15[%c0_313, %c128_314] : memref<8x293xbf16, #tpu.memory_space<vmem>>, vector<8x32xbf16>
    tpu.vector_store %arg15[%c0_313, %c128_314], %250 {strides = array<i32>} : memref<8x293xbf16, #tpu.memory_space<vmem>>, vector<8x32xbf16>,
    %c0_315 = arith.constant 0 : index
    %c5_316 = arith.constant 5 : index
    %c0_317 = arith.constant 0 : index
    %252 = vector.load %arg14[%c0_315, %c5_316, %c0_317] : memref<8x16x32xbf16, #tpu.memory_space<vmem>>, vector<8x1x32xbf16>
    %253 = vector.shape_cast %252 : vector<8x1x32xbf16> to vector<8x32xbf16>
    %c0_318 = arith.constant 0 : index
    %c160 = arith.constant 160 : index
    %254 = vector.load %arg15[%c0_318, %c160] : memref<8x293xbf16, #tpu.memory_space<vmem>>, vector<8x32xbf16>
    tpu.vector_store %arg15[%c0_318, %c160], %253 {strides = array<i32>} : memref<8x293xbf16, #tpu.memory_space<vmem>>, vector<8x32xbf16>,
    %c0_319 = arith.constant 0 : index
    %c6_320 = arith.constant 6 : index
    %c0_321 = arith.constant 0 : index
    %255 = vector.load %arg14[%c0_319, %c6_320, %c0_321] : memref<8x16x32xbf16, #tpu.memory_space<vmem>>, vector<8x1x32xbf16>
    %256 = vector.shape_cast %255 : vector<8x1x32xbf16> to vector<8x32xbf16>
    %c0_322 = arith.constant 0 : index
    %c192 = arith.constant 192 : index
    %257 = vector.load %arg15[%c0_322, %c192] : memref<8x293xbf16, #tpu.memory_space<vmem>>, vector<8x32xbf16>
    tpu.vector_store %arg15[%c0_322, %c192], %256 {strides = array<i32>} : memref<8x293xbf16, #tpu.memory_space<vmem>>, vector<8x32xbf16>,
    %c0_323 = arith.constant 0 : index
    %c7 = arith.constant 7 : index
    %c0_324 = arith.constant 0 : index
    %258 = vector.load %arg14[%c0_323, %c7, %c0_324] : memref<8x16x32xbf16, #tpu.memory_space<vmem>>, vector<8x1x32xbf16>
    %259 = vector.shape_cast %258 : vector<8x1x32xbf16> to vector<8x32xbf16>
    %c0_325 = arith.constant 0 : index
    %c224 = arith.constant 224 : index
    %260 = vector.load %arg15[%c0_325, %c224] : memref<8x293xbf16, #tpu.memory_space<vmem>>, vector<8x32xbf16>
    tpu.vector_store %arg15[%c0_325, %c224], %259 {strides = array<i32>} : memref<8x293xbf16, #tpu.memory_space<vmem>>, vector<8x32xbf16>,
    %c0_326 = arith.constant 0 : index
    %c8_327 = arith.constant 8 : index
    %c0_328 = arith.constant 0 : index
    %261 = vector.load %arg14[%c0_326, %c8_327, %c0_328] : memref<8x16x32xbf16, #tpu.memory_space<vmem>>, vector<8x1x32xbf16>
    %262 = vector.shape_cast %261 : vector<8x1x32xbf16> to vector<8x32xbf16>
    %c0_329 = arith.constant 0 : index
    %c256 = arith.constant 256 : index
    %263 = vector.load %arg15[%c0_329, %c256] : memref<8x293xbf16, #tpu.memory_space<vmem>>, vector<8x32xbf16>
    tpu.vector_store %arg15[%c0_329, %c256], %262 {strides = array<i32>} : memref<8x293xbf16, #tpu.memory_space<vmem>>, vector<8x32xbf16>,
    %c0_330 = arith.constant 0 : index
    %c0_331 = arith.constant 0 : index
    %264 = vector.load %arg2[%c0_330, %c0_331] : memref<8x5xf32, #tpu.memory_space<vmem>>, vector<8x5xf32>
    %265 = arith.truncf %264 : vector<8x5xf32> to vector<8x5xbf16>
    %c0_332 = arith.constant 0 : index
    %c288 = arith.constant 288 : index
    %266 = vector.load %arg15[%c0_332, %c288] : memref<8x293xbf16, #tpu.memory_space<vmem>>, vector<8x5xbf16>
    tpu.vector_store %arg15[%c0_332, %c288], %265 {strides = array<i32>} : memref<8x293xbf16, #tpu.memory_space<vmem>>, vector<8x5xbf16>,
    %c0_333 = arith.constant 0 : index
    %c0_334 = arith.constant 0 : index
    %267 = vector.load %arg15[%c0_333, %c0_334] : memref<8x293xbf16, #tpu.memory_space<vmem>>, vector<8x293xbf16>
    %c0_335 = arith.constant 0 : index
    %c0_336 = arith.constant 0 : index
    %268 = vector.load %arg7[%c0_335, %c0_336] : memref<293x128xbf16, #tpu.memory_space<vmem>>, vector<293x128xbf16>
    %cst_337 = arith.constant dense<0.000000e+00> : vector<8x128xf32>
    %269 = tpu.matmul %267, %268, %cst_337 {dimension_numbers = #tpu.dot_dimension_numbers<[1], [0], [0], [1], [0, 0, 1, 1], [], []>} : vector<8x293xbf16>, vector<293x128xbf16>, vector<8x128xf32> -> vector<8x128xf32>
    %c0_338 = arith.constant 0 : index
    %c0_339 = arith.constant 0 : index
    %270 = vector.load %arg8[%c0_338, %c0_339] : memref<1x128xf32, #tpu.memory_space<vmem>>, vector<1x128xf32>
    %271 = vector.broadcast %270 : vector<1x128xf32> to vector<8x128xf32>
    %272 = arith.addf %269, %271 : vector<8x128xf32>
    %cst_340 = arith.constant 0.000000e+00 : f32
    %273 = vector.broadcast %cst_340 : f32 to vector<8x128xf32>
    %274 = arith.maximumf %272, %273 : vector<8x128xf32>
    %275 = arith.truncf %274 : vector<8x128xf32> to vector<8x128xbf16>
    %c0_341 = arith.constant 0 : index
    %c0_342 = arith.constant 0 : index
    %276 = vector.load %arg9[%c0_341, %c0_342] : memref<128x128xbf16, #tpu.memory_space<vmem>>, vector<128x128xbf16>
    %cst_343 = arith.constant dense<0.000000e+00> : vector<8x128xf32>
    %277 = tpu.matmul %275, %276, %cst_343 {dimension_numbers = #tpu.dot_dimension_numbers<[1], [0], [0], [1], [0, 0, 1, 1], [], []>} : vector<8x128xbf16>, vector<128x128xbf16>, vector<8x128xf32> -> vector<8x128xf32>
    %c0_344 = arith.constant 0 : index
    %c0_345 = arith.constant 0 : index
    %278 = vector.load %arg10[%c0_344, %c0_345] : memref<1x128xf32, #tpu.memory_space<vmem>>, vector<1x128xf32>
    %279 = vector.broadcast %278 : vector<1x128xf32> to vector<8x128xf32>
    %280 = arith.addf %277, %279 : vector<8x128xf32>
    %c0_346 = arith.constant 0 : index
    %c0_347 = arith.constant 0 : index
    %281 = vector.load %arg11[%c0_346, %c0_347] : memref<8x128xf32, #tpu.memory_space<vmem>>, vector<8x128xf32>
    tpu.vector_store %arg11[%c0_346, %c0_347], %280 {strides = array<i32>} : memref<8x128xf32, #tpu.memory_space<vmem>>, vector<8x128xf32>,
    return
  }
  func.func @transform_0(%arg0: i32) -> (i32, i32, i32, i32) {
    %c0_i32 = arith.constant 0 : i32
    %c0_i32_0 = arith.constant 0 : i32
    %c0_i32_1 = arith.constant 0 : i32
    %c0_i32_2 = arith.constant 0 : i32
    return %arg0, %c0_i32, %c0_i32_0, %c0_i32_1 : i32, i32, i32, i32
  }
  func.func @transform_1(%arg0: i32) -> (i32, i32) {
    %c0_i32 = arith.constant 0 : i32
    %c0_i32_0 = arith.constant 0 : i32
    return %arg0, %c0_i32 : i32, i32
  }
  func.func @transform_2(%arg0: i32) -> (i32, i32) {
    %c0_i32 = arith.constant 0 : i32
    %c0_i32_0 = arith.constant 0 : i32
    %c0_i32_1 = arith.constant 0 : i32
    return %c0_i32, %c0_i32_0 : i32, i32
  }
  func.func @transform_3(%arg0: i32) -> (i32, i32) {
    %c0_i32 = arith.constant 0 : i32
    %c0_i32_0 = arith.constant 0 : i32
    %c0_i32_1 = arith.constant 0 : i32
    return %c0_i32, %c0_i32_0 : i32, i32
  }
  func.func @transform_4(%arg0: i32) -> (i32, i32) {
    %c0_i32 = arith.constant 0 : i32
    %c0_i32_0 = arith.constant 0 : i32
    %c0_i32_1 = arith.constant 0 : i32
    return %c0_i32, %c0_i32_0 : i32, i32
  }
  func.func @transform_5(%arg0: i32) -> (i32, i32) {
    %c0_i32 = arith.constant 0 : i32
    %c0_i32_0 = arith.constant 0 : i32
    %c0_i32_1 = arith.constant 0 : i32
    return %c0_i32, %c0_i32_0 : i32, i32
  }
  func.func @transform_6(%arg0: i32) -> (i32, i32) {
    %c0_i32 = arith.constant 0 : i32
    %c0_i32_0 = arith.constant 0 : i32
    %c0_i32_1 = arith.constant 0 : i32
    return %c0_i32, %c0_i32_0 : i32, i32
  }
  func.func @transform_7(%arg0: i32) -> (i32, i32) {
    %c0_i32 = arith.constant 0 : i32
    %c0_i32_0 = arith.constant 0 : i32
    %c0_i32_1 = arith.constant 0 : i32
    return %c0_i32, %c0_i32_0 : i32, i32
  }
  func.func @transform_8(%arg0: i32) -> (i32, i32) {
    %c0_i32 = arith.constant 0 : i32
    %c0_i32_0 = arith.constant 0 : i32
    %c0_i32_1 = arith.constant 0 : i32
    return %c0_i32, %c0_i32_0 : i32, i32
  }
  func.func @transform_9(%arg0: i32) -> (i32, i32) {
    %c0_i32 = arith.constant 0 : i32
    %c0_i32_0 = arith.constant 0 : i32
    %c0_i32_1 = arith.constant 0 : i32
    return %c0_i32, %c0_i32_0 : i32, i32
  }
  func.func @transform_10(%arg0: i32) -> (i32, i32) {
    %c0_i32 = arith.constant 0 : i32
    %c0_i32_0 = arith.constant 0 : i32
    return %arg0, %c0_i32 : i32, i32
  }
}

</mosaic_0001>

<llo_original>
// kernel: task_conditioned_forward.1
$region0: #{task_conditioned_forward.1}
  #allocation0 [shape = 'u32[]', space=smem, size = 0x4, offset = 0x4, fixed_abs, tag = 'smem constant byte address 0x4 - core index']
  #allocation1 [shape = 'u32[144,128]{1,0:T(1,128)}', space=vmem, size = 0x12000, scoped, tag = 'internal scratch']
  #allocation2 [shape = 'bf16[8,64,16]{2,1,0:T(8,128)(2,1)}', space=vmem, size = 0x20000, scoped, tag = 'scratch operand']
  #allocation3 [shape = 'bf16[8,16,144]{2,1,0:T(8,128)(2,1)}', space=vmem, size = 0x10000, scoped, tag = 'scratch operand']
  #allocation4 [shape = 'bf16[8,16,32]{2,1,0:T(8,128)(2,1)}', space=vmem, size = 0x8000, scoped, tag = 'scratch operand']
  #allocation5 [shape = 'bf16[8,293]{1,0:T(8,128)(2,1)}', space=vmem, size = 0x1800, scoped, tag = 'scratch operand']
  %s0 = inlined_call_operand.vmem [shape: bf16[8,4,64,27], index: 0, kind: input, shape index: {}]
  %s1 = inlined_call_operand.vmem [shape: f32[8,5], index: 1, kind: input, shape index: {}]
  %s2 = inlined_call_operand.vmem [shape: bf16[27,16], index: 2, kind: input, shape index: {}]
  %s3 = inlined_call_operand.vmem [shape: f32[1,16], index: 3, kind: input, shape index: {}]
  %s4 = inlined_call_operand.vmem [shape: bf16[144,32], index: 4, kind: input, shape index: {}]
  %s5 = inlined_call_operand.vmem [shape: f32[1,32], index: 5, kind: input, shape index: {}]
  %s6 = inlined_call_operand.vmem [shape: bf16[293,128], index: 6, kind: input, shape index: {}]
  %s7 = inlined_call_operand.vmem [shape: f32[1,128], index: 7, kind: input, shape index: {}]
  %s8 = inlined_call_operand.vmem [shape: bf16[128,128], index: 8, kind: input, shape index: {}]
  %s9 = inlined_call_operand.vmem [shape: f32[1,128], index: 9, kind: input, shape index: {}]
  %s10 = inlined_call_operand.vmem [shape: f32[8,128], index: 10, kind: output, shape index: {}]
  %s11 = sld [smem:[#allocation0]]
  $region50: #{task_conditioned_forward.1} parent=0
    _
  %s13 = ssub.s32 1, %s11
  %s14 = scalar_select 0, %s13, %s11
  // Predicated region
  $region2: #{task_conditioned_forward.1} parent=0 // pred_check
    _
  $region3: #{task_conditioned_forward.1} parent=0 // pred_check_branch
    %16 = sbr.rel (0) target = $region5
  $region4: #{task_conditioned_forward.1} parent=0 // pred_region
    _
  $region5: #{task_conditioned_forward.1} parent=0 // pred_fallthru
    _
  // Predicated region
  $region6: #{task_conditioned_forward.1} parent=0 // pred_check
    _
  $region7: #{task_conditioned_forward.1} parent=0 // pred_check_branch
    %18 = sbr.rel (0) target = $region9
  $region8: #{task_conditioned_forward.1} parent=0 // pred_region
    _
  $region9: #{task_conditioned_forward.1} parent=0 // pred_fallthru
    _
  // Predicated region
  $region10: #{task_conditioned_forward.1} parent=0 // pred_check
    _
  $region11: #{task_conditioned_forward.1} parent=0 // pred_check_branch
    %20 = sbr.rel (0) target = $region13
  $region12: #{task_conditioned_forward.1} parent=0 // pred_region
    _
  $region13: #{task_conditioned_forward.1} parent=0 // pred_fallthru
    _
  // Predicated region
  $region14: #{task_conditioned_forward.1} parent=0 // pred_check
    _
  $region15: #{task_conditioned_forward.1} parent=0 // pred_check_branch
    %22 = sbr.rel (0) target = $region17
  $region16: #{task_conditioned_forward.1} parent=0 // pred_region
    _
  $region17: #{task_conditioned_forward.1} parent=0 // pred_fallthru
    _
  // Predicated region
  $region18: #{task_conditioned_forward.1} parent=0 // pred_check
    _
  $region19: #{task_conditioned_forward.1} parent=0 // pred_check_branch
    %24 = sbr.rel (0) target = $region21
  $region20: #{task_conditioned_forward.1} parent=0 // pred_region
    _
  $region21: #{task_conditioned_forward.1} parent=0 // pred_fallthru
    _
  // Predicated region
  $region22: #{task_conditioned_forward.1} parent=0 // pred_check
    _
  $region23: #{task_conditioned_forward.1} parent=0 // pred_check_branch
    %26 = sbr.rel (0) target = $region25
  $region24: #{task_conditioned_forward.1} parent=0 // pred_region
    _
  $region25: #{task_conditioned_forward.1} parent=0 // pred_fallthru
    _
  // Predicated region
  $region26: #{task_conditioned_forward.1} parent=0 // pred_check
    _
  $region27: #{task_conditioned_forward.1} parent=0 // pred_check_branch
    %28 = sbr.rel (0) target = $region29
  $region28: #{task_conditioned_forward.1} parent=0 // pred_region
    _
  $region29: #{task_conditioned_forward.1} parent=0 // pred_fallthru
    _
  // Predicated region
  $region30: #{task_conditioned_forward.1} parent=0 // pred_check
    _
  $region31: #{task_conditioned_forward.1} parent=0 // pred_check_branch
    %30 = sbr.rel (0) target = $region33
  $region32: #{task_conditioned_forward.1} parent=0 // pred_region
    _
  $region33: #{task_conditioned_forward.1} parent=0 // pred_fallthru
    _
  // Predicated region
  $region34: #{task_conditioned_forward.1} parent=0 // pred_check
    _
  $region35: #{task_conditioned_forward.1} parent=0 // pred_check_branch
    %32 = sbr.rel (0) target = $region37
  $region36: #{task_conditioned_forward.1} parent=0 // pred_region
    _
  $region37: #{task_conditioned_forward.1} parent=0 // pred_fallthru
    _
  // Predicated region
  $region38: #{task_conditioned_forward.1} parent=0 // pred_check
    _
  $region39: #{task_conditioned_forward.1} parent=0 // pred_check_branch
    %34 = sbr.rel (0) target = $region41
  $region40: #{task_conditioned_forward.1} parent=0 // pred_region
    _
  $region41: #{task_conditioned_forward.1} parent=0 // pred_fallthru
    _
  %v36 = vld [vmem:[%s3] sm:$0x1]
  %v37 = vld [vmem:[%s5] sm:$0x1]
  %v38 = vld [vmem:[%s0] sm:$0xf]
  %v39 = vld [vmem:[%s0 + $0x4] sm:$0xf]
  %v40 = vld [vmem:[%s0 + $0x80] sm:$0xf]
  %v41 = vld [vmem:[%s0 + $0x84] sm:$0xf]
  %v42 = vld [vmem:[%s0 + $0x100] sm:$0xf]
  %v43 = vld [vmem:[%s0 + $0x104] sm:$0xf]
  %v44 = vld [vmem:[%s0 + $0x180] sm:$0xf]
  %v45 = vld [vmem:[%s0 + $0x184] sm:$0xf]
  %v46 = vld [vmem:[%s0 + $0x200] sm:$0xf]
  %v47 = vld [vmem:[%s0 + $0x204] sm:$0xf]
  %v48 = vld [vmem:[%s0 + $0x280] sm:$0xf]
  %v49 = vld [vmem:[%s0 + $0x284] sm:$0xf]
  %v50 = vld [vmem:[%s0 + $0x300] sm:$0xf]
  %v51 = vld [vmem:[%s0 + $0x304] sm:$0xf]
  %v52 = vld [vmem:[%s0 + $0x380] sm:$0xf]
  %v53 = vld [vmem:[%s0 + $0x384] sm:$0xf]
  %v54 = vld [vmem:[%s2] sm:$0xf]
  %v55 = vld [vmem:[%s2 + $0x4] sm:$0xf]
  %v56 = vld [vmem:[%s2 + $0x8] sm:$0xf]
  %v57 = vld [vmem:[%s2 + $0xc] sm:$0x3]
  %v59 = vlaneseq
  %v60 = vshrl.u32 %v59, 7
  %v61 = vsub.s32 0, %v60
  %v62 = vrot.slane %v36, %v61
  %v80 = vunpack.c.l.b16 %v38
  %v81 = vunpack.c.l.b16 %v39
  %v82 = vunpack.c.l.b16 %v40
  %v83 = vunpack.c.l.b16 %v41
  %v84 = vunpack.c.l.b16 %v42
  %v85 = vunpack.c.l.b16 %v43
  %v86 = vunpack.c.l.b16 %v44
  %v87 = vunpack.c.l.b16 %v45
  %v88 = vunpack.c.l.b16 %v46
  %v89 = vunpack.c.l.b16 %v47
  %v90 = vunpack.c.l.b16 %v48
  %v91 = vunpack.c.l.b16 %v49
  %v92 = vunpack.c.l.b16 %v50
  %v93 = vunpack.c.l.b16 %v51
  %v94 = vunpack.c.l.b16 %v52
  %v95 = vunpack.c.l.b16 %v53
  %v96 = vpack.c.b16 %v81, %v80
  %v97 = vpack.c.b16 %v83, %v82
  %v98 = vpack.c.b16 %v85, %v84
  %v99 = vpack.c.b16 %v87, %v86
  %v100 = vpack.c.b16 %v89, %v88
  %v101 = vpack.c.b16 %v91, %v90
  %v102 = vpack.c.b16 %v93, %v92
  %v103 = vpack.c.b16 %v95, %v94
  %v108 = vunpack.c.l.b16 %v54
  %v109 = vunpack.c.l.b16 %v55
  %v110 = vunpack.c.l.b16 %v56
  %v111 = vunpack.c.l.b16 %v57
  %v112 = vpack.c.b16 %v109, %v108
  %v113 = vpack.c.b16 %v111, %v110
  %vm115 = vcmask 220160
  %v117 = vsel %vm115, %v96, 0
  %v120 = vsel %vm115, %v97, 0
  %v123 = vsel %vm115, %v98, 0
  %v126 = vsel %vm115, %v99, 0
  %v129 = vsel %vm115, %v100, 0
  %v132 = vsel %vm115, %v101, 0
  %v135 = vsel %vm115, %v102, 0
  %v138 = vsel %vm115, %v103, 0
  %vm140 = vcmask 1044480
  %vm141 = vcmask 1045504
  %v142 = vsel %vm140, 4294967295, 65535
  %v143 = vsel %vm141, %v142, 0
  %v145 = vand.u32 %v113, %v143
  %147 = vmatprep.subr.bf16.mxu0 0
  %148 = vmatpush1.bf16.msra.mxu0 0
  %149 = vmatprep.subr.bf16.mxu0 0
  %150 = vmatpush1.bf16.msra.mxu0 0
  %151 = vmatprep.subr.bf16.mxu0 0
  %152 = vmatpush1.bf16.msra.mxu0 0
  %153 = vmatprep.subr.bf16.mxu0 0
  %154 = vmatpush1.bf16.msra.mxu0 0
  %155 = vmatprep.subr.bf16.mxu0 0
  %156 = vmatpush1.bf16.msra.mxu0 0
  %157 = vmatprep.subr.bf16.mxu0 0
  %158 = vmatpush1.bf16.msra.mxu0 0
  %159 = vmatprep.subr.bf16.mxu0 0
  %160 = vmatpush1.bf16.msra.mxu0 %v145
  %161 = vmatprep.subr.bf16.mxu0 0
  %162 = vmatpush1.bf16.msra.mxu0 %v112
  %163 = vmatprep.subr.bf16.mxu0 0
  %164 = vmatpush2.bf16.msra.mxu0 0
  %165 = vmatprep.subr.bf16.mxu0 0
  %166 = vmatpush2.bf16.msra.mxu0 0
  %167 = vmatprep.subr.bf16.mxu0 0
  %168 = vmatpush2.bf16.msra.mxu0 0
  %169 = vmatprep.subr.bf16.mxu0 0
  %170 = vmatpush2.bf16.msra.mxu0 0
  %171 = vmatprep.subr.bf16.mxu0 0
  %172 = vmatpush2.bf16.msra.mxu0 0
  %173 = vmatprep.subr.bf16.mxu0 0
  %174 = vmatpush2.bf16.msra.mxu0 0
  %175 = vmatprep.subr.bf16.mxu0 0
  %176 = vmatpush2.bf16.msra.mxu0 0
  %177 = vmatprep.subr.bf16.mxu0 0
  %178 = vmatpush2.bf16.msra.mxu0 0
  %179 = vmatprep.mubr.bf16.mxu0 0
  %180 = vmatmul.mubr.bf16.gmra.mxu0 %v117
  %v181 = vpop.f32.mrf.mxu0
  %v182 = vadd.f32 %v62, %v181
  %v183 = vpop.f32.mrf.mxu0
  %v184 = vpop.f32.mrf.mxu0
  %v185 = vadd.f32 %v62, %v184
  %v186 = vpop.f32.mrf.mxu0
  %187 = vmatprep.mubr.bf16.mxu0 0
  %188 = vmatmul.mubr.bf16.gmra.mxu0 %v120
  %v189 = vpop.f32.mrf.mxu0
  %v190 = vadd.f32 %v62, %v189
  %v191 = vpop.f32.mrf.mxu0
  %v192 = vpop.f32.mrf.mxu0
  %v193 = vadd.f32 %v62, %v192
  %v194 = vpop.f32.mrf.mxu0
  %195 = vmatprep.mubr.bf16.mxu0 0
  %196 = vmatmul.mubr.bf16.gmra.mxu0 %v123
  %v197 = vpop.f32.mrf.mxu0
  %v198 = vadd.f32 %v62, %v197
  %v199 = vpop.f32.mrf.mxu0
  %v200 = vpop.f32.mrf.mxu0
  %v201 = vadd.f32 %v62, %v200
  %v202 = vpop.f32.mrf.mxu0
  %203 = vmatprep.mubr.bf16.mxu0 0
  %204 = vmatmul.mubr.bf16.gmra.mxu0 %v126
  %v205 = vpop.f32.mrf.mxu0
  %v206 = vadd.f32 %v62, %v205
  %v207 = vpop.f32.mrf.mxu0
  %v208 = vpop.f32.mrf.mxu0
  %v209 = vadd.f32 %v62, %v208
  %v210 = vpop.f32.mrf.mxu0
  %211 = vmatprep.mubr.bf16.mxu0 0
  %212 = vmatmul.mubr.bf16.gmra.mxu0 %v129
  %v213 = vpop.f32.mrf.mxu0
  %v214 = vadd.f32 %v62, %v213
  %v215 = vpop.f32.mrf.mxu0
  %v216 = vpop.f32.mrf.mxu0
  %v217 = vadd.f32 %v62, %v216
  %v218 = vpop.f32.mrf.mxu0
  %219 = vmatprep.mubr.bf16.mxu0 0
  %220 = vmatmul.mubr.bf16.gmra.mxu0 %v132
  %v221 = vpop.f32.mrf.mxu0
  %v222 = vadd.f32 %v62, %v221
  %v223 = vpop.f32.mrf.mxu0
  %v224 = vpop.f32.mrf.mxu0
  %v225 = vadd.f32 %v62, %v224
  %v226 = vpop.f32.mrf.mxu0
  %227 = vmatprep.mubr.bf16.mxu0 0
  %228 = vmatmul.mubr.bf16.gmra.mxu0 %v135
  %v229 = vpop.f32.mrf.mxu0
  %v230 = vadd.f32 %v62, %v229
  %v231 = vpop.f32.mrf.mxu0
  %v232 = vpop.f32.mrf.mxu0
  %v233 = vadd.f32 %v62, %v232
  %v234 = vpop.f32.mrf.mxu0
  %235 = vmatprep.mubr.bf16.mxu0 0
  %236 = vmatmul.mubr.bf16.gmra.mxu0 %v138
  %v237 = vpop.f32.mrf.mxu0
  %v238 = vadd.f32 %v62, %v237
  %v239 = vpop.f32.mrf.mxu0
  %v240 = vpop.f32.mrf.mxu0
  %v241 = vadd.f32 %v62, %v240
  %v242 = vpop.f32.mrf.mxu0
  %243 = vdwg.mxu0
  %v244 = vmax.f32 %v182, 0.0
  %v245 = vmax.f32 %v185, 0.0
  %v246 = vmax.f32 %v190, 0.0
  %v247 = vmax.f32 %v193, 0.0
  %v248 = vmax.f32 %v198, 0.0
  %v249 = vmax.f32 %v201, 0.0
  %v250 = vmax.f32 %v206, 0.0
  %v251 = vmax.f32 %v209, 0.0
  %v252 = vmax.f32 %v214, 0.0
  %v253 = vmax.f32 %v217, 0.0
  %v254 = vmax.f32 %v222, 0.0
  %v255 = vmax.f32 %v225, 0.0
  %v256 = vmax.f32 %v230, 0.0
  %v257 = vmax.f32 %v233, 0.0
  %v258 = vmax.f32 %v238, 0.0
  %v259 = vmax.f32 %v241, 0.0
  %s260 = scalar_lea.vmem %s0, 32
  %v261 = vld [vmem:[%s260] sm:$0xf]
  %v262 = vld [vmem:[%s260 + $0x4] sm:$0xf]
  %v263 = vld [vmem:[%s260 + $0x80] sm:$0xf]
  %v264 = vld [vmem:[%s260 + $0x84] sm:$0xf]
  %v265 = vld [vmem:[%s260 + $0x100] sm:$0xf]
  %v266 = vld [vmem:[%s260 + $0x104] sm:$0xf]
  %v267 = vld [vmem:[%s260 + $0x180] sm:$0xf]
  %v268 = vld [vmem:[%s260 + $0x184] sm:$0xf]
  %v269 = vld [vmem:[%s260 + $0x200] sm:$0xf]
  %v270 = vld [vmem:[%s260 + $0x204] sm:$0xf]
  %v271 = vld [vmem:[%s260 + $0x280] sm:$0xf]
  %v272 = vld [vmem:[%s260 + $0x284] sm:$0xf]
  %v273 = vld [vmem:[%s260 + $0x300] sm:$0xf]
  %v274 = vld [vmem:[%s260 + $0x304] sm:$0xf]
  %v275 = vld [vmem:[%s260 + $0x380] sm:$0xf]
  %v276 = vld [vmem:[%s260 + $0x384] sm:$0xf]
  %v293 = vunpack.c.l.b16 %v261
  %v294 = vunpack.c.l.b16 %v262
  %v295 = vunpack.c.l.b16 %v263
  %v296 = vunpack.c.l.b16 %v264
  %v297 = vunpack.c.l.b16 %v265
  %v298 = vunpack.c.l.b16 %v266
  %v299 = vunpack.c.l.b16 %v267
  %v300 = vunpack.c.l.b16 %v268
  %v301 = vunpack.c.l.b16 %v269
  %v302 = vunpack.c.l.b16 %v270
  %v303 = vunpack.c.l.b16 %v271
  %v304 = vunpack.c.l.b16 %v272
  %v305 = vunpack.c.l.b16 %v273
  %v306 = vunpack.c.l.b16 %v274
  %v307 = vunpack.c.l.b16 %v275
  %v308 = vunpack.c.l.b16 %v276
  %v309 = vpack.c.b16 %v294, %v293
  %v310 = vpack.c.b16 %v296, %v295
  %v311 = vpack.c.b16 %v298, %v297
  %v312 = vpack.c.b16 %v300, %v299
  %v313 = vpack.c.b16 %v302, %v301
  %v314 = vpack.c.b16 %v304, %v303
  %v315 = vpack.c.b16 %v306, %v305
  %v316 = vpack.c.b16 %v308, %v307
  %v318 = vsel %vm115, %v309, 0
  %v321 = vsel %vm115, %v310, 0
  %v324 = vsel %vm115, %v311, 0
  %v327 = vsel %vm115, %v312, 0
  %v330 = vsel %vm115, %v313, 0
  %v333 = vsel %vm115, %v314, 0
  %v336 = vsel %vm115, %v315, 0
  %v339 = vsel %vm115, %v316, 0
  %341 = vmatprep.subr.bf16.mxu0 0
  %342 = vmatpush1.bf16.msra.mxu0 0
  %343 = vmatprep.subr.bf16.mxu0 0
  %344 = vmatpush1.bf16.msra.mxu0 0
  %345 = vmatprep.subr.bf16.mxu0 0
  %346 = vmatpush1.bf16.msra.mxu0 0
  %347 = vmatprep.subr.bf16.mxu0 0
  %348 = vmatpush1.bf16.msra.mxu0 0
  %349 = vmatprep.subr.bf16.mxu0 0
  %350 = vmatpush1.bf16.msra.mxu0 0
  %351 = vmatprep.subr.bf16.mxu0 0
  %352 = vmatpush1.bf16.msra.mxu0 0
  %353 = vmatprep.subr.bf16.mxu0 0
  %354 = vmatpush1.bf16.msra.mxu0 %v145
  %355 = vmatprep.subr.bf16.mxu0 0
  %356 = vmatpush1.bf16.msra.mxu0 %v112
  %357 = vmatprep.subr.bf16.mxu0 0
  %358 = vmatpush2.bf16.msra.mxu0 0
  %359 = vmatprep.subr.bf16.mxu0 0
  %360 = vmatpush2.bf16.msra.mxu0 0
  %361 = vmatprep.subr.bf16.mxu0 0
  %362 = vmatpush2.bf16.msra.mxu0 0
  %363 = vmatprep.subr.bf16.mxu0 0
  %364 = vmatpush2.bf16.msra.mxu0 0
  %365 = vmatprep.subr.bf16.mxu0 0
  %366 = vmatpush2.bf16.msra.mxu0 0
  %367 = vmatprep.subr.bf16.mxu0 0
  %368 = vmatpush2.bf16.msra.mxu0 0
  %369 = vmatprep.subr.bf16.mxu0 0
  %370 = vmatpush2.bf16.msra.mxu0 0
  %371 = vmatprep.subr.bf16.mxu0 0
  %372 = vmatpush2.bf16.msra.mxu0 0
  %373 = vmatprep.mubr.bf16.mxu0 0
  %374 = vmatmul.mubr.bf16.gmra.mxu0 %v318
  %v375 = vpop.f32.mrf.mxu0
  %v376 = vadd.f32 %v62, %v375
  %v377 = vpop.f32.mrf.mxu0
  %v378 = vpop.f32.mrf.mxu0
  %v379 = vadd.f32 %v62, %v378
  %v380 = vpop.f32.mrf.mxu0
  %381 = vmatprep.mubr.bf16.mxu0 0
  %382 = vmatmul.mubr.bf16.gmra.mxu0 %v321
  %v383 = vpop.f32.mrf.mxu0
  %v384 = vadd.f32 %v62, %v383
  %v385 = vpop.f32.mrf.mxu0
  %v386 = vpop.f32.mrf.mxu0
  %v387 = vadd.f32 %v62, %v386
  %v388 = vpop.f32.mrf.mxu0
  %389 = vmatprep.mubr.bf16.mxu0 0
  %390 = vmatmul.mubr.bf16.gmra.mxu0 %v324
  %v391 = vpop.f32.mrf.mxu0
  %v392 = vadd.f32 %v62, %v391
  %v393 = vpop.f32.mrf.mxu0
  %v394 = vpop.f32.mrf.mxu0
  %v395 = vadd.f32 %v62, %v394
  %v396 = vpop.f32.mrf.mxu0
  %397 = vmatprep.mubr.bf16.mxu0 0
  %398 = vmatmul.mubr.bf16.gmra.mxu0 %v327
  %v399 = vpop.f32.mrf.mxu0
  %v400 = vadd.f32 %v62, %v399
  %v401 = vpop.f32.mrf.mxu0
  %v402 = vpop.f32.mrf.mxu0
  %v403 = vadd.f32 %v62, %v402
  %v404 = vpop.f32.mrf.mxu0
  %405 = vmatprep.mubr.bf16.mxu0 0
  %406 = vmatmul.mubr.bf16.gmra.mxu0 %v330
  %v407 = vpop.f32.mrf.mxu0
  %v408 = vadd.f32 %v62, %v407
  %v409 = vpop.f32.mrf.mxu0
  %v410 = vpop.f32.mrf.mxu0
  %v411 = vadd.f32 %v62, %v410
  %v412 = vpop.f32.mrf.mxu0
  %413 = vmatprep.mubr.bf16.mxu0 0
  %414 = vmatmul.mubr.bf16.gmra.mxu0 %v333
  %v415 = vpop.f32.mrf.mxu0
  %v416 = vadd.f32 %v62, %v415
  %v417 = vpop.f32.mrf.mxu0
  %v418 = vpop.f32.mrf.mxu0
  %v419 = vadd.f32 %v62, %v418
  %v420 = vpop.f32.mrf.mxu0
  %421 = vmatprep.mubr.bf16.mxu0 0
  %422 = vmatmul.mubr.bf16.gmra.mxu0 %v336
  %v423 = vpop.f32.mrf.mxu0
  %v424 = vadd.f32 %v62, %v423
  %v425 = vpop.f32.mrf.mxu0
  %v426 = vpop.f32.mrf.mxu0
  %v427 = vadd.f32 %v62, %v426
  %v428 = vpop.f32.mrf.mxu0
  %429 = vmatprep.mubr.bf16.mxu0 0
  %430 = vmatmul.mubr.bf16.gmra.mxu0 %v339
  %v431 = vpop.f32.mrf.mxu0
  %v432 = vadd.f32 %v62, %v431
  %v433 = vpop.f32.mrf.mxu0
  %v434 = vpop.f32.mrf.mxu0
  %v435 = vadd.f32 %v62, %v434
  %v436 = vpop.f32.mrf.mxu0
  %437 = vdwg.mxu0
  %v438 = vmax.f32 %v376, 0.0
  %v439 = vmax.f32 %v379, 0.0
  %v440 = vmax.f32 %v384, 0.0
  %v441 = vmax.f32 %v387, 0.0
  %v442 = vmax.f32 %v392, 0.0
  %v443 = vmax.f32 %v395, 0.0
  %v444 = vmax.f32 %v400, 0.0
  %v445 = vmax.f32 %v403, 0.0
  %v446 = vmax.f32 %v408, 0.0
  %v447 = vmax.f32 %v411, 0.0
  %v448 = vmax.f32 %v416, 0.0
  %v449 = vmax.f32 %v419, 0.0
  %v450 = vmax.f32 %v424, 0.0
  %v451 = vmax.f32 %v427, 0.0
  %v452 = vmax.f32 %v432, 0.0
  %v453 = vmax.f32 %v435, 0.0
  %v454 = vmax.f32 %v244, %v438
  %v455 = vmax.f32 %v245, %v439
  %v456 = vmax.f32 %v246, %v440
  %v457 = vmax.f32 %v247, %v441
  %v458 = vmax.f32 %v248, %v442
  %v459 = vmax.f32 %v249, %v443
  %v460 = vmax.f32 %v250, %v444
  %v461 = vmax.f32 %v251, %v445
  %v462 = vmax.f32 %v252, %v446
  %v463 = vmax.f32 %v253, %v447
  %v464 = vmax.f32 %v254, %v448
  %v465 = vmax.f32 %v255, %v449
  %v466 = vmax.f32 %v256, %v450
  %v467 = vmax.f32 %v257, %v451
  %v468 = vmax.f32 %v258, %v452
  %v469 = vmax.f32 %v259, %v453
  %s470 = scalar_lea.vmem %s0, 64
  %v471 = vld [vmem:[%s470] sm:$0xf]
  %v472 = vld [vmem:[%s470 + $0x4] sm:$0xf]
  %v473 = vld [vmem:[%s470 + $0x80] sm:$0xf]
  %v474 = vld [vmem:[%s470 + $0x84] sm:$0xf]
  %v475 = vld [vmem:[%s470 + $0x100] sm:$0xf]
  %v476 = vld [vmem:[%s470 + $0x104] sm:$0xf]
  %v477 = vld [vmem:[%s470 + $0x180] sm:$0xf]
  %v478 = vld [vmem:[%s470 + $0x184] sm:$0xf]
  %v479 = vld [vmem:[%s470 + $0x200] sm:$0xf]
  %v480 = vld [vmem:[%s470 + $0x204] sm:$0xf]
  %v481 = vld [vmem:[%s470 + $0x280] sm:$0xf]
  %v482 = vld [vmem:[%s470 + $0x284] sm:$0xf]
  %v483 = vld [vmem:[%s470 + $0x300] sm:$0xf]
  %v484 = vld [vmem:[%s470 + $0x304] sm:$0xf]
  %v485 = vld [vmem:[%s470 + $0x380] sm:$0xf]
  %v486 = vld [vmem:[%s470 + $0x384] sm:$0xf]
  %v503 = vunpack.c.l.b16 %v471
  %v504 = vunpack.c.l.b16 %v472
  %v505 = vunpack.c.l.b16 %v473
  %v506 = vunpack.c.l.b16 %v474
  %v507 = vunpack.c.l.b16 %v475
  %v508 = vunpack.c.l.b16 %v476
  %v509 = vunpack.c.l.b16 %v477
  %v510 = vunpack.c.l.b16 %v478
  %v511 = vunpack.c.l.b16 %v479
  %v512 = vunpack.c.l.b16 %v480
  %v513 = vunpack.c.l.b16 %v481
  %v514 = vunpack.c.l.b16 %v482
  %v515 = vunpack.c.l.b16 %v483
  %v516 = vunpack.c.l.b16 %v484
  %v517 = vunpack.c.l.b16 %v485
  %v518 = vunpack.c.l.b16 %v486
  %v519 = vpack.c.b16 %v504, %v503
  %v520 = vpack.c.b16 %v506, %v505
  %v521 = vpack.c.b16 %v508, %v507
  %v522 = vpack.c.b16 %v510, %v509
  %v523 = vpack.c.b16 %v512, %v511
  %v524 = vpack.c.b16 %v514, %v513
  %v525 = vpack.c.b16 %v516, %v515
  %v526 = vpack.c.b16 %v518, %v517
  %v528 = vsel %vm115, %v519, 0
  %v531 = vsel %vm115, %v520, 0
  %v534 = vsel %vm115, %v521, 0
  %v537 = vsel %vm115, %v522, 0
  %v540 = vsel %vm115, %v523, 0
  %v543 = vsel %vm115, %v524, 0
  %v546 = vsel %vm115, %v525, 0
  %v549 = vsel %vm115, %v526, 0
  %551 = vmatprep.subr.bf16.mxu0 0
  %552 = vmatpush1.bf16.msra.mxu0 0
  %553 = vmatprep.subr.bf16.mxu0 0
  %554 = vmatpush1.bf16.msra.mxu0 0
  %555 = vmatprep.subr.bf16.mxu0 0
  %556 = vmatpush1.bf16.msra.mxu0 0
  %557 = vmatprep.subr.bf16.mxu0 0
  %558 = vmatpush1.bf16.msra.mxu0 0
  %559 = vmatprep.subr.bf16.mxu0 0
  %560 = vmatpush1.bf16.msra.mxu0 0
  %561 = vmatprep.subr.bf16.mxu0 0
  %562 = vmatpush1.bf16.msra.mxu0 0
  %563 = vmatprep.subr.bf16.mxu0 0
  %564 = vmatpush1.bf16.msra.mxu0 %v145
  %565 = vmatprep.subr.bf16.mxu0 0
  %566 = vmatpush1.bf16.msra.mxu0 %v112
  %567 = vmatprep.subr.bf16.mxu0 0
  %568 = vmatpush2.bf16.msra.mxu0 0
  %569 = vmatprep.subr.bf16.mxu0 0
  %570 = vmatpush2.bf16.msra.mxu0 0
  %571 = vmatprep.subr.bf16.mxu0 0
  %572 = vmatpush2.bf16.msra.mxu0 0
  %573 = vmatprep.subr.bf16.mxu0 0
  %574 = vmatpush2.bf16.msra.mxu0 0
  %575 = vmatprep.subr.bf16.mxu0 0
  %576 = vmatpush2.bf16.msra.mxu0 0
  %577 = vmatprep.subr.bf16.mxu0 0
  %578 = vmatpush2.bf16.msra.mxu0 0
  %579 = vmatprep.subr.bf16.mxu0 0
  %580 = vmatpush2.bf16.msra.mxu0 0
  %581 = vmatprep.subr.bf16.mxu0 0
  %582 = vmatpush2.bf16.msra.mxu0 0
  %583 = vmatprep.mubr.bf16.mxu0 0
  %584 = vmatmul.mubr.bf16.gmra.mxu0 %v528
  %v585 = vpop.f32.mrf.mxu0
  %v586 = vadd.f32 %v62, %v585
  %v587 = vpop.f32.mrf.mxu0
  %v588 = vpop.f32.mrf.mxu0
  %v589 = vadd.f32 %v62, %v588
  %v590 = vpop.f32.mrf.mxu0
  %591 = vmatprep.mubr.bf16.mxu0 0
  %592 = vmatmul.mubr.bf16.gmra.mxu0 %v531
  %v593 = vpop.f32.mrf.mxu0
  %v594 = vadd.f32 %v62, %v593
  %v595 = vpop.f32.mrf.mxu0
  %v596 = vpop.f32.mrf.mxu0
  %v597 = vadd.f32 %v62, %v596
  %v598 = vpop.f32.mrf.mxu0
  %599 = vmatprep.mubr.bf16.mxu0 0
  %600 = vmatmul.mubr.bf16.gmra.mxu0 %v534
  %v601 = vpop.f32.mrf.mxu0
  %v602 = vadd.f32 %v62, %v601
  %v603 = vpop.f32.mrf.mxu0
  %v604 = vpop.f32.mrf.mxu0
  %v605 = vadd.f32 %v62, %v604
  %v606 = vpop.f32.mrf.mxu0
  %607 = vmatprep.mubr.bf16.mxu0 0
  %608 = vmatmul.mubr.bf16.gmra.mxu0 %v537
  %v609 = vpop.f32.mrf.mxu0
  %v610 = vadd.f32 %v62, %v609
  %v611 = vpop.f32.mrf.mxu0
  %v612 = vpop.f32.mrf.mxu0
  %v613 = vadd.f32 %v62, %v612
  %v614 = vpop.f32.mrf.mxu0
  %615 = vmatprep.mubr.bf16.mxu0 0
  %616 = vmatmul.mubr.bf16.gmra.mxu0 %v540
  %v617 = vpop.f32.mrf.mxu0
  %v618 = vadd.f32 %v62, %v617
  %v619 = vpop.f32.mrf.mxu0
  %v620 = vpop.f32.mrf.mxu0
  %v621 = vadd.f32 %v62, %v620
  %v622 = vpop.f32.mrf.mxu0
  %623 = vmatprep.mubr.bf16.mxu0 0
  %624 = vmatmul.mubr.bf16.gmra.mxu0 %v543
  %v625 = vpop.f32.mrf.mxu0
  %v626 = vadd.f32 %v62, %v625
  %v627 = vpop.f32.mrf.mxu0
  %v628 = vpop.f32.mrf.mxu0
  %v629 = vadd.f32 %v62, %v628
  %v630 = vpop.f32.mrf.mxu0
  %631 = vmatprep.mubr.bf16.mxu0 0
  %632 = vmatmul.mubr.bf16.gmra.mxu0 %v546
  %v633 = vpop.f32.mrf.mxu0
  %v634 = vadd.f32 %v62, %v633
  %v635 = vpop.f32.mrf.mxu0
  %v636 = vpop.f32.mrf.mxu0
  %v637 = vadd.f32 %v62, %v636
  %v638 = vpop.f32.mrf.mxu0
  %639 = vmatprep.mubr.bf16.mxu0 0
  %640 = vmatmul.mubr.bf16.gmra.mxu0 %v549
  %v641 = vpop.f32.mrf.mxu0
  %v642 = vadd.f32 %v62, %v641
  %v643 = vpop.f32.mrf.mxu0
  %v644 = vpop.f32.mrf.mxu0
  %v645 = vadd.f32 %v62, %v644
  %v646 = vpop.f32.mrf.mxu0
  %647 = vdwg.mxu0
  %v648 = vmax.f32 %v586, 0.0
  %v649 = vmax.f32 %v589, 0.0
  %v650 = vmax.f32 %v594, 0.0
  %v651 = vmax.f32 %v597, 0.0
  %v652 = vmax.f32 %v602, 0.0
  %v653 = vmax.f32 %v605, 0.0
  %v654 = vmax.f32 %v610, 0.0
  %v655 = vmax.f32 %v613, 0.0
  %v656 = vmax.f32 %v618, 0.0
  %v657 = vmax.f32 %v621, 0.0
  %v658 = vmax.f32 %v626, 0.0
  %v659 = vmax.f32 %v629, 0.0
  %v660 = vmax.f32 %v634, 0.0
  %v661 = vmax.f32 %v637, 0.0
  %v662 = vmax.f32 %v642, 0.0
  %v663 = vmax.f32 %v645, 0.0
  %v664 = vmax.f32 %v454, %v648
  %v665 = vmax.f32 %v455, %v649
  %v666 = vmax.f32 %v456, %v650
  %v667 = vmax.f32 %v457, %v651
  %v668 = vmax.f32 %v458, %v652
  %v669 = vmax.f32 %v459, %v653
  %v670 = vmax.f32 %v460, %v654
  %v671 = vmax.f32 %v461, %v655
  %v672 = vmax.f32 %v462, %v656
  %v673 = vmax.f32 %v463, %v657
  %v674 = vmax.f32 %v464, %v658
  %v675 = vmax.f32 %v465, %v659
  %v676 = vmax.f32 %v466, %v660
  %v677 = vmax.f32 %v467, %v661
  %v678 = vmax.f32 %v468, %v662
  %v679 = vmax.f32 %v469, %v663
  %s680 = scalar_lea.vmem %s0, 96
  %v681 = vld [vmem:[%s680] sm:$0xf]
  %v682 = vld [vmem:[%s680 + $0x4] sm:$0xf]
  %v683 = vld [vmem:[%s680 + $0x80] sm:$0xf]
  %v684 = vld [vmem:[%s680 + $0x84] sm:$0xf]
  %v685 = vld [vmem:[%s680 + $0x100] sm:$0xf]
  %v686 = vld [vmem:[%s680 + $0x104] sm:$0xf]
  %v687 = vld [vmem:[%s680 + $0x180] sm:$0xf]
  %v688 = vld [vmem:[%s680 + $0x184] sm:$0xf]
  %v689 = vld [vmem:[%s680 + $0x200] sm:$0xf]
  %v690 = vld [vmem:[%s680 + $0x204] sm:$0xf]
  %v691 = vld [vmem:[%s680 + $0x280] sm:$0xf]
  %v692 = vld [vmem:[%s680 + $0x284] sm:$0xf]
  %v693 = vld [vmem:[%s680 + $0x300] sm:$0xf]
  %v694 = vld [vmem:[%s680 + $0x304] sm:$0xf]
  %v695 = vld [vmem:[%s680 + $0x380] sm:$0xf]
  %v696 = vld [vmem:[%s680 + $0x384] sm:$0xf]
  %v713 = vunpack.c.l.b16 %v681
  %v714 = vunpack.c.l.b16 %v682
  %v715 = vunpack.c.l.b16 %v683
  %v716 = vunpack.c.l.b16 %v684
  %v717 = vunpack.c.l.b16 %v685
  %v718 = vunpack.c.l.b16 %v686
  %v719 = vunpack.c.l.b16 %v687
  %v720 = vunpack.c.l.b16 %v688
  %v721 = vunpack.c.l.b16 %v689
  %v722 = vunpack.c.l.b16 %v690
  %v723 = vunpack.c.l.b16 %v691
  %v724 = vunpack.c.l.b16 %v692
  %v725 = vunpack.c.l.b16 %v693
  %v726 = vunpack.c.l.b16 %v694
  %v727 = vunpack.c.l.b16 %v695
  %v728 = vunpack.c.l.b16 %v696
  %v729 = vpack.c.b16 %v714, %v713
  %v730 = vpack.c.b16 %v716, %v715
  %v731 = vpack.c.b16 %v718, %v717
  %v732 = vpack.c.b16 %v720, %v719
  %v733 = vpack.c.b16 %v722, %v721
  %v734 = vpack.c.b16 %v724, %v723
  %v735 = vpack.c.b16 %v726, %v725
  %v736 = vpack.c.b16 %v728, %v727
  %v738 = vsel %vm115, %v729, 0
  %v741 = vsel %vm115, %v730, 0
  %v744 = vsel %vm115, %v731, 0
  %v747 = vsel %vm115, %v732, 0
  %v750 = vsel %vm115, %v733, 0
  %v753 = vsel %vm115, %v734, 0
  %v756 = vsel %vm115, %v735, 0
  %v759 = vsel %vm115, %v736, 0
  %761 = vmatprep.subr.bf16.mxu0 0
  %762 = vmatpush1.bf16.msra.mxu0 0
  %763 = vmatprep.subr.bf16.mxu0 0
  %764 = vmatpush1.bf16.msra.mxu0 0
  %765 = vmatprep.subr.bf16.mxu0 0
  %766 = vmatpush1.bf16.msra.mxu0 0
  %767 = vmatprep.subr.bf16.mxu0 0
  %768 = vmatpush1.bf16.msra.mxu0 0
  %769 = vmatprep.subr.bf16.mxu0 0
  %770 = vmatpush1.bf16.msra.mxu0 0
  %771 = vmatprep.subr.bf16.mxu0 0
  %772 = vmatpush1.bf16.msra.mxu0 0
  %773 = vmatprep.subr.bf16.mxu0 0
  %774 = vmatpush1.bf16.msra.mxu0 %v145
  %775 = vmatprep.subr.bf16.mxu0 0
  %776 = vmatpush1.bf16.msra.mxu0 %v112
  %777 = vmatprep.subr.bf16.mxu0 0
  %778 = vmatpush2.bf16.msra.mxu0 0
  %779 = vmatprep.subr.bf16.mxu0 0
  %780 = vmatpush2.bf16.msra.mxu0 0
  %781 = vmatprep.subr.bf16.mxu0 0
  %782 = vmatpush2.bf16.msra.mxu0 0
  %783 = vmatprep.subr.bf16.mxu0 0
  %784 = vmatpush2.bf16.msra.mxu0 0
  %785 = vmatprep.subr.bf16.mxu0 0
  %786 = vmatpush2.bf16.msra.mxu0 0
  %787 = vmatprep.subr.bf16.mxu0 0
  %788 = vmatpush2.bf16.msra.mxu0 0
  %789 = vmatprep.subr.bf16.mxu0 0
  %790 = vmatpush2.bf16.msra.mxu0 0
  %791 = vmatprep.subr.bf16.mxu0 0
  %792 = vmatpush2.bf16.msra.mxu0 0
  %793 = vmatprep.mubr.bf16.mxu0 0
  %794 = vmatmul.mubr.bf16.gmra.mxu0 %v738
  %v795 = vpop.f32.mrf.mxu0
  %v796 = vadd.f32 %v62, %v795
  %v797 = vpop.f32.mrf.mxu0
  %v798 = vpop.f32.mrf.mxu0
  %v799 = vadd.f32 %v62, %v798
  %v800 = vpop.f32.mrf.mxu0
  %801 = vmatprep.mubr.bf16.mxu0 0
  %802 = vmatmul.mubr.bf16.gmra.mxu0 %v741
  %v803 = vpop.f32.mrf.mxu0
  %v804 = vadd.f32 %v62, %v803
  %v805 = vpop.f32.mrf.mxu0
  %v806 = vpop.f32.mrf.mxu0
  %v807 = vadd.f32 %v62, %v806
  %v808 = vpop.f32.mrf.mxu0
  %809 = vmatprep.mubr.bf16.mxu0 0
  %810 = vmatmul.mubr.bf16.gmra.mxu0 %v744
  %v811 = vpop.f32.mrf.mxu0
  %v812 = vadd.f32 %v62, %v811
  %v813 = vpop.f32.mrf.mxu0
  %v814 = vpop.f32.mrf.mxu0
  %v815 = vadd.f32 %v62, %v814
  %v816 = vpop.f32.mrf.mxu0
  %817 = vmatprep.mubr.bf16.mxu0 0
  %818 = vmatmul.mubr.bf16.gmra.mxu0 %v747
  %v819 = vpop.f32.mrf.mxu0
  %v820 = vadd.f32 %v62, %v819
  %v821 = vpop.f32.mrf.mxu0
  %v822 = vpop.f32.mrf.mxu0
  %v823 = vadd.f32 %v62, %v822
  %v824 = vpop.f32.mrf.mxu0
  %825 = vmatprep.mubr.bf16.mxu0 0
  %826 = vmatmul.mubr.bf16.gmra.mxu0 %v750
  %v827 = vpop.f32.mrf.mxu0
  %v828 = vadd.f32 %v62, %v827
  %v829 = vpop.f32.mrf.mxu0
  %v830 = vpop.f32.mrf.mxu0
  %v831 = vadd.f32 %v62, %v830
  %v832 = vpop.f32.mrf.mxu0
  %833 = vmatprep.mubr.bf16.mxu0 0
  %834 = vmatmul.mubr.bf16.gmra.mxu0 %v753
  %v835 = vpop.f32.mrf.mxu0
  %v836 = vadd.f32 %v62, %v835
  %v837 = vpop.f32.mrf.mxu0
  %v838 = vpop.f32.mrf.mxu0
  %v839 = vadd.f32 %v62, %v838
  %v840 = vpop.f32.mrf.mxu0
  %841 = vmatprep.mubr.bf16.mxu0 0
  %842 = vmatmul.mubr.bf16.gmra.mxu0 %v756
  %v843 = vpop.f32.mrf.mxu0
  %v844 = vadd.f32 %v62, %v843
  %v845 = vpop.f32.mrf.mxu0
  %v846 = vpop.f32.mrf.mxu0
  %v847 = vadd.f32 %v62, %v846
  %v848 = vpop.f32.mrf.mxu0
  %849 = vmatprep.mubr.bf16.mxu0 0
  %850 = vmatmul.mubr.bf16.gmra.mxu0 %v759
  %v851 = vpop.f32.mrf.mxu0
  %v852 = vadd.f32 %v62, %v851
  %v853 = vpop.f32.mrf.mxu0
  %v854 = vpop.f32.mrf.mxu0
  %v855 = vadd.f32 %v62, %v854
  %v856 = vpop.f32.mrf.mxu0
  %857 = vdwg.mxu0
  %v858 = vmax.f32 %v796, 0.0
  %v859 = vmax.f32 %v799, 0.0
  %v860 = vmax.f32 %v804, 0.0
  %v861 = vmax.f32 %v807, 0.0
  %v862 = vmax.f32 %v812, 0.0
  %v863 = vmax.f32 %v815, 0.0
  %v864 = vmax.f32 %v820, 0.0
  %v865 = vmax.f32 %v823, 0.0
  %v866 = vmax.f32 %v828, 0.0
  %v867 = vmax.f32 %v831, 0.0
  %v868 = vmax.f32 %v836, 0.0
  %v869 = vmax.f32 %v839, 0.0
  %v870 = vmax.f32 %v844, 0.0
  %v871 = vmax.f32 %v847, 0.0
  %v872 = vmax.f32 %v852, 0.0
  %v873 = vmax.f32 %v855, 0.0
  %v874 = vmax.f32 %v664, %v858
  %v875 = vmax.f32 %v665, %v859
  %v876 = vmax.f32 %v666, %v860
  %v877 = vmax.f32 %v667, %v861
  %v878 = vmax.f32 %v668, %v862
  %v879 = vmax.f32 %v669, %v863
  %v880 = vmax.f32 %v670, %v864
  %v881 = vmax.f32 %v671, %v865
  %v882 = vmax.f32 %v672, %v866
  %v883 = vmax.f32 %v673, %v867
  %v884 = vmax.f32 %v674, %v868
  %v885 = vmax.f32 %v675, %v869
  %v886 = vmax.f32 %v676, %v870
  %v887 = vmax.f32 %v677, %v871
  %v888 = vmax.f32 %v678, %v872
  %v889 = vmax.f32 %v679, %v873
  %v890 = vpack.c.bf16 %v875, %v874
  %v891 = vpack.c.bf16 %v877, %v876
  %v892 = vpack.c.bf16 %v879, %v878
  %v893 = vpack.c.bf16 %v881, %v880
  %v894 = vpack.c.bf16 %v883, %v882
  %v895 = vpack.c.bf16 %v885, %v884
  %v896 = vpack.c.bf16 %v887, %v886
  %v897 = vpack.c.bf16 %v889, %v888
  %v906 = vunpack.c.l.b16 %v890
  %v907 = vunpack.c.h.b16 %v890
  %v908 = vunpack.c.l.b16 %v891
  %v909 = vunpack.c.h.b16 %v891
  %v910 = vunpack.c.l.b16 %v892
  %v911 = vunpack.c.h.b16 %v892
  %v912 = vunpack.c.l.b16 %v893
  %v913 = vunpack.c.h.b16 %v893
  %v914 = vunpack.c.l.b16 %v894
  %v915 = vunpack.c.h.b16 %v894
  %v916 = vunpack.c.l.b16 %v895
  %v917 = vunpack.c.h.b16 %v895
  %v918 = vunpack.c.l.b16 %v896
  %v919 = vunpack.c.h.b16 %v896
  %v920 = vunpack.c.l.b16 %v897
  %v921 = vunpack.c.h.b16 %v897
  %v922 = vpack.c.b16 %v906, %v906
  %v923 = vpack.c.b16 %v907, %v907
  %v924 = vpack.c.b16 %v908, %v908
  %v925 = vpack.c.b16 %v909, %v909
  %v926 = vpack.c.b16 %v910, %v910
  %v927 = vpack.c.b16 %v911, %v911
  %v928 = vpack.c.b16 %v912, %v912
  %v929 = vpack.c.b16 %v913, %v913
  %v930 = vpack.c.b16 %v914, %v914
  %v931 = vpack.c.b16 %v915, %v915
  %v932 = vpack.c.b16 %v916, %v916
  %v933 = vpack.c.b16 %v917, %v917
  %v934 = vpack.c.b16 %v918, %v918
  %v935 = vpack.c.b16 %v919, %v919
  %v936 = vpack.c.b16 %v920, %v920
  %v937 = vpack.c.b16 %v921, %v921
  %vm954 = vcmask 125952
  %955 = vst.msk [vmem:[#allocation2] sm:$0xf] %vm954, %v922
  %956 = vst.msk [vmem:[#allocation2 + $0x4] sm:$0xf] %vm954, %v923
  %957 = vst.msk [vmem:[#allocation2 + $0x20] sm:$0xf] %vm954, %v924
  %958 = vst.msk [vmem:[#allocation2 + $0x24] sm:$0xf] %vm954, %v925
  %959 = vst.msk [vmem:[#allocation2 + $0x40] sm:$0xf] %vm954, %v926
  %960 = vst.msk [vmem:[#allocation2 + $0x44] sm:$0xf] %vm954, %v927
  %961 = vst.msk [vmem:[#allocation2 + $0x60] sm:$0xf] %vm954, %v928
  %962 = vst.msk [vmem:[#allocation2 + $0x64] sm:$0xf] %vm954, %v929
  %963 = vst.msk [vmem:[#allocation2 + $0x80] sm:$0xf] %vm954, %v930
  %964 = vst.msk [vmem:[#allocation2 + $0x84] sm:$0xf] %vm954, %v931
  %965 = vst.msk [vmem:[#allocation2 + $0xa0] sm:$0xf] %vm954, %v932
  %966 = vst.msk [vmem:[#allocation2 + $0xa4] sm:$0xf] %vm954, %v933
  %967 = vst.msk [vmem:[#allocation2 + $0xc0] sm:$0xf] %vm954, %v934
  %968 = vst.msk [vmem:[#allocation2 + $0xc4] sm:$0xf] %vm954, %v935
  %969 = vst.msk [vmem:[#allocation2 + $0xe0] sm:$0xf] %vm954, %v936
  %970 = vst.msk [vmem:[#allocation2 + $0xe4] sm:$0xf] %vm954, %v937
  %v971 = vld [vmem:[%s0 + $0x8] sm:$0xf]
  %v972 = vld [vmem:[%s0 + $0xc] sm:$0xf]
  %v973 = vld [vmem:[%s0 + $0x88] sm:$0xf]
  %v974 = vld [vmem:[%s0 + $0x8c] sm:$0xf]
  %v975 = vld [vmem:[%s0 + $0x108] sm:$0xf]
  %v976 = vld [vmem:[%s0 + $0x10c] sm:$0xf]
  %v977 = vld [vmem:[%s0 + $0x188] sm:$0xf]
  %v978 = vld [vmem:[%s0 + $0x18c] sm:$0xf]
  %v979 = vld [vmem:[%s0 + $0x208] sm:$0xf]
  %v980 = vld [vmem:[%s0 + $0x20c] sm:$0xf]
  %v981 = vld [vmem:[%s0 + $0x288] sm:$0xf]
  %v982 = vld [vmem:[%s0 + $0x28c] sm:$0xf]
  %v983 = vld [vmem:[%s0 + $0x308] sm:$0xf]
  %v984 = vld [vmem:[%s0 + $0x30c] sm:$0xf]
  %v985 = vld [vmem:[%s0 + $0x388] sm:$0xf]
  %v986 = vld [vmem:[%s0 + $0x38c] sm:$0xf]
  %v987 = vld [vmem:[%s2] sm:$0xf]
  %v988 = vld [vmem:[%s2 + $0x4] sm:$0xf]
  %v989 = vld [vmem:[%s2 + $0x8] sm:$0xf]
  %v990 = vld [vmem:[%s2 + $0xc] sm:$0x3]
  %v1007 = vunpack.c.l.b16 %v971
  %v1008 = vunpack.c.l.b16 %v972
  %v1009 = vunpack.c.l.b16 %v973
  %v1010 = vunpack.c.l.b16 %v974
  %v1011 = vunpack.c.l.b16 %v975
  %v1012 = vunpack.c.l.b16 %v976
  %v1013 = vunpack.c.l.b16 %v977
  %v1014 = vunpack.c.l.b16 %v978
  %v1015 = vunpack.c.l.b16 %v979
  %v1016 = vunpack.c.l.b16 %v980
  %v1017 = vunpack.c.l.b16 %v981
  %v1018 = vunpack.c.l.b16 %v982
  %v1019 = vunpack.c.l.b16 %v983
  %v1020 = vunpack.c.l.b16 %v984
  %v1021 = vunpack.c.l.b16 %v985
  %v1022 = vunpack.c.l.b16 %v986
  %v1023 = vpack.c.b16 %v1008, %v1007
  %v1024 = vpack.c.b16 %v1010, %v1009
  %v1025 = vpack.c.b16 %v1012, %v1011
  %v1026 = vpack.c.b16 %v1014, %v1013
  %v1027 = vpack.c.b16 %v1016, %v1015
  %v1028 = vpack.c.b16 %v1018, %v1017
  %v1029 = vpack.c.b16 %v1020, %v1019
  %v1030 = vpack.c.b16 %v1022, %v1021
  %v1035 = vunpack.c.l.b16 %v987
  %v1036 = vunpack.c.l.b16 %v988
  %v1037 = vunpack.c.l.b16 %v989
  %v1038 = vunpack.c.l.b16 %v990
  %v1039 = vpack.c.b16 %v1036, %v1035
  %v1040 = vpack.c.b16 %v1038, %v1037
  %v1043 = vsel %vm115, %v1023, 0
  %v1046 = vsel %vm115, %v1024, 0
  %v1049 = vsel %vm115, %v1025, 0
  %v1052 = vsel %vm115, %v1026, 0
  %v1055 = vsel %vm115, %v1027, 0
  %v1058 = vsel %vm115, %v1028, 0
  %v1061 = vsel %vm115, %v1029, 0
  %v1064 = vsel %vm115, %v1030, 0
  %v1067 = vand.u32 %v1040, %v143
  %1069 = vmatprep.subr.bf16.mxu0 0
  %1070 = vmatpush1.bf16.msra.mxu0 0
  %1071 = vmatprep.subr.bf16.mxu0 0
  %1072 = vmatpush1.bf16.msra.mxu0 0
  %1073 = vmatprep.subr.bf16.mxu0 0
  %1074 = vmatpush1.bf16.msra.mxu0 0
  %1075 = vmatprep.subr.bf16.mxu0 0
  %1076 = vmatpush1.bf16.msra.mxu0 0
  %1077 = vmatprep.subr.bf16.mxu0 0
  %1078 = vmatpush1.bf16.msra.mxu0 0
  %1079 = vmatprep.subr.bf16.mxu0 0
  %1080 = vmatpush1.bf16.msra.mxu0 0
  %1081 = vmatprep.subr.bf16.mxu0 0
  %1082 = vmatpush1.bf16.msra.mxu0 %v1067
  %1083 = vmatprep.subr.bf16.mxu0 0
  %1084 = vmatpush1.bf16.msra.mxu0 %v1039
  %1085 = vmatprep.subr.bf16.mxu0 0
  %1086 = vmatpush2.bf16.msra.mxu0 0
  %1087 = vmatprep.subr.bf16.mxu0 0
  %1088 = vmatpush2.bf16.msra.mxu0 0
  %1089 = vmatprep.subr.bf16.mxu0 0
  %1090 = vmatpush2.bf16.msra.mxu0 0
  %1091 = vmatprep.subr.bf16.mxu0 0
  %1092 = vmatpush2.bf16.msra.mxu0 0
  %1093 = vmatprep.subr.bf16.mxu0 0
  %1094 = vmatpush2.bf16.msra.mxu0 0
  %1095 = vmatprep.subr.bf16.mxu0 0
  %1096 = vmatpush2.bf16.msra.mxu0 0
  %1097 = vmatprep.subr.bf16.mxu0 0
  %1098 = vmatpush2.bf16.msra.mxu0 0
  %1099 = vmatprep.subr.bf16.mxu0 0
  %1100 = vmatpush2.bf16.msra.mxu0 0
  %1101 = vmatprep.mubr.bf16.mxu0 0
  %1102 = vmatmul.mubr.bf16.gmra.mxu0 %v1043
  %v1103 = vpop.f32.mrf.mxu0
  %v1104 = vadd.f32 %v62, %v1103
  %v1105 = vpop.f32.mrf.mxu0
  %v1106 = vpop.f32.mrf.mxu0
  %v1107 = vadd.f32 %v62, %v1106
  %v1108 = vpop.f32.mrf.mxu0
  %1109 = vmatprep.mubr.bf16.mxu0 0
  %1110 = vmatmul.mubr.bf16.gmra.mxu0 %v1046
  %v1111 = vpop.f32.mrf.mxu0
  %v1112 = vadd.f32 %v62, %v1111
  %v1113 = vpop.f32.mrf.mxu0
  %v1114 = vpop.f32.mrf.mxu0
  %v1115 = vadd.f32 %v62, %v1114
  %v1116 = vpop.f32.mrf.mxu0
  %1117 = vmatprep.mubr.bf16.mxu0 0
  %1118 = vmatmul.mubr.bf16.gmra.mxu0 %v1049
  %v1119 = vpop.f32.mrf.mxu0
  %v1120 = vadd.f32 %v62, %v1119
  %v1121 = vpop.f32.mrf.mxu0
  %v1122 = vpop.f32.mrf.mxu0
  %v1123 = vadd.f32 %v62, %v1122
  %v1124 = vpop.f32.mrf.mxu0
  %1125 = vmatprep.mubr.bf16.mxu0 0
  %1126 = vmatmul.mubr.bf16.gmra.mxu0 %v1052
  %v1127 = vpop.f32.mrf.mxu0
  %v1128 = vadd.f32 %v62, %v1127
  %v1129 = vpop.f32.mrf.mxu0
  %v1130 = vpop.f32.mrf.mxu0
  %v1131 = vadd.f32 %v62, %v1130
  %v1132 = vpop.f32.mrf.mxu0
  %1133 = vmatprep.mubr.bf16.mxu0 0
  %1134 = vmatmul.mubr.bf16.gmra.mxu0 %v1055
  %v1135 = vpop.f32.mrf.mxu0
  %v1136 = vadd.f32 %v62, %v1135
  %v1137 = vpop.f32.mrf.mxu0
  %v1138 = vpop.f32.mrf.mxu0
  %v1139 = vadd.f32 %v62, %v1138
  %v1140 = vpop.f32.mrf.mxu0
  %1141 = vmatprep.mubr.bf16.mxu0 0
  %1142 = vmatmul.mubr.bf16.gmra.mxu0 %v1058
  %v1143 = vpop.f32.mrf.mxu0
  %v1144 = vadd.f32 %v62, %v1143
  %v1145 = vpop.f32.mrf.mxu0
  %v1146 = vpop.f32.mrf.mxu0
  %v1147 = vadd.f32 %v62, %v1146
  %v1148 = vpop.f32.mrf.mxu0
  %1149 = vmatprep.mubr.bf16.mxu0 0
  %1150 = vmatmul.mubr.bf16.gmra.mxu0 %v1061
  %v1151 = vpop.f32.mrf.mxu0
  %v1152 = vadd.f32 %v62, %v1151
  %v1153 = vpop.f32.mrf.mxu0
  %v1154 = vpop.f32.mrf.mxu0
  %v1155 = vadd.f32 %v62, %v1154
  %v1156 = vpop.f32.mrf.mxu0
  %1157 = vmatprep.mubr.bf16.mxu0 0
  %1158 = vmatmul.mubr.bf16.gmra.mxu0 %v1064
  %v1159 = vpop.f32.mrf.mxu0
  %v1160 = vadd.f32 %v62, %v1159
  %v1161 = vpop.f32.mrf.mxu0
  %v1162 = vpop.f32.mrf.mxu0
  %v1163 = vadd.f32 %v62, %v1162
  %v1164 = vpop.f32.mrf.mxu0
  %1165 = vdwg.mxu0
  %v1166 = vmax.f32 %v1104, 0.0
  %v1167 = vmax.f32 %v1107, 0.0
  %v1168 = vmax.f32 %v1112, 0.0
  %v1169 = vmax.f32 %v1115, 0.0
  %v1170 = vmax.f32 %v1120, 0.0
  %v1171 = vmax.f32 %v1123, 0.0
  %v1172 = vmax.f32 %v1128, 0.0
  %v1173 = vmax.f32 %v1131, 0.0
  %v1174 = vmax.f32 %v1136, 0.0
  %v1175 = vmax.f32 %v1139, 0.0
  %v1176 = vmax.f32 %v1144, 0.0
  %v1177 = vmax.f32 %v1147, 0.0
  %v1178 = vmax.f32 %v1152, 0.0
  %v1179 = vmax.f32 %v1155, 0.0
  %v1180 = vmax.f32 %v1160, 0.0
  %v1181 = vmax.f32 %v1163, 0.0
  %v1182 = vld [vmem:[%s260 + $0x8] sm:$0xf]
  %v1183 = vld [vmem:[%s260 + $0xc] sm:$0xf]
  %v1184 = vld [vmem:[%s260 + $0x88] sm:$0xf]
  %v1185 = vld [vmem:[%s260 + $0x8c] sm:$0xf]
  %v1186 = vld [vmem:[%s260 + $0x108] sm:$0xf]
  %v1187 = vld [vmem:[%s260 + $0x10c] sm:$0xf]
  %v1188 = vld [vmem:[%s260 + $0x188] sm:$0xf]
  %v1189 = vld [vmem:[%s260 + $0x18c] sm:$0xf]
  %v1190 = vld [vmem:[%s260 + $0x208] sm:$0xf]
  %v1191 = vld [vmem:[%s260 + $0x20c] sm:$0xf]
  %v1192 = vld [vmem:[%s260 + $0x288] sm:$0xf]
  %v1193 = vld [vmem:[%s260 + $0x28c] sm:$0xf]
  %v1194 = vld [vmem:[%s260 + $0x308] sm:$0xf]
  %v1195 = vld [vmem:[%s260 + $0x30c] sm:$0xf]
  %v1196 = vld [vmem:[%s260 + $0x388] sm:$0xf]
  %v1197 = vld [vmem:[%s260 + $0x38c] sm:$0xf]
  %v1214 = vunpack.c.l.b16 %v1182
  %v1215 = vunpack.c.l.b16 %v1183
  %v1216 = vunpack.c.l.b16 %v1184
  %v1217 = vunpack.c.l.b16 %v1185
  %v1218 = vunpack.c.l.b16 %v1186
  %v1219 = vunpack.c.l.b16 %v1187
  %v1220 = vunpack.c.l.b16 %v1188
  %v1221 = vunpack.c.l.b16 %v1189
  %v1222 = vunpack.c.l.b16 %v1190
  %v1223 = vunpack.c.l.b16 %v1191
  %v1224 = vunpack.c.l.b16 %v1192
  %v1225 = vunpack.c.l.b16 %v1193
  %v1226 = vunpack.c.l.b16 %v1194
  %v1227 = vunpack.c.l.b16 %v1195
  %v1228 = vunpack.c.l.b16 %v1196
  %v1229 = vunpack.c.l.b16 %v1197
  %v1230 = vpack.c.b16 %v1215, %v1214
  %v1231 = vpack.c.b16 %v1217, %v1216
  %v1232 = vpack.c.b16 %v1219, %v1218
  %v1233 = vpack.c.b16 %v1221, %v1220
  %v1234 = vpack.c.b16 %v1223, %v1222
  %v1235 = vpack.c.b16 %v1225, %v1224
  %v1236 = vpack.c.b16 %v1227, %v1226
  %v1237 = vpack.c.b16 %v1229, %v1228
  %v1239 = vsel %vm115, %v1230, 0
  %v1242 = vsel %vm115, %v1231, 0
  %v1245 = vsel %vm115, %v1232, 0
  %v1248 = vsel %vm115, %v1233, 0
  %v1251 = vsel %vm115, %v1234, 0
  %v1254 = vsel %vm115, %v1235, 0
  %v1257 = vsel %vm115, %v1236, 0
  %v1260 = vsel %vm115, %v1237, 0
  %1262 = vmatprep.subr.bf16.mxu0 0
  %1263 = vmatpush1.bf16.msra.mxu0 0
  %1264 = vmatprep.subr.bf16.mxu0 0
  %1265 = vmatpush1.bf16.msra.mxu0 0
  %1266 = vmatprep.subr.bf16.mxu0 0
  %1267 = vmatpush1.bf16.msra.mxu0 0
  %1268 = vmatprep.subr.bf16.mxu0 0
  %1269 = vmatpush1.bf16.msra.mxu0 0
  %1270 = vmatprep.subr.bf16.mxu0 0
  %1271 = vmatpush1.bf16.msra.mxu0 0
  %1272 = vmatprep.subr.bf16.mxu0 0
  %1273 = vmatpush1.bf16.msra.mxu0 0
  %1274 = vmatprep.subr.bf16.mxu0 0
  %1275 = vmatpush1.bf16.msra.mxu0 %v1067
  %1276 = vmatprep.subr.bf16.mxu0 0
  %1277 = vmatpush1.bf16.msra.mxu0 %v1039
  %1278 = vmatprep.subr.bf16.mxu0 0
  %1279 = vmatpush2.bf16.msra.mxu0 0
  %1280 = vmatprep.subr.bf16.mxu0 0
  %1281 = vmatpush2.bf16.msra.mxu0 0
  %1282 = vmatprep.subr.bf16.mxu0 0
  %1283 = vmatpush2.bf16.msra.mxu0 0
  %1284 = vmatprep.subr.bf16.mxu0 0
  %1285 = vmatpush2.bf16.msra.mxu0 0
  %1286 = vmatprep.subr.bf16.mxu0 0
  %1287 = vmatpush2.bf16.msra.mxu0 0
  %1288 = vmatprep.subr.bf16.mxu0 0
  %1289 = vmatpush2.bf16.msra.mxu0 0
  %1290 = vmatprep.subr.bf16.mxu0 0
  %1291 = vmatpush2.bf16.msra.mxu0 0
  %1292 = vmatprep.subr.bf16.mxu0 0
  %1293 = vmatpush2.bf16.msra.mxu0 0
  %1294 = vmatprep.mubr.bf16.mxu0 0
  %1295 = vmatmul.mubr.bf16.gmra.mxu0 %v1239
  %v1296 = vpop.f32.mrf.mxu0
  %v1297 = vadd.f32 %v62, %v1296
  %v1298 = vpop.f32.mrf.mxu0
  %v1299 = vpop.f32.mrf.mxu0
  %v1300 = vadd.f32 %v62, %v1299
  %v1301 = vpop.f32.mrf.mxu0
  %1302 = vmatprep.mubr.bf16.mxu0 0
  %1303 = vmatmul.mubr.bf16.gmra.mxu0 %v1242
  %v1304 = vpop.f32.mrf.mxu0
  %v1305 = vadd.f32 %v62, %v1304
  %v1306 = vpop.f32.mrf.mxu0
  %v1307 = vpop.f32.mrf.mxu0
  %v1308 = vadd.f32 %v62, %v1307
  %v1309 = vpop.f32.mrf.mxu0
  %1310 = vmatprep.mubr.bf16.mxu0 0
  %1311 = vmatmul.mubr.bf16.gmra.mxu0 %v1245
  %v1312 = vpop.f32.mrf.mxu0
  %v1313 = vadd.f32 %v62, %v1312
  %v1314 = vpop.f32.mrf.mxu0
  %v1315 = vpop.f32.mrf.mxu0
  %v1316 = vadd.f32 %v62, %v1315
  %v1317 = vpop.f32.mrf.mxu0
  %1318 = vmatprep.mubr.bf16.mxu0 0
  %1319 = vmatmul.mubr.bf16.gmra.mxu0 %v1248
  %v1320 = vpop.f32.mrf.mxu0
  %v1321 = vadd.f32 %v62, %v1320
  %v1322 = vpop.f32.mrf.mxu0
  %v1323 = vpop.f32.mrf.mxu0
  %v1324 = vadd.f32 %v62, %v1323
  %v1325 = vpop.f32.mrf.mxu0
  %1326 = vmatprep.mubr.bf16.mxu0 0
  %1327 = vmatmul.mubr.bf16.gmra.mxu0 %v1251
  %v1328 = vpop.f32.mrf.mxu0
  %v1329 = vadd.f32 %v62, %v1328
  %v1330 = vpop.f32.mrf.mxu0
  %v1331 = vpop.f32.mrf.mxu0
  %v1332 = vadd.f32 %v62, %v1331
  %v1333 = vpop.f32.mrf.mxu0
  %1334 = vmatprep.mubr.bf16.mxu0 0
  %1335 = vmatmul.mubr.bf16.gmra.mxu0 %v1254
  %v1336 = vpop.f32.mrf.mxu0
  %v1337 = vadd.f32 %v62, %v1336
  %v1338 = vpop.f32.mrf.mxu0
  %v1339 = vpop.f32.mrf.mxu0
  %v1340 = vadd.f32 %v62, %v1339
  %v1341 = vpop.f32.mrf.mxu0
  %1342 = vmatprep.mubr.bf16.mxu0 0
  %1343 = vmatmul.mubr.bf16.gmra.mxu0 %v1257
  %v1344 = vpop.f32.mrf.mxu0
  %v1345 = vadd.f32 %v62, %v1344
  %v1346 = vpop.f32.mrf.mxu0
  %v1347 = vpop.f32.mrf.mxu0
  %v1348 = vadd.f32 %v62, %v1347
  %v1349 = vpop.f32.mrf.mxu0
  %1350 = vmatprep.mubr.bf16.mxu0 0
  %1351 = vmatmul.mubr.bf16.gmra.mxu0 %v1260
  %v1352 = vpop.f32.mrf.mxu0
  %v1353 = vadd.f32 %v62, %v1352
  %v1354 = vpop.f32.mrf.mxu0
  %v1355 = vpop.f32.mrf.mxu0
  %v1356 = vadd.f32 %v62, %v1355
  %v1357 = vpop.f32.mrf.mxu0
  %1358 = vdwg.mxu0
  %v1359 = vmax.f32 %v1297, 0.0
  %v1360 = vmax.f32 %v1300, 0.0
  %v1361 = vmax.f32 %v1305, 0.0
  %v1362 = vmax.f32 %v1308, 0.0
  %v1363 = vmax.f32 %v1313, 0.0
  %v1364 = vmax.f32 %v1316, 0.0
  %v1365 = vmax.f32 %v1321, 0.0
  %v1366 = vmax.f32 %v1324, 0.0
  %v1367 = vmax.f32 %v1329, 0.0
  %v1368 = vmax.f32 %v1332, 0.0
  %v1369 = vmax.f32 %v1337, 0.0
  %v1370 = vmax.f32 %v1340, 0.0
  %v1371 = vmax.f32 %v1345, 0.0
  %v1372 = vmax.f32 %v1348, 0.0
  %v1373 = vmax.f32 %v1353, 0.0
  %v1374 = vmax.f32 %v1356, 0.0
  %v1375 = vmax.f32 %v1166, %v1359
  %v1376 = vmax.f32 %v1167, %v1360
  %v1377 = vmax.f32 %v1168, %v1361
  %v1378 = vmax.f32 %v1169, %v1362
  %v1379 = vmax.f32 %v1170, %v1363
  %v1380 = vmax.f32 %v1171, %v1364
  %v1381 = vmax.f32 %v1172, %v1365
  %v1382 = vmax.f32 %v1173, %v1366
  %v1383 = vmax.f32 %v1174, %v1367
  %v1384 = vmax.f32 %v1175, %v1368
  %v1385 = vmax.f32 %v1176, %v1369
  %v1386 = vmax.f32 %v1177, %v1370
  %v1387 = vmax.f32 %v1178, %v1371
  %v1388 = vmax.f32 %v1179, %v1372
  %v1389 = vmax.f32 %v1180, %v1373
  %v1390 = vmax.f32 %v1181, %v1374
  %v1391 = vld [vmem:[%s470 + $0x8] sm:$0xf]
  %v1392 = vld [vmem:[%s470 + $0xc] sm:$0xf]
  %v1393 = vld [vmem:[%s470 + $0x88] sm:$0xf]
  %v1394 = vld [vmem:[%s470 + $0x8c] sm:$0xf]
  %v1395 = vld [vmem:[%s470 + $0x108] sm:$0xf]
  %v1396 = vld [vmem:[%s470 + $0x10c] sm:$0xf]
  %v1397 = vld [vmem:[%s470 + $0x188] sm:$0xf]
  %v1398 = vld [vmem:[%s470 + $0x18c] sm:$0xf]
  %v1399 = vld [vmem:[%s470 + $0x208] sm:$0xf]
  %v1400 = vld [vmem:[%s470 + $0x20c] sm:$0xf]
  %v1401 = vld [vmem:[%s470 + $0x288] sm:$0xf]
  %v1402 = vld [vmem:[%s470 + $0x28c] sm:$0xf]
  %v1403 = vld [vmem:[%s470 + $0x308] sm:$0xf]
  %v1404 = vld [vmem:[%s470 + $0x30c] sm:$0xf]
  %v1405 = vld [vmem:[%s470 + $0x388] sm:$0xf]
  %v1406 = vld [vmem:[%s470 + $0x38c] sm:$0xf]
  %v1423 = vunpack.c.l.b16 %v1391
  %v1424 = vunpack.c.l.b16 %v1392
  %v1425 = vunpack.c.l.b16 %v1393
  %v1426 = vunpack.c.l.b16 %v1394
  %v1427 = vunpack.c.l.b16 %v1395
  %v1428 = vunpack.c.l.b16 %v1396
  %v1429 = vunpack.c.l.b16 %v1397
  %v1430 = vunpack.c.l.b16 %v1398
  %v1431 = vunpack.c.l.b16 %v1399
  %v1432 = vunpack.c.l.b16 %v1400
  %v1433 = vunpack.c.l.b16 %v1401
  %v1434 = vunpack.c.l.b16 %v1402
  %v1435 = vunpack.c.l.b16 %v1403
  %v1436 = vunpack.c.l.b16 %v1404
  %v1437 = vunpack.c.l.b16 %v1405
  %v1438 = vunpack.c.l.b16 %v1406
  %v1439 = vpack.c.b16 %v1424, %v1423
  %v1440 = vpack.c.b16 %v1426, %v1425
  %v1441 = vpack.c.b16 %v1428, %v1427
  %v1442 = vpack.c.b16 %v1430, %v1429
  %v1443 = vpack.c.b16 %v1432, %v1431
  %v1444 = vpack.c.b16 %v1434, %v1433
  %v1445 = vpack.c.b16 %v1436, %v1435
  %v1446 = vpack.c.b16 %v1438, %v1437
  %v1448 = vsel %vm115, %v1439, 0
  %v1451 = vsel %vm115, %v1440, 0
  %v1454 = vsel %vm115, %v1441, 0
  %v1457 = vsel %vm115, %v1442, 0
  %v1460 = vsel %vm115, %v1443, 0
  %v1463 = vsel %vm115, %v1444, 0
  %v1466 = vsel %vm115, %v1445, 0
  %v1469 = vsel %vm115, %v1446, 0
  %1471 = vmatprep.subr.bf16.mxu0 0
  %1472 = vmatpush1.bf16.msra.mxu0 0
  %1473 = vmatprep.subr.bf16.mxu0 0
  %1474 = vmatpush1.bf16.msra.mxu0 0
  %1475 = vmatprep.subr.bf16.mxu0 0
  %1476 = vmatpush1.bf16.msra.mxu0 0
  %1477 = vmatprep.subr.bf16.mxu0 0
  %1478 = vmatpush1.bf16.msra.mxu0 0
  %1479 = vmatprep.subr.bf16.mxu0 0
  %1480 = vmatpush1.bf16.msra.mxu0 0
  %1481 = vmatprep.subr.bf16.mxu0 0
  %1482 = vmatpush1.bf16.msra.mxu0 0
  %1483 = vmatprep.subr.bf16.mxu0 0
  %1484 = vmatpush1.bf16.msra.mxu0 %v1067
  %1485 = vmatprep.subr.bf16.mxu0 0
  %1486 = vmatpush1.bf16.msra.mxu0 %v1039
  %1487 = vmatprep.subr.bf16.mxu0 0
  %1488 = vmatpush2.bf16.msra.mxu0 0
  %1489 = vmatprep.subr.bf16.mxu0 0
  %1490 = vmatpush2.bf16.msra.mxu0 0
  %1491 = vmatprep.subr.bf16.mxu0 0
  %1492 = vmatpush2.bf16.msra.mxu0 0
  %1493 = vmatprep.subr.bf16.mxu0 0
  %1494 = vmatpush2.bf16.msra.mxu0 0
  %1495 = vmatprep.subr.bf16.mxu0 0
  %1496 = vmatpush2.bf16.msra.mxu0 0
  %1497 = vmatprep.subr.bf16.mxu0 0
  %1498 = vmatpush2.bf16.msra.mxu0 0
  %1499 = vmatprep.subr.bf16.mxu0 0
  %1500 = vmatpush2.bf16.msra.mxu0 0
  %1501 = vmatprep.subr.bf16.mxu0 0
  %1502 = vmatpush2.bf16.msra.mxu0 0
  %1503 = vmatprep.mubr.bf16.mxu0 0
  %1504 = vmatmul.mubr.bf16.gmra.mxu0 %v1448
  %v1505 = vpop.f32.mrf.mxu0
  %v1506 = vadd.f32 %v62, %v1505
  %v1507 = vpop.f32.mrf.mxu0
  %v1508 = vpop.f32.mrf.mxu0
  %v1509 = vadd.f32 %v62, %v1508
  %v1510 = vpop.f32.mrf.mxu0
  %1511 = vmatprep.mubr.bf16.mxu0 0
  %1512 = vmatmul.mubr.bf16.gmra.mxu0 %v1451
  %v1513 = vpop.f32.mrf.mxu0
  %v1514 = vadd.f32 %v62, %v1513
  %v1515 = vpop.f32.mrf.mxu0
  %v1516 = vpop.f32.mrf.mxu0
  %v1517 = vadd.f32 %v62, %v1516
  %v1518 = vpop.f32.mrf.mxu0
  %1519 = vmatprep.mubr.bf16.mxu0 0
  %1520 = vmatmul.mubr.bf16.gmra.mxu0 %v1454
  %v1521 = vpop.f32.mrf.mxu0
  %v1522 = vadd.f32 %v62, %v1521
  %v1523 = vpop.f32.mrf.mxu0
  %v1524 = vpop.f32.mrf.mxu0
  %v1525 = vadd.f32 %v62, %v1524
  %v1526 = vpop.f32.mrf.mxu0
  %1527 = vmatprep.mubr.bf16.mxu0 0
  %1528 = vmatmul.mubr.bf16.gmra.mxu0 %v1457
  %v1529 = vpop.f32.mrf.mxu0
  %v1530 = vadd.f32 %v62, %v1529
  %v1531 = vpop.f32.mrf.mxu0
  %v1532 = vpop.f32.mrf.mxu0
  %v1533 = vadd.f32 %v62, %v1532
  %v1534 = vpop.f32.mrf.mxu0
  %1535 = vmatprep.mubr.bf16.mxu0 0
  %1536 = vmatmul.mubr.bf16.gmra.mxu0 %v1460
  %v1537 = vpop.f32.mrf.mxu0
  %v1538 = vadd.f32 %v62, %v1537
  %v1539 = vpop.f32.mrf.mxu0
  %v1540 = vpop.f32.mrf.mxu0
  %v1541 = vadd.f32 %v62, %v1540
  %v1542 = vpop.f32.mrf.mxu0
  %1543 = vmatprep.mubr.bf16.mxu0 0
  %1544 = vmatmul.mubr.bf16.gmra.mxu0 %v1463
  %v1545 = vpop.f32.mrf.mxu0
  %v1546 = vadd.f32 %v62, %v1545
  %v1547 = vpop.f32.mrf.mxu0
  %v1548 = vpop.f32.mrf.mxu0
  %v1549 = vadd.f32 %v62, %v1548
  %v1550 = vpop.f32.mrf.mxu0
  %1551 = vmatprep.mubr.bf16.mxu0 0
  %1552 = vmatmul.mubr.bf16.gmra.mxu0 %v1466
  %v1553 = vpop.f32.mrf.mxu0
  %v1554 = vadd.f32 %v62, %v1553
  %v1555 = vpop.f32.mrf.mxu0
  %v1556 = vpop.f32.mrf.mxu0
  %v1557 = vadd.f32 %v62, %v1556
  %v1558 = vpop.f32.mrf.mxu0
  %1559 = vmatprep.mubr.bf16.mxu0 0
  %1560 = vmatmul.mubr.bf16.gmra.mxu0 %v1469
  %v1561 = vpop.f32.mrf.mxu0
  %v1562 = vadd.f32 %v62, %v1561
  %v1563 = vpop.f32.mrf.mxu0
  %v1564 = vpop.f32.mrf.mxu0
  %v1565 = vadd.f32 %v62, %v1564
  %v1566 = vpop.f32.mrf.mxu0
  %1567 = vdwg.mxu0
  %v1568 = vmax.f32 %v1506, 0.0
  %v1569 = vmax.f32 %v1509, 0.0
  %v1570 = vmax.f32 %v1514, 0.0
  %v1571 = vmax.f32 %v1517, 0.0
  %v1572 = vmax.f32 %v1522, 0.0
  %v1573 = vmax.f32 %v1525, 0.0
  %v1574 = vmax.f32 %v1530, 0.0
  %v1575 = vmax.f32 %v1533, 0.0
  %v1576 = vmax.f32 %v1538, 0.0
  %v1577 = vmax.f32 %v1541, 0.0
  %v1578 = vmax.f32 %v1546, 0.0
  %v1579 = vmax.f32 %v1549, 0.0
  %v1580 = vmax.f32 %v1554, 0.0
  %v1581 = vmax.f32 %v1557, 0.0
  %v1582 = vmax.f32 %v1562, 0.0
  %v1583 = vmax.f32 %v1565, 0.0
  %v1584 = vmax.f32 %v1375, %v1568
  %v1585 = vmax.f32 %v1376, %v1569
  %v1586 = vmax.f32 %v1377, %v1570
  %v1587 = vmax.f32 %v1378, %v1571
  %v1588 = vmax.f32 %v1379, %v1572
  %v1589 = vmax.f32 %v1380, %v1573
  %v1590 = vmax.f32 %v1381, %v1574
  %v1591 = vmax.f32 %v1382, %v1575
  %v1592 = vmax.f32 %v1383, %v1576
  %v1593 = vmax.f32 %v1384, %v1577
  %v1594 = vmax.f32 %v1385, %v1578
  %v1595 = vmax.f32 %v1386, %v1579
  %v1596 = vmax.f32 %v1387, %v1580
  %v1597 = vmax.f32 %v1388, %v1581
  %v1598 = vmax.f32 %v1389, %v1582
  %v1599 = vmax.f32 %v1390, %v1583
  %v1600 = vld [vmem:[%s680 + $0x8] sm:$0xf]
  %v1601 = vld [vmem:[%s680 + $0xc] sm:$0xf]
  %v1602 = vld [vmem:[%s680 + $0x88] sm:$0xf]
  %v1603 = vld [vmem:[%s680 + $0x8c] sm:$0xf]
  %v1604 = vld [vmem:[%s680 + $0x108] sm:$0xf]
  %v1605 = vld [vmem:[%s680 + $0x10c] sm:$0xf]
  %v1606 = vld [vmem:[%s680 + $0x188] sm:$0xf]
  %v1607 = vld [vmem:[%s680 + $0x18c] sm:$0xf]
  %v1608 = vld [vmem:[%s680 + $0x208] sm:$0xf]
  %v1609 = vld [vmem:[%s680 + $0x20c] sm:$0xf]
  %v1610 = vld [vmem:[%s680 + $0x288] sm:$0xf]
  %v1611 = vld [vmem:[%s680 + $0x28c] sm:$0xf]
  %v1612 = vld [vmem:[%s680 + $0x308] sm:$0xf]
  %v1613 = vld [vmem:[%s680 + $0x30c] sm:$0xf]
  %v1614 = vld [vmem:[%s680 + $0x388] sm:$0xf]
  %v1615 = vld [vmem:[%s680 + $0x38c] sm:$0xf]
  %v1632 = vunpack.c.l.b16 %v1600
  %v1633 = vunpack.c.l.b16 %v1601
  %v1634 = vunpack.c.l.b16 %v1602
  %v1635 = vunpack.c.l.b16 %v1603
  %v1636 = vunpack.c.l.b16 %v1604
  %v1637 = vunpack.c.l.b16 %v1605
  %v1638 = vunpack.c.l.b16 %v1606
  %v1639 = vunpack.c.l.b16 %v1607
  %v1640 = vunpack.c.l.b16 %v1608
  %v1641 = vunpack.c.l.b16 %v1609
  %v1642 = vunpack.c.l.b16 %v1610
  %v1643 = vunpack.c.l.b16 %v1611
  %v1644 = vunpack.c.l.b16 %v1612
  %v1645 = vunpack.c.l.b16 %v1613
  %v1646 = vunpack.c.l.b16 %v1614
  %v1647 = vunpack.c.l.b16 %v1615
  %v1648 = vpack.c.b16 %v1633, %v1632
  %v1649 = vpack.c.b16 %v1635, %v1634
  %v1650 = vpack.c.b16 %v1637, %v1636
  %v1651 = vpack.c.b16 %v1639, %v1638
  %v1652 = vpack.c.b16 %v1641, %v1640
  %v1653 = vpack.c.b16 %v1643, %v1642
  %v1654 = vpack.c.b16 %v1645, %v1644
  %v1655 = vpack.c.b16 %v1647, %v1646
  %v1657 = vsel %vm115, %v1648, 0
  %v1660 = vsel %vm115, %v1649, 0
  %v1663 = vsel %vm115, %v1650, 0
  %v1666 = vsel %vm115, %v1651, 0
  %v1669 = vsel %vm115, %v1652, 0
  %v1672 = vsel %vm115, %v1653, 0
  %v1675 = vsel %vm115, %v1654, 0
  %v1678 = vsel %vm115, %v1655, 0
  %1680 = vmatprep.subr.bf16.mxu0 0
  %1681 = vmatpush1.bf16.msra.mxu0 0
  %1682 = vmatprep.subr.bf16.mxu0 0
  %1683 = vmatpush1.bf16.msra.mxu0 0
  %1684 = vmatprep.subr.bf16.mxu0 0
  %1685 = vmatpush1.bf16.msra.mxu0 0
  %1686 = vmatprep.subr.bf16.mxu0 0
  %1687 = vmatpush1.bf16.msra.mxu0 0
  %1688 = vmatprep.subr.bf16.mxu0 0
  %1689 = vmatpush1.bf16.msra.mxu0 0
  %1690 = vmatprep.subr.bf16.mxu0 0
  %1691 = vmatpush1.bf16.msra.mxu0 0
  %1692 = vmatprep.subr.bf16.mxu0 0
  %1693 = vmatpush1.bf16.msra.mxu0 %v1067
  %1694 = vmatprep.subr.bf16.mxu0 0
  %1695 = vmatpush1.bf16.msra.mxu0 %v1039
  %1696 = vmatprep.subr.bf16.mxu0 0
  %1697 = vmatpush2.bf16.msra.mxu0 0
  %1698 = vmatprep.subr.bf16.mxu0 0
  %1699 = vmatpush2.bf16.msra.mxu0 0
  %1700 = vmatprep.subr.bf16.mxu0 0
  %1701 = vmatpush2.bf16.msra.mxu0 0
  %1702 = vmatprep.subr.bf16.mxu0 0
  %1703 = vmatpush2.bf16.msra.mxu0 0
  %1704 = vmatprep.subr.bf16.mxu0 0
  %1705 = vmatpush2.bf16.msra.mxu0 0
  %1706 = vmatprep.subr.bf16.mxu0 0
  %1707 = vmatpush2.bf16.msra.mxu0 0
  %1708 = vmatprep.subr.bf16.mxu0 0
  %1709 = vmatpush2.bf16.msra.mxu0 0
  %1710 = vmatprep.subr.bf16.mxu0 0
  %1711 = vmatpush2.bf16.msra.mxu0 0
  %1712 = vmatprep.mubr.bf16.mxu0 0
  %1713 = vmatmul.mubr.bf16.gmra.mxu0 %v1657
  %v1714 = vpop.f32.mrf.mxu0
  %v1715 = vadd.f32 %v62, %v1714
  %v1716 = vpop.f32.mrf.mxu0
  %v1717 = vpop.f32.mrf.mxu0
  %v1718 = vadd.f32 %v62, %v1717
  %v1719 = vpop.f32.mrf.mxu0
  %1720 = vmatprep.mubr.bf16.mxu0 0
  %1721 = vmatmul.mubr.bf16.gmra.mxu0 %v1660
  %v1722 = vpop.f32.mrf.mxu0
  %v1723 = vadd.f32 %v62, %v1722
  %v1724 = vpop.f32.mrf.mxu0
  %v1725 = vpop.f32.mrf.mxu0
  %v1726 = vadd.f32 %v62, %v1725
  %v1727 = vpop.f32.mrf.mxu0
  %1728 = vmatprep.mubr.bf16.mxu0 0
  %1729 = vmatmul.mubr.bf16.gmra.mxu0 %v1663
  %v1730 = vpop.f32.mrf.mxu0
  %v1731 = vadd.f32 %v62, %v1730
  %v1732 = vpop.f32.mrf.mxu0
  %v1733 = vpop.f32.mrf.mxu0
  %v1734 = vadd.f32 %v62, %v1733
  %v1735 = vpop.f32.mrf.mxu0
  %1736 = vmatprep.mubr.bf16.mxu0 0
  %1737 = vmatmul.mubr.bf16.gmra.mxu0 %v1666
  %v1738 = vpop.f32.mrf.mxu0
  %v1739 = vadd.f32 %v62, %v1738
  %v1740 = vpop.f32.mrf.mxu0
  %v1741 = vpop.f32.mrf.mxu0
  %v1742 = vadd.f32 %v62, %v1741
  %v1743 = vpop.f32.mrf.mxu0
  %1744 = vmatprep.mubr.bf16.mxu0 0
  %1745 = vmatmul.mubr.bf16.gmra.mxu0 %v1669
  %v1746 = vpop.f32.mrf.mxu0
  %v1747 = vadd.f32 %v62, %v1746
  %v1748 = vpop.f32.mrf.mxu0
  %v1749 = vpop.f32.mrf.mxu0
  %v1750 = vadd.f32 %v62, %v1749
  %v1751 = vpop.f32.mrf.mxu0
  %1752 = vmatprep.mubr.bf16.mxu0 0
  %1753 = vmatmul.mubr.bf16.gmra.mxu0 %v1672
  %v1754 = vpop.f32.mrf.mxu0
  %v1755 = vadd.f32 %v62, %v1754
  %v1756 = vpop.f32.mrf.mxu0
  %v1757 = vpop.f32.mrf.mxu0
  %v1758 = vadd.f32 %v62, %v1757
  %v1759 = vpop.f32.mrf.mxu0
  %1760 = vmatprep.mubr.bf16.mxu0 0
  %1761 = vmatmul.mubr.bf16.gmra.mxu0 %v1675
  %v1762 = vpop.f32.mrf.mxu0
  %v1763 = vadd.f32 %v62, %v1762
  %v1764 = vpop.f32.mrf.mxu0
  %v1765 = vpop.f32.mrf.mxu0
  %v1766 = vadd.f32 %v62, %v1765
  %v1767 = vpop.f32.mrf.mxu0
  %1768 = vmatprep.mubr.bf16.mxu0 0
  %1769 = vmatmul.mubr.bf16.gmra.mxu0 %v1678
  %v1770 = vpop.f32.mrf.mxu0
  %v1771 = vadd.f32 %v62, %v1770
  %v1772 = vpop.f32.mrf.mxu0
  %v1773 = vpop.f32.mrf.mxu0
  %v1774 = vadd.f32 %v62, %v1773
  %v1775 = vpop.f32.mrf.mxu0
  %1776 = vdwg.mxu0
  %v1777 = vmax.f32 %v1715, 0.0
  %v1778 = vmax.f32 %v1718, 0.0
  %v1779 = vmax.f32 %v1723, 0.0
  %v1780 = vmax.f32 %v1726, 0.0
  %v1781 = vmax.f32 %v1731, 0.0
  %v1782 = vmax.f32 %v1734, 0.0
  %v1783 = vmax.f32 %v1739, 0.0
  %v1784 = vmax.f32 %v1742, 0.0
  %v1785 = vmax.f32 %v1747, 0.0
  %v1786 = vmax.f32 %v1750, 0.0
  %v1787 = vmax.f32 %v1755, 0.0
  %v1788 = vmax.f32 %v1758, 0.0
  %v1789 = vmax.f32 %v1763, 0.0
  %v1790 = vmax.f32 %v1766, 0.0
  %v1791 = vmax.f32 %v1771, 0.0
  %v1792 = vmax.f32 %v1774, 0.0
  %v1793 = vmax.f32 %v1584, %v1777
  %v1794 = vmax.f32 %v1585, %v1778
  %v1795 = vmax.f32 %v1586, %v1779
  %v1796 = vmax.f32 %v1587, %v1780
  %v1797 = vmax.f32 %v1588, %v1781
  %v1798 = vmax.f32 %v1589, %v1782
  %v1799 = vmax.f32 %v1590, %v1783
  %v1800 = vmax.f32 %v1591, %v1784
  %v1801 = vmax.f32 %v1592, %v1785
  %v1802 = vmax.f32 %v1593, %v1786
  %v1803 = vmax.f32 %v1594, %v1787
  %v1804 = vmax.f32 %v1595, %v1788
  %v1805 = vmax.f32 %v1596, %v1789
  %v1806 = vmax.f32 %v1597, %v1790
  %v1807 = vmax.f32 %v1598, %v1791
  %v1808 = vmax.f32 %v1599, %v1792
  %v1809 = vpack.c.bf16 %v1794, %v1793
  %v1810 = vpack.c.bf16 %v1796, %v1795
  %v1811 = vpack.c.bf16 %v1798, %v1797
  %v1812 = vpack.c.bf16 %v1800, %v1799
  %v1813 = vpack.c.bf16 %v1802, %v1801
  %v1814 = vpack.c.bf16 %v1804, %v1803
  %v1815 = vpack.c.bf16 %v1806, %v1805
  %v1816 = vpack.c.bf16 %v1808, %v1807
  %v1825 = vunpack.c.l.b16 %v1809
  %v1826 = vunpack.c.h.b16 %v1809
  %v1827 = vunpack.c.l.b16 %v1810
  %v1828 = vunpack.c.h.b16 %v1810
  %v1829 = vunpack.c.l.b16 %v1811
  %v1830 = vunpack.c.h.b16 %v1811
  %v1831 = vunpack.c.l.b16 %v1812
  %v1832 = vunpack.c.h.b16 %v1812
  %v1833 = vunpack.c.l.b16 %v1813
  %v1834 = vunpack.c.h.b16 %v1813
  %v1835 = vunpack.c.l.b16 %v1814
  %v1836 = vunpack.c.h.b16 %v1814
  %v1837 = vunpack.c.l.b16 %v1815
  %v1838 = vunpack.c.h.b16 %v1815
  %v1839 = vunpack.c.l.b16 %v1816
  %v1840 = vunpack.c.h.b16 %v1816
  %v1841 = vpack.c.b16 %v1825, %v1825
  %v1842 = vpack.c.b16 %v1826, %v1826
  %v1843 = vpack.c.b16 %v1827, %v1827
  %v1844 = vpack.c.b16 %v1828, %v1828
  %v1845 = vpack.c.b16 %v1829, %v1829
  %v1846 = vpack.c.b16 %v1830, %v1830
  %v1847 = vpack.c.b16 %v1831, %v1831
  %v1848 = vpack.c.b16 %v1832, %v1832
  %v1849 = vpack.c.b16 %v1833, %v1833
  %v1850 = vpack.c.b16 %v1834, %v1834
  %v1851 = vpack.c.b16 %v1835, %v1835
  %v1852 = vpack.c.b16 %v1836, %v1836
  %v1853 = vpack.c.b16 %v1837, %v1837
  %v1854 = vpack.c.b16 %v1838, %v1838
  %v1855 = vpack.c.b16 %v1839, %v1839
  %v1856 = vpack.c.b16 %v1840, %v1840
  %1873 = vst.msk [vmem:[#allocation2 + $0x8] sm:$0xf] %vm954, %v1841
  %1874 = vst.msk [vmem:[#allocation2 + $0xc] sm:$0xf] %vm954, %v1842
  %1875 = vst.msk [vmem:[#allocation2 + $0x28] sm:$0xf] %vm954, %v1843
  %1876 = vst.msk [vmem:[#allocation2 + $0x2c] sm:$0xf] %vm954, %v1844
  %1877 = vst.msk [vmem:[#allocation2 + $0x48] sm:$0xf] %vm954, %v1845
  %1878 = vst.msk [vmem:[#allocation2 + $0x4c] sm:$0xf] %vm954, %v1846
  %1879 = vst.msk [vmem:[#allocation2 + $0x68] sm:$0xf] %vm954, %v1847
  %1880 = vst.msk [vmem:[#allocation2 + $0x6c] sm:$0xf] %vm954, %v1848
  %1881 = vst.msk [vmem:[#allocation2 + $0x88] sm:$0xf] %vm954, %v1849
  %1882 = vst.msk [vmem:[#allocation2 + $0x8c] sm:$0xf] %vm954, %v1850
  %1883 = vst.msk [vmem:[#allocation2 + $0xa8] sm:$0xf] %vm954, %v1851
  %1884 = vst.msk [vmem:[#allocation2 + $0xac] sm:$0xf] %vm954, %v1852
  %1885 = vst.msk [vmem:[#allocation2 + $0xc8] sm:$0xf] %vm954, %v1853
  %1886 = vst.msk [vmem:[#allocation2 + $0xcc] sm:$0xf] %vm954, %v1854
  %1887 = vst.msk [vmem:[#allocation2 + $0xe8] sm:$0xf] %vm954, %v1855
  %1888 = vst.msk [vmem:[#allocation2 + $0xec] sm:$0xf] %vm954, %v1856
  %v1889 = vld [vmem:[%s0 + $0x10] sm:$0xf]
  %v1890 = vld [vmem:[%s0 + $0x14] sm:$0xf]
  %v1891 = vld [vmem:[%s0 + $0x90] sm:$0xf]
  %v1892 = vld [vmem:[%s0 + $0x94] sm:$0xf]
  %v1893 = vld [vmem:[%s0 + $0x110] sm:$0xf]
  %v1894 = vld [vmem:[%s0 + $0x114] sm:$0xf]
  %v1895 = vld [vmem:[%s0 + $0x190] sm:$0xf]
  %v1896 = vld [vmem:[%s0 + $0x194] sm:$0xf]
  %v1897 = vld [vmem:[%s0 + $0x210] sm:$0xf]
  %v1898 = vld [vmem:[%s0 + $0x214] sm:$0xf]
  %v1899 = vld [vmem:[%s0 + $0x290] sm:$0xf]
  %v1900 = vld [vmem:[%s0 + $0x294] sm:$0xf]
  %v1901 = vld [vmem:[%s0 + $0x310] sm:$0xf]
  %v1902 = vld [vmem:[%s0 + $0x314] sm:$0xf]
  %v1903 = vld [vmem:[%s0 + $0x390] sm:$0xf]
  %v1904 = vld [vmem:[%s0 + $0x394] sm:$0xf]
  %v1905 = vld [vmem:[%s2] sm:$0xf]
  %v1906 = vld [vmem:[%s2 + $0x4] sm:$0xf]
  %v1907 = vld [vmem:[%s2 + $0x8] sm:$0xf]
  %v1908 = vld [vmem:[%s2 + $0xc] sm:$0x3]
  %v1925 = vunpack.c.l.b16 %v1889
  %v1926 = vunpack.c.l.b16 %v1890
  %v1927 = vunpack.c.l.b16 %v1891
  %v1928 = vunpack.c.l.b16 %v1892
  %v1929 = vunpack.c.l.b16 %v1893
  %v1930 = vunpack.c.l.b16 %v1894
  %v1931 = vunpack.c.l.b16 %v1895
  %v1932 = vunpack.c.l.b16 %v1896
  %v1933 = vunpack.c.l.b16 %v1897
  %v1934 = vunpack.c.l.b16 %v1898
  %v1935 = vunpack.c.l.b16 %v1899
  %v1936 = vunpack.c.l.b16 %v1900
  %v1937 = vunpack.c.l.b16 %v1901
  %v1938 = vunpack.c.l.b16 %v1902
  %v1939 = vunpack.c.l.b16 %v1903
  %v1940 = vunpack.c.l.b16 %v1904
  %v1941 = vpack.c.b16 %v1926, %v1925
  %v1942 = vpack.c.b16 %v1928, %v1927
  %v1943 = vpack.c.b16 %v1930, %v1929
  %v1944 = vpack.c.b16 %v1932, %v1931
  %v1945 = vpack.c.b16 %v1934, %v1933
  %v1946 = vpack.c.b16 %v1936, %v1935
  %v1947 = vpack.c.b16 %v1938, %v1937
  %v1948 = vpack.c.b16 %v1940, %v1939
  %v1953 = vunpack.c.l.b16 %v1905
  %v1954 = vunpack.c.l.b16 %v1906
  %v1955 = vunpack.c.l.b16 %v1907
  %v1956 = vunpack.c.l.b16 %v1908
  %v1957 = vpack.c.b16 %v1954, %v1953
  %v1958 = vpack.c.b16 %v1956, %v1955
  %v1961 = vsel %vm115, %v1941, 0
  %v1964 = vsel %vm115, %v1942, 0
  %v1967 = vsel %vm115, %v1943, 0
  %v1970 = vsel %vm115, %v1944, 0
  %v1973 = vsel %vm115, %v1945, 0
  %v1976 = vsel %vm115, %v1946, 0
  %v1979 = vsel %vm115, %v1947, 0
  %v1982 = vsel %vm115, %v1948, 0
  %v1985 = vand.u32 %v1958, %v143
  %1987 = vmatprep.subr.bf16.mxu0 0
  %1988 = vmatpush1.bf16.msra.mxu0 0
  %1989 = vmatprep.subr.bf16.mxu0 0
  %1990 = vmatpush1.bf16.msra.mxu0 0
  %1991 = vmatprep.subr.bf16.mxu0 0
  %1992 = vmatpush1.bf16.msra.mxu0 0
  %1993 = vmatprep.subr.bf16.mxu0 0
  %1994 = vmatpush1.bf16.msra.mxu0 0
  %1995 = vmatprep.subr.bf16.mxu0 0
  %1996 = vmatpush1.bf16.msra.mxu0 0
  %1997 = vmatprep.subr.bf16.mxu0 0
  %1998 = vmatpush1.bf16.msra.mxu0 0
  %1999 = vmatprep.subr.bf16.mxu0 0
  %2000 = vmatpush1.bf16.msra.mxu0 %v1985
  %2001 = vmatprep.subr.bf16.mxu0 0
  %2002 = vmatpush1.bf16.msra.mxu0 %v1957
  %2003 = vmatprep.subr.bf16.mxu0 0
  %2004 = vmatpush2.bf16.msra.mxu0 0
  %2005 = vmatprep.subr.bf16.mxu0 0
  %2006 = vmatpush2.bf16.msra.mxu0 0
  %2007 = vmatprep.subr.bf16.mxu0 0
  %2008 = vmatpush2.bf16.msra.mxu0 0
  %2009 = vmatprep.subr.bf16.mxu0 0
  %2010 = vmatpush2.bf16.msra.mxu0 0
  %2011 = vmatprep.subr.bf16.mxu0 0
  %2012 = vmatpush2.bf16.msra.mxu0 0
  %2013 = vmatprep.subr.bf16.mxu0 0
  %2014 = vmatpush2.bf16.msra.mxu0 0
  %2015 = vmatprep.subr.bf16.mxu0 0
  %2016 = vmatpush2.bf16.msra.mxu0 0
  %2017 = vmatprep.subr.bf16.mxu0 0
  %2018 = vmatpush2.bf16.msra.mxu0 0
  %2019 = vmatprep.mubr.bf16.mxu0 0
  %2020 = vmatmul.mubr.bf16.gmra.mxu0 %v1961
  %v2021 = vpop.f32.mrf.mxu0
  %v2022 = vadd.f32 %v62, %v2021
  %v2023 = vpop.f32.mrf.mxu0
  %v2024 = vpop.f32.mrf.mxu0
  %v2025 = vadd.f32 %v62, %v2024
  %v2026 = vpop.f32.mrf.mxu0
  %2027 = vmatprep.mubr.bf16.mxu0 0
  %2028 = vmatmul.mubr.bf16.gmra.mxu0 %v1964
  %v2029 = vpop.f32.mrf.mxu0
  %v2030 = vadd.f32 %v62, %v2029
  %v2031 = vpop.f32.mrf.mxu0
  %v2032 = vpop.f32.mrf.mxu0
  %v2033 = vadd.f32 %v62, %v2032
  %v2034 = vpop.f32.mrf.mxu0
  %2035 = vmatprep.mubr.bf16.mxu0 0
  %2036 = vmatmul.mubr.bf16.gmra.mxu0 %v1967
  %v2037 = vpop.f32.mrf.mxu0
  %v2038 = vadd.f32 %v62, %v2037
  %v2039 = vpop.f32.mrf.mxu0
  %v2040 = vpop.f32.mrf.mxu0
  %v2041 = vadd.f32 %v62, %v2040
  %v2042 = vpop.f32.mrf.mxu0
  %2043 = vmatprep.mubr.bf16.mxu0 0
  %2044 = vmatmul.mubr.bf16.gmra.mxu0 %v1970
  %v2045 = vpop.f32.mrf.mxu0
  %v2046 = vadd.f32 %v62, %v2045
  %v2047 = vpop.f32.mrf.mxu0
  %v2048 = vpop.f32.mrf.mxu0
  %v2049 = vadd.f32 %v62, %v2048
  %v2050 = vpop.f32.mrf.mxu0
  %2051 = vmatprep.mubr.bf16.mxu0 0
  %2052 = vmatmul.mubr.bf16.gmra.mxu0 %v1973
  %v2053 = vpop.f32.mrf.mxu0
  %v2054 = vadd.f32 %v62, %v2053
  %v2055 = vpop.f32.mrf.mxu0
  %v2056 = vpop.f32.mrf.mxu0
  %v2057 = vadd.f32 %v62, %v2056
  %v2058 = vpop.f32.mrf.mxu0
  %2059 = vmatprep.mubr.bf16.mxu0 0
  %2060 = vmatmul.mubr.bf16.gmra.mxu0 %v1976
  %v2061 = vpop.f32.mrf.mxu0
  %v2062 = vadd.f32 %v62, %v2061
  %v2063 = vpop.f32.mrf.mxu0
  %v2064 = vpop.f32.mrf.mxu0
  %v2065 = vadd.f32 %v62, %v2064
  %v2066 = vpop.f32.mrf.mxu0
  %2067 = vmatprep.mubr.bf16.mxu0 0
  %2068 = vmatmul.mubr.bf16.gmra.mxu0 %v1979
  %v2069 = vpop.f32.mrf.mxu0
  %v2070 = vadd.f32 %v62, %v2069
  %v2071 = vpop.f32.mrf.mxu0
  %v2072 = vpop.f32.mrf.mxu0
  %v2073 = vadd.f32 %v62, %v2072
  %v2074 = vpop.f32.mrf.mxu0
  %2075 = vmatprep.mubr.bf16.mxu0 0
  %2076 = vmatmul.mubr.bf16.gmra.mxu0 %v1982
  %v2077 = vpop.f32.mrf.mxu0
  %v2078 = vadd.f32 %v62, %v2077
  %v2079 = vpop.f32.mrf.mxu0
  %v2080 = vpop.f32.mrf.mxu0
  %v2081 = vadd.f32 %v62, %v2080
  %v2082 = vpop.f32.mrf.mxu0
  %2083 = vdwg.mxu0
  %v2084 = vmax.f32 %v2022, 0.0
  %v2085 = vmax.f32 %v2025, 0.0
  %v2086 = vmax.f32 %v2030, 0.0
  %v2087 = vmax.f32 %v2033, 0.0
  %v2088 = vmax.f32 %v2038, 0.0
  %v2089 = vmax.f32 %v2041, 0.0
  %v2090 = vmax.f32 %v2046, 0.0
  %v2091 = vmax.f32 %v2049, 0.0
  %v2092 = vmax.f32 %v2054, 0.0
  %v2093 = vmax.f32 %v2057, 0.0
  %v2094 = vmax.f32 %v2062, 0.0
  %v2095 = vmax.f32 %v2065, 0.0
  %v2096 = vmax.f32 %v2070, 0.0
  %v2097 = vmax.f32 %v2073, 0.0
  %v2098 = vmax.f32 %v2078, 0.0
  %v2099 = vmax.f32 %v2081, 0.0
  %v2100 = vld [vmem:[%s260 + $0x10] sm:$0xf]
  %v2101 = vld [vmem:[%s260 + $0x14] sm:$0xf]
  %v2102 = vld [vmem:[%s260 + $0x90] sm:$0xf]
  %v2103 = vld [vmem:[%s260 + $0x94] sm:$0xf]
  %v2104 = vld [vmem:[%s260 + $0x110] sm:$0xf]
  %v2105 = vld [vmem:[%s260 + $0x114] sm:$0xf]
  %v2106 = vld [vmem:[%s260 + $0x190] sm:$0xf]
  %v2107 = vld [vmem:[%s260 + $0x194] sm:$0xf]
  %v2108 = vld [vmem:[%s260 + $0x210] sm:$0xf]
  %v2109 = vld [vmem:[%s260 + $0x214] sm:$0xf]
  %v2110 = vld [vmem:[%s260 + $0x290] sm:$0xf]
  %v2111 = vld [vmem:[%s260 + $0x294] sm:$0xf]
  %v2112 = vld [vmem:[%s260 + $0x310] sm:$0xf]
  %v2113 = vld [vmem:[%s260 + $0x314] sm:$0xf]
  %v2114 = vld [vmem:[%s260 + $0x390] sm:$0xf]
  %v2115 = vld [vmem:[%s260 + $0x394] sm:$0xf]
  %v2132 = vunpack.c.l.b16 %v2100
  %v2133 = vunpack.c.l.b16 %v2101
  %v2134 = vunpack.c.l.b16 %v2102
  %v2135 = vunpack.c.l.b16 %v2103
  %v2136 = vunpack.c.l.b16 %v2104
  %v2137 = vunpack.c.l.b16 %v2105
  %v2138 = vunpack.c.l.b16 %v2106
  %v2139 = vunpack.c.l.b16 %v2107
  %v2140 = vunpack.c.l.b16 %v2108
  %v2141 = vunpack.c.l.b16 %v2109
  %v2142 = vunpack.c.l.b16 %v2110
  %v2143 = vunpack.c.l.b16 %v2111
  %v2144 = vunpack.c.l.b16 %v2112
  %v2145 = vunpack.c.l.b16 %v2113
  %v2146 = vunpack.c.l.b16 %v2114
  %v2147 = vunpack.c.l.b16 %v2115
  %v2148 = vpack.c.b16 %v2133, %v2132
  %v2149 = vpack.c.b16 %v2135, %v2134
  %v2150 = vpack.c.b16 %v2137, %v2136
  %v2151 = vpack.c.b16 %v2139, %v2138
  %v2152 = vpack.c.b16 %v2141, %v2140
  %v2153 = vpack.c.b16 %v2143, %v2142
  %v2154 = vpack.c.b16 %v2145, %v2144
  %v2155 = vpack.c.b16 %v2147, %v2146
  %v2157 = vsel %vm115, %v2148, 0
  %v2160 = vsel %vm115, %v2149, 0
  %v2163 = vsel %vm115, %v2150, 0
  %v2166 = vsel %vm115, %v2151, 0
  %v2169 = vsel %vm115, %v2152, 0
  %v2172 = vsel %vm115, %v2153, 0
  %v2175 = vsel %vm115, %v2154, 0
  %v2178 = vsel %vm115, %v2155, 0
  %2180 = vmatprep.subr.bf16.mxu0 0
  %2181 = vmatpush1.bf16.msra.mxu0 0
  %2182 = vmatprep.subr.bf16.mxu0 0
  %2183 = vmatpush1.bf16.msra.mxu0 0
  %2184 = vmatprep.subr.bf16.mxu0 0
  %2185 = vmatpush1.bf16.msra.mxu0 0
  %2186 = vmatprep.subr.bf16.mxu0 0
  %2187 = vmatpush1.bf16.msra.mxu0 0
  %2188 = vmatprep.subr.bf16.mxu0 0
  %2189 = vmatpush1.bf16.msra.mxu0 0
  %2190 = vmatprep.subr.bf16.mxu0 0
  %2191 = vmatpush1.bf16.msra.mxu0 0
  %2192 = vmatprep.subr.bf16.mxu0 0
  %2193 = vmatpush1.bf16.msra.mxu0 %v1985
  %2194 = vmatprep.subr.bf16.mxu0 0
  %2195 = vmatpush1.bf16.msra.mxu0 %v1957
  %2196 = vmatprep.subr.bf16.mxu0 0
  %2197 = vmatpush2.bf16.msra.mxu0 0
  %2198 = vmatprep.subr.bf16.mxu0 0
  %2199 = vmatpush2.bf16.msra.mxu0 0
  %2200 = vmatprep.subr.bf16.mxu0 0
  %2201 = vmatpush2.bf16.msra.mxu0 0
  %2202 = vmatprep.subr.bf16.mxu0 0
  %2203 = vmatpush2.bf16.msra.mxu0 0
  %2204 = vmatprep.subr.bf16.mxu0 0
  %2205 = vmatpush2.bf16.msra.mxu0 0
  %2206 = vmatprep.subr.bf16.mxu0 0
  %2207 = vmatpush2.bf16.msra.mxu0 0
  %2208 = vmatprep.subr.bf16.mxu0 0
  %2209 = vmatpush2.bf16.msra.mxu0 0
  %2210 = vmatprep.subr.bf16.mxu0 0
  %2211 = vmatpush2.bf16.msra.mxu0 0
  %2212 = vmatprep.mubr.bf16.mxu0 0
  %2213 = vmatmul.mubr.bf16.gmra.mxu0 %v2157
  %v2214 = vpop.f32.mrf.mxu0
  %v2215 = vadd.f32 %v62, %v2214
  %v2216 = vpop.f32.mrf.mxu0
  %v2217 = vpop.f32.mrf.mxu0
  %v2218 = vadd.f32 %v62, %v2217
  %v2219 = vpop.f32.mrf.mxu0
  %2220 = vmatprep.mubr.bf16.mxu0 0
  %2221 = vmatmul.mubr.bf16.gmra.mxu0 %v2160
  %v2222 = vpop.f32.mrf.mxu0
  %v2223 = vadd.f32 %v62, %v2222
  %v2224 = vpop.f32.mrf.mxu0
  %v2225 = vpop.f32.mrf.mxu0
  %v2226 = vadd.f32 %v62, %v2225
  %v2227 = vpop.f32.mrf.mxu0
  %2228 = vmatprep.mubr.bf16.mxu0 0
  %2229 = vmatmul.mubr.bf16.gmra.mxu0 %v2163
  %v2230 = vpop.f32.mrf.mxu0
  %v2231 = vadd.f32 %v62, %v2230
  %v2232 = vpop.f32.mrf.mxu0
  %v2233 = vpop.f32.mrf.mxu0
  %v2234 = vadd.f32 %v62, %v2233
  %v2235 = vpop.f32.mrf.mxu0
  %2236 = vmatprep.mubr.bf16.mxu0 0
  %2237 = vmatmul.mubr.bf16.gmra.mxu0 %v2166
  %v2238 = vpop.f32.mrf.mxu0
  %v2239 = vadd.f32 %v62, %v2238
  %v2240 = vpop.f32.mrf.mxu0
  %v2241 = vpop.f32.mrf.mxu0
  %v2242 = vadd.f32 %v62, %v2241
  %v2243 = vpop.f32.mrf.mxu0
  %2244 = vmatprep.mubr.bf16.mxu0 0
  %2245 = vmatmul.mubr.bf16.gmra.mxu0 %v2169
  %v2246 = vpop.f32.mrf.mxu0
  %v2247 = vadd.f32 %v62, %v2246
  %v2248 = vpop.f32.mrf.mxu0
  %v2249 = vpop.f32.mrf.mxu0
  %v2250 = vadd.f32 %v62, %v2249
  %v2251 = vpop.f32.mrf.mxu0
  %2252 = vmatprep.mubr.bf16.mxu0 0
  %2253 = vmatmul.mubr.bf16.gmra.mxu0 %v2172
  %v2254 = vpop.f32.mrf.mxu0
  %v2255 = vadd.f32 %v62, %v2254
  %v2256 = vpop.f32.mrf.mxu0
  %v2257 = vpop.f32.mrf.mxu0
  %v2258 = vadd.f32 %v62, %v2257
  %v2259 = vpop.f32.mrf.mxu0
  %2260 = vmatprep.mubr.bf16.mxu0 0
  %2261 = vmatmul.mubr.bf16.gmra.mxu0 %v2175
  %v2262 = vpop.f32.mrf.mxu0
  %v2263 = vadd.f32 %v62, %v2262
  %v2264 = vpop.f32.mrf.mxu0
  %v2265 = vpop.f32.mrf.mxu0
  %v2266 = vadd.f32 %v62, %v2265
  %v2267 = vpop.f32.mrf.mxu0
  %2268 = vmatprep.mubr.bf16.mxu0 0
  %2269 = vmatmul.mubr.bf16.gmra.mxu0 %v2178
  %v2270 = vpop.f32.mrf.mxu0
  %v2271 = vadd.f32 %v62, %v2270
  %v2272 = vpop.f32.mrf.mxu0
  %v2273 = vpop.f32.mrf.mxu0
  %v2274 = vadd.f32 %v62, %v2273
  %v2275 = vpop.f32.mrf.mxu0
  %2276 = vdwg.mxu0
  %v2277 = vmax.f32 %v2215, 0.0
  %v2278 = vmax.f32 %v2218, 0.0
  %v2279 = vmax.f32 %v2223, 0.0
  %v2280 = vmax.f32 %v2226, 0.0
  %v2281 = vmax.f32 %v2231, 0.0
  %v2282 = vmax.f32 %v2234, 0.0
  %v2283 = vmax.f32 %v2239, 0.0
  %v2284 = vmax.f32 %v2242, 0.0
  %v2285 = vmax.f32 %v2247, 0.0
  %v2286 = vmax.f32 %v2250, 0.0
  %v2287 = vmax.f32 %v2255, 0.0
  %v2288 = vmax.f32 %v2258, 0.0
  %v2289 = vmax.f32 %v2263, 0.0
  %v2290 = vmax.f32 %v2266, 0.0
  %v2291 = vmax.f32 %v2271, 0.0
  %v2292 = vmax.f32 %v2274, 0.0
  %v2293 = vmax.f32 %v2084, %v2277
  %v2294 = vmax.f32 %v2085, %v2278
  %v2295 = vmax.f32 %v2086, %v2279
  %v2296 = vmax.f32 %v2087, %v2280
  %v2297 = vmax.f32 %v2088, %v2281
  %v2298 = vmax.f32 %v2089, %v2282
  %v2299 = vmax.f32 %v2090, %v2283
  %v2300 = vmax.f32 %v2091, %v2284
  %v2301 = vmax.f32 %v2092, %v2285
  %v2302 = vmax.f32 %v2093, %v2286
  %v2303 = vmax.f32 %v2094, %v2287
  %v2304 = vmax.f32 %v2095, %v2288
  %v2305 = vmax.f32 %v2096, %v2289
  %v2306 = vmax.f32 %v2097, %v2290
  %v2307 = vmax.f32 %v2098, %v2291
  %v2308 = vmax.f32 %v2099, %v2292
  %v2309 = vld [vmem:[%s470 + $0x10] sm:$0xf]
  %v2310 = vld [vmem:[%s470 + $0x14] sm:$0xf]
  %v2311 = vld [vmem:[%s470 + $0x90] sm:$0xf]
  %v2312 = vld [vmem:[%s470 + $0x94] sm:$0xf]
  %v2313 = vld [vmem:[%s470 + $0x110] sm:$0xf]
  %v2314 = vld [vmem:[%s470 + $0x114] sm:$0xf]
  %v2315 = vld [vmem:[%s470 + $0x190] sm:$0xf]
  %v2316 = vld [vmem:[%s470 + $0x194] sm:$0xf]
  %v2317 = vld [vmem:[%s470 + $0x210] sm:$0xf]
  %v2318 = vld [vmem:[%s470 + $0x214] sm:$0xf]
  %v2319 = vld [vmem:[%s470 + $0x290] sm:$0xf]
  %v2320 = vld [vmem:[%s470 + $0x294] sm:$0xf]
  %v2321 = vld [vmem:[%s470 + $0x310] sm:$0xf]
  %v2322 = vld [vmem:[%s470 + $0x314] sm:$0xf]
  %v2323 = vld [vmem:[%s470 + $0x390] sm:$0xf]
  %v2324 = vld [vmem:[%s470 + $0x394] sm:$0xf]
  %v2341 = vunpack.c.l.b16 %v2309
  %v2342 = vunpack.c.l.b16 %v2310
  %v2343 = vunpack.c.l.b16 %v2311
  %v2344 = vunpack.c.l.b16 %v2312
  %v2345 = vunpack.c.l.b16 %v2313
  %v2346 = vunpack.c.l.b16 %v2314
  %v2347 = vunpack.c.l.b16 %v2315
  %v2348 = vunpack.c.l.b16 %v2316
  %v2349 = vunpack.c.l.b16 %v2317
  %v2350 = vunpack.c.l.b16 %v2318
  %v2351 = vunpack.c.l.b16 %v2319
  %v2352 = vunpack.c.l.b16 %v2320
  %v2353 = vunpack.c.l.b16 %v2321
  %v2354 = vunpack.c.l.b16 %v2322
  %v2355 = vunpack.c.l.b16 %v2323
  %v2356 = vunpack.c.l.b16 %v2324
  %v2357 = vpack.c.b16 %v2342, %v2341
  %v2358 = vpack.c.b16 %v2344, %v2343
  %v2359 = vpack.c.b16 %v2346, %v2345
  %v2360 = vpack.c.b16 %v2348, %v2347
  %v2361 = vpack.c.b16 %v2350, %v2349
  %v2362 = vpack.c.b16 %v2352, %v2351
  %v2363 = vpack.c.b16 %v2354, %v2353
  %v2364 = vpack.c.b16 %v2356, %v2355
  %v2366 = vsel %vm115, %v2357, 0
  %v2369 = vsel %vm115, %v2358, 0
  %v2372 = vsel %vm115, %v2359, 0
  %v2375 = vsel %vm115, %v2360, 0
  %v2378 = vsel %vm115, %v2361, 0
  %v2381 = vsel %vm115, %v2362, 0
  %v2384 = vsel %vm115, %v2363, 0
  %v2387 = vsel %vm115, %v2364, 0
  %2389 = vmatprep.subr.bf16.mxu0 0
  %2390 = vmatpush1.bf16.msra.mxu0 0
  %2391 = vmatprep.subr.bf16.mxu0 0
  %2392 = vmatpush1.bf16.msra.mxu0 0
  %2393 = vmatprep.subr.bf16.mxu0 0
  %2394 = vmatpush1.bf16.msra.mxu0 0
  %2395 = vmatprep.subr.bf16.mxu0 0
  %2396 = vmatpush1.bf16.msra.mxu0 0
  %2397 = vmatprep.subr.bf16.mxu0 0
  %2398 = vmatpush1.bf16.msra.mxu0 0
  %2399 = vmatprep.subr.bf16.mxu0 0
  %2400 = vmatpush1.bf16.msra.mxu0 0
  %2401 = vmatprep.subr.bf16.mxu0 0
  %2402 = vmatpush1.bf16.msra.mxu0 %v1985
  %2403 = vmatprep.subr.bf16.mxu0 0
  %2404 = vmatpush1.bf16.msra.mxu0 %v1957
  %2405 = vmatprep.subr.bf16.mxu0 0
  %2406 = vmatpush2.bf16.msra.mxu0 0
  %2407 = vmatprep.subr.bf16.mxu0 0
  %2408 = vmatpush2.bf16.msra.mxu0 0
  %2409 = vmatprep.subr.bf16.mxu0 0
  %2410 = vmatpush2.bf16.msra.mxu0 0
  %2411 = vmatprep.subr.bf16.mxu0 0
  %2412 = vmatpush2.bf16.msra.mxu0 0
  %2413 = vmatprep.subr.bf16.mxu0 0
  %2414 = vmatpush2.bf16.msra.mxu0 0
  %2415 = vmatprep.subr.bf16.mxu0 0
  %2416 = vmatpush2.bf16.msra.mxu0 0
  %2417 = vmatprep.subr.bf16.mxu0 0
  %2418 = vmatpush2.bf16.msra.mxu0 0
  %2419 = vmatprep.subr.bf16.mxu0 0
  %2420 = vmatpush2.bf16.msra.mxu0 0
  %2421 = vmatprep.mubr.bf16.mxu0 0
  %2422 = vmatmul.mubr.bf16.gmra.mxu0 %v2366
  %v2423 = vpop.f32.mrf.mxu0
  %v2424 = vadd.f32 %v62, %v2423
  %v2425 = vpop.f32.mrf.mxu0
  %v2426 = vpop.f32.mrf.mxu0
  %v2427 = vadd.f32 %v62, %v2426
  %v2428 = vpop.f32.mrf.mxu0
  %2429 = vmatprep.mubr.bf16.mxu0 0
  %2430 = vmatmul.mubr.bf16.gmra.mxu0 %v2369
  %v2431 = vpop.f32.mrf.mxu0
  %v2432 = vadd.f32 %v62, %v2431
  %v2433 = vpop.f32.mrf.mxu0
  %v2434 = vpop.f32.mrf.mxu0
  %v2435 = vadd.f32 %v62, %v2434
  %v2436 = vpop.f32.mrf.mxu0
  %2437 = vmatprep.mubr.bf16.mxu0 0
  %2438 = vmatmul.mubr.bf16.gmra.mxu0 %v2372
  %v2439 = vpop.f32.mrf.mxu0
  %v2440 = vadd.f32 %v62, %v2439
  %v2441 = vpop.f32.mrf.mxu0
  %v2442 = vpop.f32.mrf.mxu0
  %v2443 = vadd.f32 %v62, %v2442
  %v2444 = vpop.f32.mrf.mxu0
  %2445 = vmatprep.mubr.bf16.mxu0 0
  %2446 = vmatmul.mubr.bf16.gmra.mxu0 %v2375
  %v2447 = vpop.f32.mrf.mxu0
  %v2448 = vadd.f32 %v62, %v2447
  %v2449 = vpop.f32.mrf.mxu0
  %v2450 = vpop.f32.mrf.mxu0
  %v2451 = vadd.f32 %v62, %v2450
  %v2452 = vpop.f32.mrf.mxu0
  %2453 = vmatprep.mubr.bf16.mxu0 0
  %2454 = vmatmul.mubr.bf16.gmra.mxu0 %v2378
  %v2455 = vpop.f32.mrf.mxu0
  %v2456 = vadd.f32 %v62, %v2455
  %v2457 = vpop.f32.mrf.mxu0
  %v2458 = vpop.f32.mrf.mxu0
  %v2459 = vadd.f32 %v62, %v2458
  %v2460 = vpop.f32.mrf.mxu0
  %2461 = vmatprep.mubr.bf16.mxu0 0
  %2462 = vmatmul.mubr.bf16.gmra.mxu0 %v2381
  %v2463 = vpop.f32.mrf.mxu0
  %v2464 = vadd.f32 %v62, %v2463
  %v2465 = vpop.f32.mrf.mxu0
  %v2466 = vpop.f32.mrf.mxu0
  %v2467 = vadd.f32 %v62, %v2466
  %v2468 = vpop.f32.mrf.mxu0
  %2469 = vmatprep.mubr.bf16.mxu0 0
  %2470 = vmatmul.mubr.bf16.gmra.mxu0 %v2384
  %v2471 = vpop.f32.mrf.mxu0
  %v2472 = vadd.f32 %v62, %v2471
  %v2473 = vpop.f32.mrf.mxu0
  %v2474 = vpop.f32.mrf.mxu0
  %v2475 = vadd.f32 %v62, %v2474
  %v2476 = vpop.f32.mrf.mxu0
  %2477 = vmatprep.mubr.bf16.mxu0 0
  %2478 = vmatmul.mubr.bf16.gmra.mxu0 %v2387
  %v2479 = vpop.f32.mrf.mxu0
  %v2480 = vadd.f32 %v62, %v2479
  %v2481 = vpop.f32.mrf.mxu0
  %v2482 = vpop.f32.mrf.mxu0
  %v2483 = vadd.f32 %v62, %v2482
  %v2484 = vpop.f32.mrf.mxu0
  %2485 = vdwg.mxu0
  %v2486 = vmax.f32 %v2424, 0.0
  %v2487 = vmax.f32 %v2427, 0.0
  %v2488 = vmax.f32 %v2432, 0.0
  %v2489 = vmax.f32 %v2435, 0.0
  %v2490 = vmax.f32 %v2440, 0.0
  %v2491 = vmax.f32 %v2443, 0.0
  %v2492 = vmax.f32 %v2448, 0.0
  %v2493 = vmax.f32 %v2451, 0.0
  %v2494 = vmax.f32 %v2456, 0.0
  %v2495 = vmax.f32 %v2459, 0.0
  %v2496 = vmax.f32 %v2464, 0.0
  %v2497 = vmax.f32 %v2467, 0.0
  %v2498 = vmax.f32 %v2472, 0.0
  %v2499 = vmax.f32 %v2475, 0.0
  %v2500 = vmax.f32 %v2480, 0.0
  %v2501 = vmax.f32 %v2483, 0.0
  %v2502 = vmax.f32 %v2293, %v2486
  %v2503 = vmax.f32 %v2294, %v2487
  %v2504 = vmax.f32 %v2295, %v2488
  %v2505 = vmax.f32 %v2296, %v2489
  %v2506 = vmax.f32 %v2297, %v2490
  %v2507 = vmax.f32 %v2298, %v2491
  %v2508 = vmax.f32 %v2299, %v2492
  %v2509 = vmax.f32 %v2300, %v2493
  %v2510 = vmax.f32 %v2301, %v2494
  %v2511 = vmax.f32 %v2302, %v2495
  %v2512 = vmax.f32 %v2303, %v2496
  %v2513 = vmax.f32 %v2304, %v2497
  %v2514 = vmax.f32 %v2305, %v2498
  %v2515 = vmax.f32 %v2306, %v2499
  %v2516 = vmax.f32 %v2307, %v2500
  %v2517 = vmax.f32 %v2308, %v2501
  %v2518 = vld [vmem:[%s680 + $0x10] sm:$0xf]
  %v2519 = vld [vmem:[%s680 + $0x14] sm:$0xf]
  %v2520 = vld [vmem:[%s680 + $0x90] sm:$0xf]
  %v2521 = vld [vmem:[%s680 + $0x94] sm:$0xf]
  %v2522 = vld [vmem:[%s680 + $0x110] sm:$0xf]
  %v2523 = vld [vmem:[%s680 + $0x114] sm:$0xf]
  %v2524 = vld [vmem:[%s680 + $0x190] sm:$0xf]
  %v2525 = vld [vmem:[%s680 + $0x194] sm:$0xf]
  %v2526 = vld [vmem:[%s680 + $0x210] sm:$0xf]
  %v2527 = vld [vmem:[%s680 + $0x214] sm:$0xf]
  %v2528 = vld [vmem:[%s680 + $0x290] sm:$0xf]
  %v2529 = vld [vmem:[%s680 + $0x294] sm:$0xf]
  %v2530 = vld [vmem:[%s680 + $0x310] sm:$0xf]
  %v2531 = vld [vmem:[%s680 + $0x314] sm:$0xf]
  %v2532 = vld [vmem:[%s680 + $0x390] sm:$0xf]
  %v2533 = vld [vmem:[%s680 + $0x394] sm:$0xf]
  %v2550 = vunpack.c.l.b16 %v2518
  %v2551 = vunpack.c.l.b16 %v2519
  %v2552 = vunpack.c.l.b16 %v2520
  %v2553 = vunpack.c.l.b16 %v2521
  %v2554 = vunpack.c.l.b16 %v2522
  %v2555 = vunpack.c.l.b16 %v2523
  %v2556 = vunpack.c.l.b16 %v2524
  %v2557 = vunpack.c.l.b16 %v2525
  %v2558 = vunpack.c.l.b16 %v2526
  %v2559 = vunpack.c.l.b16 %v2527
  %v2560 = vunpack.c.l.b16 %v2528
  %v2561 = vunpack.c.l.b16 %v2529
  %v2562 = vunpack.c.l.b16 %v2530
  %v2563 = vunpack.c.l.b16 %v2531
  %v2564 = vunpack.c.l.b16 %v2532
  %v2565 = vunpack.c.l.b16 %v2533
  %v2566 = vpack.c.b16 %v2551, %v2550
  %v2567 = vpack.c.b16 %v2553, %v2552
  %v2568 = vpack.c.b16 %v2555, %v2554
  %v2569 = vpack.c.b16 %v2557, %v2556
  %v2570 = vpack.c.b16 %v2559, %v2558
  %v2571 = vpack.c.b16 %v2561, %v2560
  %v2572 = vpack.c.b16 %v2563, %v2562
  %v2573 = vpack.c.b16 %v2565, %v2564
  %v2575 = vsel %vm115, %v2566, 0
  %v2578 = vsel %vm115, %v2567, 0
  %v2581 = vsel %vm115, %v2568, 0
  %v2584 = vsel %vm115, %v2569, 0
  %v2587 = vsel %vm115, %v2570, 0
  %v2590 = vsel %vm115, %v2571, 0
  %v2593 = vsel %vm115, %v2572, 0
  %v2596 = vsel %vm115, %v2573, 0
  %2598 = vmatprep.subr.bf16.mxu0 0
  %2599 = vmatpush1.bf16.msra.mxu0 0
  %2600 = vmatprep.subr.bf16.mxu0 0
  %2601 = vmatpush1.bf16.msra.mxu0 0
  %2602 = vmatprep.subr.bf16.mxu0 0
  %2603 = vmatpush1.bf16.msra.mxu0 0
  %2604 = vmatprep.subr.bf16.mxu0 0
  %2605 = vmatpush1.bf16.msra.mxu0 0
  %2606 = vmatprep.subr.bf16.mxu0 0
  %2607 = vmatpush1.bf16.msra.mxu0 0
  %2608 = vmatprep.subr.bf16.mxu0 0
  %2609 = vmatpush1.bf16.msra.mxu0 0
  %2610 = vmatprep.subr.bf16.mxu0 0
  %2611 = vmatpush1.bf16.msra.mxu0 %v1985
  %2612 = vmatprep.subr.bf16.mxu0 0
  %2613 = vmatpush1.bf16.msra.mxu0 %v1957
  %2614 = vmatprep.subr.bf16.mxu0 0
  %2615 = vmatpush2.bf16.msra.mxu0 0
  %2616 = vmatprep.subr.bf16.mxu0 0
  %2617 = vmatpush2.bf16.msra.mxu0 0
  %2618 = vmatprep.subr.bf16.mxu0 0
  %2619 = vmatpush2.bf16.msra.mxu0 0
  %2620 = vmatprep.subr.bf16.mxu0 0
  %2621 = vmatpush2.bf16.msra.mxu0 0
  %2622 = vmatprep.subr.bf16.mxu0 0
  %2623 = vmatpush2.bf16.msra.mxu0 0
  %2624 = vmatprep.subr.bf16.mxu0 0
  %2625 = vmatpush2.bf16.msra.mxu0 0
  %2626 = vmatprep.subr.bf16.mxu0 0
  %2627 = vmatpush2.bf16.msra.mxu0 0
  %2628 = vmatprep.subr.bf16.mxu0 0
  %2629 = vmatpush2.bf16.msra.mxu0 0
  %2630 = vmatprep.mubr.bf16.mxu0 0
  %2631 = vmatmul.mubr.bf16.gmra.mxu0 %v2575
  %v2632 = vpop.f32.mrf.mxu0
  %v2633 = vadd.f32 %v62, %v2632
  %v2634 = vpop.f32.mrf.mxu0
  %v2635 = vpop.f32.mrf.mxu0
  %v2636 = vadd.f32 %v62, %v2635
  %v2637 = vpop.f32.mrf.mxu0
  %2638 = vmatprep.mubr.bf16.mxu0 0
  %2639 = vmatmul.mubr.bf16.gmra.mxu0 %v2578
  %v2640 = vpop.f32.mrf.mxu0
  %v2641 = vadd.f32 %v62, %v2640
  %v2642 = vpop.f32.mrf.mxu0
  %v2643 = vpop.f32.mrf.mxu0
  %v2644 = vadd.f32 %v62, %v2643
  %v2645 = vpop.f32.mrf.mxu0
  %2646 = vmatprep.mubr.bf16.mxu0 0
  %2647 = vmatmul.mubr.bf16.gmra.mxu0 %v2581
  %v2648 = vpop.f32.mrf.mxu0
  %v2649 = vadd.f32 %v62, %v2648
  %v2650 = vpop.f32.mrf.mxu0
  %v2651 = vpop.f32.mrf.mxu0
  %v2652 = vadd.f32 %v62, %v2651
  %v2653 = vpop.f32.mrf.mxu0
  %2654 = vmatprep.mubr.bf16.mxu0 0
  %2655 = vmatmul.mubr.bf16.gmra.mxu0 %v2584
  %v2656 = vpop.f32.mrf.mxu0
  %v2657 = vadd.f32 %v62, %v2656
  %v2658 = vpop.f32.mrf.mxu0
  %v2659 = vpop.f32.mrf.mxu0
  %v2660 = vadd.f32 %v62, %v2659
  %v2661 = vpop.f32.mrf.mxu0
  %2662 = vmatprep.mubr.bf16.mxu0 0
  %2663 = vmatmul.mubr.bf16.gmra.mxu0 %v2587
  %v2664 = vpop.f32.mrf.mxu0
  %v2665 = vadd.f32 %v62, %v2664
  %v2666 = vpop.f32.mrf.mxu0
  %v2667 = vpop.f32.mrf.mxu0
  %v2668 = vadd.f32 %v62, %v2667
  %v2669 = vpop.f32.mrf.mxu0
  %2670 = vmatprep.mubr.bf16.mxu0 0
  %2671 = vmatmul.mubr.bf16.gmra.mxu0 %v2590
  %v2672 = vpop.f32.mrf.mxu0
  %v2673 = vadd.f32 %v62, %v2672
  %v2674 = vpop.f32.mrf.mxu0
  %v2675 = vpop.f32.mrf.mxu0
  %v2676 = vadd.f32 %v62, %v2675
  %v2677 = vpop.f32.mrf.mxu0
  %2678 = vmatprep.mubr.bf16.mxu0 0
  %2679 = vmatmul.mubr.bf16.gmra.mxu0 %v2593
  %v2680 = vpop.f32.mrf.mxu0
  %v2681 = vadd.f32 %v62, %v2680
  %v2682 = vpop.f32.mrf.mxu0
  %v2683 = vpop.f32.mrf.mxu0
  %v2684 = vadd.f32 %v62, %v2683
  %v2685 = vpop.f32.mrf.mxu0
  %2686 = vmatprep.mubr.bf16.mxu0 0
  %2687 = vmatmul.mubr.bf16.gmra.mxu0 %v2596
  %v2688 = vpop.f32.mrf.mxu0
  %v2689 = vadd.f32 %v62, %v2688
  %v2690 = vpop.f32.mrf.mxu0
  %v2691 = vpop.f32.mrf.mxu0
  %v2692 = vadd.f32 %v62, %v2691
  %v2693 = vpop.f32.mrf.mxu0
  %2694 = vdwg.mxu0
  %v2695 = vmax.f32 %v2633, 0.0
  %v2696 = vmax.f32 %v2636, 0.0
  %v2697 = vmax.f32 %v2641, 0.0
  %v2698 = vmax.f32 %v2644, 0.0
  %v2699 = vmax.f32 %v2649, 0.0
  %v2700 = vmax.f32 %v2652, 0.0
  %v2701 = vmax.f32 %v2657, 0.0
  %v2702 = vmax.f32 %v2660, 0.0
  %v2703 = vmax.f32 %v2665, 0.0
  %v2704 = vmax.f32 %v2668, 0.0
  %v2705 = vmax.f32 %v2673, 0.0
  %v2706 = vmax.f32 %v2676, 0.0
  %v2707 = vmax.f32 %v2681, 0.0
  %v2708 = vmax.f32 %v2684, 0.0
  %v2709 = vmax.f32 %v2689, 0.0
  %v2710 = vmax.f32 %v2692, 0.0
  %v2711 = vmax.f32 %v2502, %v2695
  %v2712 = vmax.f32 %v2503, %v2696
  %v2713 = vmax.f32 %v2504, %v2697
  %v2714 = vmax.f32 %v2505, %v2698
  %v2715 = vmax.f32 %v2506, %v2699
  %v2716 = vmax.f32 %v2507, %v2700
  %v2717 = vmax.f32 %v2508, %v2701
  %v2718 = vmax.f32 %v2509, %v2702
  %v2719 = vmax.f32 %v2510, %v2703
  %v2720 = vmax.f32 %v2511, %v2704
  %v2721 = vmax.f32 %v2512, %v2705
  %v2722 = vmax.f32 %v2513, %v2706
  %v2723 = vmax.f32 %v2514, %v2707
  %v2724 = vmax.f32 %v2515, %v2708
  %v2725 = vmax.f32 %v2516, %v2709
  %v2726 = vmax.f32 %v2517, %v2710
  %v2727 = vpack.c.bf16 %v2712, %v2711
  %v2728 = vpack.c.bf16 %v2714, %v2713
  %v2729 = vpack.c.bf16 %v2716, %v2715
  %v2730 = vpack.c.bf16 %v2718, %v2717
  %v2731 = vpack.c.bf16 %v2720, %v2719
  %v2732 = vpack.c.bf16 %v2722, %v2721
  %v2733 = vpack.c.bf16 %v2724, %v2723
  %v2734 = vpack.c.bf16 %v2726, %v2725
  %v2743 = vunpack.c.l.b16 %v2727
  %v2744 = vunpack.c.h.b16 %v2727
  %v2745 = vunpack.c.l.b16 %v2728
  %v2746 = vunpack.c.h.b16 %v2728
  %v2747 = vunpack.c.l.b16 %v2729
  %v2748 = vunpack.c.h.b16 %v2729
  %v2749 = vunpack.c.l.b16 %v2730
  %v2750 = vunpack.c.h.b16 %v2730
  %v2751 = vunpack.c.l.b16 %v2731
  %v2752 = vunpack.c.h.b16 %v2731
  %v2753 = vunpack.c.l.b16 %v2732
  %v2754 = vunpack.c.h.b16 %v2732
  %v2755 = vunpack.c.l.b16 %v2733
  %v2756 = vunpack.c.h.b16 %v2733
  %v2757 = vunpack.c.l.b16 %v2734
  %v2758 = vunpack.c.h.b16 %v2734
  %v2759 = vpack.c.b16 %v2743, %v2743
  %v2760 = vpack.c.b16 %v2744, %v2744
  %v2761 = vpack.c.b16 %v2745, %v2745
  %v2762 = vpack.c.b16 %v2746, %v2746
  %v2763 = vpack.c.b16 %v2747, %v2747
  %v2764 = vpack.c.b16 %v2748, %v2748
  %v2765 = vpack.c.b16 %v2749, %v2749
  %v2766 = vpack.c.b16 %v2750, %v2750
  %v2767 = vpack.c.b16 %v2751, %v2751
  %v2768 = vpack.c.b16 %v2752, %v2752
  %v2769 = vpack.c.b16 %v2753, %v2753
  %v2770 = vpack.c.b16 %v2754, %v2754
  %v2771 = vpack.c.b16 %v2755, %v2755
  %v2772 = vpack.c.b16 %v2756, %v2756
  %v2773 = vpack.c.b16 %v2757, %v2757
  %v2774 = vpack.c.b16 %v2758, %v2758
  %2791 = vst.msk [vmem:[#allocation2 + $0x10] sm:$0xf] %vm954, %v2759
  %2792 = vst.msk [vmem:[#allocation2 + $0x14] sm:$0xf] %vm954, %v2760
  %2793 = vst.msk [vmem:[#allocation2 + $0x30] sm:$0xf] %vm954, %v2761
  %2794 = vst.msk [vmem:[#allocation2 + $0x34] sm:$0xf] %vm954, %v2762
  %2795 = vst.msk [vmem:[#allocation2 + $0x50] sm:$0xf] %vm954, %v2763
  %2796 = vst.msk [vmem:[#allocation2 + $0x54] sm:$0xf] %vm954, %v2764
  %2797 = vst.msk [vmem:[#allocation2 + $0x70] sm:$0xf] %vm954, %v2765
  %2798 = vst.msk [vmem:[#allocation2 + $0x74] sm:$0xf] %vm954, %v2766
  %2799 = vst.msk [vmem:[#allocation2 + $0x90] sm:$0xf] %vm954, %v2767
  %2800 = vst.msk [vmem:[#allocation2 + $0x94] sm:$0xf] %vm954, %v2768
  %2801 = vst.msk [vmem:[#allocation2 + $0xb0] sm:$0xf] %vm954, %v2769
  %2802 = vst.msk [vmem:[#allocation2 + $0xb4] sm:$0xf] %vm954, %v2770
  %2803 = vst.msk [vmem:[#allocation2 + $0xd0] sm:$0xf] %vm954, %v2771
  %2804 = vst.msk [vmem:[#allocation2 + $0xd4] sm:$0xf] %vm954, %v2772
  %2805 = vst.msk [vmem:[#allocation2 + $0xf0] sm:$0xf] %vm954, %v2773
  %2806 = vst.msk [vmem:[#allocation2 + $0xf4] sm:$0xf] %vm954, %v2774
  %v2807 = vld [vmem:[%s0 + $0x18] sm:$0xf]
  %v2808 = vld [vmem:[%s0 + $0x1c] sm:$0xf]
  %v2809 = vld [vmem:[%s0 + $0x98] sm:$0xf]
  %v2810 = vld [vmem:[%s0 + $0x9c] sm:$0xf]
  %v2811 = vld [vmem:[%s0 + $0x118] sm:$0xf]
  %v2812 = vld [vmem:[%s0 + $0x11c] sm:$0xf]
  %v2813 = vld [vmem:[%s0 + $0x198] sm:$0xf]
  %v2814 = vld [vmem:[%s0 + $0x19c] sm:$0xf]
  %v2815 = vld [vmem:[%s0 + $0x218] sm:$0xf]
  %v2816 = vld [vmem:[%s0 + $0x21c] sm:$0xf]
  %v2817 = vld [vmem:[%s0 + $0x298] sm:$0xf]
  %v2818 = vld [vmem:[%s0 + $0x29c] sm:$0xf]
  %v2819 = vld [vmem:[%s0 + $0x318] sm:$0xf]
  %v2820 = vld [vmem:[%s0 + $0x31c] sm:$0xf]
  %v2821 = vld [vmem:[%s0 + $0x398] sm:$0xf]
  %v2822 = vld [vmem:[%s0 + $0x39c] sm:$0xf]
  %v2823 = vld [vmem:[%s2] sm:$0xf]
  %v2824 = vld [vmem:[%s2 + $0x4] sm:$0xf]
  %v2825 = vld [vmem:[%s2 + $0x8] sm:$0xf]
  %v2826 = vld [vmem:[%s2 + $0xc] sm:$0x3]
  %v2843 = vunpack.c.l.b16 %v2807
  %v2844 = vunpack.c.l.b16 %v2808
  %v2845 = vunpack.c.l.b16 %v2809
  %v2846 = vunpack.c.l.b16 %v2810
  %v2847 = vunpack.c.l.b16 %v2811
  %v2848 = vunpack.c.l.b16 %v2812
  %v2849 = vunpack.c.l.b16 %v2813
  %v2850 = vunpack.c.l.b16 %v2814
  %v2851 = vunpack.c.l.b16 %v2815
  %v2852 = vunpack.c.l.b16 %v2816
  %v2853 = vunpack.c.l.b16 %v2817
  %v2854 = vunpack.c.l.b16 %v2818
  %v2855 = vunpack.c.l.b16 %v2819
  %v2856 = vunpack.c.l.b16 %v2820
  %v2857 = vunpack.c.l.b16 %v2821
  %v2858 = vunpack.c.l.b16 %v2822
  %v2859 = vpack.c.b16 %v2844, %v2843
  %v2860 = vpack.c.b16 %v2846, %v2845
  %v2861 = vpack.c.b16 %v2848, %v2847
  %v2862 = vpack.c.b16 %v2850, %v2849
  %v2863 = vpack.c.b16 %v2852, %v2851
  %v2864 = vpack.c.b16 %v2854, %v2853
  %v2865 = vpack.c.b16 %v2856, %v2855
  %v2866 = vpack.c.b16 %v2858, %v2857
  %v2871 = vunpack.c.l.b16 %v2823
  %v2872 = vunpack.c.l.b16 %v2824
  %v2873 = vunpack.c.l.b16 %v2825
  %v2874 = vunpack.c.l.b16 %v2826
  %v2875 = vpack.c.b16 %v2872, %v2871
  %v2876 = vpack.c.b16 %v2874, %v2873
  %v2879 = vsel %vm115, %v2859, 0
  %v2882 = vsel %vm115, %v2860, 0
  %v2885 = vsel %vm115, %v2861, 0
  %v2888 = vsel %vm115, %v2862, 0
  %v2891 = vsel %vm115, %v2863, 0
  %v2894 = vsel %vm115, %v2864, 0
  %v2897 = vsel %vm115, %v2865, 0
  %v2900 = vsel %vm115, %v2866, 0
  %v2903 = vand.u32 %v2876, %v143
  %2905 = vmatprep.subr.bf16.mxu0 0
  %2906 = vmatpush1.bf16.msra.mxu0 0
  %2907 = vmatprep.subr.bf16.mxu0 0
  %2908 = vmatpush1.bf16.msra.mxu0 0
  %2909 = vmatprep.subr.bf16.mxu0 0
  %2910 = vmatpush1.bf16.msra.mxu0 0
  %2911 = vmatprep.subr.bf16.mxu0 0
  %2912 = vmatpush1.bf16.msra.mxu0 0
  %2913 = vmatprep.subr.bf16.mxu0 0
  %2914 = vmatpush1.bf16.msra.mxu0 0
  %2915 = vmatprep.subr.bf16.mxu0 0
  %2916 = vmatpush1.bf16.msra.mxu0 0
  %2917 = vmatprep.subr.bf16.mxu0 0
  %2918 = vmatpush1.bf16.msra.mxu0 %v2903
  %2919 = vmatprep.subr.bf16.mxu0 0
  %2920 = vmatpush1.bf16.msra.mxu0 %v2875
  %2921 = vmatprep.subr.bf16.mxu0 0
  %2922 = vmatpush2.bf16.msra.mxu0 0
  %2923 = vmatprep.subr.bf16.mxu0 0
  %2924 = vmatpush2.bf16.msra.mxu0 0
  %2925 = vmatprep.subr.bf16.mxu0 0
  %2926 = vmatpush2.bf16.msra.mxu0 0
  %2927 = vmatprep.subr.bf16.mxu0 0
  %2928 = vmatpush2.bf16.msra.mxu0 0
  %2929 = vmatprep.subr.bf16.mxu0 0
  %2930 = vmatpush2.bf16.msra.mxu0 0
  %2931 = vmatprep.subr.bf16.mxu0 0
  %2932 = vmatpush2.bf16.msra.mxu0 0
  %2933 = vmatprep.subr.bf16.mxu0 0
  %2934 = vmatpush2.bf16.msra.mxu0 0
  %2935 = vmatprep.subr.bf16.mxu0 0
  %2936 = vmatpush2.bf16.msra.mxu0 0
  %2937 = vmatprep.mubr.bf16.mxu0 0
  %2938 = vmatmul.mubr.bf16.gmra.mxu0 %v2879
  %v2939 = vpop.f32.mrf.mxu0
  %v2940 = vadd.f32 %v62, %v2939
  %v2941 = vpop.f32.mrf.mxu0
  %v2942 = vpop.f32.mrf.mxu0
  %v2943 = vadd.f32 %v62, %v2942
  %v2944 = vpop.f32.mrf.mxu0
  %2945 = vmatprep.mubr.bf16.mxu0 0
  %2946 = vmatmul.mubr.bf16.gmra.mxu0 %v2882
  %v2947 = vpop.f32.mrf.mxu0
  %v2948 = vadd.f32 %v62, %v2947
  %v2949 = vpop.f32.mrf.mxu0
  %v2950 = vpop.f32.mrf.mxu0
  %v2951 = vadd.f32 %v62, %v2950
  %v2952 = vpop.f32.mrf.mxu0
  %2953 = vmatprep.mubr.bf16.mxu0 0
  %2954 = vmatmul.mubr.bf16.gmra.mxu0 %v2885
  %v2955 = vpop.f32.mrf.mxu0
  %v2956 = vadd.f32 %v62, %v2955
  %v2957 = vpop.f32.mrf.mxu0
  %v2958 = vpop.f32.mrf.mxu0
  %v2959 = vadd.f32 %v62, %v2958
  %v2960 = vpop.f32.mrf.mxu0
  %2961 = vmatprep.mubr.bf16.mxu0 0
  %2962 = vmatmul.mubr.bf16.gmra.mxu0 %v2888
  %v2963 = vpop.f32.mrf.mxu0
  %v2964 = vadd.f32 %v62, %v2963
  %v2965 = vpop.f32.mrf.mxu0
  %v2966 = vpop.f32.mrf.mxu0
  %v2967 = vadd.f32 %v62, %v2966
  %v2968 = vpop.f32.mrf.mxu0
  %2969 = vmatprep.mubr.bf16.mxu0 0
  %2970 = vmatmul.mubr.bf16.gmra.mxu0 %v2891
  %v2971 = vpop.f32.mrf.mxu0
  %v2972 = vadd.f32 %v62, %v2971
  %v2973 = vpop.f32.mrf.mxu0
  %v2974 = vpop.f32.mrf.mxu0
  %v2975 = vadd.f32 %v62, %v2974
  %v2976 = vpop.f32.mrf.mxu0
  %2977 = vmatprep.mubr.bf16.mxu0 0
  %2978 = vmatmul.mubr.bf16.gmra.mxu0 %v2894
  %v2979 = vpop.f32.mrf.mxu0
  %v2980 = vadd.f32 %v62, %v2979
  %v2981 = vpop.f32.mrf.mxu0
  %v2982 = vpop.f32.mrf.mxu0
  %v2983 = vadd.f32 %v62, %v2982
  %v2984 = vpop.f32.mrf.mxu0
  %2985 = vmatprep.mubr.bf16.mxu0 0
  %2986 = vmatmul.mubr.bf16.gmra.mxu0 %v2897
  %v2987 = vpop.f32.mrf.mxu0
  %v2988 = vadd.f32 %v62, %v2987
  %v2989 = vpop.f32.mrf.mxu0
  %v2990 = vpop.f32.mrf.mxu0
  %v2991 = vadd.f32 %v62, %v2990
  %v2992 = vpop.f32.mrf.mxu0
  %2993 = vmatprep.mubr.bf16.mxu0 0
  %2994 = vmatmul.mubr.bf16.gmra.mxu0 %v2900
  %v2995 = vpop.f32.mrf.mxu0
  %v2996 = vadd.f32 %v62, %v2995
  %v2997 = vpop.f32.mrf.mxu0
  %v2998 = vpop.f32.mrf.mxu0
  %v2999 = vadd.f32 %v62, %v2998
  %v3000 = vpop.f32.mrf.mxu0
  %3001 = vdwg.mxu0
  %v3002 = vmax.f32 %v2940, 0.0
  %v3003 = vmax.f32 %v2943, 0.0
  %v3004 = vmax.f32 %v2948, 0.0
  %v3005 = vmax.f32 %v2951, 0.0
  %v3006 = vmax.f32 %v2956, 0.0
  %v3007 = vmax.f32 %v2959, 0.0
  %v3008 = vmax.f32 %v2964, 0.0
  %v3009 = vmax.f32 %v2967, 0.0
  %v3010 = vmax.f32 %v2972, 0.0
  %v3011 = vmax.f32 %v2975, 0.0
  %v3012 = vmax.f32 %v2980, 0.0
  %v3013 = vmax.f32 %v2983, 0.0
  %v3014 = vmax.f32 %v2988, 0.0
  %v3015 = vmax.f32 %v2991, 0.0
  %v3016 = vmax.f32 %v2996, 0.0
  %v3017 = vmax.f32 %v2999, 0.0
  %v3018 = vld [vmem:[%s260 + $0x18] sm:$0xf]
  %v3019 = vld [vmem:[%s260 + $0x1c] sm:$0xf]
  %v3020 = vld [vmem:[%s260 + $0x98] sm:$0xf]
  %v3021 = vld [vmem:[%s260 + $0x9c] sm:$0xf]
  %v3022 = vld [vmem:[%s260 + $0x118] sm:$0xf]
  %v3023 = vld [vmem:[%s260 + $0x11c] sm:$0xf]
  %v3024 = vld [vmem:[%s260 + $0x198] sm:$0xf]
  %v3025 = vld [vmem:[%s260 + $0x19c] sm:$0xf]
  %v3026 = vld [vmem:[%s260 + $0x218] sm:$0xf]
  %v3027 = vld [vmem:[%s260 + $0x21c] sm:$0xf]
  %v3028 = vld [vmem:[%s260 + $0x298] sm:$0xf]
  %v3029 = vld [vmem:[%s260 + $0x29c] sm:$0xf]
  %v3030 = vld [vmem:[%s260 + $0x318] sm:$0xf]
  %v3031 = vld [vmem:[%s260 + $0x31c] sm:$0xf]
  %v3032 = vld [vmem:[%s260 + $0x398] sm:$0xf]
  %v3033 = vld [vmem:[%s260 + $0x39c] sm:$0xf]
  %v3050 = vunpack.c.l.b16 %v3018
  %v3051 = vunpack.c.l.b16 %v3019
  %v3052 = vunpack.c.l.b16 %v3020
  %v3053 = vunpack.c.l.b16 %v3021
  %v3054 = vunpack.c.l.b16 %v3022
  %v3055 = vunpack.c.l.b16 %v3023
  %v3056 = vunpack.c.l.b16 %v3024
  %v3057 = vunpack.c.l.b16 %v3025
  %v3058 = vunpack.c.l.b16 %v3026
  %v3059 = vunpack.c.l.b16 %v3027
  %v3060 = vunpack.c.l.b16 %v3028
  %v3061 = vunpack.c.l.b16 %v3029
  %v3062 = vunpack.c.l.b16 %v3030
  %v3063 = vunpack.c.l.b16 %v3031
  %v3064 = vunpack.c.l.b16 %v3032
  %v3065 = vunpack.c.l.b16 %v3033
  %v3066 = vpack.c.b16 %v3051, %v3050
  %v3067 = vpack.c.b16 %v3053, %v3052
  %v3068 = vpack.c.b16 %v3055, %v3054
  %v3069 = vpack.c.b16 %v3057, %v3056
  %v3070 = vpack.c.b16 %v3059, %v3058
  %v3071 = vpack.c.b16 %v3061, %v3060
  %v3072 = vpack.c.b16 %v3063, %v3062
  %v3073 = vpack.c.b16 %v3065, %v3064
  %v3075 = vsel %vm115, %v3066, 0
  %v3078 = vsel %vm115, %v3067, 0
  %v3081 = vsel %vm115, %v3068, 0
  %v3084 = vsel %vm115, %v3069, 0
  %v3087 = vsel %vm115, %v3070, 0
  %v3090 = vsel %vm115, %v3071, 0
  %v3093 = vsel %vm115, %v3072, 0
  %v3096 = vsel %vm115, %v3073, 0
  %3098 = vmatprep.subr.bf16.mxu0 0
  %3099 = vmatpush1.bf16.msra.mxu0 0
  %3100 = vmatprep.subr.bf16.mxu0 0
  %3101 = vmatpush1.bf16.msra.mxu0 0
  %3102 = vmatprep.subr.bf16.mxu0 0
  %3103 = vmatpush1.bf16.msra.mxu0 0
  %3104 = vmatprep.subr.bf16.mxu0 0
  %3105 = vmatpush1.bf16.msra.mxu0 0
  %3106 = vmatprep.subr.bf16.mxu0 0
  %3107 = vmatpush1.bf16.msra.mxu0 0
  %3108 = vmatprep.subr.bf16.mxu0 0
  %3109 = vmatpush1.bf16.msra.mxu0 0
  %3110 = vmatprep.subr.bf16.mxu0 0
  %3111 = vmatpush1.bf16.msra.mxu0 %v2903
  %3112 = vmatprep.subr.bf16.mxu0 0
  %3113 = vmatpush1.bf16.msra.mxu0 %v2875
  %3114 = vmatprep.subr.bf16.mxu0 0
  %3115 = vmatpush2.bf16.msra.mxu0 0
  %3116 = vmatprep.subr.bf16.mxu0 0
  %3117 = vmatpush2.bf16.msra.mxu0 0
  %3118 = vmatprep.subr.bf16.mxu0 0
  %3119 = vmatpush2.bf16.msra.mxu0 0
  %3120 = vmatprep.subr.bf16.mxu0 0
  %3121 = vmatpush2.bf16.msra.mxu0 0
  %3122 = vmatprep.subr.bf16.mxu0 0
  %3123 = vmatpush2.bf16.msra.mxu0 0
  %3124 = vmatprep.subr.bf16.mxu0 0
  %3125 = vmatpush2.bf16.msra.mxu0 0
  %3126 = vmatprep.subr.bf16.mxu0 0
  %3127 = vmatpush2.bf16.msra.mxu0 0
  %3128 = vmatprep.subr.bf16.mxu0 0
  %3129 = vmatpush2.bf16.msra.mxu0 0
  %3130 = vmatprep.mubr.bf16.mxu0 0
  %3131 = vmatmul.mubr.bf16.gmra.mxu0 %v3075
  %v3132 = vpop.f32.mrf.mxu0
  %v3133 = vadd.f32 %v62, %v3132
  %v3134 = vpop.f32.mrf.mxu0
  %v3135 = vpop.f32.mrf.mxu0
  %v3136 = vadd.f32 %v62, %v3135
  %v3137 = vpop.f32.mrf.mxu0
  %3138 = vmatprep.mubr.bf16.mxu0 0
  %3139 = vmatmul.mubr.bf16.gmra.mxu0 %v3078
  %v3140 = vpop.f32.mrf.mxu0
  %v3141 = vadd.f32 %v62, %v3140
  %v3142 = vpop.f32.mrf.mxu0
  %v3143 = vpop.f32.mrf.mxu0
  %v3144 = vadd.f32 %v62, %v3143
  %v3145 = vpop.f32.mrf.mxu0
  %3146 = vmatprep.mubr.bf16.mxu0 0
  %3147 = vmatmul.mubr.bf16.gmra.mxu0 %v3081
  %v3148 = vpop.f32.mrf.mxu0
  %v3149 = vadd.f32 %v62, %v3148
  %v3150 = vpop.f32.mrf.mxu0
  %v3151 = vpop.f32.mrf.mxu0
  %v3152 = vadd.f32 %v62, %v3151
  %v3153 = vpop.f32.mrf.mxu0
  %3154 = vmatprep.mubr.bf16.mxu0 0
  %3155 = vmatmul.mubr.bf16.gmra.mxu0 %v3084
  %v3156 = vpop.f32.mrf.mxu0
  %v3157 = vadd.f32 %v62, %v3156
  %v3158 = vpop.f32.mrf.mxu0
  %v3159 = vpop.f32.mrf.mxu0
  %v3160 = vadd.f32 %v62, %v3159
  %v3161 = vpop.f32.mrf.mxu0
  %3162 = vmatprep.mubr.bf16.mxu0 0
  %3163 = vmatmul.mubr.bf16.gmra.mxu0 %v3087
  %v3164 = vpop.f32.mrf.mxu0
  %v3165 = vadd.f32 %v62, %v3164
  %v3166 = vpop.f32.mrf.mxu0
  %v3167 = vpop.f32.mrf.mxu0
  %v3168 = vadd.f32 %v62, %v3167
  %v3169 = vpop.f32.mrf.mxu0
  %3170 = vmatprep.mubr.bf16.mxu0 0
  %3171 = vmatmul.mubr.bf16.gmra.mxu0 %v3090
  %v3172 = vpop.f32.mrf.mxu0
  %v3173 = vadd.f32 %v62, %v3172
  %v3174 = vpop.f32.mrf.mxu0
  %v3175 = vpop.f32.mrf.mxu0
  %v3176 = vadd.f32 %v62, %v3175
  %v3177 = vpop.f32.mrf.mxu0
  %3178 = vmatprep.mubr.bf16.mxu0 0
  %3179 = vmatmul.mubr.bf16.gmra.mxu0 %v3093
  %v3180 = vpop.f32.mrf.mxu0
  %v3181 = vadd.f32 %v62, %v3180
  %v3182 = vpop.f32.mrf.mxu0
  %v3183 = vpop.f32.mrf.mxu0
  %v3184 = vadd.f32 %v62, %v3183
  %v3185 = vpop.f32.mrf.mxu0
  %3186 = vmatprep.mubr.bf16.mxu0 0
  %3187 = vmatmul.mubr.bf16.gmra.mxu0 %v3096
  %v3188 = vpop.f32.mrf.mxu0
  %v3189 = vadd.f32 %v62, %v3188
  %v3190 = vpop.f32.mrf.mxu0
  %v3191 = vpop.f32.mrf.mxu0
  %v3192 = vadd.f32 %v62, %v3191
  %v3193 = vpop.f32.mrf.mxu0
  %3194 = vdwg.mxu0
  %v3195 = vmax.f32 %v3133, 0.0
  %v3196 = vmax.f32 %v3136, 0.0
  %v3197 = vmax.f32 %v3141, 0.0
  %v3198 = vmax.f32 %v3144, 0.0
  %v3199 = vmax.f32 %v3149, 0.0
  %v3200 = vmax.f32 %v3152, 0.0
  %v3201 = vmax.f32 %v3157, 0.0
  %v3202 = vmax.f32 %v3160, 0.0
  %v3203 = vmax.f32 %v3165, 0.0
  %v3204 = vmax.f32 %v3168, 0.0
  %v3205 = vmax.f32 %v3173, 0.0
  %v3206 = vmax.f32 %v3176, 0.0
  %v3207 = vmax.f32 %v3181, 0.0
  %v3208 = vmax.f32 %v3184, 0.0
  %v3209 = vmax.f32 %v3189, 0.0
  %v3210 = vmax.f32 %v3192, 0.0
  %v3211 = vmax.f32 %v3002, %v3195
  %v3212 = vmax.f32 %v3003, %v3196
  %v3213 = vmax.f32 %v3004, %v3197
  %v3214 = vmax.f32 %v3005, %v3198
  %v3215 = vmax.f32 %v3006, %v3199
  %v3216 = vmax.f32 %v3007, %v3200
  %v3217 = vmax.f32 %v3008, %v3201
  %v3218 = vmax.f32 %v3009, %v3202
  %v3219 = vmax.f32 %v3010, %v3203
  %v3220 = vmax.f32 %v3011, %v3204
  %v3221 = vmax.f32 %v3012, %v3205
  %v3222 = vmax.f32 %v3013, %v3206
  %v3223 = vmax.f32 %v3014, %v3207
  %v3224 = vmax.f32 %v3015, %v3208
  %v3225 = vmax.f32 %v3016, %v3209
  %v3226 = vmax.f32 %v3017, %v3210
  %v3227 = vld [vmem:[%s470 + $0x18] sm:$0xf]
  %v3228 = vld [vmem:[%s470 + $0x1c] sm:$0xf]
  %v3229 = vld [vmem:[%s470 + $0x98] sm:$0xf]
  %v3230 = vld [vmem:[%s470 + $0x9c] sm:$0xf]
  %v3231 = vld [vmem:[%s470 + $0x118] sm:$0xf]
  %v3232 = vld [vmem:[%s470 + $0x11c] sm:$0xf]
  %v3233 = vld [vmem:[%s470 + $0x198] sm:$0xf]
  %v3234 = vld [vmem:[%s470 + $0x19c] sm:$0xf]
  %v3235 = vld [vmem:[%s470 + $0x218] sm:$0xf]
  %v3236 = vld [vmem:[%s470 + $0x21c] sm:$0xf]
  %v3237 = vld [vmem:[%s470 + $0x298] sm:$0xf]
  %v3238 = vld [vmem:[%s470 + $0x29c] sm:$0xf]
  %v3239 = vld [vmem:[%s470 + $0x318] sm:$0xf]
  %v3240 = vld [vmem:[%s470 + $0x31c] sm:$0xf]
  %v3241 = vld [vmem:[%s470 + $0x398] sm:$0xf]
  %v3242 = vld [vmem:[%s470 + $0x39c] sm:$0xf]
  %v3259 = vunpack.c.l.b16 %v3227
  %v3260 = vunpack.c.l.b16 %v3228
  %v3261 = vunpack.c.l.b16 %v3229
  %v3262 = vunpack.c.l.b16 %v3230
  %v3263 = vunpack.c.l.b16 %v3231
  %v3264 = vunpack.c.l.b16 %v3232
  %v3265 = vunpack.c.l.b16 %v3233
  %v3266 = vunpack.c.l.b16 %v3234
  %v3267 = vunpack.c.l.b16 %v3235
  %v3268 = vunpack.c.l.b16 %v3236
  %v3269 = vunpack.c.l.b16 %v3237
  %v3270 = vunpack.c.l.b16 %v3238
  %v3271 = vunpack.c.l.b16 %v3239
  %v3272 = vunpack.c.l.b16 %v3240
  %v3273 = vunpack.c.l.b16 %v3241
  %v3274 = vunpack.c.l.b16 %v3242
  %v3275 = vpack.c.b16 %v3260, %v3259
  %v3276 = vpack.c.b16 %v3262, %v3261
  %v3277 = vpack.c.b16 %v3264, %v3263
  %v3278 = vpack.c.b16 %v3266, %v3265
  %v3279 = vpack.c.b16 %v3268, %v3267
  %v3280 = vpack.c.b16 %v3270, %v3269
  %v3281 = vpack.c.b16 %v3272, %v3271
  %v3282 = vpack.c.b16 %v3274, %v3273
  %v3284 = vsel %vm115, %v3275, 0
  %v3287 = vsel %vm115, %v3276, 0
  %v3290 = vsel %vm115, %v3277, 0
  %v3293 = vsel %vm115, %v3278, 0
  %v3296 = vsel %vm115, %v3279, 0
  %v3299 = vsel %vm115, %v3280, 0
  %v3302 = vsel %vm115, %v3281, 0
  %v3305 = vsel %vm115, %v3282, 0
  %3307 = vmatprep.subr.bf16.mxu0 0
  %3308 = vmatpush1.bf16.msra.mxu0 0
  %3309 = vmatprep.subr.bf16.mxu0 0
  %3310 = vmatpush1.bf16.msra.mxu0 0
  %3311 = vmatprep.subr.bf16.mxu0 0
  %3312 = vmatpush1.bf16.msra.mxu0 0
  %3313 = vmatprep.subr.bf16.mxu0 0
  %3314 = vmatpush1.bf16.msra.mxu0 0
  %3315 = vmatprep.subr.bf16.mxu0 0
  %3316 = vmatpush1.bf16.msra.mxu0 0
  %3317 = vmatprep.subr.bf16.mxu0 0
  %3318 = vmatpush1.bf16.msra.mxu0 0
  %3319 = vmatprep.subr.bf16.mxu0 0
  %3320 = vmatpush1.bf16.msra.mxu0 %v2903
  %3321 = vmatprep.subr.bf16.mxu0 0
  %3322 = vmatpush1.bf16.msra.mxu0 %v2875
  %3323 = vmatprep.subr.bf16.mxu0 0
  %3324 = vmatpush2.bf16.msra.mxu0 0
  %3325 = vmatprep.subr.bf16.mxu0 0
  %3326 = vmatpush2.bf16.msra.mxu0 0
  %3327 = vmatprep.subr.bf16.mxu0 0
  %3328 = vmatpush2.bf16.msra.mxu0 0
  %3329 = vmatprep.subr.bf16.mxu0 0
  %3330 = vmatpush2.bf16.msra.mxu0 0
  %3331 = vmatprep.subr.bf16.mxu0 0
  %3332 = vmatpush2.bf16.msra.mxu0 0
  %3333 = vmatprep.subr.bf16.mxu0 0
  %3334 = vmatpush2.bf16.msra.mxu0 0
  %3335 = vmatprep.subr.bf16.mxu0 0
  %3336 = vmatpush2.bf16.msra.mxu0 0
  %3337 = vmatprep.subr.bf16.mxu0 0
  %3338 = vmatpush2.bf16.msra.mxu0 0
  %3339 = vmatprep.mubr.bf16.mxu0 0
  %3340 = vmatmul.mubr.bf16.gmra.mxu0 %v3284
  %v3341 = vpop.f32.mrf.mxu0
  %v3342 = vadd.f32 %v62, %v3341
  %v3343 = vpop.f32.mrf.mxu0
  %v3344 = vpop.f32.mrf.mxu0
  %v3345 = vadd.f32 %v62, %v3344
  %v3346 = vpop.f32.mrf.mxu0
  %3347 = vmatprep.mubr.bf16.mxu0 0
  %3348 = vmatmul.mubr.bf16.gmra.mxu0 %v3287
  %v3349 = vpop.f32.mrf.mxu0
  %v3350 = vadd.f32 %v62, %v3349
  %v3351 = vpop.f32.mrf.mxu0
  %v3352 = vpop.f32.mrf.mxu0
  %v3353 = vadd.f32 %v62, %v3352
  %v3354 = vpop.f32.mrf.mxu0
  %3355 = vmatprep.mubr.bf16.mxu0 0
  %3356 = vmatmul.mubr.bf16.gmra.mxu0 %v3290
  %v3357 = vpop.f32.mrf.mxu0
  %v3358 = vadd.f32 %v62, %v3357
  %v3359 = vpop.f32.mrf.mxu0
  %v3360 = vpop.f32.mrf.mxu0
  %v3361 = vadd.f32 %v62, %v3360
  %v3362 = vpop.f32.mrf.mxu0
  %3363 = vmatprep.mubr.bf16.mxu0 0
  %3364 = vmatmul.mubr.bf16.gmra.mxu0 %v3293
  %v3365 = vpop.f32.mrf.mxu0
  %v3366 = vadd.f32 %v62, %v3365
  %v3367 = vpop.f32.mrf.mxu0
  %v3368 = vpop.f32.mrf.mxu0
  %v3369 = vadd.f32 %v62, %v3368
  %v3370 = vpop.f32.mrf.mxu0
  %3371 = vmatprep.mubr.bf16.mxu0 0
  %3372 = vmatmul.mubr.bf16.gmra.mxu0 %v3296
  %v3373 = vpop.f32.mrf.mxu0
  %v3374 = vadd.f32 %v62, %v3373
  %v3375 = vpop.f32.mrf.mxu0
  %v3376 = vpop.f32.mrf.mxu0
  %v3377 = vadd.f32 %v62, %v3376
  %v3378 = vpop.f32.mrf.mxu0
  %3379 = vmatprep.mubr.bf16.mxu0 0
  %3380 = vmatmul.mubr.bf16.gmra.mxu0 %v3299
  %v3381 = vpop.f32.mrf.mxu0
  %v3382 = vadd.f32 %v62, %v3381
  %v3383 = vpop.f32.mrf.mxu0
  %v3384 = vpop.f32.mrf.mxu0
  %v3385 = vadd.f32 %v62, %v3384
  %v3386 = vpop.f32.mrf.mxu0
  %3387 = vmatprep.mubr.bf16.mxu0 0
  %3388 = vmatmul.mubr.bf16.gmra.mxu0 %v3302
  %v3389 = vpop.f32.mrf.mxu0
  %v3390 = vadd.f32 %v62, %v3389
  %v3391 = vpop.f32.mrf.mxu0
  %v3392 = vpop.f32.mrf.mxu0
  %v3393 = vadd.f32 %v62, %v3392
  %v3394 = vpop.f32.mrf.mxu0
  %3395 = vmatprep.mubr.bf16.mxu0 0
  %3396 = vmatmul.mubr.bf16.gmra.mxu0 %v3305
  %v3397 = vpop.f32.mrf.mxu0
  %v3398 = vadd.f32 %v62, %v3397
  %v3399 = vpop.f32.mrf.mxu0
  %v3400 = vpop.f32.mrf.mxu0
  %v3401 = vadd.f32 %v62, %v3400
  %v3402 = vpop.f32.mrf.mxu0
  %3403 = vdwg.mxu0
  %v3404 = vmax.f32 %v3342, 0.0
  %v3405 = vmax.f32 %v3345, 0.0
  %v3406 = vmax.f32 %v3350, 0.0
  %v3407 = vmax.f32 %v3353, 0.0
  %v3408 = vmax.f32 %v3358, 0.0
  %v3409 = vmax.f32 %v3361, 0.0
  %v3410 = vmax.f32 %v3366, 0.0
  %v3411 = vmax.f32 %v3369, 0.0
  %v3412 = vmax.f32 %v3374, 0.0
  %v3413 = vmax.f32 %v3377, 0.0
  %v3414 = vmax.f32 %v3382, 0.0
  %v3415 = vmax.f32 %v3385, 0.0
  %v3416 = vmax.f32 %v3390, 0.0
  %v3417 = vmax.f32 %v3393, 0.0
  %v3418 = vmax.f32 %v3398, 0.0
  %v3419 = vmax.f32 %v3401, 0.0
  %v3420 = vmax.f32 %v3211, %v3404
  %v3421 = vmax.f32 %v3212, %v3405
  %v3422 = vmax.f32 %v3213, %v3406
  %v3423 = vmax.f32 %v3214, %v3407
  %v3424 = vmax.f32 %v3215, %v3408
  %v3425 = vmax.f32 %v3216, %v3409
  %v3426 = vmax.f32 %v3217, %v3410
  %v3427 = vmax.f32 %v3218, %v3411
  %v3428 = vmax.f32 %v3219, %v3412
  %v3429 = vmax.f32 %v3220, %v3413
  %v3430 = vmax.f32 %v3221, %v3414
  %v3431 = vmax.f32 %v3222, %v3415
  %v3432 = vmax.f32 %v3223, %v3416
  %v3433 = vmax.f32 %v3224, %v3417
  %v3434 = vmax.f32 %v3225, %v3418
  %v3435 = vmax.f32 %v3226, %v3419
  %v3436 = vld [vmem:[%s680 + $0x18] sm:$0xf]
  %v3437 = vld [vmem:[%s680 + $0x1c] sm:$0xf]
  %v3438 = vld [vmem:[%s680 + $0x98] sm:$0xf]
  %v3439 = vld [vmem:[%s680 + $0x9c] sm:$0xf]
  %v3440 = vld [vmem:[%s680 + $0x118] sm:$0xf]
  %v3441 = vld [vmem:[%s680 + $0x11c] sm:$0xf]
  %v3442 = vld [vmem:[%s680 + $0x198] sm:$0xf]
  %v3443 = vld [vmem:[%s680 + $0x19c] sm:$0xf]
  %v3444 = vld [vmem:[%s680 + $0x218] sm:$0xf]
  %v3445 = vld [vmem:[%s680 + $0x21c] sm:$0xf]
  %v3446 = vld [vmem:[%s680 + $0x298] sm:$0xf]
  %v3447 = vld [vmem:[%s680 + $0x29c] sm:$0xf]
  %v3448 = vld [vmem:[%s680 + $0x318] sm:$0xf]
  %v3449 = vld [vmem:[%s680 + $0x31c] sm:$0xf]
  %v3450 = vld [vmem:[%s680 + $0x398] sm:$0xf]
  %v3451 = vld [vmem:[%s680 + $0x39c] sm:$0xf]
  %v3468 = vunpack.c.l.b16 %v3436
  %v3469 = vunpack.c.l.b16 %v3437
  %v3470 = vunpack.c.l.b16 %v3438
  %v3471 = vunpack.c.l.b16 %v3439
  %v3472 = vunpack.c.l.b16 %v3440
  %v3473 = vunpack.c.l.b16 %v3441
  %v3474 = vunpack.c.l.b16 %v3442
  %v3475 = vunpack.c.l.b16 %v3443
  %v3476 = vunpack.c.l.b16 %v3444
  %v3477 = vunpack.c.l.b16 %v3445
  %v3478 = vunpack.c.l.b16 %v3446
  %v3479 = vunpack.c.l.b16 %v3447
  %v3480 = vunpack.c.l.b16 %v3448
  %v3481 = vunpack.c.l.b16 %v3449
  %v3482 = vunpack.c.l.b16 %v3450
  %v3483 = vunpack.c.l.b16 %v3451
  %v3484 = vpack.c.b16 %v3469, %v3468
  %v3485 = vpack.c.b16 %v3471, %v3470
  %v3486 = vpack.c.b16 %v3473, %v3472
  %v3487 = vpack.c.b16 %v3475, %v3474
  %v3488 = vpack.c.b16 %v3477, %v3476
  %v3489 = vpack.c.b16 %v3479, %v3478
  %v3490 = vpack.c.b16 %v3481, %v3480
  %v3491 = vpack.c.b16 %v3483, %v3482
  %v3493 = vsel %vm115, %v3484, 0
  %v3496 = vsel %vm115, %v3485, 0
  %v3499 = vsel %vm115, %v3486, 0
  %v3502 = vsel %vm115, %v3487, 0
  %v3505 = vsel %vm115, %v3488, 0
  %v3508 = vsel %vm115, %v3489, 0
  %v3511 = vsel %vm115, %v3490, 0
  %v3514 = vsel %vm115, %v3491, 0
  %3516 = vmatprep.subr.bf16.mxu0 0
  %3517 = vmatpush1.bf16.msra.mxu0 0
  %3518 = vmatprep.subr.bf16.mxu0 0
  %3519 = vmatpush1.bf16.msra.mxu0 0
  %3520 = vmatprep.subr.bf16.mxu0 0
  %3521 = vmatpush1.bf16.msra.mxu0 0
  %3522 = vmatprep.subr.bf16.mxu0 0
  %3523 = vmatpush1.bf16.msra.mxu0 0
  %3524 = vmatprep.subr.bf16.mxu0 0
  %3525 = vmatpush1.bf16.msra.mxu0 0
  %3526 = vmatprep.subr.bf16.mxu0 0
  %3527 = vmatpush1.bf16.msra.mxu0 0
  %3528 = vmatprep.subr.bf16.mxu0 0
  %3529 = vmatpush1.bf16.msra.mxu0 %v2903
  %3530 = vmatprep.subr.bf16.mxu0 0
  %3531 = vmatpush1.bf16.msra.mxu0 %v2875
  %3532 = vmatprep.subr.bf16.mxu0 0
  %3533 = vmatpush2.bf16.msra.mxu0 0
  %3534 = vmatprep.subr.bf16.mxu0 0
  %3535 = vmatpush2.bf16.msra.mxu0 0
  %3536 = vmatprep.subr.bf16.mxu0 0
  %3537 = vmatpush2.bf16.msra.mxu0 0
  %3538 = vmatprep.subr.bf16.mxu0 0
  %3539 = vmatpush2.bf16.msra.mxu0 0
  %3540 = vmatprep.subr.bf16.mxu0 0
  %3541 = vmatpush2.bf16.msra.mxu0 0
  %3542 = vmatprep.subr.bf16.mxu0 0
  %3543 = vmatpush2.bf16.msra.mxu0 0
  %3544 = vmatprep.subr.bf16.mxu0 0
  %3545 = vmatpush2.bf16.msra.mxu0 0
  %3546 = vmatprep.subr.bf16.mxu0 0
  %3547 = vmatpush2.bf16.msra.mxu0 0
  %3548 = vmatprep.mubr.bf16.mxu0 0
  %3549 = vmatmul.mubr.bf16.gmra.mxu0 %v3493
  %v3550 = vpop.f32.mrf.mxu0
  %v3551 = vadd.f32 %v62, %v3550
  %v3552 = vpop.f32.mrf.mxu0
  %v3553 = vpop.f32.mrf.mxu0
  %v3554 = vadd.f32 %v62, %v3553
  %v3555 = vpop.f32.mrf.mxu0
  %3556 = vmatprep.mubr.bf16.mxu0 0
  %3557 = vmatmul.mubr.bf16.gmra.mxu0 %v3496
  %v3558 = vpop.f32.mrf.mxu0
  %v3559 = vadd.f32 %v62, %v3558
  %v3560 = vpop.f32.mrf.mxu0
  %v3561 = vpop.f32.mrf.mxu0
  %v3562 = vadd.f32 %v62, %v3561
  %v3563 = vpop.f32.mrf.mxu0
  %3564 = vmatprep.mubr.bf16.mxu0 0
  %3565 = vmatmul.mubr.bf16.gmra.mxu0 %v3499
  %v3566 = vpop.f32.mrf.mxu0
  %v3567 = vadd.f32 %v62, %v3566
  %v3568 = vpop.f32.mrf.mxu0
  %v3569 = vpop.f32.mrf.mxu0
  %v3570 = vadd.f32 %v62, %v3569
  %v3571 = vpop.f32.mrf.mxu0
  %3572 = vmatprep.mubr.bf16.mxu0 0
  %3573 = vmatmul.mubr.bf16.gmra.mxu0 %v3502
  %v3574 = vpop.f32.mrf.mxu0
  %v3575 = vadd.f32 %v62, %v3574
  %v3576 = vpop.f32.mrf.mxu0
  %v3577 = vpop.f32.mrf.mxu0
  %v3578 = vadd.f32 %v62, %v3577
  %v3579 = vpop.f32.mrf.mxu0
  %3580 = vmatprep.mubr.bf16.mxu0 0
  %3581 = vmatmul.mubr.bf16.gmra.mxu0 %v3505
  %v3582 = vpop.f32.mrf.mxu0
  %v3583 = vadd.f32 %v62, %v3582
  %v3584 = vpop.f32.mrf.mxu0
  %v3585 = vpop.f32.mrf.mxu0
  %v3586 = vadd.f32 %v62, %v3585
  %v3587 = vpop.f32.mrf.mxu0
  %3588 = vmatprep.mubr.bf16.mxu0 0
  %3589 = vmatmul.mubr.bf16.gmra.mxu0 %v3508
  %v3590 = vpop.f32.mrf.mxu0
  %v3591 = vadd.f32 %v62, %v3590
  %v3592 = vpop.f32.mrf.mxu0
  %v3593 = vpop.f32.mrf.mxu0
  %v3594 = vadd.f32 %v62, %v3593
  %v3595 = vpop.f32.mrf.mxu0
  %3596 = vmatprep.mubr.bf16.mxu0 0
  %3597 = vmatmul.mubr.bf16.gmra.mxu0 %v3511
  %v3598 = vpop.f32.mrf.mxu0
  %v3599 = vadd.f32 %v62, %v3598
  %v3600 = vpop.f32.mrf.mxu0
  %v3601 = vpop.f32.mrf.mxu0
  %v3602 = vadd.f32 %v62, %v3601
  %v3603 = vpop.f32.mrf.mxu0
  %3604 = vmatprep.mubr.bf16.mxu0 0
  %3605 = vmatmul.mubr.bf16.gmra.mxu0 %v3514
  %v3606 = vpop.f32.mrf.mxu0
  %v3607 = vadd.f32 %v62, %v3606
  %v3608 = vpop.f32.mrf.mxu0
  %v3609 = vpop.f32.mrf.mxu0
  %v3610 = vadd.f32 %v62, %v3609
  %v3611 = vpop.f32.mrf.mxu0
  %3612 = vdwg.mxu0
  %v3613 = vmax.f32 %v3551, 0.0
  %v3614 = vmax.f32 %v3554, 0.0
  %v3615 = vmax.f32 %v3559, 0.0
  %v3616 = vmax.f32 %v3562, 0.0
  %v3617 = vmax.f32 %v3567, 0.0
  %v3618 = vmax.f32 %v3570, 0.0
  %v3619 = vmax.f32 %v3575, 0.0
  %v3620 = vmax.f32 %v3578, 0.0
  %v3621 = vmax.f32 %v3583, 0.0
  %v3622 = vmax.f32 %v3586, 0.0
  %v3623 = vmax.f32 %v3591, 0.0
  %v3624 = vmax.f32 %v3594, 0.0
  %v3625 = vmax.f32 %v3599, 0.0
  %v3626 = vmax.f32 %v3602, 0.0
  %v3627 = vmax.f32 %v3607, 0.0
  %v3628 = vmax.f32 %v3610, 0.0
  %v3629 = vmax.f32 %v3420, %v3613
  %v3630 = vmax.f32 %v3421, %v3614
  %v3631 = vmax.f32 %v3422, %v3615
  %v3632 = vmax.f32 %v3423, %v3616
  %v3633 = vmax.f32 %v3424, %v3617
  %v3634 = vmax.f32 %v3425, %v3618
  %v3635 = vmax.f32 %v3426, %v3619
  %v3636 = vmax.f32 %v3427, %v3620
  %v3637 = vmax.f32 %v3428, %v3621
  %v3638 = vmax.f32 %v3429, %v3622
  %v3639 = vmax.f32 %v3430, %v3623
  %v3640 = vmax.f32 %v3431, %v3624
  %v3641 = vmax.f32 %v3432, %v3625
  %v3642 = vmax.f32 %v3433, %v3626
  %v3643 = vmax.f32 %v3434, %v3627
  %v3644 = vmax.f32 %v3435, %v3628
  %v3645 = vpack.c.bf16 %v3630, %v3629
  %v3646 = vpack.c.bf16 %v3632, %v3631
  %v3647 = vpack.c.bf16 %v3634, %v3633
  %v3648 = vpack.c.bf16 %v3636, %v3635
  %v3649 = vpack.c.bf16 %v3638, %v3637
  %v3650 = vpack.c.bf16 %v3640, %v3639
  %v3651 = vpack.c.bf16 %v3642, %v3641
  %v3652 = vpack.c.bf16 %v3644, %v3643
  %v3661 = vunpack.c.l.b16 %v3645
  %v3662 = vunpack.c.h.b16 %v3645
  %v3663 = vunpack.c.l.b16 %v3646
  %v3664 = vunpack.c.h.b16 %v3646
  %v3665 = vunpack.c.l.b16 %v3647
  %v3666 = vunpack.c.h.b16 %v3647
  %v3667 = vunpack.c.l.b16 %v3648
  %v3668 = vunpack.c.h.b16 %v3648
  %v3669 = vunpack.c.l.b16 %v3649
  %v3670 = vunpack.c.h.b16 %v3649
  %v3671 = vunpack.c.l.b16 %v3650
  %v3672 = vunpack.c.h.b16 %v3650
  %v3673 = vunpack.c.l.b16 %v3651
  %v3674 = vunpack.c.h.b16 %v3651
  %v3675 = vunpack.c.l.b16 %v3652
  %v3676 = vunpack.c.h.b16 %v3652
  %v3677 = vpack.c.b16 %v3661, %v3661
  %v3678 = vpack.c.b16 %v3662, %v3662
  %v3679 = vpack.c.b16 %v3663, %v3663
  %v3680 = vpack.c.b16 %v3664, %v3664
  %v3681 = vpack.c.b16 %v3665, %v3665
  %v3682 = vpack.c.b16 %v3666, %v3666
  %v3683 = vpack.c.b16 %v3667, %v3667
  %v3684 = vpack.c.b16 %v3668, %v3668
  %v3685 = vpack.c.b16 %v3669, %v3669
  %v3686 = vpack.c.b16 %v3670, %v3670
  %v3687 = vpack.c.b16 %v3671, %v3671
  %v3688 = vpack.c.b16 %v3672, %v3672
  %v3689 = vpack.c.b16 %v3673, %v3673
  %v3690 = vpack.c.b16 %v3674, %v3674
  %v3691 = vpack.c.b16 %v3675, %v3675
  %v3692 = vpack.c.b16 %v3676, %v3676
  %3709 = vst.msk [vmem:[#allocation2 + $0x18] sm:$0xf] %vm954, %v3677
  %3710 = vst.msk [vmem:[#allocation2 + $0x1c] sm:$0xf] %vm954, %v3678
  %3711 = vst.msk [vmem:[#allocation2 + $0x38] sm:$0xf] %vm954, %v3679
  %3712 = vst.msk [vmem:[#allocation2 + $0x3c] sm:$0xf] %vm954, %v3680
  %3713 = vst.msk [vmem:[#allocation2 + $0x58] sm:$0xf] %vm954, %v3681
  %3714 = vst.msk [vmem:[#allocation2 + $0x5c] sm:$0xf] %vm954, %v3682
  %3715 = vst.msk [vmem:[#allocation2 + $0x78] sm:$0xf] %vm954, %v3683
  %3716 = vst.msk [vmem:[#allocation2 + $0x7c] sm:$0xf] %vm954, %v3684
  %3717 = vst.msk [vmem:[#allocation2 + $0x98] sm:$0xf] %vm954, %v3685
  %3718 = vst.msk [vmem:[#allocation2 + $0x9c] sm:$0xf] %vm954, %v3686
  %3719 = vst.msk [vmem:[#allocation2 + $0xb8] sm:$0xf] %vm954, %v3687
  %3720 = vst.msk [vmem:[#allocation2 + $0xbc] sm:$0xf] %vm954, %v3688
  %3721 = vst.msk [vmem:[#allocation2 + $0xd8] sm:$0xf] %vm954, %v3689
  %3722 = vst.msk [vmem:[#allocation2 + $0xdc] sm:$0xf] %vm954, %v3690
  %3723 = vst.msk [vmem:[#allocation2 + $0xf8] sm:$0xf] %vm954, %v3691
  %3724 = vst.msk [vmem:[#allocation2 + $0xfc] sm:$0xf] %vm954, %v3692
  %vm3725 = vcmask 1043456
  %vm3726 = vcmask 130052
  %vm3727 = vmor %vm3726, %vm3725
  %3728 = vst.msk [vmem:[#allocation3] sm:$0xff] %vm3727, 0
  %3729 = vst.msk [vmem:[#allocation3 + $0x8] sm:$0xff] %vm3727, 0
  %3730 = vst.msk [vmem:[#allocation3 + $0x10] sm:$0xff] %vm3727, 0
  %3731 = vst.msk [vmem:[#allocation3 + $0x18] sm:$0xff] %vm3727, 0
  %3732 = vst.msk [vmem:[#allocation3 + $0x20] sm:$0xff] %vm3727, 0
  %3733 = vst.msk [vmem:[#allocation3 + $0x28] sm:$0xff] %vm3727, 0
  %3734 = vst.msk [vmem:[#allocation3 + $0x30] sm:$0xff] %vm3727, 0
  %3735 = vst.msk [vmem:[#allocation3 + $0x38] sm:$0xff] %vm3727, 0
  %3736 = vst.msk [vmem:[#allocation3 + $0x40] sm:$0xff] %vm3727, 0
  %3737 = vst.msk [vmem:[#allocation3 + $0x48] sm:$0xff] %vm3727, 0
  %3738 = vst.msk [vmem:[#allocation3 + $0x50] sm:$0xff] %vm3727, 0
  %3739 = vst.msk [vmem:[#allocation3 + $0x58] sm:$0xff] %vm3727, 0
  %3740 = vst.msk [vmem:[#allocation3 + $0x60] sm:$0xff] %vm3727, 0
  %3741 = vst.msk [vmem:[#allocation3 + $0x68] sm:$0xff] %vm3727, 0
  %3742 = vst.msk [vmem:[#allocation3 + $0x70] sm:$0xff] %vm3727, 0
  %3743 = vst.msk [vmem:[#allocation3 + $0x78] sm:$0xff] %vm3727, 0
  %v3744 = vld [vmem:[#allocation2] sm:$0x3]
  %v3745 = vld [vmem:[#allocation2 + $0x20] sm:$0x3]
  %v3746 = vld [vmem:[#allocation2 + $0x40] sm:$0x3]
  %v3747 = vld [vmem:[#allocation2 + $0x60] sm:$0x3]
  %v3748 = vld [vmem:[#allocation2 + $0x80] sm:$0x3]
  %v3749 = vld [vmem:[#allocation2 + $0xa0] sm:$0x3]
  %v3750 = vld [vmem:[#allocation2 + $0xc0] sm:$0x3]
  %v3751 = vld [vmem:[#allocation2 + $0xe0] sm:$0x3]
  %vm3752 = vcmask 123904
  %vm3753 = vsmask.f32 1280
  %vm3754 = vmand %vm3752, %vm3753
  %v3755 = vld [vmem:[#allocation3] sm:$0x3]
  %v3756 = vsel %vm3754, %v3744, %v3755
  %3757 = vst [vmem:[#allocation3] sm:$0x3] %v3756
  %v3758 = vld [vmem:[#allocation3 + $0x10] sm:$0x3]
  %v3759 = vsel %vm3754, %v3745, %v3758
  %3760 = vst [vmem:[#allocation3 + $0x10] sm:$0x3] %v3759
  %v3761 = vld [vmem:[#allocation3 + $0x20] sm:$0x3]
  %v3762 = vsel %vm3754, %v3746, %v3761
  %3763 = vst [vmem:[#allocation3 + $0x20] sm:$0x3] %v3762
  %v3764 = vld [vmem:[#allocation3 + $0x30] sm:$0x3]
  %v3765 = vsel %vm3754, %v3747, %v3764
  %3766 = vst [vmem:[#allocation3 + $0x30] sm:$0x3] %v3765
  %v3767 = vld [vmem:[#allocation3 + $0x40] sm:$0x3]
  %v3768 = vsel %vm3754, %v3748, %v3767
  %3769 = vst [vmem:[#allocation3 + $0x40] sm:$0x3] %v3768
  %v3770 = vld [vmem:[#allocation3 + $0x50] sm:$0x3]
  %v3771 = vsel %vm3754, %v3749, %v3770
  %3772 = vst [vmem:[#allocation3 + $0x50] sm:$0x3] %v3771
  %v3773 = vld [vmem:[#allocation3 + $0x60] sm:$0x3]
  %v3774 = vsel %vm3754, %v3750, %v3773
  %3775 = vst [vmem:[#allocation3 + $0x60] sm:$0x3] %v3774
  %v3776 = vld [vmem:[#allocation3 + $0x70] sm:$0x3]
  %v3777 = vsel %vm3754, %v3751, %v3776
  %3778 = vst [vmem:[#allocation3 + $0x70] sm:$0x3] %v3777
  %v3779 = vld [vmem:[#allocation2] sm:$0xc]
  %v3780 = vld [vmem:[#allocation2 + $0x20] sm:$0xc]
  %v3781 = vld [vmem:[#allocation2 + $0x40] sm:$0xc]
  %v3782 = vld [vmem:[#allocation2 + $0x60] sm:$0xc]
  %v3783 = vld [vmem:[#allocation2 + $0x80] sm:$0xc]
  %v3784 = vld [vmem:[#allocation2 + $0xa0] sm:$0xc]
  %v3785 = vld [vmem:[#allocation2 + $0xc0] sm:$0xc]
  %v3786 = vld [vmem:[#allocation2 + $0xe0] sm:$0xc]
  %v3788 = vshrl.u32 %v3779, 16
  %v3790 = vrot.slane %v3788, 4
  %v3791 = vshll.u32 %v3779, 16
  %v3793 = vrot.slane %v3791, 5
  %v3794 = vor.u32 %v3790, %v3793
  %v3795 = vrot.slane %v3794, 4
  %v3797 = vshrl.u32 %v3780, 16
  %v3799 = vrot.slane %v3797, 4
  %v3800 = vshll.u32 %v3780, 16
  %v3802 = vrot.slane %v3800, 5
  %v3803 = vor.u32 %v3799, %v3802
  %v3804 = vrot.slane %v3803, 4
  %v3806 = vshrl.u32 %v3781, 16
  %v3808 = vrot.slane %v3806, 4
  %v3809 = vshll.u32 %v3781, 16
  %v3811 = vrot.slane %v3809, 5
  %v3812 = vor.u32 %v3808, %v3811
  %v3813 = vrot.slane %v3812, 4
  %v3815 = vshrl.u32 %v3782, 16
  %v3817 = vrot.slane %v3815, 4
  %v3818 = vshll.u32 %v3782, 16
  %v3820 = vrot.slane %v3818, 5
  %v3821 = vor.u32 %v3817, %v3820
  %v3822 = vrot.slane %v3821, 4
  %v3824 = vshrl.u32 %v3783, 16
  %v3826 = vrot.slane %v3824, 4
  %v3827 = vshll.u32 %v3783, 16
  %v3829 = vrot.slane %v3827, 5
  %v3830 = vor.u32 %v3826, %v3829
  %v3831 = vrot.slane %v3830, 4
  %v3833 = vshrl.u32 %v3784, 16
  %v3835 = vrot.slane %v3833, 4
  %v3836 = vshll.u32 %v3784, 16
  %v3838 = vrot.slane %v3836, 5
  %v3839 = vor.u32 %v3835, %v3838
  %v3840 = vrot.slane %v3839, 4
  %v3842 = vshrl.u32 %v3785, 16
  %v3844 = vrot.slane %v3842, 4
  %v3845 = vshll.u32 %v3785, 16
  %v3847 = vrot.slane %v3845, 5
  %v3848 = vor.u32 %v3844, %v3847
  %v3849 = vrot.slane %v3848, 4
  %v3851 = vshrl.u32 %v3786, 16
  %v3853 = vrot.slane %v3851, 4
  %v3854 = vshll.u32 %v3786, 16
  %v3856 = vrot.slane %v3854, 5
  %v3857 = vor.u32 %v3853, %v3856
  %v3858 = vrot.slane %v3857, 4
  %vm3867 = vcmask 124929
  %vm3868 = vsmask.f32 7942
  %vm3869 = vmand %vm3867, %vm3868
  %v3870 = vld [vmem:[#allocation3] sm:$0x6]
  %v3871 = vsel %vm3869, %v3795, %v3870
  %3872 = vst [vmem:[#allocation3] sm:$0x6] %v3871
  %v3873 = vld [vmem:[#allocation3 + $0x10] sm:$0x6]
  %v3874 = vsel %vm3869, %v3804, %v3873
  %3875 = vst [vmem:[#allocation3 + $0x10] sm:$0x6] %v3874
  %v3876 = vld [vmem:[#allocation3 + $0x20] sm:$0x6]
  %v3877 = vsel %vm3869, %v3813, %v3876
  %3878 = vst [vmem:[#allocation3 + $0x20] sm:$0x6] %v3877
  %v3879 = vld [vmem:[#allocation3 + $0x30] sm:$0x6]
  %v3880 = vsel %vm3869, %v3822, %v3879
  %3881 = vst [vmem:[#allocation3 + $0x30] sm:$0x6] %v3880
  %v3882 = vld [vmem:[#allocation3 + $0x40] sm:$0x6]
  %v3883 = vsel %vm3869, %v3831, %v3882
  %3884 = vst [vmem:[#allocation3 + $0x40] sm:$0x6] %v3883
  %v3885 = vld [vmem:[#allocation3 + $0x50] sm:$0x6]
  %v3886 = vsel %vm3869, %v3840, %v3885
  %3887 = vst [vmem:[#allocation3 + $0x50] sm:$0x6] %v3886
  %v3888 = vld [vmem:[#allocation3 + $0x60] sm:$0x6]
  %v3889 = vsel %vm3869, %v3849, %v3888
  %3890 = vst [vmem:[#allocation3 + $0x60] sm:$0x6] %v3889
  %v3891 = vld [vmem:[#allocation3 + $0x70] sm:$0x6]
  %v3892 = vsel %vm3869, %v3858, %v3891
  %3893 = vst [vmem:[#allocation3 + $0x70] sm:$0x6] %v3892
  %v3894 = vld [vmem:[#allocation2 + $0x4] sm:$0x3]
  %v3895 = vld [vmem:[#allocation2 + $0x24] sm:$0x3]
  %v3896 = vld [vmem:[#allocation2 + $0x44] sm:$0x3]
  %v3897 = vld [vmem:[#allocation2 + $0x64] sm:$0x3]
  %v3898 = vld [vmem:[#allocation2 + $0x84] sm:$0x3]
  %v3899 = vld [vmem:[#allocation2 + $0xa4] sm:$0x3]
  %v3900 = vld [vmem:[#allocation2 + $0xc4] sm:$0x3]
  %v3901 = vld [vmem:[#allocation2 + $0xe4] sm:$0x3]
  %v3910 = vrot.slane %v3894, 5
  %v3911 = vrot.slane %v3910, 4
  %v3912 = vrot.slane %v3895, 5
  %v3913 = vrot.slane %v3912, 4
  %v3914 = vrot.slane %v3896, 5
  %v3915 = vrot.slane %v3914, 4
  %v3916 = vrot.slane %v3897, 5
  %v3917 = vrot.slane %v3916, 4
  %v3918 = vrot.slane %v3898, 5
  %v3919 = vrot.slane %v3918, 4
  %v3920 = vrot.slane %v3899, 5
  %v3921 = vrot.slane %v3920, 4
  %v3922 = vrot.slane %v3900, 5
  %v3923 = vrot.slane %v3922, 4
  %v3924 = vrot.slane %v3901, 5
  %v3925 = vrot.slane %v3924, 4
  %vm3942 = vcmask 125955
  %3943 = vst.msk [vmem:[#allocation3] sm:$0x8] %vm3942, %v3910
  %vm3944 = vcmask 122880
  %vm3945 = vsmask.f32 256
  %vm3946 = vmand %vm3944, %vm3945
  %v3947 = vld [vmem:[#allocation3 + $0x8] sm:$0x1]
  %v3948 = vsel %vm3946, %v3911, %v3947
  %3949 = vst [vmem:[#allocation3 + $0x8] sm:$0x1] %v3948
  %3950 = vst.msk [vmem:[#allocation3 + $0x10] sm:$0x8] %vm3942, %v3912
  %v3951 = vld [vmem:[#allocation3 + $0x18] sm:$0x1]
  %v3952 = vsel %vm3946, %v3913, %v3951
  %3953 = vst [vmem:[#allocation3 + $0x18] sm:$0x1] %v3952
  %3954 = vst.msk [vmem:[#allocation3 + $0x20] sm:$0x8] %vm3942, %v3914
  %v3955 = vld [vmem:[#allocation3 + $0x28] sm:$0x1]
  %v3956 = vsel %vm3946, %v3915, %v3955
  %3957 = vst [vmem:[#allocation3 + $0x28] sm:$0x1] %v3956
  %3958 = vst.msk [vmem:[#allocation3 + $0x30] sm:$0x8] %vm3942, %v3916
  %v3959 = vld [vmem:[#allocation3 + $0x38] sm:$0x1]
  %v3960 = vsel %vm3946, %v3917, %v3959
  %3961 = vst [vmem:[#allocation3 + $0x38] sm:$0x1] %v3960
  %3962 = vst.msk [vmem:[#allocation3 + $0x40] sm:$0x8] %vm3942, %v3918
  %v3963 = vld [vmem:[#allocation3 + $0x48] sm:$0x1]
  %v3964 = vsel %vm3946, %v3919, %v3963
  %3965 = vst [vmem:[#allocation3 + $0x48] sm:$0x1] %v3964
  %3966 = vst.msk [vmem:[#allocation3 + $0x50] sm:$0x8] %vm3942, %v3920
  %v3967 = vld [vmem:[#allocation3 + $0x58] sm:$0x1]
  %v3968 = vsel %vm3946, %v3921, %v3967
  %3969 = vst [vmem:[#allocation3 + $0x58] sm:$0x1] %v3968
  %3970 = vst.msk [vmem:[#allocation3 + $0x60] sm:$0x8] %vm3942, %v3922
  %v3971 = vld [vmem:[#allocation3 + $0x68] sm:$0x1]
  %v3972 = vsel %vm3946, %v3923, %v3971
  %3973 = vst [vmem:[#allocation3 + $0x68] sm:$0x1] %v3972
  %3974 = vst.msk [vmem:[#allocation3 + $0x70] sm:$0x8] %vm3942, %v3924
  %v3975 = vld [vmem:[#allocation3 + $0x78] sm:$0x1]
  %v3976 = vsel %vm3946, %v3925, %v3975
  %3977 = vst [vmem:[#allocation3 + $0x78] sm:$0x1] %v3976
  %v3978 = vld [vmem:[#allocation2 + $0x8] sm:$0x3]
  %v3979 = vld [vmem:[#allocation2 + $0x28] sm:$0x3]
  %v3980 = vld [vmem:[#allocation2 + $0x48] sm:$0x3]
  %v3981 = vld [vmem:[#allocation2 + $0x68] sm:$0x3]
  %v3982 = vld [vmem:[#allocation2 + $0x88] sm:$0x3]
  %v3983 = vld [vmem:[#allocation2 + $0xa8] sm:$0x3]
  %v3984 = vld [vmem:[#allocation2 + $0xc8] sm:$0x3]
  %v3985 = vld [vmem:[#allocation2 + $0xe8] sm:$0x3]
  %3994 = vrot.lane.b32.xlu0 %v3978, 16
  %v3995 = vpop.permute.xlu0 %3994
  %3996 = vrot.lane.b32.xlu0 %v3979, 16
  %v3997 = vpop.permute.xlu0 %3996
  %3998 = vrot.lane.b32.xlu0 %v3980, 16
  %v3999 = vpop.permute.xlu0 %3998
  %4000 = vrot.lane.b32.xlu0 %v3981, 16
  %v4001 = vpop.permute.xlu0 %4000
  %4002 = vrot.lane.b32.xlu0 %v3982, 16
  %v4003 = vpop.permute.xlu0 %4002
  %4004 = vrot.lane.b32.xlu0 %v3983, 16
  %v4005 = vpop.permute.xlu0 %4004
  %4006 = vrot.lane.b32.xlu0 %v3984, 16
  %v4007 = vpop.permute.xlu0 %4006
  %4008 = vrot.lane.b32.xlu0 %v3985, 16
  %v4009 = vpop.permute.xlu0 %4008
  %vm4018 = vcmask 255104
  %vm4019 = vmand %vm4018, %vm3753
  %v4020 = vld [vmem:[#allocation3] sm:$0x3]
  %v4021 = vsel %vm4019, %v3995, %v4020
  %4022 = vst [vmem:[#allocation3] sm:$0x3] %v4021
  %v4023 = vld [vmem:[#allocation3 + $0x10] sm:$0x3]
  %v4024 = vsel %vm4019, %v3997, %v4023
  %4025 = vst [vmem:[#allocation3 + $0x10] sm:$0x3] %v4024
  %v4026 = vld [vmem:[#allocation3 + $0x20] sm:$0x3]
  %v4027 = vsel %vm4019, %v3999, %v4026
  %4028 = vst [vmem:[#allocation3 + $0x20] sm:$0x3] %v4027
  %v4029 = vld [vmem:[#allocation3 + $0x30] sm:$0x3]
  %v4030 = vsel %vm4019, %v4001, %v4029
  %4031 = vst [vmem:[#allocation3 + $0x30] sm:$0x3] %v4030
  %v4032 = vld [vmem:[#allocation3 + $0x40] sm:$0x3]
  %v4033 = vsel %vm4019, %v4003, %v4032
  %4034 = vst [vmem:[#allocation3 + $0x40] sm:$0x3] %v4033
  %v4035 = vld [vmem:[#allocation3 + $0x50] sm:$0x3]
  %v4036 = vsel %vm4019, %v4005, %v4035
  %4037 = vst [vmem:[#allocation3 + $0x50] sm:$0x3] %v4036
  %v4038 = vld [vmem:[#allocation3 + $0x60] sm:$0x3]
  %v4039 = vsel %vm4019, %v4007, %v4038
  %4040 = vst [vmem:[#allocation3 + $0x60] sm:$0x3] %v4039
  %v4041 = vld [vmem:[#allocation3 + $0x70] sm:$0x3]
  %v4042 = vsel %vm4019, %v4009, %v4041
  %4043 = vst [vmem:[#allocation3 + $0x70] sm:$0x3] %v4042
  %v4044 = vld [vmem:[#allocation2 + $0x8] sm:$0xc]
  %v4045 = vld [vmem:[#allocation2 + $0x28] sm:$0xc]
  %v4046 = vld [vmem:[#allocation2 + $0x48] sm:$0xc]
  %v4047 = vld [vmem:[#allocation2 + $0x68] sm:$0xc]
  %v4048 = vld [vmem:[#allocation2 + $0x88] sm:$0xc]
  %v4049 = vld [vmem:[#allocation2 + $0xa8] sm:$0xc]
  %v4050 = vld [vmem:[#allocation2 + $0xc8] sm:$0xc]
  %v4051 = vld [vmem:[#allocation2 + $0xe8] sm:$0xc]
  %v4053 = vshrl.u32 %v4044, 16
  %v4055 = vrot.slane %v4053, 4
  %v4056 = vshll.u32 %v4044, 16
  %v4058 = vrot.slane %v4056, 5
  %v4059 = vor.u32 %v4055, %v4058
  %v4060 = vrot.slane %v4059, 4
  %v4062 = vshrl.u32 %v4045, 16
  %v4064 = vrot.slane %v4062, 4
  %v4065 = vshll.u32 %v4045, 16
  %v4067 = vrot.slane %v4065, 5
  %v4068 = vor.u32 %v4064, %v4067
  %v4069 = vrot.slane %v4068, 4
  %v4071 = vshrl.u32 %v4046, 16
  %v4073 = vrot.slane %v4071, 4
  %v4074 = vshll.u32 %v4046, 16
  %v4076 = vrot.slane %v4074, 5
  %v4077 = vor.u32 %v4073, %v4076
  %v4078 = vrot.slane %v4077, 4
  %v4080 = vshrl.u32 %v4047, 16
  %v4082 = vrot.slane %v4080, 4
  %v4083 = vshll.u32 %v4047, 16
  %v4085 = vrot.slane %v4083, 5
  %v4086 = vor.u32 %v4082, %v4085
  %v4087 = vrot.slane %v4086, 4
  %v4089 = vshrl.u32 %v4048, 16
  %v4091 = vrot.slane %v4089, 4
  %v4092 = vshll.u32 %v4048, 16
  %v4094 = vrot.slane %v4092, 5
  %v4095 = vor.u32 %v4091, %v4094
  %v4096 = vrot.slane %v4095, 4
  %v4098 = vshrl.u32 %v4049, 16
  %v4100 = vrot.slane %v4098, 4
  %v4101 = vshll.u32 %v4049, 16
  %v4103 = vrot.slane %v4101, 5
  %v4104 = vor.u32 %v4100, %v4103
  %v4105 = vrot.slane %v4104, 4
  %v4107 = vshrl.u32 %v4050, 16
  %v4109 = vrot.slane %v4107, 4
  %v4110 = vshll.u32 %v4050, 16
  %v4112 = vrot.slane %v4110, 5
  %v4113 = vor.u32 %v4109, %v4112
  %v4114 = vrot.slane %v4113, 4
  %v4116 = vshrl.u32 %v4051, 16
  %v4118 = vrot.slane %v4116, 4
  %v4119 = vshll.u32 %v4051, 16
  %v4121 = vrot.slane %v4119, 5
  %v4122 = vor.u32 %v4118, %v4121
  %v4123 = vrot.slane %v4122, 4
  %4124 = vrot.lane.b32.xlu0 %v4060, 16
  %v4125 = vpop.permute.xlu0 %4124
  %4126 = vrot.lane.b32.xlu0 %v4069, 16
  %v4127 = vpop.permute.xlu0 %4126
  %4128 = vrot.lane.b32.xlu0 %v4078, 16
  %v4129 = vpop.permute.xlu0 %4128
  %4130 = vrot.lane.b32.xlu0 %v4087, 16
  %v4131 = vpop.permute.xlu0 %4130
  %4132 = vrot.lane.b32.xlu0 %v4096, 16
  %v4133 = vpop.permute.xlu0 %4132
  %4134 = vrot.lane.b32.xlu0 %v4105, 16
  %v4135 = vpop.permute.xlu0 %4134
  %4136 = vrot.lane.b32.xlu0 %v4114, 16
  %v4137 = vpop.permute.xlu0 %4136
  %4138 = vrot.lane.b32.xlu0 %v4123, 16
  %v4139 = vpop.permute.xlu0 %4138
  %vm4148 = vcmask 256129
  %vm4149 = vmand %vm4148, %vm3868
  %v4150 = vld [vmem:[#allocation3] sm:$0x6]
  %v4151 = vsel %vm4149, %v4125, %v4150
  %4152 = vst [vmem:[#allocation3] sm:$0x6] %v4151
  %v4153 = vld [vmem:[#allocation3 + $0x10] sm:$0x6]
  %v4154 = vsel %vm4149, %v4127, %v4153
  %4155 = vst [vmem:[#allocation3 + $0x10] sm:$0x6] %v4154
  %v4156 = vld [vmem:[#allocation3 + $0x20] sm:$0x6]
  %v4157 = vsel %vm4149, %v4129, %v4156
  %4158 = vst [vmem:[#allocation3 + $0x20] sm:$0x6] %v4157
  %v4159 = vld [vmem:[#allocation3 + $0x30] sm:$0x6]
  %v4160 = vsel %vm4149, %v4131, %v4159
  %4161 = vst [vmem:[#allocation3 + $0x30] sm:$0x6] %v4160
  %v4162 = vld [vmem:[#allocation3 + $0x40] sm:$0x6]
  %v4163 = vsel %vm4149, %v4133, %v4162
  %4164 = vst [vmem:[#allocation3 + $0x40] sm:$0x6] %v4163
  %v4165 = vld [vmem:[#allocation3 + $0x50] sm:$0x6]
  %v4166 = vsel %vm4149, %v4135, %v4165
  %4167 = vst [vmem:[#allocation3 + $0x50] sm:$0x6] %v4166
  %v4168 = vld [vmem:[#allocation3 + $0x60] sm:$0x6]
  %v4169 = vsel %vm4149, %v4137, %v4168
  %4170 = vst [vmem:[#allocation3 + $0x60] sm:$0x6] %v4169
  %v4171 = vld [vmem:[#allocation3 + $0x70] sm:$0x6]
  %v4172 = vsel %vm4149, %v4139, %v4171
  %4173 = vst [vmem:[#allocation3 + $0x70] sm:$0x6] %v4172
  %v4174 = vld [vmem:[#allocation2 + $0xc] sm:$0x3]
  %v4175 = vld [vmem:[#allocation2 + $0x2c] sm:$0x3]
  %v4176 = vld [vmem:[#allocation2 + $0x4c] sm:$0x3]
  %v4177 = vld [vmem:[#allocation2 + $0x6c] sm:$0x3]
  %v4178 = vld [vmem:[#allocation2 + $0x8c] sm:$0x3]
  %v4179 = vld [vmem:[#allocation2 + $0xac] sm:$0x3]
  %v4180 = vld [vmem:[#allocation2 + $0xcc] sm:$0x3]
  %v4181 = vld [vmem:[#allocation2 + $0xec] sm:$0x3]
  %v4190 = vrot.slane %v4174, 5
  %v4191 = vrot.slane %v4190, 4
  %v4192 = vrot.slane %v4175, 5
  %v4193 = vrot.slane %v4192, 4
  %v4194 = vrot.slane %v4176, 5
  %v4195 = vrot.slane %v4194, 4
  %v4196 = vrot.slane %v4177, 5
  %v4197 = vrot.slane %v4196, 4
  %v4198 = vrot.slane %v4178, 5
  %v4199 = vrot.slane %v4198, 4
  %v4200 = vrot.slane %v4179, 5
  %v4201 = vrot.slane %v4200, 4
  %v4202 = vrot.slane %v4180, 5
  %v4203 = vrot.slane %v4202, 4
  %v4204 = vrot.slane %v4181, 5
  %v4205 = vrot.slane %v4204, 4
  %4206 = vrot.lane.b32.xlu0 %v4190, 16
  %v4207 = vpop.permute.xlu0 %4206
  %4208 = vrot.lane.b32.xlu0 %v4191, 16
  %v4209 = vpop.permute.xlu0 %4208
  %4210 = vrot.lane.b32.xlu0 %v4192, 16
  %v4211 = vpop.permute.xlu0 %4210
  %4212 = vrot.lane.b32.xlu0 %v4193, 16
  %v4213 = vpop.permute.xlu0 %4212
  %4214 = vrot.lane.b32.xlu0 %v4194, 16
  %v4215 = vpop.permute.xlu0 %4214
  %4216 = vrot.lane.b32.xlu0 %v4195, 16
  %v4217 = vpop.permute.xlu0 %4216
  %4218 = vrot.lane.b32.xlu0 %v4196, 16
  %v4219 = vpop.permute.xlu0 %4218
  %4220 = vrot.lane.b32.xlu0 %v4197, 16
  %v4221 = vpop.permute.xlu0 %4220
  %4222 = vrot.lane.b32.xlu0 %v4198, 16
  %v4223 = vpop.permute.xlu0 %4222
  %4224 = vrot.lane.b32.xlu0 %v4199, 16
  %v4225 = vpop.permute.xlu0 %4224
  %4226 = vrot.lane.b32.xlu0 %v4200, 16
  %v4227 = vpop.permute.xlu0 %4226
  %4228 = vrot.lane.b32.xlu0 %v4201, 16
  %v4229 = vpop.permute.xlu0 %4228
  %4230 = vrot.lane.b32.xlu0 %v4202, 16
  %v4231 = vpop.permute.xlu0 %4230
  %4232 = vrot.lane.b32.xlu0 %v4203, 16
  %v4233 = vpop.permute.xlu0 %4232
  %4234 = vrot.lane.b32.xlu0 %v4204, 16
  %v4235 = vpop.permute.xlu0 %4234
  %4236 = vrot.lane.b32.xlu0 %v4205, 16
  %v4237 = vpop.permute.xlu0 %4236
  %vm4254 = vcmask 257155
  %4255 = vst.msk [vmem:[#allocation3] sm:$0x8] %vm4254, %v4207
  %vm4256 = vcmask 254080
  %vm4257 = vmand %vm4256, %vm3945
  %v4258 = vld [vmem:[#allocation3 + $0x8] sm:$0x1]
  %v4259 = vsel %vm4257, %v4209, %v4258
  %4260 = vst [vmem:[#allocation3 + $0x8] sm:$0x1] %v4259
  %4261 = vst.msk [vmem:[#allocation3 + $0x10] sm:$0x8] %vm4254, %v4211
  %v4262 = vld [vmem:[#allocation3 + $0x18] sm:$0x1]
  %v4263 = vsel %vm4257, %v4213, %v4262
  %4264 = vst [vmem:[#allocation3 + $0x18] sm:$0x1] %v4263
  %4265 = vst.msk [vmem:[#allocation3 + $0x20] sm:$0x8] %vm4254, %v4215
  %v4266 = vld [vmem:[#allocation3 + $0x28] sm:$0x1]
  %v4267 = vsel %vm4257, %v4217, %v4266
  %4268 = vst [vmem:[#allocation3 + $0x28] sm:$0x1] %v4267
  %4269 = vst.msk [vmem:[#allocation3 + $0x30] sm:$0x8] %vm4254, %v4219
  %v4270 = vld [vmem:[#allocation3 + $0x38] sm:$0x1]
  %v4271 = vsel %vm4257, %v4221, %v4270
  %4272 = vst [vmem:[#allocation3 + $0x38] sm:$0x1] %v4271
  %4273 = vst.msk [vmem:[#allocation3 + $0x40] sm:$0x8] %vm4254, %v4223
  %v4274 = vld [vmem:[#allocation3 + $0x48] sm:$0x1]
  %v4275 = vsel %vm4257, %v4225, %v4274
  %4276 = vst [vmem:[#allocation3 + $0x48] sm:$0x1] %v4275
  %4277 = vst.msk [vmem:[#allocation3 + $0x50] sm:$0x8] %vm4254, %v4227
  %v4278 = vld [vmem:[#allocation3 + $0x58] sm:$0x1]
  %v4279 = vsel %vm4257, %v4229, %v4278
  %4280 = vst [vmem:[#allocation3 + $0x58] sm:$0x1] %v4279
  %4281 = vst.msk [vmem:[#allocation3 + $0x60] sm:$0x8] %vm4254, %v4231
  %v4282 = vld [vmem:[#allocation3 + $0x68] sm:$0x1]
  %v4283 = vsel %vm4257, %v4233, %v4282
  %4284 = vst [vmem:[#allocation3 + $0x68] sm:$0x1] %v4283
  %4285 = vst.msk [vmem:[#allocation3 + $0x70] sm:$0x8] %vm4254, %v4235
  %v4286 = vld [vmem:[#allocation3 + $0x78] sm:$0x1]
  %v4287 = vsel %vm4257, %v4237, %v4286
  %4288 = vst [vmem:[#allocation3 + $0x78] sm:$0x1] %v4287
  %v4289 = vld [vmem:[#allocation2] sm:$0x3]
  %v4290 = vld [vmem:[#allocation2 + $0x20] sm:$0x3]
  %v4291 = vld [vmem:[#allocation2 + $0x40] sm:$0x3]
  %v4292 = vld [vmem:[#allocation2 + $0x60] sm:$0x3]
  %v4293 = vld [vmem:[#allocation2 + $0x80] sm:$0x3]
  %v4294 = vld [vmem:[#allocation2 + $0xa0] sm:$0x3]
  %v4295 = vld [vmem:[#allocation2 + $0xc0] sm:$0x3]
  %v4296 = vld [vmem:[#allocation2 + $0xe0] sm:$0x3]
  %v4298 = vshrl.u32 %v4289, 16
  %v4300 = vrot.slane %v4298, 4
  %v4301 = vshll.u32 %v4289, 16
  %v4303 = vrot.slane %v4301, 5
  %v4304 = vor.u32 %v4300, %v4303
  %v4305 = vrot.slane %v4304, 4
  %v4307 = vshrl.u32 %v4290, 16
  %v4309 = vrot.slane %v4307, 4
  %v4310 = vshll.u32 %v4290, 16
  %v4312 = vrot.slane %v4310, 5
  %v4313 = vor.u32 %v4309, %v4312
  %v4314 = vrot.slane %v4313, 4
  %v4316 = vshrl.u32 %v4291, 16
  %v4318 = vrot.slane %v4316, 4
  %v4319 = vshll.u32 %v4291, 16
  %v4321 = vrot.slane %v4319, 5
  %v4322 = vor.u32 %v4318, %v4321
  %v4323 = vrot.slane %v4322, 4
  %v4325 = vshrl.u32 %v4292, 16
  %v4327 = vrot.slane %v4325, 4
  %v4328 = vshll.u32 %v4292, 16
  %v4330 = vrot.slane %v4328, 5
  %v4331 = vor.u32 %v4327, %v4330
  %v4332 = vrot.slane %v4331, 4
  %v4334 = vshrl.u32 %v4293, 16
  %v4336 = vrot.slane %v4334, 4
  %v4337 = vshll.u32 %v4293, 16
  %v4339 = vrot.slane %v4337, 5
  %v4340 = vor.u32 %v4336, %v4339
  %v4341 = vrot.slane %v4340, 4
  %v4343 = vshrl.u32 %v4294, 16
  %v4345 = vrot.slane %v4343, 4
  %v4346 = vshll.u32 %v4294, 16
  %v4348 = vrot.slane %v4346, 5
  %v4349 = vor.u32 %v4345, %v4348
  %v4350 = vrot.slane %v4349, 4
  %v4352 = vshrl.u32 %v4295, 16
  %v4354 = vrot.slane %v4352, 4
  %v4355 = vshll.u32 %v4295, 16
  %v4357 = vrot.slane %v4355, 5
  %v4358 = vor.u32 %v4354, %v4357
  %v4359 = vrot.slane %v4358, 4
  %v4361 = vshrl.u32 %v4296, 16
  %v4363 = vrot.slane %v4361, 4
  %v4364 = vshll.u32 %v4296, 16
  %v4366 = vrot.slane %v4364, 5
  %v4367 = vor.u32 %v4363, %v4366
  %v4368 = vrot.slane %v4367, 4
  %4369 = vrot.lane.b32.xlu0 %v4305, 32
  %v4370 = vpop.permute.xlu0 %4369
  %4371 = vrot.lane.b32.xlu0 %v4314, 32
  %v4372 = vpop.permute.xlu0 %4371
  %4373 = vrot.lane.b32.xlu0 %v4323, 32
  %v4374 = vpop.permute.xlu0 %4373
  %4375 = vrot.lane.b32.xlu0 %v4332, 32
  %v4376 = vpop.permute.xlu0 %4375
  %4377 = vrot.lane.b32.xlu0 %v4341, 32
  %v4378 = vpop.permute.xlu0 %4377
  %4379 = vrot.lane.b32.xlu0 %v4350, 32
  %v4380 = vpop.permute.xlu0 %4379
  %4381 = vrot.lane.b32.xlu0 %v4359, 32
  %v4382 = vpop.permute.xlu0 %4381
  %4383 = vrot.lane.b32.xlu0 %v4368, 32
  %v4384 = vpop.permute.xlu0 %4383
  %vm4393 = vcmask 386304
  %vm4394 = vmand %vm4393, %vm3753
  %v4395 = vld [vmem:[#allocation3] sm:$0x3]
  %v4396 = vsel %vm4394, %v4370, %v4395
  %4397 = vst [vmem:[#allocation3] sm:$0x3] %v4396
  %v4398 = vld [vmem:[#allocation3 + $0x10] sm:$0x3]
  %v4399 = vsel %vm4394, %v4372, %v4398
  %4400 = vst [vmem:[#allocation3 + $0x10] sm:$0x3] %v4399
  %v4401 = vld [vmem:[#allocation3 + $0x20] sm:$0x3]
  %v4402 = vsel %vm4394, %v4374, %v4401
  %4403 = vst [vmem:[#allocation3 + $0x20] sm:$0x3] %v4402
  %v4404 = vld [vmem:[#allocation3 + $0x30] sm:$0x3]
  %v4405 = vsel %vm4394, %v4376, %v4404
  %4406 = vst [vmem:[#allocation3 + $0x30] sm:$0x3] %v4405
  %v4407 = vld [vmem:[#allocation3 + $0x40] sm:$0x3]
  %v4408 = vsel %vm4394, %v4378, %v4407
  %4409 = vst [vmem:[#allocation3 + $0x40] sm:$0x3] %v4408
  %v4410 = vld [vmem:[#allocation3 + $0x50] sm:$0x3]
  %v4411 = vsel %vm4394, %v4380, %v4410
  %4412 = vst [vmem:[#allocation3 + $0x50] sm:$0x3] %v4411
  %v4413 = vld [vmem:[#allocation3 + $0x60] sm:$0x3]
  %v4414 = vsel %vm4394, %v4382, %v4413
  %4415 = vst [vmem:[#allocation3 + $0x60] sm:$0x3] %v4414
  %v4416 = vld [vmem:[#allocation3 + $0x70] sm:$0x3]
  %v4417 = vsel %vm4394, %v4384, %v4416
  %4418 = vst [vmem:[#allocation3 + $0x70] sm:$0x3] %v4417
  %v4419 = vld [vmem:[#allocation2] sm:$0xc]
  %v4420 = vld [vmem:[#allocation2 + $0x20] sm:$0xc]
  %v4421 = vld [vmem:[#allocation2 + $0x40] sm:$0xc]
  %v4422 = vld [vmem:[#allocation2 + $0x60] sm:$0xc]
  %v4423 = vld [vmem:[#allocation2 + $0x80] sm:$0xc]
  %v4424 = vld [vmem:[#allocation2 + $0xa0] sm:$0xc]
  %v4425 = vld [vmem:[#allocation2 + $0xc0] sm:$0xc]
  %v4426 = vld [vmem:[#allocation2 + $0xe0] sm:$0xc]
  %v4435 = vrot.slane %v4419, 5
  %v4436 = vrot.slane %v4435, 4
  %v4437 = vrot.slane %v4420, 5
  %v4438 = vrot.slane %v4437, 4
  %v4439 = vrot.slane %v4421, 5
  %v4440 = vrot.slane %v4439, 4
  %v4441 = vrot.slane %v4422, 5
  %v4442 = vrot.slane %v4441, 4
  %v4443 = vrot.slane %v4423, 5
  %v4444 = vrot.slane %v4443, 4
  %v4445 = vrot.slane %v4424, 5
  %v4446 = vrot.slane %v4445, 4
  %v4447 = vrot.slane %v4425, 5
  %v4448 = vrot.slane %v4447, 4
  %v4449 = vrot.slane %v4426, 5
  %v4450 = vrot.slane %v4449, 4
  %4451 = vrot.lane.b32.xlu0 %v4436, 32
  %v4452 = vpop.permute.xlu0 %4451
  %4453 = vrot.lane.b32.xlu0 %v4438, 32
  %v4454 = vpop.permute.xlu0 %4453
  %4455 = vrot.lane.b32.xlu0 %v4440, 32
  %v4456 = vpop.permute.xlu0 %4455
  %4457 = vrot.lane.b32.xlu0 %v4442, 32
  %v4458 = vpop.permute.xlu0 %4457
  %4459 = vrot.lane.b32.xlu0 %v4444, 32
  %v4460 = vpop.permute.xlu0 %4459
  %4461 = vrot.lane.b32.xlu0 %v4446, 32
  %v4462 = vpop.permute.xlu0 %4461
  %4463 = vrot.lane.b32.xlu0 %v4448, 32
  %v4464 = vpop.permute.xlu0 %4463
  %4465 = vrot.lane.b32.xlu0 %v4450, 32
  %v4466 = vpop.permute.xlu0 %4465
  %vm4475 = vcmask 387329
  %vm4476 = vmand %vm4475, %vm3868
  %v4477 = vld [vmem:[#allocation3] sm:$0x6]
  %v4478 = vsel %vm4476, %v4452, %v4477
  %4479 = vst [vmem:[#allocation3] sm:$0x6] %v4478
  %v4480 = vld [vmem:[#allocation3 + $0x10] sm:$0x6]
  %v4481 = vsel %vm4476, %v4454, %v4480
  %4482 = vst [vmem:[#allocation3 + $0x10] sm:$0x6] %v4481
  %v4483 = vld [vmem:[#allocation3 + $0x20] sm:$0x6]
  %v4484 = vsel %vm4476, %v4456, %v4483
  %4485 = vst [vmem:[#allocation3 + $0x20] sm:$0x6] %v4484
  %v4486 = vld [vmem:[#allocation3 + $0x30] sm:$0x6]
  %v4487 = vsel %vm4476, %v4458, %v4486
  %4488 = vst [vmem:[#allocation3 + $0x30] sm:$0x6] %v4487
  %v4489 = vld [vmem:[#allocation3 + $0x40] sm:$0x6]
  %v4490 = vsel %vm4476, %v4460, %v4489
  %4491 = vst [vmem:[#allocation3 + $0x40] sm:$0x6] %v4490
  %v4492 = vld [vmem:[#allocation3 + $0x50] sm:$0x6]
  %v4493 = vsel %vm4476, %v4462, %v4492
  %4494 = vst [vmem:[#allocation3 + $0x50] sm:$0x6] %v4493
  %v4495 = vld [vmem:[#allocation3 + $0x60] sm:$0x6]
  %v4496 = vsel %vm4476, %v4464, %v4495
  %4497 = vst [vmem:[#allocation3 + $0x60] sm:$0x6] %v4496
  %v4498 = vld [vmem:[#allocation3 + $0x70] sm:$0x6]
  %v4499 = vsel %vm4476, %v4466, %v4498
  %4500 = vst [vmem:[#allocation3 + $0x70] sm:$0x6] %v4499
  %v4501 = vld [vmem:[#allocation2 + $0x4] sm:$0x3]
  %v4502 = vld [vmem:[#allocation2 + $0x24] sm:$0x3]
  %v4503 = vld [vmem:[#allocation2 + $0x44] sm:$0x3]
  %v4504 = vld [vmem:[#allocation2 + $0x64] sm:$0x3]
  %v4505 = vld [vmem:[#allocation2 + $0x84] sm:$0x3]
  %v4506 = vld [vmem:[#allocation2 + $0xa4] sm:$0x3]
  %v4507 = vld [vmem:[#allocation2 + $0xc4] sm:$0x3]
  %v4508 = vld [vmem:[#allocation2 + $0xe4] sm:$0x3]
  %v4510 = vshrl.u32 %v4501, 16
  %v4512 = vrot.slane %v4510, 5
  %v4513 = vshll.u32 %v4501, 16
  %v4515 = vrot.slane %v4513, 6
  %v4516 = vor.u32 %v4512, %v4515
  %v4517 = vrot.slane %v4512, 4
  %v4519 = vshrl.u32 %v4502, 16
  %v4521 = vrot.slane %v4519, 5
  %v4522 = vshll.u32 %v4502, 16
  %v4524 = vrot.slane %v4522, 6
  %v4525 = vor.u32 %v4521, %v4524
  %v4526 = vrot.slane %v4521, 4
  %v4528 = vshrl.u32 %v4503, 16
  %v4530 = vrot.slane %v4528, 5
  %v4531 = vshll.u32 %v4503, 16
  %v4533 = vrot.slane %v4531, 6
  %v4534 = vor.u32 %v4530, %v4533
  %v4535 = vrot.slane %v4530, 4
  %v4537 = vshrl.u32 %v4504, 16
  %v4539 = vrot.slane %v4537, 5
  %v4540 = vshll.u32 %v4504, 16
  %v4542 = vrot.slane %v4540, 6
  %v4543 = vor.u32 %v4539, %v4542
  %v4544 = vrot.slane %v4539, 4
  %v4546 = vshrl.u32 %v4505, 16
  %v4548 = vrot.slane %v4546, 5
  %v4549 = vshll.u32 %v4505, 16
  %v4551 = vrot.slane %v4549, 6
  %v4552 = vor.u32 %v4548, %v4551
  %v4553 = vrot.slane %v4548, 4
  %v4555 = vshrl.u32 %v4506, 16
  %v4557 = vrot.slane %v4555, 5
  %v4558 = vshll.u32 %v4506, 16
  %v4560 = vrot.slane %v4558, 6
  %v4561 = vor.u32 %v4557, %v4560
  %v4562 = vrot.slane %v4557, 4
  %v4564 = vshrl.u32 %v4507, 16
  %v4566 = vrot.slane %v4564, 5
  %v4567 = vshll.u32 %v4507, 16
  %v4569 = vrot.slane %v4567, 6
  %v4570 = vor.u32 %v4566, %v4569
  %v4571 = vrot.slane %v4566, 4
  %v4573 = vshrl.u32 %v4508, 16
  %v4575 = vrot.slane %v4573, 5
  %v4576 = vshll.u32 %v4508, 16
  %v4578 = vrot.slane %v4576, 6
  %v4579 = vor.u32 %v4575, %v4578
  %v4580 = vrot.slane %v4575, 4
  %4581 = vrot.lane.b32.xlu0 %v4516, 32
  %v4582 = vpop.permute.xlu0 %4581
  %4583 = vrot.lane.b32.xlu0 %v4517, 32
  %v4584 = vpop.permute.xlu0 %4583
  %4585 = vrot.lane.b32.xlu0 %v4525, 32
  %v4586 = vpop.permute.xlu0 %4585
  %4587 = vrot.lane.b32.xlu0 %v4526, 32
  %v4588 = vpop.permute.xlu0 %4587
  %4589 = vrot.lane.b32.xlu0 %v4534, 32
  %v4590 = vpop.permute.xlu0 %4589
  %4591 = vrot.lane.b32.xlu0 %v4535, 32
  %v4592 = vpop.permute.xlu0 %4591
  %4593 = vrot.lane.b32.xlu0 %v4543, 32
  %v4594 = vpop.permute.xlu0 %4593
  %4595 = vrot.lane.b32.xlu0 %v4544, 32
  %v4596 = vpop.permute.xlu0 %4595
  %4597 = vrot.lane.b32.xlu0 %v4552, 32
  %v4598 = vpop.permute.xlu0 %4597
  %4599 = vrot.lane.b32.xlu0 %v4553, 32
  %v4600 = vpop.permute.xlu0 %4599
  %4601 = vrot.lane.b32.xlu0 %v4561, 32
  %v4602 = vpop.permute.xlu0 %4601
  %4603 = vrot.lane.b32.xlu0 %v4562, 32
  %v4604 = vpop.permute.xlu0 %4603
  %4605 = vrot.lane.b32.xlu0 %v4570, 32
  %v4606 = vpop.permute.xlu0 %4605
  %4607 = vrot.lane.b32.xlu0 %v4571, 32
  %v4608 = vpop.permute.xlu0 %4607
  %4609 = vrot.lane.b32.xlu0 %v4579, 32
  %v4610 = vpop.permute.xlu0 %4609
  %4611 = vrot.lane.b32.xlu0 %v4580, 32
  %v4612 = vpop.permute.xlu0 %4611
  %vm4629 = vcmask 388355
  %4630 = vst.msk [vmem:[#allocation3] sm:$0x8] %vm4629, %v4582
  %vm4631 = vcmask 385280
  %vm4632 = vmand %vm4631, %vm3945
  %v4633 = vld [vmem:[#allocation3 + $0x8] sm:$0x1]
  %v4634 = vsel %vm4632, %v4584, %v4633
  %4635 = vst [vmem:[#allocation3 + $0x8] sm:$0x1] %v4634
  %4636 = vst.msk [vmem:[#allocation3 + $0x10] sm:$0x8] %vm4629, %v4586
  %v4637 = vld [vmem:[#allocation3 + $0x18] sm:$0x1]
  %v4638 = vsel %vm4632, %v4588, %v4637
  %4639 = vst [vmem:[#allocation3 + $0x18] sm:$0x1] %v4638
  %4640 = vst.msk [vmem:[#allocation3 + $0x20] sm:$0x8] %vm4629, %v4590
  %v4641 = vld [vmem:[#allocation3 + $0x28] sm:$0x1]
  %v4642 = vsel %vm4632, %v4592, %v4641
  %4643 = vst [vmem:[#allocation3 + $0x28] sm:$0x1] %v4642
  %4644 = vst.msk [vmem:[#allocation3 + $0x30] sm:$0x8] %vm4629, %v4594
  %v4645 = vld [vmem:[#allocation3 + $0x38] sm:$0x1]
  %v4646 = vsel %vm4632, %v4596, %v4645
  %4647 = vst [vmem:[#allocation3 + $0x38] sm:$0x1] %v4646
  %4648 = vst.msk [vmem:[#allocation3 + $0x40] sm:$0x8] %vm4629, %v4598
  %v4649 = vld [vmem:[#allocation3 + $0x48] sm:$0x1]
  %v4650 = vsel %vm4632, %v4600, %v4649
  %4651 = vst [vmem:[#allocation3 + $0x48] sm:$0x1] %v4650
  %4652 = vst.msk [vmem:[#allocation3 + $0x50] sm:$0x8] %vm4629, %v4602
  %v4653 = vld [vmem:[#allocation3 + $0x58] sm:$0x1]
  %v4654 = vsel %vm4632, %v4604, %v4653
  %4655 = vst [vmem:[#allocation3 + $0x58] sm:$0x1] %v4654
  %4656 = vst.msk [vmem:[#allocation3 + $0x60] sm:$0x8] %vm4629, %v4606
  %v4657 = vld [vmem:[#allocation3 + $0x68] sm:$0x1]
  %v4658 = vsel %vm4632, %v4608, %v4657
  %4659 = vst [vmem:[#allocation3 + $0x68] sm:$0x1] %v4658
  %4660 = vst.msk [vmem:[#allocation3 + $0x70] sm:$0x8] %vm4629, %v4610
  %v4661 = vld [vmem:[#allocation3 + $0x78] sm:$0x1]
  %v4662 = vsel %vm4632, %v4612, %v4661
  %4663 = vst [vmem:[#allocation3 + $0x78] sm:$0x1] %v4662
  %v4664 = vld [vmem:[#allocation2 + $0x10] sm:$0x3]
  %v4665 = vld [vmem:[#allocation2 + $0x30] sm:$0x3]
  %v4666 = vld [vmem:[#allocation2 + $0x50] sm:$0x3]
  %v4667 = vld [vmem:[#allocation2 + $0x70] sm:$0x3]
  %v4668 = vld [vmem:[#allocation2 + $0x90] sm:$0x3]
  %v4669 = vld [vmem:[#allocation2 + $0xb0] sm:$0x3]
  %v4670 = vld [vmem:[#allocation2 + $0xd0] sm:$0x3]
  %v4671 = vld [vmem:[#allocation2 + $0xf0] sm:$0x3]
  %4680 = vrot.lane.b32.xlu0 %v4664, 48
  %v4681 = vpop.permute.xlu0 %4680
  %4682 = vrot.lane.b32.xlu0 %v4665, 48
  %v4683 = vpop.permute.xlu0 %4682
  %4684 = vrot.lane.b32.xlu0 %v4666, 48
  %v4685 = vpop.permute.xlu0 %4684
  %4686 = vrot.lane.b32.xlu0 %v4667, 48
  %v4687 = vpop.permute.xlu0 %4686
  %4688 = vrot.lane.b32.xlu0 %v4668, 48
  %v4689 = vpop.permute.xlu0 %4688
  %4690 = vrot.lane.b32.xlu0 %v4669, 48
  %v4691 = vpop.permute.xlu0 %4690
  %4692 = vrot.lane.b32.xlu0 %v4670, 48
  %v4693 = vpop.permute.xlu0 %4692
  %4694 = vrot.lane.b32.xlu0 %v4671, 48
  %v4695 = vpop.permute.xlu0 %4694
  %vm4704 = vcmask 517504
  %vm4705 = vmand %vm4704, %vm3753
  %v4706 = vld [vmem:[#allocation3] sm:$0x3]
  %v4707 = vsel %vm4705, %v4681, %v4706
  %4708 = vst [vmem:[#allocation3] sm:$0x3] %v4707
  %v4709 = vld [vmem:[#allocation3 + $0x10] sm:$0x3]
  %v4710 = vsel %vm4705, %v4683, %v4709
  %4711 = vst [vmem:[#allocation3 + $0x10] sm:$0x3] %v4710
  %v4712 = vld [vmem:[#allocation3 + $0x20] sm:$0x3]
  %v4713 = vsel %vm4705, %v4685, %v4712
  %4714 = vst [vmem:[#allocation3 + $0x20] sm:$0x3] %v4713
  %v4715 = vld [vmem:[#allocation3 + $0x30] sm:$0x3]
  %v4716 = vsel %vm4705, %v4687, %v4715
  %4717 = vst [vmem:[#allocation3 + $0x30] sm:$0x3] %v4716
  %v4718 = vld [vmem:[#allocation3 + $0x40] sm:$0x3]
  %v4719 = vsel %vm4705, %v4689, %v4718
  %4720 = vst [vmem:[#allocation3 + $0x40] sm:$0x3] %v4719
  %v4721 = vld [vmem:[#allocation3 + $0x50] sm:$0x3]
  %v4722 = vsel %vm4705, %v4691, %v4721
  %4723 = vst [vmem:[#allocation3 + $0x50] sm:$0x3] %v4722
  %v4724 = vld [vmem:[#allocation3 + $0x60] sm:$0x3]
  %v4725 = vsel %vm4705, %v4693, %v4724
  %4726 = vst [vmem:[#allocation3 + $0x60] sm:$0x3] %v4725
  %v4727 = vld [vmem:[#allocation3 + $0x70] sm:$0x3]
  %v4728 = vsel %vm4705, %v4695, %v4727
  %4729 = vst [vmem:[#allocation3 + $0x70] sm:$0x3] %v4728
  %v4730 = vld [vmem:[#allocation2 + $0x10] sm:$0xc]
  %v4731 = vld [vmem:[#allocation2 + $0x30] sm:$0xc]
  %v4732 = vld [vmem:[#allocation2 + $0x50] sm:$0xc]
  %v4733 = vld [vmem:[#allocation2 + $0x70] sm:$0xc]
  %v4734 = vld [vmem:[#allocation2 + $0x90] sm:$0xc]
  %v4735 = vld [vmem:[#allocation2 + $0xb0] sm:$0xc]
  %v4736 = vld [vmem:[#allocation2 + $0xd0] sm:$0xc]
  %v4737 = vld [vmem:[#allocation2 + $0xf0] sm:$0xc]
  %v4739 = vshrl.u32 %v4730, 16
  %v4741 = vrot.slane %v4739, 4
  %v4742 = vshll.u32 %v4730, 16
  %v4744 = vrot.slane %v4742, 5
  %v4745 = vor.u32 %v4741, %v4744
  %v4746 = vrot.slane %v4745, 4
  %v4748 = vshrl.u32 %v4731, 16
  %v4750 = vrot.slane %v4748, 4
  %v4751 = vshll.u32 %v4731, 16
  %v4753 = vrot.slane %v4751, 5
  %v4754 = vor.u32 %v4750, %v4753
  %v4755 = vrot.slane %v4754, 4
  %v4757 = vshrl.u32 %v4732, 16
  %v4759 = vrot.slane %v4757, 4
  %v4760 = vshll.u32 %v4732, 16
  %v4762 = vrot.slane %v4760, 5
  %v4763 = vor.u32 %v4759, %v4762
  %v4764 = vrot.slane %v4763, 4
  %v4766 = vshrl.u32 %v4733, 16
  %v4768 = vrot.slane %v4766, 4
  %v4769 = vshll.u32 %v4733, 16
  %v4771 = vrot.slane %v4769, 5
  %v4772 = vor.u32 %v4768, %v4771
  %v4773 = vrot.slane %v4772, 4
  %v4775 = vshrl.u32 %v4734, 16
  %v4777 = vrot.slane %v4775, 4
  %v4778 = vshll.u32 %v4734, 16
  %v4780 = vrot.slane %v4778, 5
  %v4781 = vor.u32 %v4777, %v4780
  %v4782 = vrot.slane %v4781, 4
  %v4784 = vshrl.u32 %v4735, 16
  %v4786 = vrot.slane %v4784, 4
  %v4787 = vshll.u32 %v4735, 16
  %v4789 = vrot.slane %v4787, 5
  %v4790 = vor.u32 %v4786, %v4789
  %v4791 = vrot.slane %v4790, 4
  %v4793 = vshrl.u32 %v4736, 16
  %v4795 = vrot.slane %v4793, 4
  %v4796 = vshll.u32 %v4736, 16
  %v4798 = vrot.slane %v4796, 5
  %v4799 = vor.u32 %v4795, %v4798
  %v4800 = vrot.slane %v4799, 4
  %v4802 = vshrl.u32 %v4737, 16
  %v4804 = vrot.slane %v4802, 4
  %v4805 = vshll.u32 %v4737, 16
  %v4807 = vrot.slane %v4805, 5
  %v4808 = vor.u32 %v4804, %v4807
  %v4809 = vrot.slane %v4808, 4
  %4810 = vrot.lane.b32.xlu0 %v4746, 48
  %v4811 = vpop.permute.xlu0 %4810
  %4812 = vrot.lane.b32.xlu0 %v4755, 48
  %v4813 = vpop.permute.xlu0 %4812
  %4814 = vrot.lane.b32.xlu0 %v4764, 48
  %v4815 = vpop.permute.xlu0 %4814
  %4816 = vrot.lane.b32.xlu0 %v4773, 48
  %v4817 = vpop.permute.xlu0 %4816
  %4818 = vrot.lane.b32.xlu0 %v4782, 48
  %v4819 = vpop.permute.xlu0 %4818
  %4820 = vrot.lane.b32.xlu0 %v4791, 48
  %v4821 = vpop.permute.xlu0 %4820
  %4822 = vrot.lane.b32.xlu0 %v4800, 48
  %v4823 = vpop.permute.xlu0 %4822
  %4824 = vrot.lane.b32.xlu0 %v4809, 48
  %v4825 = vpop.permute.xlu0 %4824
  %vm4834 = vcmask 518529
  %vm4835 = vmand %vm4834, %vm3868
  %v4836 = vld [vmem:[#allocation3] sm:$0x6]
  %v4837 = vsel %vm4835, %v4811, %v4836
  %4838 = vst [vmem:[#allocation3] sm:$0x6] %v4837
  %v4839 = vld [vmem:[#allocation3 + $0x10] sm:$0x6]
  %v4840 = vsel %vm4835, %v4813, %v4839
  %4841 = vst [vmem:[#allocation3 + $0x10] sm:$0x6] %v4840
  %v4842 = vld [vmem:[#allocation3 + $0x20] sm:$0x6]
  %v4843 = vsel %vm4835, %v4815, %v4842
  %4844 = vst [vmem:[#allocation3 + $0x20] sm:$0x6] %v4843
  %v4845 = vld [vmem:[#allocation3 + $0x30] sm:$0x6]
  %v4846 = vsel %vm4835, %v4817, %v4845
  %4847 = vst [vmem:[#allocation3 + $0x30] sm:$0x6] %v4846
  %v4848 = vld [vmem:[#allocation3 + $0x40] sm:$0x6]
  %v4849 = vsel %vm4835, %v4819, %v4848
  %4850 = vst [vmem:[#allocation3 + $0x40] sm:$0x6] %v4849
  %v4851 = vld [vmem:[#allocation3 + $0x50] sm:$0x6]
  %v4852 = vsel %vm4835, %v4821, %v4851
  %4853 = vst [vmem:[#allocation3 + $0x50] sm:$0x6] %v4852
  %v4854 = vld [vmem:[#allocation3 + $0x60] sm:$0x6]
  %v4855 = vsel %vm4835, %v4823, %v4854
  %4856 = vst [vmem:[#allocation3 + $0x60] sm:$0x6] %v4855
  %v4857 = vld [vmem:[#allocation3 + $0x70] sm:$0x6]
  %v4858 = vsel %vm4835, %v4825, %v4857
  %4859 = vst [vmem:[#allocation3 + $0x70] sm:$0x6] %v4858
  %v4860 = vld [vmem:[#allocation2 + $0x14] sm:$0x3]
  %v4861 = vld [vmem:[#allocation2 + $0x34] sm:$0x3]
  %v4862 = vld [vmem:[#allocation2 + $0x54] sm:$0x3]
  %v4863 = vld [vmem:[#allocation2 + $0x74] sm:$0x3]
  %v4864 = vld [vmem:[#allocation2 + $0x94] sm:$0x3]
  %v4865 = vld [vmem:[#allocation2 + $0xb4] sm:$0x3]
  %v4866 = vld [vmem:[#allocation2 + $0xd4] sm:$0x3]
  %v4867 = vld [vmem:[#allocation2 + $0xf4] sm:$0x3]
  %v4876 = vrot.slane %v4860, 5
  %v4877 = vrot.slane %v4876, 4
  %v4878 = vrot.slane %v4861, 5
  %v4879 = vrot.slane %v4878, 4
  %v4880 = vrot.slane %v4862, 5
  %v4881 = vrot.slane %v4880, 4
  %v4882 = vrot.slane %v4863, 5
  %v4883 = vrot.slane %v4882, 4
  %v4884 = vrot.slane %v4864, 5
  %v4885 = vrot.slane %v4884, 4
  %v4886 = vrot.slane %v4865, 5
  %v4887 = vrot.slane %v4886, 4
  %v4888 = vrot.slane %v4866, 5
  %v4889 = vrot.slane %v4888, 4
  %v4890 = vrot.slane %v4867, 5
  %v4891 = vrot.slane %v4890, 4
  %4892 = vrot.lane.b32.xlu0 %v4876, 48
  %v4893 = vpop.permute.xlu0 %4892
  %4894 = vrot.lane.b32.xlu0 %v4877, 48
  %v4895 = vpop.permute.xlu0 %4894
  %4896 = vrot.lane.b32.xlu0 %v4878, 48
  %v4897 = vpop.permute.xlu0 %4896
  %4898 = vrot.lane.b32.xlu0 %v4879, 48
  %v4899 = vpop.permute.xlu0 %4898
  %4900 = vrot.lane.b32.xlu0 %v4880, 48
  %v4901 = vpop.permute.xlu0 %4900
  %4902 = vrot.lane.b32.xlu0 %v4881, 48
  %v4903 = vpop.permute.xlu0 %4902
  %4904 = vrot.lane.b32.xlu0 %v4882, 48
  %v4905 = vpop.permute.xlu0 %4904
  %4906 = vrot.lane.b32.xlu0 %v4883, 48
  %v4907 = vpop.permute.xlu0 %4906
  %4908 = vrot.lane.b32.xlu0 %v4884, 48
  %v4909 = vpop.permute.xlu0 %4908
  %4910 = vrot.lane.b32.xlu0 %v4885, 48
  %v4911 = vpop.permute.xlu0 %4910
  %4912 = vrot.lane.b32.xlu0 %v4886, 48
  %v4913 = vpop.permute.xlu0 %4912
  %4914 = vrot.lane.b32.xlu0 %v4887, 48
  %v4915 = vpop.permute.xlu0 %4914
  %4916 = vrot.lane.b32.xlu0 %v4888, 48
  %v4917 = vpop.permute.xlu0 %4916
  %4918 = vrot.lane.b32.xlu0 %v4889, 48
  %v4919 = vpop.permute.xlu0 %4918
  %4920 = vrot.lane.b32.xlu0 %v4890, 48
  %v4921 = vpop.permute.xlu0 %4920
  %4922 = vrot.lane.b32.xlu0 %v4891, 48
  %v4923 = vpop.permute.xlu0 %4922
  %vm4940 = vcmask 519555
  %4941 = vst.msk [vmem:[#allocation3] sm:$0x8] %vm4940, %v4893
  %vm4942 = vcmask 516480
  %vm4943 = vmand %vm4942, %vm3945
  %v4944 = vld [vmem:[#allocation3 + $0x8] sm:$0x1]
  %v4945 = vsel %vm4943, %v4895, %v4944
  %4946 = vst [vmem:[#allocation3 + $0x8] sm:$0x1] %v4945
  %4947 = vst.msk [vmem:[#allocation3 + $0x10] sm:$0x8] %vm4940, %v4897
  %v4948 = vld [vmem:[#allocation3 + $0x18] sm:$0x1]
  %v4949 = vsel %vm4943, %v4899, %v4948
  %4950 = vst [vmem:[#allocation3 + $0x18] sm:$0x1] %v4949
  %4951 = vst.msk [vmem:[#allocation3 + $0x20] sm:$0x8] %vm4940, %v4901
  %v4952 = vld [vmem:[#allocation3 + $0x28] sm:$0x1]
  %v4953 = vsel %vm4943, %v4903, %v4952
  %4954 = vst [vmem:[#allocation3 + $0x28] sm:$0x1] %v4953
  %4955 = vst.msk [vmem:[#allocation3 + $0x30] sm:$0x8] %vm4940, %v4905
  %v4956 = vld [vmem:[#allocation3 + $0x38] sm:$0x1]
  %v4957 = vsel %vm4943, %v4907, %v4956
  %4958 = vst [vmem:[#allocation3 + $0x38] sm:$0x1] %v4957
  %4959 = vst.msk [vmem:[#allocation3 + $0x40] sm:$0x8] %vm4940, %v4909
  %v4960 = vld [vmem:[#allocation3 + $0x48] sm:$0x1]
  %v4961 = vsel %vm4943, %v4911, %v4960
  %4962 = vst [vmem:[#allocation3 + $0x48] sm:$0x1] %v4961
  %4963 = vst.msk [vmem:[#allocation3 + $0x50] sm:$0x8] %vm4940, %v4913
  %v4964 = vld [vmem:[#allocation3 + $0x58] sm:$0x1]
  %v4965 = vsel %vm4943, %v4915, %v4964
  %4966 = vst [vmem:[#allocation3 + $0x58] sm:$0x1] %v4965
  %4967 = vst.msk [vmem:[#allocation3 + $0x60] sm:$0x8] %vm4940, %v4917
  %v4968 = vld [vmem:[#allocation3 + $0x68] sm:$0x1]
  %v4969 = vsel %vm4943, %v4919, %v4968
  %4970 = vst [vmem:[#allocation3 + $0x68] sm:$0x1] %v4969
  %4971 = vst.msk [vmem:[#allocation3 + $0x70] sm:$0x8] %vm4940, %v4921
  %v4972 = vld [vmem:[#allocation3 + $0x78] sm:$0x1]
  %v4973 = vsel %vm4943, %v4923, %v4972
  %4974 = vst [vmem:[#allocation3 + $0x78] sm:$0x1] %v4973
  %v4975 = vld [vmem:[#allocation2 + $0x18] sm:$0x3]
  %v4976 = vld [vmem:[#allocation2 + $0x38] sm:$0x3]
  %v4977 = vld [vmem:[#allocation2 + $0x58] sm:$0x3]
  %v4978 = vld [vmem:[#allocation2 + $0x78] sm:$0x3]
  %v4979 = vld [vmem:[#allocation2 + $0x98] sm:$0x3]
  %v4980 = vld [vmem:[#allocation2 + $0xb8] sm:$0x3]
  %v4981 = vld [vmem:[#allocation2 + $0xd8] sm:$0x3]
  %v4982 = vld [vmem:[#allocation2 + $0xf8] sm:$0x3]
  %4991 = vrot.lane.b32.xlu0 %v4975, 64
  %v4992 = vpop.permute.xlu0 %4991
  %4993 = vrot.lane.b32.xlu0 %v4976, 64
  %v4994 = vpop.permute.xlu0 %4993
  %4995 = vrot.lane.b32.xlu0 %v4977, 64
  %v4996 = vpop.permute.xlu0 %4995
  %4997 = vrot.lane.b32.xlu0 %v4978, 64
  %v4998 = vpop.permute.xlu0 %4997
  %4999 = vrot.lane.b32.xlu0 %v4979, 64
  %v5000 = vpop.permute.xlu0 %4999
  %5001 = vrot.lane.b32.xlu0 %v4980, 64
  %v5002 = vpop.permute.xlu0 %5001
  %5003 = vrot.lane.b32.xlu0 %v4981, 64
  %v5004 = vpop.permute.xlu0 %5003
  %5005 = vrot.lane.b32.xlu0 %v4982, 64
  %v5006 = vpop.permute.xlu0 %5005
  %vm5015 = vcmask 648704
  %vm5016 = vmand %vm5015, %vm3753
  %v5017 = vld [vmem:[#allocation3] sm:$0x3]
  %v5018 = vsel %vm5016, %v4992, %v5017
  %5019 = vst [vmem:[#allocation3] sm:$0x3] %v5018
  %v5020 = vld [vmem:[#allocation3 + $0x10] sm:$0x3]
  %v5021 = vsel %vm5016, %v4994, %v5020
  %5022 = vst [vmem:[#allocation3 + $0x10] sm:$0x3] %v5021
  %v5023 = vld [vmem:[#allocation3 + $0x20] sm:$0x3]
  %v5024 = vsel %vm5016, %v4996, %v5023
  %5025 = vst [vmem:[#allocation3 + $0x20] sm:$0x3] %v5024
  %v5026 = vld [vmem:[#allocation3 + $0x30] sm:$0x3]
  %v5027 = vsel %vm5016, %v4998, %v5026
  %5028 = vst [vmem:[#allocation3 + $0x30] sm:$0x3] %v5027
  %v5029 = vld [vmem:[#allocation3 + $0x40] sm:$0x3]
  %v5030 = vsel %vm5016, %v5000, %v5029
  %5031 = vst [vmem:[#allocation3 + $0x40] sm:$0x3] %v5030
  %v5032 = vld [vmem:[#allocation3 + $0x50] sm:$0x3]
  %v5033 = vsel %vm5016, %v5002, %v5032
  %5034 = vst [vmem:[#allocation3 + $0x50] sm:$0x3] %v5033
  %v5035 = vld [vmem:[#allocation3 + $0x60] sm:$0x3]
  %v5036 = vsel %vm5016, %v5004, %v5035
  %5037 = vst [vmem:[#allocation3 + $0x60] sm:$0x3] %v5036
  %v5038 = vld [vmem:[#allocation3 + $0x70] sm:$0x3]
  %v5039 = vsel %vm5016, %v5006, %v5038
  %5040 = vst [vmem:[#allocation3 + $0x70] sm:$0x3] %v5039
  %v5041 = vld [vmem:[#allocation2 + $0x18] sm:$0xc]
  %v5042 = vld [vmem:[#allocation2 + $0x38] sm:$0xc]
  %v5043 = vld [vmem:[#allocation2 + $0x58] sm:$0xc]
  %v5044 = vld [vmem:[#allocation2 + $0x78] sm:$0xc]
  %v5045 = vld [vmem:[#allocation2 + $0x98] sm:$0xc]
  %v5046 = vld [vmem:[#allocation2 + $0xb8] sm:$0xc]
  %v5047 = vld [vmem:[#allocation2 + $0xd8] sm:$0xc]
  %v5048 = vld [vmem:[#allocation2 + $0xf8] sm:$0xc]
  %v5050 = vshrl.u32 %v5041, 16
  %v5052 = vrot.slane %v5050, 4
  %v5053 = vshll.u32 %v5041, 16
  %v5055 = vrot.slane %v5053, 5
  %v5056 = vor.u32 %v5052, %v5055
  %v5057 = vrot.slane %v5056, 4
  %v5059 = vshrl.u32 %v5042, 16
  %v5061 = vrot.slane %v5059, 4
  %v5062 = vshll.u32 %v5042, 16
  %v5064 = vrot.slane %v5062, 5
  %v5065 = vor.u32 %v5061, %v5064
  %v5066 = vrot.slane %v5065, 4
  %v5068 = vshrl.u32 %v5043, 16
  %v5070 = vrot.slane %v5068, 4
  %v5071 = vshll.u32 %v5043, 16
  %v5073 = vrot.slane %v5071, 5
  %v5074 = vor.u32 %v5070, %v5073
  %v5075 = vrot.slane %v5074, 4
  %v5077 = vshrl.u32 %v5044, 16
  %v5079 = vrot.slane %v5077, 4
  %v5080 = vshll.u32 %v5044, 16
  %v5082 = vrot.slane %v5080, 5
  %v5083 = vor.u32 %v5079, %v5082
  %v5084 = vrot.slane %v5083, 4
  %v5086 = vshrl.u32 %v5045, 16
  %v5088 = vrot.slane %v5086, 4
  %v5089 = vshll.u32 %v5045, 16
  %v5091 = vrot.slane %v5089, 5
  %v5092 = vor.u32 %v5088, %v5091
  %v5093 = vrot.slane %v5092, 4
  %v5095 = vshrl.u32 %v5046, 16
  %v5097 = vrot.slane %v5095, 4
  %v5098 = vshll.u32 %v5046, 16
  %v5100 = vrot.slane %v5098, 5
  %v5101 = vor.u32 %v5097, %v5100
  %v5102 = vrot.slane %v5101, 4
  %v5104 = vshrl.u32 %v5047, 16
  %v5106 = vrot.slane %v5104, 4
  %v5107 = vshll.u32 %v5047, 16
  %v5109 = vrot.slane %v5107, 5
  %v5110 = vor.u32 %v5106, %v5109
  %v5111 = vrot.slane %v5110, 4
  %v5113 = vshrl.u32 %v5048, 16
  %v5115 = vrot.slane %v5113, 4
  %v5116 = vshll.u32 %v5048, 16
  %v5118 = vrot.slane %v5116, 5
  %v5119 = vor.u32 %v5115, %v5118
  %v5120 = vrot.slane %v5119, 4
  %5121 = vrot.lane.b32.xlu0 %v5057, 64
  %v5122 = vpop.permute.xlu0 %5121
  %5123 = vrot.lane.b32.xlu0 %v5066, 64
  %v5124 = vpop.permute.xlu0 %5123
  %5125 = vrot.lane.b32.xlu0 %v5075, 64
  %v5126 = vpop.permute.xlu0 %5125
  %5127 = vrot.lane.b32.xlu0 %v5084, 64
  %v5128 = vpop.permute.xlu0 %5127
  %5129 = vrot.lane.b32.xlu0 %v5093, 64
  %v5130 = vpop.permute.xlu0 %5129
  %5131 = vrot.lane.b32.xlu0 %v5102, 64
  %v5132 = vpop.permute.xlu0 %5131
  %5133 = vrot.lane.b32.xlu0 %v5111, 64
  %v5134 = vpop.permute.xlu0 %5133
  %5135 = vrot.lane.b32.xlu0 %v5120, 64
  %v5136 = vpop.permute.xlu0 %5135
  %vm5145 = vcmask 649729
  %vm5146 = vmand %vm5145, %vm3868
  %v5147 = vld [vmem:[#allocation3] sm:$0x6]
  %v5148 = vsel %vm5146, %v5122, %v5147
  %5149 = vst [vmem:[#allocation3] sm:$0x6] %v5148
  %v5150 = vld [vmem:[#allocation3 + $0x10] sm:$0x6]
  %v5151 = vsel %vm5146, %v5124, %v5150
  %5152 = vst [vmem:[#allocation3 + $0x10] sm:$0x6] %v5151
  %v5153 = vld [vmem:[#allocation3 + $0x20] sm:$0x6]
  %v5154 = vsel %vm5146, %v5126, %v5153
  %5155 = vst [vmem:[#allocation3 + $0x20] sm:$0x6] %v5154
  %v5156 = vld [vmem:[#allocation3 + $0x30] sm:$0x6]
  %v5157 = vsel %vm5146, %v5128, %v5156
  %5158 = vst [vmem:[#allocation3 + $0x30] sm:$0x6] %v5157
  %v5159 = vld [vmem:[#allocation3 + $0x40] sm:$0x6]
  %v5160 = vsel %vm5146, %v5130, %v5159
  %5161 = vst [vmem:[#allocation3 + $0x40] sm:$0x6] %v5160
  %v5162 = vld [vmem:[#allocation3 + $0x50] sm:$0x6]
  %v5163 = vsel %vm5146, %v5132, %v5162
  %5164 = vst [vmem:[#allocation3 + $0x50] sm:$0x6] %v5163
  %v5165 = vld [vmem:[#allocation3 + $0x60] sm:$0x6]
  %v5166 = vsel %vm5146, %v5134, %v5165
  %5167 = vst [vmem:[#allocation3 + $0x60] sm:$0x6] %v5166
  %v5168 = vld [vmem:[#allocation3 + $0x70] sm:$0x6]
  %v5169 = vsel %vm5146, %v5136, %v5168
  %5170 = vst [vmem:[#allocation3 + $0x70] sm:$0x6] %v5169
  %v5171 = vld [vmem:[#allocation2 + $0x1c] sm:$0x3]
  %v5172 = vld [vmem:[#allocation2 + $0x3c] sm:$0x3]
  %v5173 = vld [vmem:[#allocation2 + $0x5c] sm:$0x3]
  %v5174 = vld [vmem:[#allocation2 + $0x7c] sm:$0x3]
  %v5175 = vld [vmem:[#allocation2 + $0x9c] sm:$0x3]
  %v5176 = vld [vmem:[#allocation2 + $0xbc] sm:$0x3]
  %v5177 = vld [vmem:[#allocation2 + $0xdc] sm:$0x3]
  %v5178 = vld [vmem:[#allocation2 + $0xfc] sm:$0x3]
  %v5187 = vrot.slane %v5171, 5
  %v5188 = vrot.slane %v5187, 4
  %v5189 = vrot.slane %v5172, 5
  %v5190 = vrot.slane %v5189, 4
  %v5191 = vrot.slane %v5173, 5
  %v5192 = vrot.slane %v5191, 4
  %v5193 = vrot.slane %v5174, 5
  %v5194 = vrot.slane %v5193, 4
  %v5195 = vrot.slane %v5175, 5
  %v5196 = vrot.slane %v5195, 4
  %v5197 = vrot.slane %v5176, 5
  %v5198 = vrot.slane %v5197, 4
  %v5199 = vrot.slane %v5177, 5
  %v5200 = vrot.slane %v5199, 4
  %v5201 = vrot.slane %v5178, 5
  %v5202 = vrot.slane %v5201, 4
  %5203 = vrot.lane.b32.xlu0 %v5187, 64
  %v5204 = vpop.permute.xlu0 %5203
  %5205 = vrot.lane.b32.xlu0 %v5188, 64
  %v5206 = vpop.permute.xlu0 %5205
  %5207 = vrot.lane.b32.xlu0 %v5189, 64
  %v5208 = vpop.permute.xlu0 %5207
  %5209 = vrot.lane.b32.xlu0 %v5190, 64
  %v5210 = vpop.permute.xlu0 %5209
  %5211 = vrot.lane.b32.xlu0 %v5191, 64
  %v5212 = vpop.permute.xlu0 %5211
  %5213 = vrot.lane.b32.xlu0 %v5192, 64
  %v5214 = vpop.permute.xlu0 %5213
  %5215 = vrot.lane.b32.xlu0 %v5193, 64
  %v5216 = vpop.permute.xlu0 %5215
  %5217 = vrot.lane.b32.xlu0 %v5194, 64
  %v5218 = vpop.permute.xlu0 %5217
  %5219 = vrot.lane.b32.xlu0 %v5195, 64
  %v5220 = vpop.permute.xlu0 %5219
  %5221 = vrot.lane.b32.xlu0 %v5196, 64
  %v5222 = vpop.permute.xlu0 %5221
  %5223 = vrot.lane.b32.xlu0 %v5197, 64
  %v5224 = vpop.permute.xlu0 %5223
  %5225 = vrot.lane.b32.xlu0 %v5198, 64
  %v5226 = vpop.permute.xlu0 %5225
  %5227 = vrot.lane.b32.xlu0 %v5199, 64
  %v5228 = vpop.permute.xlu0 %5227
  %5229 = vrot.lane.b32.xlu0 %v5200, 64
  %v5230 = vpop.permute.xlu0 %5229
  %5231 = vrot.lane.b32.xlu0 %v5201, 64
  %v5232 = vpop.permute.xlu0 %5231
  %5233 = vrot.lane.b32.xlu0 %v5202, 64
  %v5234 = vpop.permute.xlu0 %5233
  %vm5251 = vcmask 650755
  %5252 = vst.msk [vmem:[#allocation3] sm:$0x8] %vm5251, %v5204
  %vm5253 = vcmask 647680
  %vm5254 = vmand %vm5253, %vm3945
  %v5255 = vld [vmem:[#allocation3 + $0x8] sm:$0x1]
  %v5256 = vsel %vm5254, %v5206, %v5255
  %5257 = vst [vmem:[#allocation3 + $0x8] sm:$0x1] %v5256
  %5258 = vst.msk [vmem:[#allocation3 + $0x10] sm:$0x8] %vm5251, %v5208
  %v5259 = vld [vmem:[#allocation3 + $0x18] sm:$0x1]
  %v5260 = vsel %vm5254, %v5210, %v5259
  %5261 = vst [vmem:[#allocation3 + $0x18] sm:$0x1] %v5260
  %5262 = vst.msk [vmem:[#allocation3 + $0x20] sm:$0x8] %vm5251, %v5212
  %v5263 = vld [vmem:[#allocation3 + $0x28] sm:$0x1]
  %v5264 = vsel %vm5254, %v5214, %v5263
  %5265 = vst [vmem:[#allocation3 + $0x28] sm:$0x1] %v5264
  %5266 = vst.msk [vmem:[#allocation3 + $0x30] sm:$0x8] %vm5251, %v5216
  %v5267 = vld [vmem:[#allocation3 + $0x38] sm:$0x1]
  %v5268 = vsel %vm5254, %v5218, %v5267
  %5269 = vst [vmem:[#allocation3 + $0x38] sm:$0x1] %v5268
  %5270 = vst.msk [vmem:[#allocation3 + $0x40] sm:$0x8] %vm5251, %v5220
  %v5271 = vld [vmem:[#allocation3 + $0x48] sm:$0x1]
  %v5272 = vsel %vm5254, %v5222, %v5271
  %5273 = vst [vmem:[#allocation3 + $0x48] sm:$0x1] %v5272
  %5274 = vst.msk [vmem:[#allocation3 + $0x50] sm:$0x8] %vm5251, %v5224
  %v5275 = vld [vmem:[#allocation3 + $0x58] sm:$0x1]
  %v5276 = vsel %vm5254, %v5226, %v5275
  %5277 = vst [vmem:[#allocation3 + $0x58] sm:$0x1] %v5276
  %5278 = vst.msk [vmem:[#allocation3 + $0x60] sm:$0x8] %vm5251, %v5228
  %v5279 = vld [vmem:[#allocation3 + $0x68] sm:$0x1]
  %v5280 = vsel %vm5254, %v5230, %v5279
  %5281 = vst [vmem:[#allocation3 + $0x68] sm:$0x1] %v5280
  %5282 = vst.msk [vmem:[#allocation3 + $0x70] sm:$0x8] %vm5251, %v5232
  %v5283 = vld [vmem:[#allocation3 + $0x78] sm:$0x1]
  %v5284 = vsel %vm5254, %v5234, %v5283
  %5285 = vst [vmem:[#allocation3 + $0x78] sm:$0x1] %v5284
  %v5286 = vld [vmem:[#allocation2 + $0x10] sm:$0x3]
  %v5287 = vld [vmem:[#allocation2 + $0x30] sm:$0x3]
  %v5288 = vld [vmem:[#allocation2 + $0x50] sm:$0x3]
  %v5289 = vld [vmem:[#allocation2 + $0x70] sm:$0x3]
  %v5290 = vld [vmem:[#allocation2 + $0x90] sm:$0x3]
  %v5291 = vld [vmem:[#allocation2 + $0xb0] sm:$0x3]
  %v5292 = vld [vmem:[#allocation2 + $0xd0] sm:$0x3]
  %v5293 = vld [vmem:[#allocation2 + $0xf0] sm:$0x3]
  %v5295 = vshrl.u32 %v5286, 16
  %v5297 = vrot.slane %v5295, 4
  %v5298 = vshll.u32 %v5286, 16
  %v5300 = vrot.slane %v5298, 5
  %v5301 = vor.u32 %v5297, %v5300
  %v5302 = vrot.slane %v5301, 4
  %v5304 = vshrl.u32 %v5287, 16
  %v5306 = vrot.slane %v5304, 4
  %v5307 = vshll.u32 %v5287, 16
  %v5309 = vrot.slane %v5307, 5
  %v5310 = vor.u32 %v5306, %v5309
  %v5311 = vrot.slane %v5310, 4
  %v5313 = vshrl.u32 %v5288, 16
  %v5315 = vrot.slane %v5313, 4
  %v5316 = vshll.u32 %v5288, 16
  %v5318 = vrot.slane %v5316, 5
  %v5319 = vor.u32 %v5315, %v5318
  %v5320 = vrot.slane %v5319, 4
  %v5322 = vshrl.u32 %v5289, 16
  %v5324 = vrot.slane %v5322, 4
  %v5325 = vshll.u32 %v5289, 16
  %v5327 = vrot.slane %v5325, 5
  %v5328 = vor.u32 %v5324, %v5327
  %v5329 = vrot.slane %v5328, 4
  %v5331 = vshrl.u32 %v5290, 16
  %v5333 = vrot.slane %v5331, 4
  %v5334 = vshll.u32 %v5290, 16
  %v5336 = vrot.slane %v5334, 5
  %v5337 = vor.u32 %v5333, %v5336
  %v5338 = vrot.slane %v5337, 4
  %v5340 = vshrl.u32 %v5291, 16
  %v5342 = vrot.slane %v5340, 4
  %v5343 = vshll.u32 %v5291, 16
  %v5345 = vrot.slane %v5343, 5
  %v5346 = vor.u32 %v5342, %v5345
  %v5347 = vrot.slane %v5346, 4
  %v5349 = vshrl.u32 %v5292, 16
  %v5351 = vrot.slane %v5349, 4
  %v5352 = vshll.u32 %v5292, 16
  %v5354 = vrot.slane %v5352, 5
  %v5355 = vor.u32 %v5351, %v5354
  %v5356 = vrot.slane %v5355, 4
  %v5358 = vshrl.u32 %v5293, 16
  %v5360 = vrot.slane %v5358, 4
  %v5361 = vshll.u32 %v5293, 16
  %v5363 = vrot.slane %v5361, 5
  %v5364 = vor.u32 %v5360, %v5363
  %v5365 = vrot.slane %v5364, 4
  %5366 = vrot.lane.b32.xlu0 %v5302, 80
  %v5367 = vpop.permute.xlu0 %5366
  %5368 = vrot.lane.b32.xlu0 %v5311, 80
  %v5369 = vpop.permute.xlu0 %5368
  %5370 = vrot.lane.b32.xlu0 %v5320, 80
  %v5371 = vpop.permute.xlu0 %5370
  %5372 = vrot.lane.b32.xlu0 %v5329, 80
  %v5373 = vpop.permute.xlu0 %5372
  %5374 = vrot.lane.b32.xlu0 %v5338, 80
  %v5375 = vpop.permute.xlu0 %5374
  %5376 = vrot.lane.b32.xlu0 %v5347, 80
  %v5377 = vpop.permute.xlu0 %5376
  %5378 = vrot.lane.b32.xlu0 %v5356, 80
  %v5379 = vpop.permute.xlu0 %5378
  %5380 = vrot.lane.b32.xlu0 %v5365, 80
  %v5381 = vpop.permute.xlu0 %5380
  %vm5390 = vcmask 779904
  %vm5391 = vmand %vm5390, %vm3753
  %v5392 = vld [vmem:[#allocation3] sm:$0x3]
  %v5393 = vsel %vm5391, %v5367, %v5392
  %5394 = vst [vmem:[#allocation3] sm:$0x3] %v5393
  %v5395 = vld [vmem:[#allocation3 + $0x10] sm:$0x3]
  %v5396 = vsel %vm5391, %v5369, %v5395
  %5397 = vst [vmem:[#allocation3 + $0x10] sm:$0x3] %v5396
  %v5398 = vld [vmem:[#allocation3 + $0x20] sm:$0x3]
  %v5399 = vsel %vm5391, %v5371, %v5398
  %5400 = vst [vmem:[#allocation3 + $0x20] sm:$0x3] %v5399
  %v5401 = vld [vmem:[#allocation3 + $0x30] sm:$0x3]
  %v5402 = vsel %vm5391, %v5373, %v5401
  %5403 = vst [vmem:[#allocation3 + $0x30] sm:$0x3] %v5402
  %v5404 = vld [vmem:[#allocation3 + $0x40] sm:$0x3]
  %v5405 = vsel %vm5391, %v5375, %v5404
  %5406 = vst [vmem:[#allocation3 + $0x40] sm:$0x3] %v5405
  %v5407 = vld [vmem:[#allocation3 + $0x50] sm:$0x3]
  %v5408 = vsel %vm5391, %v5377, %v5407
  %5409 = vst [vmem:[#allocation3 + $0x50] sm:$0x3] %v5408
  %v5410 = vld [vmem:[#allocation3 + $0x60] sm:$0x3]
  %v5411 = vsel %vm5391, %v5379, %v5410
  %5412 = vst [vmem:[#allocation3 + $0x60] sm:$0x3] %v5411
  %v5413 = vld [vmem:[#allocation3 + $0x70] sm:$0x3]
  %v5414 = vsel %vm5391, %v5381, %v5413
  %5415 = vst [vmem:[#allocation3 + $0x70] sm:$0x3] %v5414
  %v5416 = vld [vmem:[#allocation2 + $0x10] sm:$0xc]
  %v5417 = vld [vmem:[#allocation2 + $0x30] sm:$0xc]
  %v5418 = vld [vmem:[#allocation2 + $0x50] sm:$0xc]
  %v5419 = vld [vmem:[#allocation2 + $0x70] sm:$0xc]
  %v5420 = vld [vmem:[#allocation2 + $0x90] sm:$0xc]
  %v5421 = vld [vmem:[#allocation2 + $0xb0] sm:$0xc]
  %v5422 = vld [vmem:[#allocation2 + $0xd0] sm:$0xc]
  %v5423 = vld [vmem:[#allocation2 + $0xf0] sm:$0xc]
  %v5432 = vrot.slane %v5416, 5
  %v5433 = vrot.slane %v5432, 4
  %v5434 = vrot.slane %v5417, 5
  %v5435 = vrot.slane %v5434, 4
  %v5436 = vrot.slane %v5418, 5
  %v5437 = vrot.slane %v5436, 4
  %v5438 = vrot.slane %v5419, 5
  %v5439 = vrot.slane %v5438, 4
  %v5440 = vrot.slane %v5420, 5
  %v5441 = vrot.slane %v5440, 4
  %v5442 = vrot.slane %v5421, 5
  %v5443 = vrot.slane %v5442, 4
  %v5444 = vrot.slane %v5422, 5
  %v5445 = vrot.slane %v5444, 4
  %v5446 = vrot.slane %v5423, 5
  %v5447 = vrot.slane %v5446, 4
  %5448 = vrot.lane.b32.xlu0 %v5433, 80
  %v5449 = vpop.permute.xlu0 %5448
  %5450 = vrot.lane.b32.xlu0 %v5435, 80
  %v5451 = vpop.permute.xlu0 %5450
  %5452 = vrot.lane.b32.xlu0 %v5437, 80
  %v5453 = vpop.permute.xlu0 %5452
  %5454 = vrot.lane.b32.xlu0 %v5439, 80
  %v5455 = vpop.permute.xlu0 %5454
  %5456 = vrot.lane.b32.xlu0 %v5441, 80
  %v5457 = vpop.permute.xlu0 %5456
  %5458 = vrot.lane.b32.xlu0 %v5443, 80
  %v5459 = vpop.permute.xlu0 %5458
  %5460 = vrot.lane.b32.xlu0 %v5445, 80
  %v5461 = vpop.permute.xlu0 %5460
  %5462 = vrot.lane.b32.xlu0 %v5447, 80
  %v5463 = vpop.permute.xlu0 %5462
  %vm5472 = vcmask 780929
  %vm5473 = vmand %vm5472, %vm3868
  %v5474 = vld [vmem:[#allocation3] sm:$0x6]
  %v5475 = vsel %vm5473, %v5449, %v5474
  %5476 = vst [vmem:[#allocation3] sm:$0x6] %v5475
  %v5477 = vld [vmem:[#allocation3 + $0x10] sm:$0x6]
  %v5478 = vsel %vm5473, %v5451, %v5477
  %5479 = vst [vmem:[#allocation3 + $0x10] sm:$0x6] %v5478
  %v5480 = vld [vmem:[#allocation3 + $0x20] sm:$0x6]
  %v5481 = vsel %vm5473, %v5453, %v5480
  %5482 = vst [vmem:[#allocation3 + $0x20] sm:$0x6] %v5481
  %v5483 = vld [vmem:[#allocation3 + $0x30] sm:$0x6]
  %v5484 = vsel %vm5473, %v5455, %v5483
  %5485 = vst [vmem:[#allocation3 + $0x30] sm:$0x6] %v5484
  %v5486 = vld [vmem:[#allocation3 + $0x40] sm:$0x6]
  %v5487 = vsel %vm5473, %v5457, %v5486
  %5488 = vst [vmem:[#allocation3 + $0x40] sm:$0x6] %v5487
  %v5489 = vld [vmem:[#allocation3 + $0x50] sm:$0x6]
  %v5490 = vsel %vm5473, %v5459, %v5489
  %5491 = vst [vmem:[#allocation3 + $0x50] sm:$0x6] %v5490
  %v5492 = vld [vmem:[#allocation3 + $0x60] sm:$0x6]
  %v5493 = vsel %vm5473, %v5461, %v5492
  %5494 = vst [vmem:[#allocation3 + $0x60] sm:$0x6] %v5493
  %v5495 = vld [vmem:[#allocation3 + $0x70] sm:$0x6]
  %v5496 = vsel %vm5473, %v5463, %v5495
  %5497 = vst [vmem:[#allocation3 + $0x70] sm:$0x6] %v5496
  %v5498 = vld [vmem:[#allocation2 + $0x14] sm:$0x3]
  %v5499 = vld [vmem:[#allocation2 + $0x34] sm:$0x3]
  %v5500 = vld [vmem:[#allocation2 + $0x54] sm:$0x3]
  %v5501 = vld [vmem:[#allocation2 + $0x74] sm:$0x3]
  %v5502 = vld [vmem:[#allocation2 + $0x94] sm:$0x3]
  %v5503 = vld [vmem:[#allocation2 + $0xb4] sm:$0x3]
  %v5504 = vld [vmem:[#allocation2 + $0xd4] sm:$0x3]
  %v5505 = vld [vmem:[#allocation2 + $0xf4] sm:$0x3]
  %v5507 = vshrl.u32 %v5498, 16
  %v5509 = vrot.slane %v5507, 5
  %v5510 = vshll.u32 %v5498, 16
  %v5512 = vrot.slane %v5510, 6
  %v5513 = vor.u32 %v5509, %v5512
  %v5514 = vrot.slane %v5509, 4
  %v5516 = vshrl.u32 %v5499, 16
  %v5518 = vrot.slane %v5516, 5
  %v5519 = vshll.u32 %v5499, 16
  %v5521 = vrot.slane %v5519, 6
  %v5522 = vor.u32 %v5518, %v5521
  %v5523 = vrot.slane %v5518, 4
  %v5525 = vshrl.u32 %v5500, 16
  %v5527 = vrot.slane %v5525, 5
  %v5528 = vshll.u32 %v5500, 16
  %v5530 = vrot.slane %v5528, 6
  %v5531 = vor.u32 %v5527, %v5530
  %v5532 = vrot.slane %v5527, 4
  %v5534 = vshrl.u32 %v5501, 16
  %v5536 = vrot.slane %v5534, 5
  %v5537 = vshll.u32 %v5501, 16
  %v5539 = vrot.slane %v5537, 6
  %v5540 = vor.u32 %v5536, %v5539
  %v5541 = vrot.slane %v5536, 4
  %v5543 = vshrl.u32 %v5502, 16
  %v5545 = vrot.slane %v5543, 5
  %v5546 = vshll.u32 %v5502, 16
  %v5548 = vrot.slane %v5546, 6
  %v5549 = vor.u32 %v5545, %v5548
  %v5550 = vrot.slane %v5545, 4
  %v5552 = vshrl.u32 %v5503, 16
  %v5554 = vrot.slane %v5552, 5
  %v5555 = vshll.u32 %v5503, 16
  %v5557 = vrot.slane %v5555, 6
  %v5558 = vor.u32 %v5554, %v5557
  %v5559 = vrot.slane %v5554, 4
  %v5561 = vshrl.u32 %v5504, 16
  %v5563 = vrot.slane %v5561, 5
  %v5564 = vshll.u32 %v5504, 16
  %v5566 = vrot.slane %v5564, 6
  %v5567 = vor.u32 %v5563, %v5566
  %v5568 = vrot.slane %v5563, 4
  %v5570 = vshrl.u32 %v5505, 16
  %v5572 = vrot.slane %v5570, 5
  %v5573 = vshll.u32 %v5505, 16
  %v5575 = vrot.slane %v5573, 6
  %v5576 = vor.u32 %v5572, %v5575
  %v5577 = vrot.slane %v5572, 4
  %5578 = vrot.lane.b32.xlu0 %v5513, 80
  %v5579 = vpop.permute.xlu0 %5578
  %5580 = vrot.lane.b32.xlu0 %v5514, 80
  %v5581 = vpop.permute.xlu0 %5580
  %5582 = vrot.lane.b32.xlu0 %v5522, 80
  %v5583 = vpop.permute.xlu0 %5582
  %5584 = vrot.lane.b32.xlu0 %v5523, 80
  %v5585 = vpop.permute.xlu0 %5584
  %5586 = vrot.lane.b32.xlu0 %v5531, 80
  %v5587 = vpop.permute.xlu0 %5586
  %5588 = vrot.lane.b32.xlu0 %v5532, 80
  %v5589 = vpop.permute.xlu0 %5588
  %5590 = vrot.lane.b32.xlu0 %v5540, 80
  %v5591 = vpop.permute.xlu0 %5590
  %5592 = vrot.lane.b32.xlu0 %v5541, 80
  %v5593 = vpop.permute.xlu0 %5592
  %5594 = vrot.lane.b32.xlu0 %v5549, 80
  %v5595 = vpop.permute.xlu0 %5594
  %5596 = vrot.lane.b32.xlu0 %v5550, 80
  %v5597 = vpop.permute.xlu0 %5596
  %5598 = vrot.lane.b32.xlu0 %v5558, 80
  %v5599 = vpop.permute.xlu0 %5598
  %5600 = vrot.lane.b32.xlu0 %v5559, 80
  %v5601 = vpop.permute.xlu0 %5600
  %5602 = vrot.lane.b32.xlu0 %v5567, 80
  %v5603 = vpop.permute.xlu0 %5602
  %5604 = vrot.lane.b32.xlu0 %v5568, 80
  %v5605 = vpop.permute.xlu0 %5604
  %5606 = vrot.lane.b32.xlu0 %v5576, 80
  %v5607 = vpop.permute.xlu0 %5606
  %5608 = vrot.lane.b32.xlu0 %v5577, 80
  %v5609 = vpop.permute.xlu0 %5608
  %vm5626 = vcmask 781955
  %5627 = vst.msk [vmem:[#allocation3] sm:$0x8] %vm5626, %v5579
  %vm5628 = vcmask 778880
  %vm5629 = vmand %vm5628, %vm3945
  %v5630 = vld [vmem:[#allocation3 + $0x8] sm:$0x1]
  %v5631 = vsel %vm5629, %v5581, %v5630
  %5632 = vst [vmem:[#allocation3 + $0x8] sm:$0x1] %v5631
  %5633 = vst.msk [vmem:[#allocation3 + $0x10] sm:$0x8] %vm5626, %v5583
  %v5634 = vld [vmem:[#allocation3 + $0x18] sm:$0x1]
  %v5635 = vsel %vm5629, %v5585, %v5634
  %5636 = vst [vmem:[#allocation3 + $0x18] sm:$0x1] %v5635
  %5637 = vst.msk [vmem:[#allocation3 + $0x20] sm:$0x8] %vm5626, %v5587
  %v5638 = vld [vmem:[#allocation3 + $0x28] sm:$0x1]
  %v5639 = vsel %vm5629, %v5589, %v5638
  %5640 = vst [vmem:[#allocation3 + $0x28] sm:$0x1] %v5639
  %5641 = vst.msk [vmem:[#allocation3 + $0x30] sm:$0x8] %vm5626, %v5591
  %v5642 = vld [vmem:[#allocation3 + $0x38] sm:$0x1]
  %v5643 = vsel %vm5629, %v5593, %v5642
  %5644 = vst [vmem:[#allocation3 + $0x38] sm:$0x1] %v5643
  %5645 = vst.msk [vmem:[#allocation3 + $0x40] sm:$0x8] %vm5626, %v5595
  %v5646 = vld [vmem:[#allocation3 + $0x48] sm:$0x1]
  %v5647 = vsel %vm5629, %v5597, %v5646
  %5648 = vst [vmem:[#allocation3 + $0x48] sm:$0x1] %v5647
  %5649 = vst.msk [vmem:[#allocation3 + $0x50] sm:$0x8] %vm5626, %v5599
  %v5650 = vld [vmem:[#allocation3 + $0x58] sm:$0x1]
  %v5651 = vsel %vm5629, %v5601, %v5650
  %5652 = vst [vmem:[#allocation3 + $0x58] sm:$0x1] %v5651
  %5653 = vst.msk [vmem:[#allocation3 + $0x60] sm:$0x8] %vm5626, %v5603
  %v5654 = vld [vmem:[#allocation3 + $0x68] sm:$0x1]
  %v5655 = vsel %vm5629, %v5605, %v5654
  %5656 = vst [vmem:[#allocation3 + $0x68] sm:$0x1] %v5655
  %5657 = vst.msk [vmem:[#allocation3 + $0x70] sm:$0x8] %vm5626, %v5607
  %v5658 = vld [vmem:[#allocation3 + $0x78] sm:$0x1]
  %v5659 = vsel %vm5629, %v5609, %v5658
  %5660 = vst [vmem:[#allocation3 + $0x78] sm:$0x1] %v5659
  %v5661 = vld [vmem:[#allocation2] sm:$0xc]
  %v5662 = vld [vmem:[#allocation2 + $0x20] sm:$0xc]
  %v5663 = vld [vmem:[#allocation2 + $0x40] sm:$0xc]
  %v5664 = vld [vmem:[#allocation2 + $0x60] sm:$0xc]
  %v5665 = vld [vmem:[#allocation2 + $0x80] sm:$0xc]
  %v5666 = vld [vmem:[#allocation2 + $0xa0] sm:$0xc]
  %v5667 = vld [vmem:[#allocation2 + $0xc0] sm:$0xc]
  %v5668 = vld [vmem:[#allocation2 + $0xe0] sm:$0xc]
  %v5677 = vrot.slane %v5661, 6
  %v5678 = vrot.slane %v5677, 4
  %v5679 = vrot.slane %v5662, 6
  %v5680 = vrot.slane %v5679, 4
  %v5681 = vrot.slane %v5663, 6
  %v5682 = vrot.slane %v5681, 4
  %v5683 = vrot.slane %v5664, 6
  %v5684 = vrot.slane %v5683, 4
  %v5685 = vrot.slane %v5665, 6
  %v5686 = vrot.slane %v5685, 4
  %v5687 = vrot.slane %v5666, 6
  %v5688 = vrot.slane %v5687, 4
  %v5689 = vrot.slane %v5667, 6
  %v5690 = vrot.slane %v5689, 4
  %v5691 = vrot.slane %v5668, 6
  %v5692 = vrot.slane %v5691, 4
  %5693 = vrot.lane.b32.xlu0 %v5678, 96
  %v5694 = vpop.permute.xlu0 %5693
  %5695 = vrot.lane.b32.xlu0 %v5680, 96
  %v5696 = vpop.permute.xlu0 %5695
  %5697 = vrot.lane.b32.xlu0 %v5682, 96
  %v5698 = vpop.permute.xlu0 %5697
  %5699 = vrot.lane.b32.xlu0 %v5684, 96
  %v5700 = vpop.permute.xlu0 %5699
  %5701 = vrot.lane.b32.xlu0 %v5686, 96
  %v5702 = vpop.permute.xlu0 %5701
  %5703 = vrot.lane.b32.xlu0 %v5688, 96
  %v5704 = vpop.permute.xlu0 %5703
  %5705 = vrot.lane.b32.xlu0 %v5690, 96
  %v5706 = vpop.permute.xlu0 %5705
  %5707 = vrot.lane.b32.xlu0 %v5692, 96
  %v5708 = vpop.permute.xlu0 %5707
  %vm5717 = vcmask 911104
  %vm5718 = vmand %vm5717, %vm3753
  %v5719 = vld [vmem:[#allocation3] sm:$0x3]
  %v5720 = vsel %vm5718, %v5694, %v5719
  %5721 = vst [vmem:[#allocation3] sm:$0x3] %v5720
  %v5722 = vld [vmem:[#allocation3 + $0x10] sm:$0x3]
  %v5723 = vsel %vm5718, %v5696, %v5722
  %5724 = vst [vmem:[#allocation3 + $0x10] sm:$0x3] %v5723
  %v5725 = vld [vmem:[#allocation3 + $0x20] sm:$0x3]
  %v5726 = vsel %vm5718, %v5698, %v5725
  %5727 = vst [vmem:[#allocation3 + $0x20] sm:$0x3] %v5726
  %v5728 = vld [vmem:[#allocation3 + $0x30] sm:$0x3]
  %v5729 = vsel %vm5718, %v5700, %v5728
  %5730 = vst [vmem:[#allocation3 + $0x30] sm:$0x3] %v5729
  %v5731 = vld [vmem:[#allocation3 + $0x40] sm:$0x3]
  %v5732 = vsel %vm5718, %v5702, %v5731
  %5733 = vst [vmem:[#allocation3 + $0x40] sm:$0x3] %v5732
  %v5734 = vld [vmem:[#allocation3 + $0x50] sm:$0x3]
  %v5735 = vsel %vm5718, %v5704, %v5734
  %5736 = vst [vmem:[#allocation3 + $0x50] sm:$0x3] %v5735
  %v5737 = vld [vmem:[#allocation3 + $0x60] sm:$0x3]
  %v5738 = vsel %vm5718, %v5706, %v5737
  %5739 = vst [vmem:[#allocation3 + $0x60] sm:$0x3] %v5738
  %v5740 = vld [vmem:[#allocation3 + $0x70] sm:$0x3]
  %v5741 = vsel %vm5718, %v5708, %v5740
  %5742 = vst [vmem:[#allocation3 + $0x70] sm:$0x3] %v5741
  %v5743 = vld [vmem:[#allocation2 + $0x4] sm:$0x3]
  %v5744 = vld [vmem:[#allocation2 + $0x24] sm:$0x3]
  %v5745 = vld [vmem:[#allocation2 + $0x44] sm:$0x3]
  %v5746 = vld [vmem:[#allocation2 + $0x64] sm:$0x3]
  %v5747 = vld [vmem:[#allocation2 + $0x84] sm:$0x3]
  %v5748 = vld [vmem:[#allocation2 + $0xa4] sm:$0x3]
  %v5749 = vld [vmem:[#allocation2 + $0xc4] sm:$0x3]
  %v5750 = vld [vmem:[#allocation2 + $0xe4] sm:$0x3]
  %v5752 = vshrl.u32 %v5743, 16
  %v5754 = vrot.slane %v5752, 6
  %v5755 = vshll.u32 %v5743, 16
  %v5757 = vrot.slane %v5755, 7
  %v5758 = vor.u32 %v5754, %v5757
  %v5760 = vshrl.u32 %v5744, 16
  %v5762 = vrot.slane %v5760, 6
  %v5763 = vshll.u32 %v5744, 16
  %v5765 = vrot.slane %v5763, 7
  %v5766 = vor.u32 %v5762, %v5765
  %v5768 = vshrl.u32 %v5745, 16
  %v5770 = vrot.slane %v5768, 6
  %v5771 = vshll.u32 %v5745, 16
  %v5773 = vrot.slane %v5771, 7
  %v5774 = vor.u32 %v5770, %v5773
  %v5776 = vshrl.u32 %v5746, 16
  %v5778 = vrot.slane %v5776, 6
  %v5779 = vshll.u32 %v5746, 16
  %v5781 = vrot.slane %v5779, 7
  %v5782 = vor.u32 %v5778, %v5781
  %v5784 = vshrl.u32 %v5747, 16
  %v5786 = vrot.slane %v5784, 6
  %v5787 = vshll.u32 %v5747, 16
  %v5789 = vrot.slane %v5787, 7
  %v5790 = vor.u32 %v5786, %v5789
  %v5792 = vshrl.u32 %v5748, 16
  %v5794 = vrot.slane %v5792, 6
  %v5795 = vshll.u32 %v5748, 16
  %v5797 = vrot.slane %v5795, 7
  %v5798 = vor.u32 %v5794, %v5797
  %v5800 = vshrl.u32 %v5749, 16
  %v5802 = vrot.slane %v5800, 6
  %v5803 = vshll.u32 %v5749, 16
  %v5805 = vrot.slane %v5803, 7
  %v5806 = vor.u32 %v5802, %v5805
  %v5808 = vshrl.u32 %v5750, 16
  %v5810 = vrot.slane %v5808, 6
  %v5811 = vshll.u32 %v5750, 16
  %v5813 = vrot.slane %v5811, 7
  %v5814 = vor.u32 %v5810, %v5813
  %5815 = vrot.lane.b32.xlu0 %v5758, 96
  %v5816 = vpop.permute.xlu0 %5815
  %5817 = vrot.lane.b32.xlu0 %v5766, 96
  %v5818 = vpop.permute.xlu0 %5817
  %5819 = vrot.lane.b32.xlu0 %v5774, 96
  %v5820 = vpop.permute.xlu0 %5819
  %5821 = vrot.lane.b32.xlu0 %v5782, 96
  %v5822 = vpop.permute.xlu0 %5821
  %5823 = vrot.lane.b32.xlu0 %v5790, 96
  %v5824 = vpop.permute.xlu0 %5823
  %5825 = vrot.lane.b32.xlu0 %v5798, 96
  %v5826 = vpop.permute.xlu0 %5825
  %5827 = vrot.lane.b32.xlu0 %v5806, 96
  %v5828 = vpop.permute.xlu0 %5827
  %5829 = vrot.lane.b32.xlu0 %v5814, 96
  %v5830 = vpop.permute.xlu0 %5829
  %vm5839 = vcmask 912129
  %vm5840 = vmand %vm5839, %vm3868
  %v5841 = vld [vmem:[#allocation3] sm:$0x6]
  %v5842 = vsel %vm5840, %v5816, %v5841
  %5843 = vst [vmem:[#allocation3] sm:$0x6] %v5842
  %v5844 = vld [vmem:[#allocation3 + $0x10] sm:$0x6]
  %v5845 = vsel %vm5840, %v5818, %v5844
  %5846 = vst [vmem:[#allocation3 + $0x10] sm:$0x6] %v5845
  %v5847 = vld [vmem:[#allocation3 + $0x20] sm:$0x6]
  %v5848 = vsel %vm5840, %v5820, %v5847
  %5849 = vst [vmem:[#allocation3 + $0x20] sm:$0x6] %v5848
  %v5850 = vld [vmem:[#allocation3 + $0x30] sm:$0x6]
  %v5851 = vsel %vm5840, %v5822, %v5850
  %5852 = vst [vmem:[#allocation3 + $0x30] sm:$0x6] %v5851
  %v5853 = vld [vmem:[#allocation3 + $0x40] sm:$0x6]
  %v5854 = vsel %vm5840, %v5824, %v5853
  %5855 = vst [vmem:[#allocation3 + $0x40] sm:$0x6] %v5854
  %v5856 = vld [vmem:[#allocation3 + $0x50] sm:$0x6]
  %v5857 = vsel %vm5840, %v5826, %v5856
  %5858 = vst [vmem:[#allocation3 + $0x50] sm:$0x6] %v5857
  %v5859 = vld [vmem:[#allocation3 + $0x60] sm:$0x6]
  %v5860 = vsel %vm5840, %v5828, %v5859
  %5861 = vst [vmem:[#allocation3 + $0x60] sm:$0x6] %v5860
  %v5862 = vld [vmem:[#allocation3 + $0x70] sm:$0x6]
  %v5863 = vsel %vm5840, %v5830, %v5862
  %5864 = vst [vmem:[#allocation3 + $0x70] sm:$0x6] %v5863
  %v5865 = vld [vmem:[#allocation2 + $0x4] sm:$0xc]
  %v5866 = vld [vmem:[#allocation2 + $0x24] sm:$0xc]
  %v5867 = vld [vmem:[#allocation2 + $0x44] sm:$0xc]
  %v5868 = vld [vmem:[#allocation2 + $0x64] sm:$0xc]
  %v5869 = vld [vmem:[#allocation2 + $0x84] sm:$0xc]
  %v5870 = vld [vmem:[#allocation2 + $0xa4] sm:$0xc]
  %v5871 = vld [vmem:[#allocation2 + $0xc4] sm:$0xc]
  %v5872 = vld [vmem:[#allocation2 + $0xe4] sm:$0xc]
  %v5881 = vrot.slane %v5865, 7
  %v5882 = vrot.slane %v5881, 4
  %v5883 = vrot.slane %v5866, 7
  %v5884 = vrot.slane %v5883, 4
  %v5885 = vrot.slane %v5867, 7
  %v5886 = vrot.slane %v5885, 4
  %v5887 = vrot.slane %v5868, 7
  %v5888 = vrot.slane %v5887, 4
  %v5889 = vrot.slane %v5869, 7
  %v5890 = vrot.slane %v5889, 4
  %v5891 = vrot.slane %v5870, 7
  %v5892 = vrot.slane %v5891, 4
  %v5893 = vrot.slane %v5871, 7
  %v5894 = vrot.slane %v5893, 4
  %v5895 = vrot.slane %v5872, 7
  %v5896 = vrot.slane %v5895, 4
  %5897 = vrot.lane.b32.xlu0 %v5881, 96
  %v5898 = vpop.permute.xlu0 %5897
  %5899 = vrot.lane.b32.xlu0 %v5882, 96
  %v5900 = vpop.permute.xlu0 %5899
  %5901 = vrot.lane.b32.xlu0 %v5883, 96
  %v5902 = vpop.permute.xlu0 %5901
  %5903 = vrot.lane.b32.xlu0 %v5884, 96
  %v5904 = vpop.permute.xlu0 %5903
  %5905 = vrot.lane.b32.xlu0 %v5885, 96
  %v5906 = vpop.permute.xlu0 %5905
  %5907 = vrot.lane.b32.xlu0 %v5886, 96
  %v5908 = vpop.permute.xlu0 %5907
  %5909 = vrot.lane.b32.xlu0 %v5887, 96
  %v5910 = vpop.permute.xlu0 %5909
  %5911 = vrot.lane.b32.xlu0 %v5888, 96
  %v5912 = vpop.permute.xlu0 %5911
  %5913 = vrot.lane.b32.xlu0 %v5889, 96
  %v5914 = vpop.permute.xlu0 %5913
  %5915 = vrot.lane.b32.xlu0 %v5890, 96
  %v5916 = vpop.permute.xlu0 %5915
  %5917 = vrot.lane.b32.xlu0 %v5891, 96
  %v5918 = vpop.permute.xlu0 %5917
  %5919 = vrot.lane.b32.xlu0 %v5892, 96
  %v5920 = vpop.permute.xlu0 %5919
  %5921 = vrot.lane.b32.xlu0 %v5893, 96
  %v5922 = vpop.permute.xlu0 %5921
  %5923 = vrot.lane.b32.xlu0 %v5894, 96
  %v5924 = vpop.permute.xlu0 %5923
  %5925 = vrot.lane.b32.xlu0 %v5895, 96
  %v5926 = vpop.permute.xlu0 %5925
  %5927 = vrot.lane.b32.xlu0 %v5896, 96
  %v5928 = vpop.permute.xlu0 %5927
  %vm5945 = vcmask 913155
  %5946 = vst.msk [vmem:[#allocation3] sm:$0x8] %vm5945, %v5898
  %vm5947 = vcmask 910080
  %vm5948 = vmand %vm5947, %vm3945
  %v5949 = vld [vmem:[#allocation3 + $0x8] sm:$0x1]
  %v5950 = vsel %vm5948, %v5900, %v5949
  %5951 = vst [vmem:[#allocation3 + $0x8] sm:$0x1] %v5950
  %5952 = vst.msk [vmem:[#allocation3 + $0x10] sm:$0x8] %vm5945, %v5902
  %v5953 = vld [vmem:[#allocation3 + $0x18] sm:$0x1]
  %v5954 = vsel %vm5948, %v5904, %v5953
  %5955 = vst [vmem:[#allocation3 + $0x18] sm:$0x1] %v5954
  %5956 = vst.msk [vmem:[#allocation3 + $0x20] sm:$0x8] %vm5945, %v5906
  %v5957 = vld [vmem:[#allocation3 + $0x28] sm:$0x1]
  %v5958 = vsel %vm5948, %v5908, %v5957
  %5959 = vst [vmem:[#allocation3 + $0x28] sm:$0x1] %v5958
  %5960 = vst.msk [vmem:[#allocation3 + $0x30] sm:$0x8] %vm5945, %v5910
  %v5961 = vld [vmem:[#allocation3 + $0x38] sm:$0x1]
  %v5962 = vsel %vm5948, %v5912, %v5961
  %5963 = vst [vmem:[#allocation3 + $0x38] sm:$0x1] %v5962
  %5964 = vst.msk [vmem:[#allocation3 + $0x40] sm:$0x8] %vm5945, %v5914
  %v5965 = vld [vmem:[#allocation3 + $0x48] sm:$0x1]
  %v5966 = vsel %vm5948, %v5916, %v5965
  %5967 = vst [vmem:[#allocation3 + $0x48] sm:$0x1] %v5966
  %5968 = vst.msk [vmem:[#allocation3 + $0x50] sm:$0x8] %vm5945, %v5918
  %v5969 = vld [vmem:[#allocation3 + $0x58] sm:$0x1]
  %v5970 = vsel %vm5948, %v5920, %v5969
  %5971 = vst [vmem:[#allocation3 + $0x58] sm:$0x1] %v5970
  %5972 = vst.msk [vmem:[#allocation3 + $0x60] sm:$0x8] %vm5945, %v5922
  %v5973 = vld [vmem:[#allocation3 + $0x68] sm:$0x1]
  %v5974 = vsel %vm5948, %v5924, %v5973
  %5975 = vst [vmem:[#allocation3 + $0x68] sm:$0x1] %v5974
  %5976 = vst.msk [vmem:[#allocation3 + $0x70] sm:$0x8] %vm5945, %v5926
  %v5977 = vld [vmem:[#allocation3 + $0x78] sm:$0x1]
  %v5978 = vsel %vm5948, %v5928, %v5977
  %5979 = vst [vmem:[#allocation3 + $0x78] sm:$0x1] %v5978
  %v5980 = vld [vmem:[#allocation2 + $0x8] sm:$0xc]
  %v5981 = vld [vmem:[#allocation2 + $0x28] sm:$0xc]
  %v5982 = vld [vmem:[#allocation2 + $0x48] sm:$0xc]
  %v5983 = vld [vmem:[#allocation2 + $0x68] sm:$0xc]
  %v5984 = vld [vmem:[#allocation2 + $0x88] sm:$0xc]
  %v5985 = vld [vmem:[#allocation2 + $0xa8] sm:$0xc]
  %v5986 = vld [vmem:[#allocation2 + $0xc8] sm:$0xc]
  %v5987 = vld [vmem:[#allocation2 + $0xe8] sm:$0xc]
  %v5996 = vrot.slane %v5980, 6
  %v5997 = vrot.slane %v5996, 4
  %v5998 = vrot.slane %v5981, 6
  %v5999 = vrot.slane %v5998, 4
  %v6000 = vrot.slane %v5982, 6
  %v6001 = vrot.slane %v6000, 4
  %v6002 = vrot.slane %v5983, 6
  %v6003 = vrot.slane %v6002, 4
  %v6004 = vrot.slane %v5984, 6
  %v6005 = vrot.slane %v6004, 4
  %v6006 = vrot.slane %v5985, 6
  %v6007 = vrot.slane %v6006, 4
  %v6008 = vrot.slane %v5986, 6
  %v6009 = vrot.slane %v6008, 4
  %v6010 = vrot.slane %v5987, 6
  %v6011 = vrot.slane %v6010, 4
  %6012 = vrot.lane.b32.xlu0 %v5997, 112
  %v6013 = vpop.permute.xlu0 %6012
  %6014 = vrot.lane.b32.xlu0 %v5999, 112
  %v6015 = vpop.permute.xlu0 %6014
  %6016 = vrot.lane.b32.xlu0 %v6001, 112
  %v6017 = vpop.permute.xlu0 %6016
  %6018 = vrot.lane.b32.xlu0 %v6003, 112
  %v6019 = vpop.permute.xlu0 %6018
  %6020 = vrot.lane.b32.xlu0 %v6005, 112
  %v6021 = vpop.permute.xlu0 %6020
  %6022 = vrot.lane.b32.xlu0 %v6007, 112
  %v6023 = vpop.permute.xlu0 %6022
  %6024 = vrot.lane.b32.xlu0 %v6009, 112
  %v6025 = vpop.permute.xlu0 %6024
  %6026 = vrot.lane.b32.xlu0 %v6011, 112
  %v6027 = vpop.permute.xlu0 %6026
  %vm6036 = vcmask 1042304
  %vm6037 = vmand %vm6036, %vm3753
  %v6038 = vld [vmem:[#allocation3] sm:$0x3]
  %v6039 = vsel %vm6037, %v6013, %v6038
  %6040 = vst [vmem:[#allocation3] sm:$0x3] %v6039
  %v6041 = vld [vmem:[#allocation3 + $0x10] sm:$0x3]
  %v6042 = vsel %vm6037, %v6015, %v6041
  %6043 = vst [vmem:[#allocation3 + $0x10] sm:$0x3] %v6042
  %v6044 = vld [vmem:[#allocation3 + $0x20] sm:$0x3]
  %v6045 = vsel %vm6037, %v6017, %v6044
  %6046 = vst [vmem:[#allocation3 + $0x20] sm:$0x3] %v6045
  %v6047 = vld [vmem:[#allocation3 + $0x30] sm:$0x3]
  %v6048 = vsel %vm6037, %v6019, %v6047
  %6049 = vst [vmem:[#allocation3 + $0x30] sm:$0x3] %v6048
  %v6050 = vld [vmem:[#allocation3 + $0x40] sm:$0x3]
  %v6051 = vsel %vm6037, %v6021, %v6050
  %6052 = vst [vmem:[#allocation3 + $0x40] sm:$0x3] %v6051
  %v6053 = vld [vmem:[#allocation3 + $0x50] sm:$0x3]
  %v6054 = vsel %vm6037, %v6023, %v6053
  %6055 = vst [vmem:[#allocation3 + $0x50] sm:$0x3] %v6054
  %v6056 = vld [vmem:[#allocation3 + $0x60] sm:$0x3]
  %v6057 = vsel %vm6037, %v6025, %v6056
  %6058 = vst [vmem:[#allocation3 + $0x60] sm:$0x3] %v6057
  %v6059 = vld [vmem:[#allocation3 + $0x70] sm:$0x3]
  %v6060 = vsel %vm6037, %v6027, %v6059
  %6061 = vst [vmem:[#allocation3 + $0x70] sm:$0x3] %v6060
  %v6062 = vld [vmem:[#allocation2 + $0xc] sm:$0x3]
  %v6063 = vld [vmem:[#allocation2 + $0x2c] sm:$0x3]
  %v6064 = vld [vmem:[#allocation2 + $0x4c] sm:$0x3]
  %v6065 = vld [vmem:[#allocation2 + $0x6c] sm:$0x3]
  %v6066 = vld [vmem:[#allocation2 + $0x8c] sm:$0x3]
  %v6067 = vld [vmem:[#allocation2 + $0xac] sm:$0x3]
  %v6068 = vld [vmem:[#allocation2 + $0xcc] sm:$0x3]
  %v6069 = vld [vmem:[#allocation2 + $0xec] sm:$0x3]
  %v6071 = vshrl.u32 %v6062, 16
  %v6073 = vrot.slane %v6071, 6
  %v6074 = vshll.u32 %v6062, 16
  %v6076 = vrot.slane %v6074, 7
  %v6077 = vor.u32 %v6073, %v6076
  %v6079 = vshrl.u32 %v6063, 16
  %v6081 = vrot.slane %v6079, 6
  %v6082 = vshll.u32 %v6063, 16
  %v6084 = vrot.slane %v6082, 7
  %v6085 = vor.u32 %v6081, %v6084
  %v6087 = vshrl.u32 %v6064, 16
  %v6089 = vrot.slane %v6087, 6
  %v6090 = vshll.u32 %v6064, 16
  %v6092 = vrot.slane %v6090, 7
  %v6093 = vor.u32 %v6089, %v6092
  %v6095 = vshrl.u32 %v6065, 16
  %v6097 = vrot.slane %v6095, 6
  %v6098 = vshll.u32 %v6065, 16
  %v6100 = vrot.slane %v6098, 7
  %v6101 = vor.u32 %v6097, %v6100
  %v6103 = vshrl.u32 %v6066, 16
  %v6105 = vrot.slane %v6103, 6
  %v6106 = vshll.u32 %v6066, 16
  %v6108 = vrot.slane %v6106, 7
  %v6109 = vor.u32 %v6105, %v6108
  %v6111 = vshrl.u32 %v6067, 16
  %v6113 = vrot.slane %v6111, 6
  %v6114 = vshll.u32 %v6067, 16
  %v6116 = vrot.slane %v6114, 7
  %v6117 = vor.u32 %v6113, %v6116
  %v6119 = vshrl.u32 %v6068, 16
  %v6121 = vrot.slane %v6119, 6
  %v6122 = vshll.u32 %v6068, 16
  %v6124 = vrot.slane %v6122, 7
  %v6125 = vor.u32 %v6121, %v6124
  %v6127 = vshrl.u32 %v6069, 16
  %v6129 = vrot.slane %v6127, 6
  %v6130 = vshll.u32 %v6069, 16
  %v6132 = vrot.slane %v6130, 7
  %v6133 = vor.u32 %v6129, %v6132
  %6134 = vrot.lane.b32.xlu0 %v6077, 112
  %v6135 = vpop.permute.xlu0 %6134
  %6136 = vrot.lane.b32.xlu0 %v6085, 112
  %v6137 = vpop.permute.xlu0 %6136
  %6138 = vrot.lane.b32.xlu0 %v6093, 112
  %v6139 = vpop.permute.xlu0 %6138
  %6140 = vrot.lane.b32.xlu0 %v6101, 112
  %v6141 = vpop.permute.xlu0 %6140
  %6142 = vrot.lane.b32.xlu0 %v6109, 112
  %v6143 = vpop.permute.xlu0 %6142
  %6144 = vrot.lane.b32.xlu0 %v6117, 112
  %v6145 = vpop.permute.xlu0 %6144
  %6146 = vrot.lane.b32.xlu0 %v6125, 112
  %v6147 = vpop.permute.xlu0 %6146
  %6148 = vrot.lane.b32.xlu0 %v6133, 112
  %v6149 = vpop.permute.xlu0 %6148
  %vm6158 = vcmask 1043329
  %vm6159 = vmand %vm6158, %vm3868
  %v6160 = vld [vmem:[#allocation3] sm:$0x6]
  %v6161 = vsel %vm6159, %v6135, %v6160
  %6162 = vst [vmem:[#allocation3] sm:$0x6] %v6161
  %v6163 = vld [vmem:[#allocation3 + $0x10] sm:$0x6]
  %v6164 = vsel %vm6159, %v6137, %v6163
  %6165 = vst [vmem:[#allocation3 + $0x10] sm:$0x6] %v6164
  %v6166 = vld [vmem:[#allocation3 + $0x20] sm:$0x6]
  %v6167 = vsel %vm6159, %v6139, %v6166
  %6168 = vst [vmem:[#allocation3 + $0x20] sm:$0x6] %v6167
  %v6169 = vld [vmem:[#allocation3 + $0x30] sm:$0x6]
  %v6170 = vsel %vm6159, %v6141, %v6169
  %6171 = vst [vmem:[#allocation3 + $0x30] sm:$0x6] %v6170
  %v6172 = vld [vmem:[#allocation3 + $0x40] sm:$0x6]
  %v6173 = vsel %vm6159, %v6143, %v6172
  %6174 = vst [vmem:[#allocation3 + $0x40] sm:$0x6] %v6173
  %v6175 = vld [vmem:[#allocation3 + $0x50] sm:$0x6]
  %v6176 = vsel %vm6159, %v6145, %v6175
  %6177 = vst [vmem:[#allocation3 + $0x50] sm:$0x6] %v6176
  %v6178 = vld [vmem:[#allocation3 + $0x60] sm:$0x6]
  %v6179 = vsel %vm6159, %v6147, %v6178
  %6180 = vst [vmem:[#allocation3 + $0x60] sm:$0x6] %v6179
  %v6181 = vld [vmem:[#allocation3 + $0x70] sm:$0x6]
  %v6182 = vsel %vm6159, %v6149, %v6181
  %6183 = vst [vmem:[#allocation3 + $0x70] sm:$0x6] %v6182
  %v6184 = vld [vmem:[#allocation2 + $0xc] sm:$0xc]
  %v6185 = vld [vmem:[#allocation2 + $0x2c] sm:$0xc]
  %v6186 = vld [vmem:[#allocation2 + $0x4c] sm:$0xc]
  %v6187 = vld [vmem:[#allocation2 + $0x6c] sm:$0xc]
  %v6188 = vld [vmem:[#allocation2 + $0x8c] sm:$0xc]
  %v6189 = vld [vmem:[#allocation2 + $0xac] sm:$0xc]
  %v6190 = vld [vmem:[#allocation2 + $0xcc] sm:$0xc]
  %v6191 = vld [vmem:[#allocation2 + $0xec] sm:$0xc]
  %v6200 = vrot.slane %v6184, 7
  %v6201 = vrot.slane %v6200, 4
  %v6202 = vrot.slane %v6185, 7
  %v6203 = vrot.slane %v6202, 4
  %v6204 = vrot.slane %v6186, 7
  %v6205 = vrot.slane %v6204, 4
  %v6206 = vrot.slane %v6187, 7
  %v6207 = vrot.slane %v6206, 4
  %v6208 = vrot.slane %v6188, 7
  %v6209 = vrot.slane %v6208, 4
  %v6210 = vrot.slane %v6189, 7
  %v6211 = vrot.slane %v6210, 4
  %v6212 = vrot.slane %v6190, 7
  %v6213 = vrot.slane %v6212, 4
  %v6214 = vrot.slane %v6191, 7
  %v6215 = vrot.slane %v6214, 4
  %6216 = vrot.lane.b32.xlu0 %v6200, 112
  %v6217 = vpop.permute.xlu0 %6216
  %6218 = vrot.lane.b32.xlu0 %v6201, 112
  %v6219 = vpop.permute.xlu0 %6218
  %6220 = vrot.lane.b32.xlu0 %v6202, 112
  %v6221 = vpop.permute.xlu0 %6220
  %6222 = vrot.lane.b32.xlu0 %v6203, 112
  %v6223 = vpop.permute.xlu0 %6222
  %6224 = vrot.lane.b32.xlu0 %v6204, 112
  %v6225 = vpop.permute.xlu0 %6224
  %6226 = vrot.lane.b32.xlu0 %v6205, 112
  %v6227 = vpop.permute.xlu0 %6226
  %6228 = vrot.lane.b32.xlu0 %v6206, 112
  %v6229 = vpop.permute.xlu0 %6228
  %6230 = vrot.lane.b32.xlu0 %v6207, 112
  %v6231 = vpop.permute.xlu0 %6230
  %6232 = vrot.lane.b32.xlu0 %v6208, 112
  %v6233 = vpop.permute.xlu0 %6232
  %6234 = vrot.lane.b32.xlu0 %v6209, 112
  %v6235 = vpop.permute.xlu0 %6234
  %6236 = vrot.lane.b32.xlu0 %v6210, 112
  %v6237 = vpop.permute.xlu0 %6236
  %6238 = vrot.lane.b32.xlu0 %v6211, 112
  %v6239 = vpop.permute.xlu0 %6238
  %6240 = vrot.lane.b32.xlu0 %v6212, 112
  %v6241 = vpop.permute.xlu0 %6240
  %6242 = vrot.lane.b32.xlu0 %v6213, 112
  %v6243 = vpop.permute.xlu0 %6242
  %6244 = vrot.lane.b32.xlu0 %v6214, 112
  %v6245 = vpop.permute.xlu0 %6244
  %6246 = vrot.lane.b32.xlu0 %v6215, 112
  %v6247 = vpop.permute.xlu0 %6246
  %vm6264 = vcmask 1044355
  %6265 = vst.msk [vmem:[#allocation3] sm:$0x8] %vm6264, %v6217
  %vm6266 = vcmask 1041280
  %vm6267 = vmand %vm6266, %vm3945
  %v6268 = vld [vmem:[#allocation3 + $0x8] sm:$0x1]
  %v6269 = vsel %vm6267, %v6219, %v6268
  %6270 = vst [vmem:[#allocation3 + $0x8] sm:$0x1] %v6269
  %6271 = vst.msk [vmem:[#allocation3 + $0x10] sm:$0x8] %vm6264, %v6221
  %v6272 = vld [vmem:[#allocation3 + $0x18] sm:$0x1]
  %v6273 = vsel %vm6267, %v6223, %v6272
  %6274 = vst [vmem:[#allocation3 + $0x18] sm:$0x1] %v6273
  %6275 = vst.msk [vmem:[#allocation3 + $0x20] sm:$0x8] %vm6264, %v6225
  %v6276 = vld [vmem:[#allocation3 + $0x28] sm:$0x1]
  %v6277 = vsel %vm6267, %v6227, %v6276
  %6278 = vst [vmem:[#allocation3 + $0x28] sm:$0x1] %v6277
  %6279 = vst.msk [vmem:[#allocation3 + $0x30] sm:$0x8] %vm6264, %v6229
  %v6280 = vld [vmem:[#allocation3 + $0x38] sm:$0x1]
  %v6281 = vsel %vm6267, %v6231, %v6280
  %6282 = vst [vmem:[#allocation3 + $0x38] sm:$0x1] %v6281
  %6283 = vst.msk [vmem:[#allocation3 + $0x40] sm:$0x8] %vm6264, %v6233
  %v6284 = vld [vmem:[#allocation3 + $0x48] sm:$0x1]
  %v6285 = vsel %vm6267, %v6235, %v6284
  %6286 = vst [vmem:[#allocation3 + $0x48] sm:$0x1] %v6285
  %6287 = vst.msk [vmem:[#allocation3 + $0x50] sm:$0x8] %vm6264, %v6237
  %v6288 = vld [vmem:[#allocation3 + $0x58] sm:$0x1]
  %v6289 = vsel %vm6267, %v6239, %v6288
  %6290 = vst [vmem:[#allocation3 + $0x58] sm:$0x1] %v6289
  %6291 = vst.msk [vmem:[#allocation3 + $0x60] sm:$0x8] %vm6264, %v6241
  %v6292 = vld [vmem:[#allocation3 + $0x68] sm:$0x1]
  %v6293 = vsel %vm6267, %v6243, %v6292
  %6294 = vst [vmem:[#allocation3 + $0x68] sm:$0x1] %v6293
  %6295 = vst.msk [vmem:[#allocation3 + $0x70] sm:$0x8] %vm6264, %v6245
  %v6296 = vld [vmem:[#allocation3 + $0x78] sm:$0x1]
  %v6297 = vsel %vm6267, %v6247, %v6296
  %6298 = vst [vmem:[#allocation3 + $0x78] sm:$0x1] %v6297
  %v6299 = vld [vmem:[#allocation2] sm:$0xc]
  %v6300 = vld [vmem:[#allocation2 + $0x20] sm:$0xc]
  %v6301 = vld [vmem:[#allocation2 + $0x40] sm:$0xc]
  %v6302 = vld [vmem:[#allocation2 + $0x60] sm:$0xc]
  %v6303 = vld [vmem:[#allocation2 + $0x80] sm:$0xc]
  %v6304 = vld [vmem:[#allocation2 + $0xa0] sm:$0xc]
  %v6305 = vld [vmem:[#allocation2 + $0xc0] sm:$0xc]
  %v6306 = vld [vmem:[#allocation2 + $0xe0] sm:$0xc]
  %v6308 = vshrl.u32 %v6299, 16
  %v6310 = vrot.slane %v6308, 6
  %v6311 = vshll.u32 %v6299, 16
  %v6313 = vrot.slane %v6311, 7
  %v6314 = vor.u32 %v6310, %v6313
  %v6315 = vrot.slane %v6314, 4
  %v6317 = vshrl.u32 %v6300, 16
  %v6319 = vrot.slane %v6317, 6
  %v6320 = vshll.u32 %v6300, 16
  %v6322 = vrot.slane %v6320, 7
  %v6323 = vor.u32 %v6319, %v6322
  %v6324 = vrot.slane %v6323, 4
  %v6326 = vshrl.u32 %v6301, 16
  %v6328 = vrot.slane %v6326, 6
  %v6329 = vshll.u32 %v6301, 16
  %v6331 = vrot.slane %v6329, 7
  %v6332 = vor.u32 %v6328, %v6331
  %v6333 = vrot.slane %v6332, 4
  %v6335 = vshrl.u32 %v6302, 16
  %v6337 = vrot.slane %v6335, 6
  %v6338 = vshll.u32 %v6302, 16
  %v6340 = vrot.slane %v6338, 7
  %v6341 = vor.u32 %v6337, %v6340
  %v6342 = vrot.slane %v6341, 4
  %v6344 = vshrl.u32 %v6303, 16
  %v6346 = vrot.slane %v6344, 6
  %v6347 = vshll.u32 %v6303, 16
  %v6349 = vrot.slane %v6347, 7
  %v6350 = vor.u32 %v6346, %v6349
  %v6351 = vrot.slane %v6350, 4
  %v6353 = vshrl.u32 %v6304, 16
  %v6355 = vrot.slane %v6353, 6
  %v6356 = vshll.u32 %v6304, 16
  %v6358 = vrot.slane %v6356, 7
  %v6359 = vor.u32 %v6355, %v6358
  %v6360 = vrot.slane %v6359, 4
  %v6362 = vshrl.u32 %v6305, 16
  %v6364 = vrot.slane %v6362, 6
  %v6365 = vshll.u32 %v6305, 16
  %v6367 = vrot.slane %v6365, 7
  %v6368 = vor.u32 %v6364, %v6367
  %v6369 = vrot.slane %v6368, 4
  %v6371 = vshrl.u32 %v6306, 16
  %v6373 = vrot.slane %v6371, 6
  %v6374 = vshll.u32 %v6306, 16
  %v6376 = vrot.slane %v6374, 7
  %v6377 = vor.u32 %v6373, %v6376
  %v6378 = vrot.slane %v6377, 4
  %v6387 = vld [vmem:[#allocation3 + $0x4] sm:$0x3]
  %v6388 = vsel %vm3754, %v6315, %v6387
  %6389 = vst [vmem:[#allocation3 + $0x4] sm:$0x3] %v6388
  %v6390 = vld [vmem:[#allocation3 + $0x14] sm:$0x3]
  %v6391 = vsel %vm3754, %v6324, %v6390
  %6392 = vst [vmem:[#allocation3 + $0x14] sm:$0x3] %v6391
  %v6393 = vld [vmem:[#allocation3 + $0x24] sm:$0x3]
  %v6394 = vsel %vm3754, %v6333, %v6393
  %6395 = vst [vmem:[#allocation3 + $0x24] sm:$0x3] %v6394
  %v6396 = vld [vmem:[#allocation3 + $0x34] sm:$0x3]
  %v6397 = vsel %vm3754, %v6342, %v6396
  %6398 = vst [vmem:[#allocation3 + $0x34] sm:$0x3] %v6397
  %v6399 = vld [vmem:[#allocation3 + $0x44] sm:$0x3]
  %v6400 = vsel %vm3754, %v6351, %v6399
  %6401 = vst [vmem:[#allocation3 + $0x44] sm:$0x3] %v6400
  %v6402 = vld [vmem:[#allocation3 + $0x54] sm:$0x3]
  %v6403 = vsel %vm3754, %v6360, %v6402
  %6404 = vst [vmem:[#allocation3 + $0x54] sm:$0x3] %v6403
  %v6405 = vld [vmem:[#allocation3 + $0x64] sm:$0x3]
  %v6406 = vsel %vm3754, %v6369, %v6405
  %6407 = vst [vmem:[#allocation3 + $0x64] sm:$0x3] %v6406
  %v6408 = vld [vmem:[#allocation3 + $0x74] sm:$0x3]
  %v6409 = vsel %vm3754, %v6378, %v6408
  %6410 = vst [vmem:[#allocation3 + $0x74] sm:$0x3] %v6409
  %v6411 = vld [vmem:[#allocation2 + $0x4] sm:$0x3]
  %v6412 = vld [vmem:[#allocation2 + $0x24] sm:$0x3]
  %v6413 = vld [vmem:[#allocation2 + $0x44] sm:$0x3]
  %v6414 = vld [vmem:[#allocation2 + $0x64] sm:$0x3]
  %v6415 = vld [vmem:[#allocation2 + $0x84] sm:$0x3]
  %v6416 = vld [vmem:[#allocation2 + $0xa4] sm:$0x3]
  %v6417 = vld [vmem:[#allocation2 + $0xc4] sm:$0x3]
  %v6418 = vld [vmem:[#allocation2 + $0xe4] sm:$0x3]
  %v6427 = vrot.slane %v6411, 7
  %v6428 = vrot.slane %v6412, 7
  %v6429 = vrot.slane %v6413, 7
  %v6430 = vrot.slane %v6414, 7
  %v6431 = vrot.slane %v6415, 7
  %v6432 = vrot.slane %v6416, 7
  %v6433 = vrot.slane %v6417, 7
  %v6434 = vrot.slane %v6418, 7
  %v6443 = vld [vmem:[#allocation3 + $0x4] sm:$0x6]
  %v6444 = vsel %vm3869, %v6427, %v6443
  %6445 = vst [vmem:[#allocation3 + $0x4] sm:$0x6] %v6444
  %v6446 = vld [vmem:[#allocation3 + $0x14] sm:$0x6]
  %v6447 = vsel %vm3869, %v6428, %v6446
  %6448 = vst [vmem:[#allocation3 + $0x14] sm:$0x6] %v6447
  %v6449 = vld [vmem:[#allocation3 + $0x24] sm:$0x6]
  %v6450 = vsel %vm3869, %v6429, %v6449
  %6451 = vst [vmem:[#allocation3 + $0x24] sm:$0x6] %v6450
  %v6452 = vld [vmem:[#allocation3 + $0x34] sm:$0x6]
  %v6453 = vsel %vm3869, %v6430, %v6452
  %6454 = vst [vmem:[#allocation3 + $0x34] sm:$0x6] %v6453
  %v6455 = vld [vmem:[#allocation3 + $0x44] sm:$0x6]
  %v6456 = vsel %vm3869, %v6431, %v6455
  %6457 = vst [vmem:[#allocation3 + $0x44] sm:$0x6] %v6456
  %v6458 = vld [vmem:[#allocation3 + $0x54] sm:$0x6]
  %v6459 = vsel %vm3869, %v6432, %v6458
  %6460 = vst [vmem:[#allocation3 + $0x54] sm:$0x6] %v6459
  %v6461 = vld [vmem:[#allocation3 + $0x64] sm:$0x6]
  %v6462 = vsel %vm3869, %v6433, %v6461
  %6463 = vst [vmem:[#allocation3 + $0x64] sm:$0x6] %v6462
  %v6464 = vld [vmem:[#allocation3 + $0x74] sm:$0x6]
  %v6465 = vsel %vm3869, %v6434, %v6464
  %6466 = vst [vmem:[#allocation3 + $0x74] sm:$0x6] %v6465
  %v6467 = vld [vmem:[#allocation2 + $0x4] sm:$0xc]
  %v6468 = vld [vmem:[#allocation2 + $0x24] sm:$0xc]
  %v6469 = vld [vmem:[#allocation2 + $0x44] sm:$0xc]
  %v6470 = vld [vmem:[#allocation2 + $0x64] sm:$0xc]
  %v6471 = vld [vmem:[#allocation2 + $0x84] sm:$0xc]
  %v6472 = vld [vmem:[#allocation2 + $0xa4] sm:$0xc]
  %v6473 = vld [vmem:[#allocation2 + $0xc4] sm:$0xc]
  %v6474 = vld [vmem:[#allocation2 + $0xe4] sm:$0xc]
  %v6476 = vshrl.u32 %v6467, 16
  %v6478 = vrot.slane %v6476, 7
  %v6479 = vshll.u32 %v6467, 16
  %v6481 = vor.u32 %v6478, %v6479
  %v6482 = vrot.slane %v6478, 4
  %v6484 = vshrl.u32 %v6468, 16
  %v6486 = vrot.slane %v6484, 7
  %v6487 = vshll.u32 %v6468, 16
  %v6489 = vor.u32 %v6486, %v6487
  %v6490 = vrot.slane %v6486, 4
  %v6492 = vshrl.u32 %v6469, 16
  %v6494 = vrot.slane %v6492, 7
  %v6495 = vshll.u32 %v6469, 16
  %v6497 = vor.u32 %v6494, %v6495
  %v6498 = vrot.slane %v6494, 4
  %v6500 = vshrl.u32 %v6470, 16
  %v6502 = vrot.slane %v6500, 7
  %v6503 = vshll.u32 %v6470, 16
  %v6505 = vor.u32 %v6502, %v6503
  %v6506 = vrot.slane %v6502, 4
  %v6508 = vshrl.u32 %v6471, 16
  %v6510 = vrot.slane %v6508, 7
  %v6511 = vshll.u32 %v6471, 16
  %v6513 = vor.u32 %v6510, %v6511
  %v6514 = vrot.slane %v6510, 4
  %v6516 = vshrl.u32 %v6472, 16
  %v6518 = vrot.slane %v6516, 7
  %v6519 = vshll.u32 %v6472, 16
  %v6521 = vor.u32 %v6518, %v6519
  %v6522 = vrot.slane %v6518, 4
  %v6524 = vshrl.u32 %v6473, 16
  %v6526 = vrot.slane %v6524, 7
  %v6527 = vshll.u32 %v6473, 16
  %v6529 = vor.u32 %v6526, %v6527
  %v6530 = vrot.slane %v6526, 4
  %v6532 = vshrl.u32 %v6474, 16
  %v6534 = vrot.slane %v6532, 7
  %v6535 = vshll.u32 %v6474, 16
  %v6537 = vor.u32 %v6534, %v6535
  %v6538 = vrot.slane %v6534, 4
  %6555 = vst.msk [vmem:[#allocation3 + $0x4] sm:$0x8] %vm3942, %v6481
  %v6556 = vld [vmem:[#allocation3 + $0xc] sm:$0x1]
  %v6557 = vsel %vm3946, %v6482, %v6556
  %6558 = vst [vmem:[#allocation3 + $0xc] sm:$0x1] %v6557
  %6559 = vst.msk [vmem:[#allocation3 + $0x14] sm:$0x8] %vm3942, %v6489
  %v6560 = vld [vmem:[#allocation3 + $0x1c] sm:$0x1]
  %v6561 = vsel %vm3946, %v6490, %v6560
  %6562 = vst [vmem:[#allocation3 + $0x1c] sm:$0x1] %v6561
  %6563 = vst.msk [vmem:[#allocation3 + $0x24] sm:$0x8] %vm3942, %v6497
  %v6564 = vld [vmem:[#allocation3 + $0x2c] sm:$0x1]
  %v6565 = vsel %vm3946, %v6498, %v6564
  %6566 = vst [vmem:[#allocation3 + $0x2c] sm:$0x1] %v6565
  %6567 = vst.msk [vmem:[#allocation3 + $0x34] sm:$0x8] %vm3942, %v6505
  %v6568 = vld [vmem:[#allocation3 + $0x3c] sm:$0x1]
  %v6569 = vsel %vm3946, %v6506, %v6568
  %6570 = vst [vmem:[#allocation3 + $0x3c] sm:$0x1] %v6569
  %6571 = vst.msk [vmem:[#allocation3 + $0x44] sm:$0x8] %vm3942, %v6513
  %v6572 = vld [vmem:[#allocation3 + $0x4c] sm:$0x1]
  %v6573 = vsel %vm3946, %v6514, %v6572
  %6574 = vst [vmem:[#allocation3 + $0x4c] sm:$0x1] %v6573
  %6575 = vst.msk [vmem:[#allocation3 + $0x54] sm:$0x8] %vm3942, %v6521
  %v6576 = vld [vmem:[#allocation3 + $0x5c] sm:$0x1]
  %v6577 = vsel %vm3946, %v6522, %v6576
  %6578 = vst [vmem:[#allocation3 + $0x5c] sm:$0x1] %v6577
  %6579 = vst.msk [vmem:[#allocation3 + $0x64] sm:$0x8] %vm3942, %v6529
  %v6580 = vld [vmem:[#allocation3 + $0x6c] sm:$0x1]
  %v6581 = vsel %vm3946, %v6530, %v6580
  %6582 = vst [vmem:[#allocation3 + $0x6c] sm:$0x1] %v6581
  %6583 = vst.msk [vmem:[#allocation3 + $0x74] sm:$0x8] %vm3942, %v6537
  %v6584 = vld [vmem:[#allocation3 + $0x7c] sm:$0x1]
  %v6585 = vsel %vm3946, %v6538, %v6584
  %6586 = vst [vmem:[#allocation3 + $0x7c] sm:$0x1] %v6585
  %v6587 = vld [vmem:[#allocation3] sm:$0xff]
  %v6588 = vld [vmem:[#allocation3 + $0x8] sm:$0xff]
  %v6589 = vld [vmem:[#allocation3 + $0x10] sm:$0xff]
  %v6590 = vld [vmem:[#allocation3 + $0x18] sm:$0xff]
  %v6591 = vld [vmem:[#allocation3 + $0x20] sm:$0xff]
  %v6592 = vld [vmem:[#allocation3 + $0x28] sm:$0xff]
  %v6593 = vld [vmem:[#allocation3 + $0x30] sm:$0xff]
  %v6594 = vld [vmem:[#allocation3 + $0x38] sm:$0xff]
  %v6595 = vld [vmem:[#allocation3 + $0x40] sm:$0xff]
  %v6596 = vld [vmem:[#allocation3 + $0x48] sm:$0xff]
  %v6597 = vld [vmem:[#allocation3 + $0x50] sm:$0xff]
  %v6598 = vld [vmem:[#allocation3 + $0x58] sm:$0xff]
  %v6599 = vld [vmem:[#allocation3 + $0x60] sm:$0xff]
  %v6600 = vld [vmem:[#allocation3 + $0x68] sm:$0xff]
  %v6601 = vld [vmem:[#allocation3 + $0x70] sm:$0xff]
  %v6602 = vld [vmem:[#allocation3 + $0x78] sm:$0xff]
  %v6603 = vld [vmem:[%s4] sm:$0xf]
  %v6604 = vld [vmem:[%s4 + $0x4] sm:$0xf]
  %v6605 = vld [vmem:[%s4 + $0x8] sm:$0xf]
  %v6606 = vld [vmem:[%s4 + $0xc] sm:$0xf]
  %v6607 = vld [vmem:[%s4 + $0x10] sm:$0xf]
  %v6608 = vld [vmem:[%s4 + $0x14] sm:$0xf]
  %v6609 = vld [vmem:[%s4 + $0x18] sm:$0xf]
  %v6610 = vld [vmem:[%s4 + $0x1c] sm:$0xf]
  %v6611 = vld [vmem:[%s4 + $0x20] sm:$0xf]
  %v6612 = vld [vmem:[%s4 + $0x24] sm:$0xf]
  %v6613 = vld [vmem:[%s4 + $0x28] sm:$0xf]
  %v6614 = vld [vmem:[%s4 + $0x2c] sm:$0xf]
  %v6615 = vld [vmem:[%s4 + $0x30] sm:$0xf]
  %v6616 = vld [vmem:[%s4 + $0x34] sm:$0xf]
  %v6617 = vld [vmem:[%s4 + $0x38] sm:$0xf]
  %v6618 = vld [vmem:[%s4 + $0x3c] sm:$0xf]
  %v6619 = vld [vmem:[%s4 + $0x40] sm:$0xf]
  %v6620 = vld [vmem:[%s4 + $0x44] sm:$0xf]
  %v6622 = vlaneseq
  %v6623 = vshrl.u32 %v6622, 7
  %v6624 = vsub.s32 0, %v6623
  %v6625 = vrot.slane %v37, %v6624
  %v6643 = vunpack.c.l.b16 %v6587
  %v6644 = vunpack.c.h.b16 %v6587
  %v6645 = vunpack.c.l.b16 %v6588
  %v6646 = vunpack.c.h.b16 %v6588
  %v6647 = vunpack.c.l.b16 %v6589
  %v6648 = vunpack.c.h.b16 %v6589
  %v6649 = vunpack.c.l.b16 %v6590
  %v6650 = vunpack.c.h.b16 %v6590
  %v6651 = vunpack.c.l.b16 %v6591
  %v6652 = vunpack.c.h.b16 %v6591
  %v6653 = vunpack.c.l.b16 %v6592
  %v6654 = vunpack.c.h.b16 %v6592
  %v6655 = vunpack.c.l.b16 %v6593
  %v6656 = vunpack.c.h.b16 %v6593
  %v6657 = vunpack.c.l.b16 %v6594
  %v6658 = vunpack.c.h.b16 %v6594
  %v6659 = vunpack.c.l.b16 %v6595
  %v6660 = vunpack.c.h.b16 %v6595
  %v6661 = vunpack.c.l.b16 %v6596
  %v6662 = vunpack.c.h.b16 %v6596
  %v6663 = vunpack.c.l.b16 %v6597
  %v6664 = vunpack.c.h.b16 %v6597
  %v6665 = vunpack.c.l.b16 %v6598
  %v6666 = vunpack.c.h.b16 %v6598
  %v6667 = vunpack.c.l.b16 %v6599
  %v6668 = vunpack.c.h.b16 %v6599
  %v6669 = vunpack.c.l.b16 %v6600
  %v6670 = vunpack.c.h.b16 %v6600
  %v6671 = vunpack.c.l.b16 %v6601
  %v6672 = vunpack.c.h.b16 %v6601
  %v6673 = vunpack.c.l.b16 %v6602
  %v6674 = vunpack.c.h.b16 %v6602
  %v6675 = vpack.c.b16 %v6645, %v6643
  %v6676 = vpack.c.b16 %v6646, %v6644
  %v6677 = vpack.c.b16 %v6649, %v6647
  %v6678 = vpack.c.b16 %v6650, %v6648
  %v6679 = vpack.c.b16 %v6653, %v6651
  %v6680 = vpack.c.b16 %v6654, %v6652
  %v6681 = vpack.c.b16 %v6657, %v6655
  %v6682 = vpack.c.b16 %v6658, %v6656
  %v6683 = vpack.c.b16 %v6661, %v6659
  %v6684 = vpack.c.b16 %v6662, %v6660
  %v6685 = vpack.c.b16 %v6665, %v6663
  %v6686 = vpack.c.b16 %v6666, %v6664
  %v6687 = vpack.c.b16 %v6669, %v6667
  %v6688 = vpack.c.b16 %v6670, %v6668
  %v6689 = vpack.c.b16 %v6673, %v6671
  %v6690 = vpack.c.b16 %v6674, %v6672
  %v6717 = vunpack.c.l.b16 %v6603
  %v6718 = vunpack.c.l.b16 %v6604
  %v6719 = vunpack.c.l.b16 %v6605
  %v6720 = vunpack.c.l.b16 %v6606
  %v6721 = vunpack.c.l.b16 %v6607
  %v6722 = vunpack.c.l.b16 %v6608
  %v6723 = vunpack.c.l.b16 %v6609
  %v6724 = vunpack.c.l.b16 %v6610
  %v6725 = vunpack.c.l.b16 %v6611
  %v6726 = vunpack.c.l.b16 %v6612
  %v6727 = vunpack.c.l.b16 %v6613
  %v6728 = vunpack.c.l.b16 %v6614
  %v6729 = vunpack.c.l.b16 %v6615
  %v6730 = vunpack.c.l.b16 %v6616
  %v6731 = vunpack.c.l.b16 %v6617
  %v6732 = vunpack.c.l.b16 %v6618
  %v6733 = vunpack.c.l.b16 %v6619
  %v6734 = vunpack.c.l.b16 %v6620
  %v6735 = vpack.c.b16 %v6718, %v6717
  %v6736 = vpack.c.b16 %v6720, %v6719
  %v6737 = vpack.c.b16 %v6722, %v6721
  %v6738 = vpack.c.b16 %v6724, %v6723
  %v6739 = vpack.c.b16 %v6726, %v6725
  %v6740 = vpack.c.b16 %v6728, %v6727
  %v6741 = vpack.c.b16 %v6730, %v6729
  %v6742 = vpack.c.b16 %v6732, %v6731
  %v6743 = vpack.c.b16 %v6734, %v6733
  %vm6753 = vcmask 130048
  %v6755 = vsel %vm6753, %v6676, 0
  %v6758 = vsel %vm6753, %v6678, 0
  %v6761 = vsel %vm6753, %v6680, 0
  %v6764 = vsel %vm6753, %v6682, 0
  %v6767 = vsel %vm6753, %v6684, 0
  %v6770 = vsel %vm6753, %v6686, 0
  %v6773 = vsel %vm6753, %v6688, 0
  %v6776 = vsel %vm6753, %v6690, 0
  %6778 = vmatprep.subr.bf16.mxu0 0
  %6779 = vmatpush1.bf16.msra.mxu0 %v6742
  %6780 = vmatprep.subr.bf16.mxu0 0
  %6781 = vmatpush1.bf16.msra.mxu0 %v6741
  %6782 = vmatprep.subr.bf16.mxu0 0
  %6783 = vmatpush1.bf16.msra.mxu0 %v6740
  %6784 = vmatprep.subr.bf16.mxu0 0
  %6785 = vmatpush1.bf16.msra.mxu0 %v6739
  %6786 = vmatprep.subr.bf16.mxu0 0
  %6787 = vmatpush1.bf16.msra.mxu0 %v6738
  %6788 = vmatprep.subr.bf16.mxu0 0
  %6789 = vmatpush1.bf16.msra.mxu0 %v6737
  %6790 = vmatprep.subr.bf16.mxu0 0
  %6791 = vmatpush1.bf16.msra.mxu0 %v6736
  %6792 = vmatprep.subr.bf16.mxu0 0
  %6793 = vmatpush1.bf16.msra.mxu0 %v6735
  %6794 = vmatprep.subr.bf16.mxu0 0
  %6795 = vmatpush2.bf16.msra.mxu0 0
  %6796 = vmatprep.subr.bf16.mxu0 0
  %6797 = vmatpush2.bf16.msra.mxu0 0
  %6798 = vmatprep.subr.bf16.mxu0 0
  %6799 = vmatpush2.bf16.msra.mxu0 0
  %6800 = vmatprep.subr.bf16.mxu0 0
  %6801 = vmatpush2.bf16.msra.mxu0 0
  %6802 = vmatprep.subr.bf16.mxu0 0
  %6803 = vmatpush2.bf16.msra.mxu0 0
  %6804 = vmatprep.subr.bf16.mxu0 0
  %6805 = vmatpush2.bf16.msra.mxu0 0
  %6806 = vmatprep.subr.bf16.mxu0 0
  %6807 = vmatpush2.bf16.msra.mxu0 0
  %6808 = vmatprep.subr.bf16.mxu0 0
  %6809 = vmatpush2.bf16.msra.mxu0 %v6743
  %6810 = vmatprep.mubr.bf16.mxu0 %v6755
  %6811 = vmatmul.mubr.bf16.gmra.mxu0 %v6675
  %v6812 = vpop.f32.mrf.mxu0
  %v6813 = vadd.f32 %v6625, %v6812
  %v6814 = vpop.f32.mrf.mxu0
  %v6815 = vpop.f32.mrf.mxu0
  %v6816 = vadd.f32 %v6625, %v6815
  %v6817 = vpop.f32.mrf.mxu0
  %6818 = vmatprep.mubr.bf16.mxu0 %v6758
  %6819 = vmatmul.mubr.bf16.gmra.mxu0 %v6677
  %v6820 = vpop.f32.mrf.mxu0
  %v6821 = vadd.f32 %v6625, %v6820
  %v6822 = vpop.f32.mrf.mxu0
  %v6823 = vpop.f32.mrf.mxu0
  %v6824 = vadd.f32 %v6625, %v6823
  %v6825 = vpop.f32.mrf.mxu0
  %6826 = vmatprep.mubr.bf16.mxu0 %v6761
  %6827 = vmatmul.mubr.bf16.gmra.mxu0 %v6679
  %v6828 = vpop.f32.mrf.mxu0
  %v6829 = vadd.f32 %v6625, %v6828
  %v6830 = vpop.f32.mrf.mxu0
  %v6831 = vpop.f32.mrf.mxu0
  %v6832 = vadd.f32 %v6625, %v6831
  %v6833 = vpop.f32.mrf.mxu0
  %6834 = vmatprep.mubr.bf16.mxu0 %v6764
  %6835 = vmatmul.mubr.bf16.gmra.mxu0 %v6681
  %v6836 = vpop.f32.mrf.mxu0
  %v6837 = vadd.f32 %v6625, %v6836
  %v6838 = vpop.f32.mrf.mxu0
  %v6839 = vpop.f32.mrf.mxu0
  %v6840 = vadd.f32 %v6625, %v6839
  %v6841 = vpop.f32.mrf.mxu0
  %6842 = vmatprep.mubr.bf16.mxu0 %v6767
  %6843 = vmatmul.mubr.bf16.gmra.mxu0 %v6683
  %v6844 = vpop.f32.mrf.mxu0
  %v6845 = vadd.f32 %v6625, %v6844
  %v6846 = vpop.f32.mrf.mxu0
  %v6847 = vpop.f32.mrf.mxu0
  %v6848 = vadd.f32 %v6625, %v6847
  %v6849 = vpop.f32.mrf.mxu0
  %6850 = vmatprep.mubr.bf16.mxu0 %v6770
  %6851 = vmatmul.mubr.bf16.gmra.mxu0 %v6685
  %v6852 = vpop.f32.mrf.mxu0
  %v6853 = vadd.f32 %v6625, %v6852
  %v6854 = vpop.f32.mrf.mxu0
  %v6855 = vpop.f32.mrf.mxu0
  %v6856 = vadd.f32 %v6625, %v6855
  %v6857 = vpop.f32.mrf.mxu0
  %6858 = vmatprep.mubr.bf16.mxu0 %v6773
  %6859 = vmatmul.mubr.bf16.gmra.mxu0 %v6687
  %v6860 = vpop.f32.mrf.mxu0
  %v6861 = vadd.f32 %v6625, %v6860
  %v6862 = vpop.f32.mrf.mxu0
  %v6863 = vpop.f32.mrf.mxu0
  %v6864 = vadd.f32 %v6625, %v6863
  %v6865 = vpop.f32.mrf.mxu0
  %6866 = vmatprep.mubr.bf16.mxu0 %v6776
  %6867 = vmatmul.mubr.bf16.gmra.mxu0 %v6689
  %v6868 = vpop.f32.mrf.mxu0
  %v6869 = vadd.f32 %v6625, %v6868
  %v6870 = vpop.f32.mrf.mxu0
  %v6871 = vpop.f32.mrf.mxu0
  %v6872 = vadd.f32 %v6625, %v6871
  %v6873 = vpop.f32.mrf.mxu0
  %6874 = vdwg.mxu0
  %v6875 = vmax.f32 %v6813, 0.0
  %v6876 = vmax.f32 %v6816, 0.0
  %v6877 = vmax.f32 %v6821, 0.0
  %v6878 = vmax.f32 %v6824, 0.0
  %v6879 = vmax.f32 %v6829, 0.0
  %v6880 = vmax.f32 %v6832, 0.0
  %v6881 = vmax.f32 %v6837, 0.0
  %v6882 = vmax.f32 %v6840, 0.0
  %v6883 = vmax.f32 %v6845, 0.0
  %v6884 = vmax.f32 %v6848, 0.0
  %v6885 = vmax.f32 %v6853, 0.0
  %v6886 = vmax.f32 %v6856, 0.0
  %v6887 = vmax.f32 %v6861, 0.0
  %v6888 = vmax.f32 %v6864, 0.0
  %v6889 = vmax.f32 %v6869, 0.0
  %v6890 = vmax.f32 %v6872, 0.0
  %v6891 = vpack.c.bf16 %v6876, %v6875
  %v6892 = vpack.c.bf16 %v6878, %v6877
  %v6893 = vpack.c.bf16 %v6880, %v6879
  %v6894 = vpack.c.bf16 %v6882, %v6881
  %v6895 = vpack.c.bf16 %v6884, %v6883
  %v6896 = vpack.c.bf16 %v6886, %v6885
  %v6897 = vpack.c.bf16 %v6888, %v6887
  %v6898 = vpack.c.bf16 %v6890, %v6889
  %v6907 = vunpack.c.l.b16 %v6891
  %v6908 = vunpack.c.h.b16 %v6891
  %v6909 = vunpack.c.l.b16 %v6892
  %v6910 = vunpack.c.h.b16 %v6892
  %v6911 = vunpack.c.l.b16 %v6893
  %v6912 = vunpack.c.h.b16 %v6893
  %v6913 = vunpack.c.l.b16 %v6894
  %v6914 = vunpack.c.h.b16 %v6894
  %v6915 = vunpack.c.l.b16 %v6895
  %v6916 = vunpack.c.h.b16 %v6895
  %v6917 = vunpack.c.l.b16 %v6896
  %v6918 = vunpack.c.h.b16 %v6896
  %v6919 = vunpack.c.l.b16 %v6897
  %v6920 = vunpack.c.h.b16 %v6897
  %v6921 = vunpack.c.l.b16 %v6898
  %v6922 = vunpack.c.h.b16 %v6898
  %v6923 = vpack.c.b16 %v6907, %v6907
  %v6924 = vpack.c.b16 %v6908, %v6908
  %v6925 = vpack.c.b16 %v6909, %v6909
  %v6926 = vpack.c.b16 %v6910, %v6910
  %v6927 = vpack.c.b16 %v6911, %v6911
  %v6928 = vpack.c.b16 %v6912, %v6912
  %v6929 = vpack.c.b16 %v6913, %v6913
  %v6930 = vpack.c.b16 %v6914, %v6914
  %v6931 = vpack.c.b16 %v6915, %v6915
  %v6932 = vpack.c.b16 %v6916, %v6916
  %v6933 = vpack.c.b16 %v6917, %v6917
  %v6934 = vpack.c.b16 %v6918, %v6918
  %v6935 = vpack.c.b16 %v6919, %v6919
  %v6936 = vpack.c.b16 %v6920, %v6920
  %v6937 = vpack.c.b16 %v6921, %v6921
  %v6938 = vpack.c.b16 %v6922, %v6922
  %vm6955 = vcmask 257024
  %6956 = vst.msk [vmem:[#allocation4] sm:$0xf] %vm6955, %v6923
  %6957 = vst.msk [vmem:[#allocation4 + $0x4] sm:$0xf] %vm6955, %v6924
  %6958 = vst.msk [vmem:[#allocation4 + $0x8] sm:$0xf] %vm6955, %v6925
  %6959 = vst.msk [vmem:[#allocation4 + $0xc] sm:$0xf] %vm6955, %v6926
  %6960 = vst.msk [vmem:[#allocation4 + $0x10] sm:$0xf] %vm6955, %v6927
  %6961 = vst.msk [vmem:[#allocation4 + $0x14] sm:$0xf] %vm6955, %v6928
  %6962 = vst.msk [vmem:[#allocation4 + $0x18] sm:$0xf] %vm6955, %v6929
  %6963 = vst.msk [vmem:[#allocation4 + $0x1c] sm:$0xf] %vm6955, %v6930
  %6964 = vst.msk [vmem:[#allocation4 + $0x20] sm:$0xf] %vm6955, %v6931
  %6965 = vst.msk [vmem:[#allocation4 + $0x24] sm:$0xf] %vm6955, %v6932
  %6966 = vst.msk [vmem:[#allocation4 + $0x28] sm:$0xf] %vm6955, %v6933
  %6967 = vst.msk [vmem:[#allocation4 + $0x2c] sm:$0xf] %vm6955, %v6934
  %6968 = vst.msk [vmem:[#allocation4 + $0x30] sm:$0xf] %vm6955, %v6935
  %6969 = vst.msk [vmem:[#allocation4 + $0x34] sm:$0xf] %vm6955, %v6936
  %6970 = vst.msk [vmem:[#allocation4 + $0x38] sm:$0xf] %vm6955, %v6937
  %6971 = vst.msk [vmem:[#allocation4 + $0x3c] sm:$0xf] %vm6955, %v6938
  %v6972 = vld [vmem:[#allocation4] sm:$0x1]
  %v6973 = vld [vmem:[#allocation4 + $0x8] sm:$0x1]
  %v6974 = vld [vmem:[#allocation4 + $0x10] sm:$0x1]
  %v6975 = vld [vmem:[#allocation4 + $0x18] sm:$0x1]
  %v6976 = vld [vmem:[#allocation4 + $0x20] sm:$0x1]
  %v6977 = vld [vmem:[#allocation4 + $0x28] sm:$0x1]
  %v6978 = vld [vmem:[#allocation4 + $0x30] sm:$0x1]
  %v6979 = vld [vmem:[#allocation4 + $0x38] sm:$0x1]
  %v6988 = vunpack.c.l.b16 %v6972
  %v6989 = vunpack.c.l.b16 %v6973
  %v6990 = vunpack.c.l.b16 %v6974
  %v6991 = vunpack.c.l.b16 %v6975
  %v6992 = vunpack.c.l.b16 %v6976
  %v6993 = vunpack.c.l.b16 %v6977
  %v6994 = vunpack.c.l.b16 %v6978
  %v6995 = vunpack.c.l.b16 %v6979
  %v6996 = vrot.slane %v6989, 7
  %vm6997 = vcmask 1041409
  %v6998 = vsel %vm6997, %v6996, %v6988
  %v6999 = vrot.slane %v6990, 6
  %vm7000 = vcmask 1042434
  %v7001 = vsel %vm7000, %v6999, %v6998
  %v7002 = vrot.slane %v6991, 5
  %vm7003 = vcmask 1043459
  %v7004 = vsel %vm7003, %v7002, %v7001
  %v7005 = vrot.slane %v6992, 4
  %vm7006 = vcmask 1044484
  %v7007 = vsel %vm7006, %v7005, %v7004
  %v7008 = vrot.slane %v6993, 3
  %vm7009 = vcmask 1045509
  %v7010 = vsel %vm7009, %v7008, %v7007
  %v7011 = vrot.slane %v6994, 2
  %vm7012 = vcmask 1046534
  %v7013 = vsel %vm7012, %v7011, %v7010
  %v7014 = vrot.slane %v6995, 1
  %vm7015 = vcmask 1047559
  %v7016 = vsel %vm7015, %v7014, %v7013
  %v7017 = vpack.c.b16 %v7016, %v7016
  %7019 = vst.msk [vmem:[#allocation5] sm:$0xf] %vm6955, %v7017
  %v7020 = vld [vmem:[#allocation4] sm:$0x1]
  %v7021 = vld [vmem:[#allocation4 + $0x8] sm:$0x1]
  %v7022 = vld [vmem:[#allocation4 + $0x10] sm:$0x1]
  %v7023 = vld [vmem:[#allocation4 + $0x18] sm:$0x1]
  %v7024 = vld [vmem:[#allocation4 + $0x20] sm:$0x1]
  %v7025 = vld [vmem:[#allocation4 + $0x28] sm:$0x1]
  %v7026 = vld [vmem:[#allocation4 + $0x30] sm:$0x1]
  %v7027 = vld [vmem:[#allocation4 + $0x38] sm:$0x1]
  %v7036 = vunpack.c.l.b16 %v7020
  %v7037 = vunpack.c.l.b16 %v7021
  %v7038 = vunpack.c.l.b16 %v7022
  %v7039 = vunpack.c.l.b16 %v7023
  %v7040 = vunpack.c.l.b16 %v7024
  %v7041 = vunpack.c.l.b16 %v7025
  %v7042 = vunpack.c.l.b16 %v7026
  %v7043 = vunpack.c.l.b16 %v7027
  %v7044 = vrot.slane %v7036, 1
  %v7045 = vsel %vm6997, %v7037, %v7044
  %v7046 = vrot.slane %v7038, 7
  %v7047 = vsel %vm7000, %v7046, %v7045
  %v7048 = vrot.slane %v7039, 6
  %v7049 = vsel %vm7003, %v7048, %v7047
  %v7050 = vrot.slane %v7040, 5
  %v7051 = vsel %vm7006, %v7050, %v7049
  %v7052 = vrot.slane %v7041, 4
  %v7053 = vsel %vm7009, %v7052, %v7051
  %v7054 = vrot.slane %v7042, 3
  %v7055 = vsel %vm7012, %v7054, %v7053
  %v7056 = vrot.slane %v7043, 2
  %v7057 = vsel %vm7015, %v7056, %v7055
  %v7058 = vpack.c.b16 %v7057, %v7057
  %7059 = vrot.lane.b32.xlu0 %v7058, 32
  %v7060 = vpop.permute.xlu0 %7059
  %vm7062 = vcmask 519424
  %7063 = vst.msk [vmem:[#allocation5] sm:$0xf] %vm7062, %v7060
  %v7064 = vld [vmem:[#allocation4] sm:$0x2]
  %v7065 = vld [vmem:[#allocation4 + $0x8] sm:$0x2]
  %v7066 = vld [vmem:[#allocation4 + $0x10] sm:$0x2]
  %v7067 = vld [vmem:[#allocation4 + $0x18] sm:$0x2]
  %v7068 = vld [vmem:[#allocation4 + $0x20] sm:$0x2]
  %v7069 = vld [vmem:[#allocation4 + $0x28] sm:$0x2]
  %v7070 = vld [vmem:[#allocation4 + $0x30] sm:$0x2]
  %v7071 = vld [vmem:[#allocation4 + $0x38] sm:$0x2]
  %v7080 = vunpack.c.l.b16 %v7064
  %v7081 = vunpack.c.l.b16 %v7065
  %v7082 = vunpack.c.l.b16 %v7066
  %v7083 = vunpack.c.l.b16 %v7067
  %v7084 = vunpack.c.l.b16 %v7068
  %v7085 = vunpack.c.l.b16 %v7069
  %v7086 = vunpack.c.l.b16 %v7070
  %v7087 = vunpack.c.l.b16 %v7071
  %v7088 = vrot.slane %v7080, 2
  %v7089 = vrot.slane %v7081, 1
  %v7090 = vsel %vm6997, %v7089, %v7088
  %v7091 = vsel %vm7000, %v7082, %v7090
  %v7092 = vrot.slane %v7083, 7
  %v7093 = vsel %vm7003, %v7092, %v7091
  %v7094 = vrot.slane %v7084, 6
  %v7095 = vsel %vm7006, %v7094, %v7093
  %v7096 = vrot.slane %v7085, 5
  %v7097 = vsel %vm7009, %v7096, %v7095
  %v7098 = vrot.slane %v7086, 4
  %v7099 = vsel %vm7012, %v7098, %v7097
  %v7100 = vrot.slane %v7087, 3
  %v7101 = vsel %vm7015, %v7100, %v7099
  %v7102 = vpack.c.b16 %v7101, %v7101
  %7103 = vrot.lane.b32.xlu0 %v7102, 64
  %v7104 = vpop.permute.xlu0 %7103
  %vm7106 = vcmask 781824
  %7107 = vst.msk [vmem:[#allocation5] sm:$0xf] %vm7106, %v7104
  %v7108 = vld [vmem:[#allocation4] sm:$0x2]
  %v7109 = vld [vmem:[#allocation4 + $0x8] sm:$0x2]
  %v7110 = vld [vmem:[#allocation4 + $0x10] sm:$0x2]
  %v7111 = vld [vmem:[#allocation4 + $0x18] sm:$0x2]
  %v7112 = vld [vmem:[#allocation4 + $0x20] sm:$0x2]
  %v7113 = vld [vmem:[#allocation4 + $0x28] sm:$0x2]
  %v7114 = vld [vmem:[#allocation4 + $0x30] sm:$0x2]
  %v7115 = vld [vmem:[#allocation4 + $0x38] sm:$0x2]
  %v7124 = vunpack.c.l.b16 %v7108
  %v7125 = vunpack.c.l.b16 %v7109
  %v7126 = vunpack.c.l.b16 %v7110
  %v7127 = vunpack.c.l.b16 %v7111
  %v7128 = vunpack.c.l.b16 %v7112
  %v7129 = vunpack.c.l.b16 %v7113
  %v7130 = vunpack.c.l.b16 %v7114
  %v7131 = vunpack.c.l.b16 %v7115
  %v7132 = vrot.slane %v7124, 3
  %v7133 = vrot.slane %v7125, 2
  %v7134 = vsel %vm6997, %v7133, %v7132
  %v7135 = vrot.slane %v7126, 1
  %v7136 = vsel %vm7000, %v7135, %v7134
  %v7137 = vsel %vm7003, %v7127, %v7136
  %v7138 = vrot.slane %v7128, 7
  %v7139 = vsel %vm7006, %v7138, %v7137
  %v7140 = vrot.slane %v7129, 6
  %v7141 = vsel %vm7009, %v7140, %v7139
  %v7142 = vrot.slane %v7130, 5
  %v7143 = vsel %vm7012, %v7142, %v7141
  %v7144 = vrot.slane %v7131, 4
  %v7145 = vsel %vm7015, %v7144, %v7143
  %v7146 = vpack.c.b16 %v7145, %v7145
  %7147 = vrot.lane.b32.xlu0 %v7146, 96
  %v7148 = vpop.permute.xlu0 %7147
  %vm7150 = vcmask 1044224
  %7151 = vst.msk [vmem:[#allocation5] sm:$0xf] %vm7150, %v7148
  %v7152 = vld [vmem:[#allocation4] sm:$0x4]
  %v7153 = vld [vmem:[#allocation4 + $0x8] sm:$0x4]
  %v7154 = vld [vmem:[#allocation4 + $0x10] sm:$0x4]
  %v7155 = vld [vmem:[#allocation4 + $0x18] sm:$0x4]
  %v7156 = vld [vmem:[#allocation4 + $0x20] sm:$0x4]
  %v7157 = vld [vmem:[#allocation4 + $0x28] sm:$0x4]
  %v7158 = vld [vmem:[#allocation4 + $0x30] sm:$0x4]
  %v7159 = vld [vmem:[#allocation4 + $0x38] sm:$0x4]
  %v7168 = vunpack.c.l.b16 %v7152
  %v7169 = vunpack.c.l.b16 %v7153
  %v7170 = vunpack.c.l.b16 %v7154
  %v7171 = vunpack.c.l.b16 %v7155
  %v7172 = vunpack.c.l.b16 %v7156
  %v7173 = vunpack.c.l.b16 %v7157
  %v7174 = vunpack.c.l.b16 %v7158
  %v7175 = vunpack.c.l.b16 %v7159
  %v7176 = vrot.slane %v7168, 4
  %v7177 = vrot.slane %v7169, 3
  %v7178 = vsel %vm6997, %v7177, %v7176
  %v7179 = vrot.slane %v7170, 2
  %v7180 = vsel %vm7000, %v7179, %v7178
  %v7181 = vrot.slane %v7171, 1
  %v7182 = vsel %vm7003, %v7181, %v7180
  %v7183 = vsel %vm7006, %v7172, %v7182
  %v7184 = vrot.slane %v7173, 7
  %v7185 = vsel %vm7009, %v7184, %v7183
  %v7186 = vrot.slane %v7174, 6
  %v7187 = vsel %vm7012, %v7186, %v7185
  %v7188 = vrot.slane %v7175, 5
  %v7189 = vsel %vm7015, %v7188, %v7187
  %v7190 = vpack.c.b16 %v7189, %v7189
  %7192 = vst.msk [vmem:[#allocation5 + $0x4] sm:$0xf] %vm6955, %v7190
  %v7193 = vld [vmem:[#allocation4] sm:$0x4]
  %v7194 = vld [vmem:[#allocation4 + $0x8] sm:$0x4]
  %v7195 = vld [vmem:[#allocation4 + $0x10] sm:$0x4]
  %v7196 = vld [vmem:[#allocation4 + $0x18] sm:$0x4]
  %v7197 = vld [vmem:[#allocation4 + $0x20] sm:$0x4]
  %v7198 = vld [vmem:[#allocation4 + $0x28] sm:$0x4]
  %v7199 = vld [vmem:[#allocation4 + $0x30] sm:$0x4]
  %v7200 = vld [vmem:[#allocation4 + $0x38] sm:$0x4]
  %v7209 = vunpack.c.l.b16 %v7193
  %v7210 = vunpack.c.l.b16 %v7194
  %v7211 = vunpack.c.l.b16 %v7195
  %v7212 = vunpack.c.l.b16 %v7196
  %v7213 = vunpack.c.l.b16 %v7197
  %v7214 = vunpack.c.l.b16 %v7198
  %v7215 = vunpack.c.l.b16 %v7199
  %v7216 = vunpack.c.l.b16 %v7200
  %v7217 = vrot.slane %v7209, 5
  %v7218 = vrot.slane %v7210, 4
  %v7219 = vsel %vm6997, %v7218, %v7217
  %v7220 = vrot.slane %v7211, 3
  %v7221 = vsel %vm7000, %v7220, %v7219
  %v7222 = vrot.slane %v7212, 2
  %v7223 = vsel %vm7003, %v7222, %v7221
  %v7224 = vrot.slane %v7213, 1
  %v7225 = vsel %vm7006, %v7224, %v7223
  %v7226 = vsel %vm7009, %v7214, %v7225
  %v7227 = vrot.slane %v7215, 7
  %v7228 = vsel %vm7012, %v7227, %v7226
  %v7229 = vrot.slane %v7216, 6
  %v7230 = vsel %vm7015, %v7229, %v7228
  %v7231 = vpack.c.b16 %v7230, %v7230
  %7232 = vrot.lane.b32.xlu0 %v7231, 32
  %v7233 = vpop.permute.xlu0 %7232
  %7235 = vst.msk [vmem:[#allocation5 + $0x4] sm:$0xf] %vm7062, %v7233
  %v7236 = vld [vmem:[#allocation4] sm:$0x8]
  %v7237 = vld [vmem:[#allocation4 + $0x8] sm:$0x8]
  %v7238 = vld [vmem:[#allocation4 + $0x10] sm:$0x8]
  %v7239 = vld [vmem:[#allocation4 + $0x18] sm:$0x8]
  %v7240 = vld [vmem:[#allocation4 + $0x20] sm:$0x8]
  %v7241 = vld [vmem:[#allocation4 + $0x28] sm:$0x8]
  %v7242 = vld [vmem:[#allocation4 + $0x30] sm:$0x8]
  %v7243 = vld [vmem:[#allocation4 + $0x38] sm:$0x8]
  %v7252 = vunpack.c.l.b16 %v7236
  %v7253 = vunpack.c.l.b16 %v7237
  %v7254 = vunpack.c.l.b16 %v7238
  %v7255 = vunpack.c.l.b16 %v7239
  %v7256 = vunpack.c.l.b16 %v7240
  %v7257 = vunpack.c.l.b16 %v7241
  %v7258 = vunpack.c.l.b16 %v7242
  %v7259 = vunpack.c.l.b16 %v7243
  %v7260 = vrot.slane %v7252, 6
  %v7261 = vrot.slane %v7253, 5
  %v7262 = vsel %vm6997, %v7261, %v7260
  %v7263 = vrot.slane %v7254, 4
  %v7264 = vsel %vm7000, %v7263, %v7262
  %v7265 = vrot.slane %v7255, 3
  %v7266 = vsel %vm7003, %v7265, %v7264
  %v7267 = vrot.slane %v7256, 2
  %v7268 = vsel %vm7006, %v7267, %v7266
  %v7269 = vrot.slane %v7257, 1
  %v7270 = vsel %vm7009, %v7269, %v7268
  %v7271 = vsel %vm7012, %v7258, %v7270
  %v7272 = vrot.slane %v7259, 7
  %v7273 = vsel %vm7015, %v7272, %v7271
  %v7274 = vpack.c.b16 %v7273, %v7273
  %7275 = vrot.lane.b32.xlu0 %v7274, 64
  %v7276 = vpop.permute.xlu0 %7275
  %7278 = vst.msk [vmem:[#allocation5 + $0x4] sm:$0xf] %vm7106, %v7276
  %v7279 = vld [vmem:[#allocation4] sm:$0x8]
  %v7280 = vld [vmem:[#allocation4 + $0x8] sm:$0x8]
  %v7281 = vld [vmem:[#allocation4 + $0x10] sm:$0x8]
  %v7282 = vld [vmem:[#allocation4 + $0x18] sm:$0x8]
  %v7283 = vld [vmem:[#allocation4 + $0x20] sm:$0x8]
  %v7284 = vld [vmem:[#allocation4 + $0x28] sm:$0x8]
  %v7285 = vld [vmem:[#allocation4 + $0x30] sm:$0x8]
  %v7286 = vld [vmem:[#allocation4 + $0x38] sm:$0x8]
  %v7295 = vunpack.c.l.b16 %v7279
  %v7296 = vunpack.c.l.b16 %v7280
  %v7297 = vunpack.c.l.b16 %v7281
  %v7298 = vunpack.c.l.b16 %v7282
  %v7299 = vunpack.c.l.b16 %v7283
  %v7300 = vunpack.c.l.b16 %v7284
  %v7301 = vunpack.c.l.b16 %v7285
  %v7302 = vunpack.c.l.b16 %v7286
  %v7303 = vrot.slane %v7295, 7
  %v7304 = vrot.slane %v7296, 6
  %v7305 = vsel %vm6997, %v7304, %v7303
  %v7306 = vrot.slane %v7297, 5
  %v7307 = vsel %vm7000, %v7306, %v7305
  %v7308 = vrot.slane %v7298, 4
  %v7309 = vsel %vm7003, %v7308, %v7307
  %v7310 = vrot.slane %v7299, 3
  %v7311 = vsel %vm7006, %v7310, %v7309
  %v7312 = vrot.slane %v7300, 2
  %v7313 = vsel %vm7009, %v7312, %v7311
  %v7314 = vrot.slane %v7301, 1
  %v7315 = vsel %vm7012, %v7314, %v7313
  %v7316 = vsel %vm7015, %v7302, %v7315
  %v7317 = vpack.c.b16 %v7316, %v7316
  %7318 = vrot.lane.b32.xlu0 %v7317, 96
  %v7319 = vpop.permute.xlu0 %7318
  %7321 = vst.msk [vmem:[#allocation5 + $0x4] sm:$0xf] %vm7150, %v7319
  %v7322 = vld [vmem:[#allocation4 + $0x4] sm:$0x1]
  %v7323 = vld [vmem:[#allocation4 + $0xc] sm:$0x1]
  %v7324 = vld [vmem:[#allocation4 + $0x14] sm:$0x1]
  %v7325 = vld [vmem:[#allocation4 + $0x1c] sm:$0x1]
  %v7326 = vld [vmem:[#allocation4 + $0x24] sm:$0x1]
  %v7327 = vld [vmem:[#allocation4 + $0x2c] sm:$0x1]
  %v7328 = vld [vmem:[#allocation4 + $0x34] sm:$0x1]
  %v7329 = vld [vmem:[#allocation4 + $0x3c] sm:$0x1]
  %v7338 = vunpack.c.l.b16 %v7322
  %v7339 = vunpack.c.l.b16 %v7323
  %v7340 = vunpack.c.l.b16 %v7324
  %v7341 = vunpack.c.l.b16 %v7325
  %v7342 = vunpack.c.l.b16 %v7326
  %v7343 = vunpack.c.l.b16 %v7327
  %v7344 = vunpack.c.l.b16 %v7328
  %v7345 = vunpack.c.l.b16 %v7329
  %v7346 = vrot.slane %v7339, 7
  %v7347 = vsel %vm6997, %v7346, %v7338
  %v7348 = vrot.slane %v7340, 6
  %v7349 = vsel %vm7000, %v7348, %v7347
  %v7350 = vrot.slane %v7341, 5
  %v7351 = vsel %vm7003, %v7350, %v7349
  %v7352 = vrot.slane %v7342, 4
  %v7353 = vsel %vm7006, %v7352, %v7351
  %v7354 = vrot.slane %v7343, 3
  %v7355 = vsel %vm7009, %v7354, %v7353
  %v7356 = vrot.slane %v7344, 2
  %v7357 = vsel %vm7012, %v7356, %v7355
  %v7358 = vrot.slane %v7345, 1
  %v7359 = vsel %vm7015, %v7358, %v7357
  %v7360 = vpack.c.b16 %v7359, %v7359
  %7362 = vst.msk [vmem:[#allocation5 + $0x8] sm:$0xf] %vm6955, %v7360
  %v7363 = vld [vmem:[%s1] sm:$0xff]
  %v7364 = vpack.c.bf16 %v7363, %v7363
  %v7366 = vunpack.c.l.b16 %v7364
  %v7367 = vpack.c.b16 %v7366, %v7366
  %7368 = vrot.lane.b32.xlu0 %v7367, 32
  %v7369 = vpop.permute.xlu0 %7368
  %vm7371 = vcmask 298240
  %7372 = vst.msk [vmem:[#allocation5 + $0x8] sm:$0xf] %vm7371, %v7369
  %v7373 = vld [vmem:[#allocation5] sm:$0xff]
  %v7374 = vld [vmem:[#allocation5 + $0x8] sm:$0xf]
  %v7375 = vld [vmem:[%s6] sm:$0xf]
  %v7376 = vld [vmem:[%s6 + $0x4] sm:$0xf]
  %v7377 = vld [vmem:[%s6 + $0x8] sm:$0xf]
  %v7378 = vld [vmem:[%s6 + $0xc] sm:$0xf]
  %v7379 = vld [vmem:[%s6 + $0x10] sm:$0xf]
  %v7380 = vld [vmem:[%s6 + $0x14] sm:$0xf]
  %v7381 = vld [vmem:[%s6 + $0x18] sm:$0xf]
  %v7382 = vld [vmem:[%s6 + $0x1c] sm:$0xf]
  %v7383 = vld [vmem:[%s6 + $0x20] sm:$0xf]
  %v7384 = vld [vmem:[%s6 + $0x24] sm:$0xf]
  %v7385 = vld [vmem:[%s6 + $0x28] sm:$0xf]
  %v7386 = vld [vmem:[%s6 + $0x2c] sm:$0xf]
  %v7387 = vld [vmem:[%s6 + $0x30] sm:$0xf]
  %v7388 = vld [vmem:[%s6 + $0x34] sm:$0xf]
  %v7389 = vld [vmem:[%s6 + $0x38] sm:$0xf]
  %v7390 = vld [vmem:[%s6 + $0x3c] sm:$0xf]
  %v7391 = vld [vmem:[%s6 + $0x40] sm:$0xf]
  %v7392 = vld [vmem:[%s6 + $0x44] sm:$0xf]
  %v7393 = vld [vmem:[%s6 + $0x48] sm:$0xf]
  %v7394 = vld [vmem:[%s6 + $0x4c] sm:$0xf]
  %v7395 = vld [vmem:[%s6 + $0x50] sm:$0xf]
  %v7396 = vld [vmem:[%s6 + $0x54] sm:$0xf]
  %v7397 = vld [vmem:[%s6 + $0x58] sm:$0xf]
  %v7398 = vld [vmem:[%s6 + $0x5c] sm:$0xf]
  %v7399 = vld [vmem:[%s6 + $0x60] sm:$0xf]
  %v7400 = vld [vmem:[%s6 + $0x64] sm:$0xf]
  %v7401 = vld [vmem:[%s6 + $0x68] sm:$0xf]
  %v7402 = vld [vmem:[%s6 + $0x6c] sm:$0xf]
  %v7403 = vld [vmem:[%s6 + $0x70] sm:$0xf]
  %v7404 = vld [vmem:[%s6 + $0x74] sm:$0xf]
  %v7405 = vld [vmem:[%s6 + $0x78] sm:$0xf]
  %v7406 = vld [vmem:[%s6 + $0x7c] sm:$0xf]
  %v7407 = vld [vmem:[%s6 + $0x80] sm:$0xf]
  %v7408 = vld [vmem:[%s6 + $0x84] sm:$0xf]
  %v7409 = vld [vmem:[%s6 + $0x88] sm:$0xf]
  %v7410 = vld [vmem:[%s6 + $0x8c] sm:$0xf]
  %v7411 = vld [vmem:[%s6 + $0x90] sm:$0x7]
  %v7412 = vld [vmem:[%s7] sm:$0x1]
  %v7414 = vlaneseq
  %v7415 = vshrl.u32 %v7414, 7
  %v7416 = vsub.s32 0, %v7415
  %v7417 = vrot.slane %v7412, %v7416
  %v7421 = vunpack.c.l.b16 %v7373
  %v7422 = vunpack.c.h.b16 %v7373
  %v7423 = vunpack.c.l.b16 %v7374
  %v7424 = vpack.c.b16 %v7421, %v7421
  %v7425 = vpack.c.b16 %v7422, %v7422
  %v7426 = vpack.c.b16 %v7423, %v7423
  %v7466 = vunpack.c.l.b16 %v7375
  %v7467 = vunpack.c.l.b16 %v7376
  %v7468 = vunpack.c.l.b16 %v7377
  %v7469 = vunpack.c.l.b16 %v7378
  %v7470 = vunpack.c.l.b16 %v7379
  %v7471 = vunpack.c.l.b16 %v7380
  %v7472 = vunpack.c.l.b16 %v7381
  %v7473 = vunpack.c.l.b16 %v7382
  %v7474 = vunpack.c.l.b16 %v7383
  %v7475 = vunpack.c.l.b16 %v7384
  %v7476 = vunpack.c.l.b16 %v7385
  %v7477 = vunpack.c.l.b16 %v7386
  %v7478 = vunpack.c.l.b16 %v7387
  %v7479 = vunpack.c.l.b16 %v7388
  %v7480 = vunpack.c.l.b16 %v7389
  %v7481 = vunpack.c.l.b16 %v7390
  %v7482 = vunpack.c.l.b16 %v7391
  %v7483 = vunpack.c.l.b16 %v7392
  %v7484 = vunpack.c.l.b16 %v7393
  %v7485 = vunpack.c.l.b16 %v7394
  %v7486 = vunpack.c.l.b16 %v7395
  %v7487 = vunpack.c.l.b16 %v7396
  %v7488 = vunpack.c.l.b16 %v7397
  %v7489 = vunpack.c.l.b16 %v7398
  %v7490 = vunpack.c.l.b16 %v7399
  %v7491 = vunpack.c.l.b16 %v7400
  %v7492 = vunpack.c.l.b16 %v7401
  %v7493 = vunpack.c.l.b16 %v7402
  %v7494 = vunpack.c.l.b16 %v7403
  %v7495 = vunpack.c.l.b16 %v7404
  %v7496 = vunpack.c.l.b16 %v7405
  %v7497 = vunpack.c.l.b16 %v7406
  %v7498 = vunpack.c.l.b16 %v7407
  %v7499 = vunpack.c.l.b16 %v7408
  %v7500 = vunpack.c.l.b16 %v7409
  %v7501 = vunpack.c.l.b16 %v7410
  %v7502 = vunpack.c.l.b16 %v7411
  %v7503 = vpack.c.b16 %v7467, %v7466
  %v7504 = vpack.c.b16 %v7469, %v7468
  %v7505 = vpack.c.b16 %v7471, %v7470
  %v7506 = vpack.c.b16 %v7473, %v7472
  %v7507 = vpack.c.b16 %v7475, %v7474
  %v7508 = vpack.c.b16 %v7477, %v7476
  %v7509 = vpack.c.b16 %v7479, %v7478
  %v7510 = vpack.c.b16 %v7481, %v7480
  %v7511 = vpack.c.b16 %v7483, %v7482
  %v7512 = vpack.c.b16 %v7485, %v7484
  %v7513 = vpack.c.b16 %v7487, %v7486
  %v7514 = vpack.c.b16 %v7489, %v7488
  %v7515 = vpack.c.b16 %v7491, %v7490
  %v7516 = vpack.c.b16 %v7493, %v7492
  %v7517 = vpack.c.b16 %v7495, %v7494
  %v7518 = vpack.c.b16 %v7497, %v7496
  %v7519 = vpack.c.b16 %v7499, %v7498
  %v7520 = vpack.c.b16 %v7501, %v7500
  %v7521 = vpack.c.b16 %v7502, %v7502
  %vm7540 = vcmask 302080
  %v7542 = vsel %vm7540, %v7426, 0
  %vm7544 = vcmask 1041408
  %vm7545 = vcmask 1042432
  %v7546 = vsel %vm7544, 4294967295, 65535
  %v7547 = vsel %vm7545, %v7546, 0
  %v7549 = vand.u32 %v7521, %v7547
  %7551 = vmatprep.subr.bf16.mxu0 0
  %7552 = vmatpush1.bf16.msra.mxu0 %v7510
  %7553 = vmatprep.subr.bf16.mxu0 0
  %7554 = vmatpush1.bf16.msra.mxu0 %v7509
  %7555 = vmatprep.subr.bf16.mxu0 0
  %7556 = vmatpush1.bf16.msra.mxu0 %v7508
  %7557 = vmatprep.subr.bf16.mxu0 0
  %7558 = vmatpush1.bf16.msra.mxu0 %v7507
  %7559 = vmatprep.subr.bf16.mxu0 0
  %7560 = vmatpush1.bf16.msra.mxu0 %v7506
  %7561 = vmatprep.subr.bf16.mxu0 0
  %7562 = vmatpush1.bf16.msra.mxu0 %v7505
  %7563 = vmatprep.subr.bf16.mxu0 0
  %7564 = vmatpush1.bf16.msra.mxu0 %v7504
  %7565 = vmatprep.subr.bf16.mxu0 0
  %7566 = vmatpush1.bf16.msra.mxu0 %v7503
  %7567 = vmatprep.subr.bf16.mxu0 0
  %7568 = vmatpush2.bf16.msra.mxu0 %v7518
  %7569 = vmatprep.subr.bf16.mxu0 0
  %7570 = vmatpush2.bf16.msra.mxu0 %v7517
  %7571 = vmatprep.subr.bf16.mxu0 0
  %7572 = vmatpush2.bf16.msra.mxu0 %v7516
  %7573 = vmatprep.subr.bf16.mxu0 0
  %7574 = vmatpush2.bf16.msra.mxu0 %v7515
  %7575 = vmatprep.subr.bf16.mxu0 0
  %7576 = vmatpush2.bf16.msra.mxu0 %v7514
  %7577 = vmatprep.subr.bf16.mxu0 0
  %7578 = vmatpush2.bf16.msra.mxu0 %v7513
  %7579 = vmatprep.subr.bf16.mxu0 0
  %7580 = vmatpush2.bf16.msra.mxu0 %v7512
  %7581 = vmatprep.subr.bf16.mxu0 0
  %7582 = vmatpush2.bf16.msra.mxu0 %v7511
  %7583 = vmatprep.mubr.bf16.mxu0 %v7425
  %7584 = vmatmul.mubr.bf16.gmra.mxu0 %v7424
  %v7585 = vpop.f32.mrf.mxu0
  %v7586 = vadd.f32 %v7417, %v7585
  %v7587 = vpop.f32.mrf.mxu0
  %v7588 = vpop.f32.mrf.mxu0
  %v7589 = vpop.f32.mrf.mxu0
  %7590 = vdwg.mxu0
  %7591 = vmatprep.subr.bf16.mxu0 0
  %7592 = vmatpush1.bf16.msra.mxu0 0
  %7593 = vmatprep.subr.bf16.mxu0 0
  %7594 = vmatpush1.bf16.msra.mxu0 0
  %7595 = vmatprep.subr.bf16.mxu0 0
  %7596 = vmatpush1.bf16.msra.mxu0 0
  %7597 = vmatprep.subr.bf16.mxu0 0
  %7598 = vmatpush1.bf16.msra.mxu0 0
  %7599 = vmatprep.subr.bf16.mxu0 0
  %7600 = vmatpush1.bf16.msra.mxu0 0
  %7601 = vmatprep.subr.bf16.mxu0 0
  %7602 = vmatpush1.bf16.msra.mxu0 %v7549
  %7603 = vmatprep.subr.bf16.mxu0 0
  %7604 = vmatpush1.bf16.msra.mxu0 %v7520
  %7605 = vmatprep.subr.bf16.mxu0 0
  %7606 = vmatpush1.bf16.msra.mxu0 %v7519
  %7607 = vmatprep.subr.bf16.mxu0 0
  %7608 = vmatpush2.bf16.msra.mxu0 0
  %7609 = vmatprep.subr.bf16.mxu0 0
  %7610 = vmatpush2.bf16.msra.mxu0 0
  %7611 = vmatprep.subr.bf16.mxu0 0
  %7612 = vmatpush2.bf16.msra.mxu0 0
  %7613 = vmatprep.subr.bf16.mxu0 0
  %7614 = vmatpush2.bf16.msra.mxu0 0
  %7615 = vmatprep.subr.bf16.mxu0 0
  %7616 = vmatpush2.bf16.msra.mxu0 0
  %7617 = vmatprep.subr.bf16.mxu0 0
  %7618 = vmatpush2.bf16.msra.mxu0 0
  %7619 = vmatprep.subr.bf16.mxu0 0
  %7620 = vmatpush2.bf16.msra.mxu0 0
  %7621 = vmatprep.subr.bf16.mxu0 0
  %7622 = vmatpush2.bf16.msra.mxu0 0
  %7623 = vmatprep.mubr.bf16.mxu0 0
  %7624 = vmatmul.mubr.bf16.gmra.mxu0 %v7542
  %v7625 = vpop.f32.mrf.mxu0
  %v7626 = vadd.f32 %v7586, %v7625
  %v7627 = vpop.f32.mrf.mxu0
  %v7628 = vpop.f32.mrf.mxu0
  %v7629 = vpop.f32.mrf.mxu0
  %7630 = vdwg.mxu0
  %v7631 = vmax.f32 %v7626, 0.0
  %v7632 = vpack.c.bf16 %v7631, %v7631
  %v7633 = vld [vmem:[%s8] sm:$0xf]
  %v7634 = vld [vmem:[%s8 + $0x4] sm:$0xf]
  %v7635 = vld [vmem:[%s8 + $0x8] sm:$0xf]
  %v7636 = vld [vmem:[%s8 + $0xc] sm:$0xf]
  %v7637 = vld [vmem:[%s8 + $0x10] sm:$0xf]
  %v7638 = vld [vmem:[%s8 + $0x14] sm:$0xf]
  %v7639 = vld [vmem:[%s8 + $0x18] sm:$0xf]
  %v7640 = vld [vmem:[%s8 + $0x1c] sm:$0xf]
  %v7641 = vld [vmem:[%s8 + $0x20] sm:$0xf]
  %v7642 = vld [vmem:[%s8 + $0x24] sm:$0xf]
  %v7643 = vld [vmem:[%s8 + $0x28] sm:$0xf]
  %v7644 = vld [vmem:[%s8 + $0x2c] sm:$0xf]
  %v7645 = vld [vmem:[%s8 + $0x30] sm:$0xf]
  %v7646 = vld [vmem:[%s8 + $0x34] sm:$0xf]
  %v7647 = vld [vmem:[%s8 + $0x38] sm:$0xf]
  %v7648 = vld [vmem:[%s8 + $0x3c] sm:$0xf]
  %v7649 = vld [vmem:[%s9] sm:$0x1]
  %v7651 = vlaneseq
  %v7652 = vshrl.u32 %v7651, 7
  %v7653 = vsub.s32 0, %v7652
  %v7654 = vrot.slane %v7649, %v7653
  %v7672 = vunpack.c.l.b16 %v7633
  %v7673 = vunpack.c.l.b16 %v7634
  %v7674 = vunpack.c.l.b16 %v7635
  %v7675 = vunpack.c.l.b16 %v7636
  %v7676 = vunpack.c.l.b16 %v7637
  %v7677 = vunpack.c.l.b16 %v7638
  %v7678 = vunpack.c.l.b16 %v7639
  %v7679 = vunpack.c.l.b16 %v7640
  %v7680 = vunpack.c.l.b16 %v7641
  %v7681 = vunpack.c.l.b16 %v7642
  %v7682 = vunpack.c.l.b16 %v7643
  %v7683 = vunpack.c.l.b16 %v7644
  %v7684 = vunpack.c.l.b16 %v7645
  %v7685 = vunpack.c.l.b16 %v7646
  %v7686 = vunpack.c.l.b16 %v7647
  %v7687 = vunpack.c.l.b16 %v7648
  %v7688 = vpack.c.b16 %v7673, %v7672
  %v7689 = vpack.c.b16 %v7675, %v7674
  %v7690 = vpack.c.b16 %v7677, %v7676
  %v7691 = vpack.c.b16 %v7679, %v7678
  %v7692 = vpack.c.b16 %v7681, %v7680
  %v7693 = vpack.c.b16 %v7683, %v7682
  %v7694 = vpack.c.b16 %v7685, %v7684
  %v7695 = vpack.c.b16 %v7687, %v7686
  %7704 = vmatprep.subr.bf16.mxu0 0
  %7705 = vmatpush1.bf16.msra.mxu0 %v7695
  %7706 = vmatprep.subr.bf16.mxu0 0
  %7707 = vmatpush1.bf16.msra.mxu0 %v7694
  %7708 = vmatprep.subr.bf16.mxu0 0
  %7709 = vmatpush1.bf16.msra.mxu0 %v7693
  %7710 = vmatprep.subr.bf16.mxu0 0
  %7711 = vmatpush1.bf16.msra.mxu0 %v7692
  %7712 = vmatprep.subr.bf16.mxu0 0
  %7713 = vmatpush1.bf16.msra.mxu0 %v7691
  %7714 = vmatprep.subr.bf16.mxu0 0
  %7715 = vmatpush1.bf16.msra.mxu0 %v7690
  %7716 = vmatprep.subr.bf16.mxu0 0
  %7717 = vmatpush1.bf16.msra.mxu0 %v7689
  %7718 = vmatprep.subr.bf16.mxu0 0
  %7719 = vmatpush1.bf16.msra.mxu0 %v7688
  %7720 = vmatprep.subr.bf16.mxu0 0
  %7721 = vmatpush2.bf16.msra.mxu0 0
  %7722 = vmatprep.subr.bf16.mxu0 0
  %7723 = vmatpush2.bf16.msra.mxu0 0
  %7724 = vmatprep.subr.bf16.mxu0 0
  %7725 = vmatpush2.bf16.msra.mxu0 0
  %7726 = vmatprep.subr.bf16.mxu0 0
  %7727 = vmatpush2.bf16.msra.mxu0 0
  %7728 = vmatprep.subr.bf16.mxu0 0
  %7729 = vmatpush2.bf16.msra.mxu0 0
  %7730 = vmatprep.subr.bf16.mxu0 0
  %7731 = vmatpush2.bf16.msra.mxu0 0
  %7732 = vmatprep.subr.bf16.mxu0 0
  %7733 = vmatpush2.bf16.msra.mxu0 0
  %7734 = vmatprep.subr.bf16.mxu0 0
  %7735 = vmatpush2.bf16.msra.mxu0 0
  %7736 = vmatprep.mubr.bf16.mxu0 0
  %7737 = vmatmul.mubr.bf16.gmra.mxu0 %v7632
  %v7738 = vpop.f32.mrf.mxu0
  %v7739 = vadd.f32 %v7654, %v7738
  %v7740 = vpop.f32.mrf.mxu0
  %v7741 = vpop.f32.mrf.mxu0
  %v7742 = vpop.f32.mrf.mxu0
  %7743 = vdwg.mxu0
  %7744 = vst [vmem:[%s10] sm:$0xff] %v7739
  // Predicated region
  $region42: #{task_conditioned_forward.1} parent=0 // pred_check
    _
  $region43: #{task_conditioned_forward.1} parent=0 // pred_check_branch
    %7746 = sbr.rel (0) target = $region45
  $region44: #{task_conditioned_forward.1} parent=0 // pred_region
    _
  $region45: #{task_conditioned_forward.1} parent=0 // pred_fallthru
    _
  // Predicated region
  $region46: #{task_conditioned_forward.1} parent=0 // pred_check
    _
  $region47: #{task_conditioned_forward.1} parent=0 // pred_check_branch
    %7748 = sbr.rel (0) target = $region49
  $region48: #{task_conditioned_forward.1} parent=0 // pred_region
    _
  $region49: #{task_conditioned_forward.1} parent=0 // pred_fallthru
    _

</llo_original>
